<compile_context>
chip_gen: v6e
topology: v6e:2x2x1
jax: 0.10.0
libtpu: 0.0.40
codegen_flags: <defaults>
</compile_context>

<pallas_src>
import math

import jax
import jax.numpy as jnp
from jax import lax
from jax.experimental import pallas as pl
from jax.experimental.pallas import tpu as pltpu

D = 400        # token_emb_dim == news_dim (hard-coded in the module)
H = 4          # cfg.model.head_num
DH = 100       # cfg.model.head_dim  (H * DH == 400)
DHP = 128      # per-head padded width (lane aligned)
DP = H * DHP   # 512: padded feature width used inside the kernel
ATT_HID = 128  # cfg.model.attention_hidden_dim
LN_EPS = 1e-5
EPS = 1e-8


def key_entity_attention_kernel(
    x_ref, mrow_ref, mcol_ref, bd_ref, sel_ref,
    wq_ref, bq_ref, wk_ref, bk_ref, wv_ref, bv_ref,
    g1_ref, be1_ref,
    wp1_ref, bp1_ref, wp2_ref, bp2_ref,
    g2_ref, be2_ref,
    out_ref,
    q_s, k_s, v_s, ctx_s,
):
    # dropout layers of the module are identity in eval mode.
    scale = 1.0 / math.sqrt(DH)

    # ---- Q/K/V projections into the padded-head layout (bf16 MXU, f32 acc) ----
    xb = x_ref[...].astype(jnp.bfloat16)                                   # (TBL, D)
    # 1/sqrt(DH) folded into q.  Pad columns are exactly zero (zero weight cols
    # + zero bias), so everything downstream is exact in the padded space.
    q_s[...] = ((jnp.dot(xb, wq_ref[...], preferred_element_type=jnp.float32)
                 + bq_ref[...]) * scale).astype(jnp.bfloat16)
    k_s[...] = (jnp.dot(xb, wk_ref[...], preferred_element_type=jnp.float32)
                + bk_ref[...]).astype(jnp.bfloat16)
    v_s[...] = (jnp.dot(xb, wv_ref[...], preferred_element_type=jnp.float32)
                + bv_ref[...]).astype(jnp.bfloat16)

    # Block-diagonal (same batch element) AND key-validity mask over the row slab.
    amask = bd_ref[...] * mrow_ref[0]                                      # (TBL, TBL)
    dn_qkT = (((1,), (1,)), ((), ()))                                      # A @ B^T

    # ---- MultiHeadAttention ---------------------------------------------------
    # Per head: lane-aligned static 128-wide slices (contraction is 128, not 400),
    # result written directly into this head's 128-column slot of ctx (no zero
    # init, no read-modify-write accumulation).  The A@B^T operands are only
    # (128,128) bf16 tiles, so any RHS transpose the lowering emits is cheap.
    for h in range(H):
        sl = slice(h * DHP, (h + 1) * DHP)
        qh = q_s[:, sl]                                                    # (TBL, 128) bf16
        kh = k_s[:, sl]
        s = lax.dot_general(qh, kh, dn_qkT, preferred_element_type=jnp.float32)
        # NOTE: exp() without max-subtraction matches the reference
        # "exp-mask-normalize" semantics; assumes scores do not overflow
        # (same assumption as the module).
        p = jnp.exp(s) * amask
        attn = p * pl.reciprocal(jnp.sum(p, axis=-1, keepdims=True) + EPS,
                                 approx=True)
        ctx_s[:, sl] = jnp.dot(attn.astype(jnp.bfloat16), v_s[:, sl],
                               preferred_element_type=jnp.float32)

    # ---- LayerNorm 1 (single-pass stats; pad columns are 0 so /D is exact) ----
    ctx = ctx_s[...]                                                       # (TBL, DP) f32
    ssum = jnp.sum(ctx, axis=-1, keepdims=True)
    ssq = jnp.sum(ctx * ctx, axis=-1, keepdims=True)
    mu = ssum * (1.0 / D)
    var = jnp.maximum(ssq * (1.0 / D) - mu * mu, 0.0)
    # g1/be1 are zero in the pad columns -> h1 pad columns stay exactly 0.
    ctx_s[...] = (ctx - mu) * lax.rsqrt(var + LN_EPS) * g1_ref[...] + be1_ref[...]

    # ---- AttentionPooling -------------------------------------------------------
    h1 = ctx_s[...]
    e = jnp.tanh(jnp.dot(h1.astype(jnp.bfloat16), wp1_ref[...],
                         preferred_element_type=jnp.float32) + bp1_ref[...])  # (TBL, HID)
    # fc2 has N=1: VPU multiply + lane reduction instead of a wasted MXU pass.
    logit = jnp.sum(e * wp2_ref[...], axis=-1, keepdims=True) + bp2_ref[...]  # (TBL, 1)
    a = jnp.exp(logit) * mcol_ref[...]

    sel = sel_ref[...]                                                     # (TB, TBL)
    num = jnp.dot(sel, a * h1, preferred_element_type=jnp.float32)         # (TB, DP)
    den = jnp.dot(sel, a, preferred_element_type=jnp.float32)              # (TB, 1)
    pooled = num * pl.reciprocal(den + EPS, approx=True)

    # ---- LayerNorm 2 (same zero-pad trick, single-pass stats) -------------------
    ssum2 = jnp.sum(pooled, axis=-1, keepdims=True)
    ssq2 = jnp.sum(pooled * pooled, axis=-1, keepdims=True)
    mu2 = ssum2 * (1.0 / D)
    var2 = jnp.maximum(ssq2 * (1.0 / D) - mu2 * mu2, 0.0)
    out_ref[...] = (pooled - mu2) * lax.rsqrt(var2 + LN_EPS) * g2_ref[...] + be2_ref[...]


def _pad_head_cols(w):
    """Zero-pad the last (H*DH) axis per head to H*DHP (lane-aligned head slots)."""
    lead = w.shape[:-1]
    w = w.reshape(*lead, H, DH)
    pad = [(0, 0)] * (w.ndim - 1) + [(0, DHP - DH)]
    return jnp.pad(w, pad).reshape(*lead, H * DHP)


def _pad_head_rows(w):
    """Zero-pad the first (H*DH) axis per head to H*DHP (for wp1)."""
    tail = w.shape[1:]
    w = w.reshape(H, DH, *tail)
    pad = [(0, 0), (0, DHP - DH)] + [(0, 0)] * len(tail)
    return jnp.pad(w, pad).reshape(H * DHP, *tail)


def _const_spec(w):
    # Constant index_map -> Pallas keeps one resident copy, no per-step re-DMA.
    return pl.BlockSpec(w.shape, lambda g, z=(0,) * w.ndim: z)


def key_entity_attention(x, mask, params):
    """x: (B, L, D) f32, mask: (B, L) float 0/1 -> (B, D) f32."""
    B, L, d = x.shape
    assert d == D
    p = params

    # Batch tile: ~128 rows per grid step, TB a multiple of 8 (sublane-aligned
    # output block).  Grid rounded up to a multiple of 2 so both v7x TensorCores
    # get work under dimension_semantics=("parallel",).
    tb = max(8, (max(1, 128 // L) // 8) * 8)
    grid_n = -(-B // tb)
    grid_n = grid_n + (grid_n % 2)
    bp = grid_n * tb
    if bp != B:
        x = jnp.pad(x, ((0, bp - B), (0, 0), (0, 0)))
        mask = jnp.pad(mask, ((0, bp - B), (0, 0)))
    tbl = tb * L

    # x stays f32 in HBM; the bf16 cast for the MXU happens inside the kernel.
    x_flat = x.reshape(bp * L, D)
    mask_f = mask.astype(jnp.float32)
    mrow = mask_f.reshape(grid_n, 1, tbl)                # key-validity mask (row form)
    mcol = mask_f.reshape(bp * L, 1)                     # token mask for pooling

    # Tiny constant helper matrices (avoid in-kernel integer division / relayouts).
    seg = jnp.repeat(jnp.arange(tb), L)
    bdiag = (seg[:, None] == seg[None, :]).astype(jnp.float32)             # (TBL, TBL)
    sel = (jnp.arange(tb)[:, None] == seg[None, :]).astype(jnp.float32)    # (TB, TBL)

    # Padded-head weight layout: head h occupies columns [h*128, h*128+100) of a
    # 512-wide projection; pad columns / rows are zero so the padded pipeline is
    # exact (see kernel comments).
    weight_args = (
        _pad_head_cols(p["wq"]).astype(jnp.bfloat16), _pad_head_cols(p["bq"].reshape(1, D)),
        _pad_head_cols(p["wk"]).astype(jnp.bfloat16), _pad_head_cols(p["bk"].reshape(1, D)),
        _pad_head_cols(p["wv"]).astype(jnp.bfloat16), _pad_head_cols(p["bv"].reshape(1, D)),
        _pad_head_cols(p["g1"]), _pad_head_cols(p["be1"]),
        _pad_head_rows(p["wp1"]).astype(jnp.bfloat16), p["bp1"],
        p["wp2"].reshape(1, ATT_HID), p["bp2"].reshape(1, 1),
        _pad_head_cols(p["g2"]), _pad_head_cols(p["be2"]),
    )

    in_specs = [
        pl.BlockSpec((tbl, D), lambda g: (g, 0)),
        pl.BlockSpec((1, 1, tbl), lambda g: (g, 0, 0)),
        pl.BlockSpec((tbl, 1), lambda g: (g, 0)),
        _const_spec(bdiag),
        _const_spec(sel),
    ] + [_const_spec(w) for w in weight_args]

    out_pad = pl.pallas_call(
        key_entity_attention_kernel,
        out_shape=jax.ShapeDtypeStruct((bp, DP), jnp.float32),
        grid=(grid_n,),
        in_specs=in_specs,
        out_specs=pl.BlockSpec((tb, DP), lambda g: (g, 0)),
        scratch_shapes=[
            pltpu.VMEM((tbl, DP), jnp.bfloat16),   # q (pre-scaled, bf16 MXU operand)
            pltpu.VMEM((tbl, DP), jnp.bfloat16),   # k
            pltpu.VMEM((tbl, DP), jnp.bfloat16),   # v
            pltpu.VMEM((tbl, DP), jnp.float32),    # ctx / h1
        ],
        compiler_params=pltpu.CompilerParams(dimension_semantics=("parallel",)),
    )(x_flat, mrow, mcol, bdiag, sel, *weight_args)

    # Cheap un-pad of the tiny (B, 512) result back to the packed (B, 400) layout.
    return out_pad[:B].reshape(B, H, DHP)[:, :, :DH].reshape(B, D)


def reference(x, mask, p):
    """Pure-JAX f32 mirror of the torch forward (eval mode)."""
    B, L, _ = x.shape
    q = x @ p["wq"] + p["bq"]
    k = x @ p["wk"] + p["bk"]
    v = x @ p["wv"] + p["bv"]

    def split(t):  # (B, L, H*DH) -> (B, H, L, DH)
        return t.reshape(B, L, H, DH).transpose(0, 2, 1, 3)

    qh, kh, vh = split(q), split(k), split(v)
    scores = jnp.einsum("bhqd,bhkd->bhqk", qh, kh) / math.sqrt(DH)
    scores = jnp.exp(scores) * mask[:, None, None, :]
    attn = scores / (jnp.sum(scores, axis=-1, keepdims=True) + EPS)
    ctx = jnp.einsum("bhqk,bhkd->bhqd", attn, vh)
    ctx = ctx.transpose(0, 2, 1, 3).reshape(B, L, D)

    def ln(t, g, b):
        mu = jnp.mean(t, axis=-1, keepdims=True)
        var = jnp.mean((t - mu) ** 2, axis=-1, keepdims=True)
        return (t - mu) * lax.rsqrt(var + LN_EPS) * g + b

    h1 = ln(ctx, p["g1"], p["be1"])
    e = jnp.tanh(h1 @ p["wp1"] + p["bp1"])
    a = e @ p["wp2"] + p["bp2"]
    a = jnp.exp(a) * mask[:, :, None]
    a = a / (jnp.sum(a, axis=1, keepdims=True) + EPS)
    pooled = jnp.sum(a * h1, axis=1)
    return ln(pooled, p["g2"], p["be2"])


def make_params(key):
    ks = jax.random.split(key, 10)
    s = 0.05
    return {
        "wq": jax.random.normal(ks[0], (D, D), jnp.float32) * s,
        "bq": jax.random.normal(ks[1], (D,), jnp.float32) * s,
        "wk": jax.random.normal(ks[2], (D, D), jnp.float32) * s,
        "bk": jax.random.normal(ks[3], (D,), jnp.float32) * s,
        "wv": jax.random.normal(ks[4], (D, D), jnp.float32) * s,
        "bv": jax.random.normal(ks[5], (D,), jnp.float32) * s,
        "g1": jnp.ones((1, D), jnp.float32),
        "be1": jnp.zeros((1, D), jnp.float32),
        "wp1": jax.random.normal(ks[6], (D, ATT_HID), jnp.float32) * s,
        "bp1": jax.random.normal(ks[7], (1, ATT_HID), jnp.float32) * s,
        "wp2": jax.random.normal(ks[8], (ATT_HID, 1), jnp.float32) * s,
        "bp2": jax.random.normal(ks[9], (1, 1), jnp.float32) * s,
        "g2": jnp.ones((1, D), jnp.float32),
        "be2": jnp.zeros((1, D), jnp.float32),
    }


if __name__ == "__main__":
    B, L = 32, 8   # 32 batch elements -> 2 grid steps of 16 (exercises batch tiling)
    key = jax.random.PRNGKey(0)
    kx, kl, kp = jax.random.split(key, 3)

    x = jax.random.normal(kx, (B, L, D), jnp.float32)
    lengths = jax.random.randint(kl, (B,), 1, L + 1)
    mask = (jnp.arange(L)[None, :] < lengths[:, None]).astype(jnp.float32)  # (B, L)
    params = make_params(kp)

    out = jax.block_until_ready(key_entity_attention(x, mask, params))
    ref = reference(x, mask, params)

    assert out.shape == (B, D)
    assert bool(jnp.all(jnp.isfinite(out)))
    # bf16 MXU operands vs f32 reference; outputs are LayerNorm-scaled
    # (unit variance), so 5e-2 absolute is ~5% of output std — far below any
    # structural error, yet robust to bf16 rounding noise.
    assert bool(jnp.allclose(out, ref, atol=5e-2, rtol=5e-2)), (
        float(jnp.max(jnp.abs(out - ref))))
    print("KERNEL_OK")
</pallas_src>

<mosaic_0001>
module attributes {stable_mosaic.version = 11 : i64} {
  func.func @key_entity_attention_kernel(%arg0: i32, %arg1: memref<128x400xf32, #tpu.memory_space<vmem>>, %arg2: memref<1x1x128xf32, #tpu.memory_space<vmem>>, %arg3: memref<128x1xf32, #tpu.memory_space<vmem>>, %arg4: memref<128x128xf32, #tpu.memory_space<vmem>>, %arg5: memref<16x128xf32, #tpu.memory_space<vmem>>, %arg6: memref<400x512xbf16, #tpu.memory_space<vmem>>, %arg7: memref<1x512xf32, #tpu.memory_space<vmem>>, %arg8: memref<400x512xbf16, #tpu.memory_space<vmem>>, %arg9: memref<1x512xf32, #tpu.memory_space<vmem>>, %arg10: memref<400x512xbf16, #tpu.memory_space<vmem>>, %arg11: memref<1x512xf32, #tpu.memory_space<vmem>>, %arg12: memref<1x512xf32, #tpu.memory_space<vmem>>, %arg13: memref<1x512xf32, #tpu.memory_space<vmem>>, %arg14: memref<512x128xbf16, #tpu.memory_space<vmem>>, %arg15: memref<1x128xf32, #tpu.memory_space<vmem>>, %arg16: memref<1x128xf32, #tpu.memory_space<vmem>>, %arg17: memref<1x1xf32, #tpu.memory_space<vmem>>, %arg18: memref<1x512xf32, #tpu.memory_space<vmem>>, %arg19: memref<1x512xf32, #tpu.memory_space<vmem>>, %arg20: memref<16x512xf32, #tpu.memory_space<vmem>>, %arg21: memref<128x512xbf16, #tpu.memory_space<vmem>>, %arg22: memref<128x512xbf16, #tpu.memory_space<vmem>>, %arg23: memref<128x512xbf16, #tpu.memory_space<vmem>>, %arg24: memref<128x512xf32, #tpu.memory_space<vmem>>) attributes {dimension_semantics = [#tpu.dimension_semantics<parallel>], iteration_bounds = array<i64: 2>, scalar_prefetch = 0 : i64, scratch_operands = 4 : i64, tpu.core_type = #tpu.core_type<tc>, window_params = [{transform_indices = @transform_0, window_bounds = array<i64: 128, 400>}, {transform_indices = @transform_1, window_bounds = array<i64: 1, 1, 128>}, {transform_indices = @transform_2, window_bounds = array<i64: 128, 1>}, {pipeline_mode = #tpu.pipeline_mode<synchronous>, transform_indices = @transform_3, window_bounds = array<i64: 128, 128>}, {pipeline_mode = #tpu.pipeline_mode<synchronous>, transform_indices = @transform_4, window_bounds = array<i64: 16, 128>}, {pipeline_mode = #tpu.pipeline_mode<synchronous>, transform_indices = @transform_5, window_bounds = array<i64: 400, 512>}, {pipeline_mode = #tpu.pipeline_mode<synchronous>, transform_indices = @transform_6, window_bounds = array<i64: 1, 512>}, {pipeline_mode = #tpu.pipeline_mode<synchronous>, transform_indices = @transform_7, window_bounds = array<i64: 400, 512>}, {pipeline_mode = #tpu.pipeline_mode<synchronous>, transform_indices = @transform_8, window_bounds = array<i64: 1, 512>}, {pipeline_mode = #tpu.pipeline_mode<synchronous>, transform_indices = @transform_9, window_bounds = array<i64: 400, 512>}, {pipeline_mode = #tpu.pipeline_mode<synchronous>, transform_indices = @transform_10, window_bounds = array<i64: 1, 512>}, {pipeline_mode = #tpu.pipeline_mode<synchronous>, transform_indices = @transform_11, window_bounds = array<i64: 1, 512>}, {pipeline_mode = #tpu.pipeline_mode<synchronous>, transform_indices = @transform_12, window_bounds = array<i64: 1, 512>}, {pipeline_mode = #tpu.pipeline_mode<synchronous>, transform_indices = @transform_13, window_bounds = array<i64: 512, 128>}, {pipeline_mode = #tpu.pipeline_mode<synchronous>, transform_indices = @transform_14, window_bounds = array<i64: 1, 128>}, {pipeline_mode = #tpu.pipeline_mode<synchronous>, transform_indices = @transform_15, window_bounds = array<i64: 1, 128>}, {pipeline_mode = #tpu.pipeline_mode<synchronous>, transform_indices = @transform_16, window_bounds = array<i64: 1, 1>}, {pipeline_mode = #tpu.pipeline_mode<synchronous>, transform_indices = @transform_17, window_bounds = array<i64: 1, 512>}, {pipeline_mode = #tpu.pipeline_mode<synchronous>, transform_indices = @transform_18, window_bounds = array<i64: 1, 512>}, {transform_indices = @transform_19, window_bounds = array<i64: 16, 512>}]} {
    %c0 = arith.constant 0 : index
    %c0_0 = arith.constant 0 : index
    %0 = vector.load %arg1[%c0, %c0_0] : memref<128x400xf32, #tpu.memory_space<vmem>>, vector<128x400xf32>
    %1 = arith.truncf %0 : vector<128x400xf32> to vector<128x400xbf16>
    %c0_1 = arith.constant 0 : index
    %c0_2 = arith.constant 0 : index
    %2 = vector.load %arg6[%c0_1, %c0_2] : memref<400x512xbf16, #tpu.memory_space<vmem>>, vector<400x512xbf16>
    %cst = arith.constant dense<0.000000e+00> : vector<128x512xf32>
    %3 = tpu.matmul %1, %2, %cst {dimension_numbers = #tpu.dot_dimension_numbers<[1], [0], [0], [1], [0, 0, 1, 1], [], []>} : vector<128x400xbf16>, vector<400x512xbf16>, vector<128x512xf32> -> vector<128x512xf32>
    %c0_3 = arith.constant 0 : index
    %c0_4 = arith.constant 0 : index
    %4 = vector.load %arg7[%c0_3, %c0_4] : memref<1x512xf32, #tpu.memory_space<vmem>>, vector<1x512xf32>
    %5 = vector.broadcast %4 : vector<1x512xf32> to vector<128x512xf32>
    %6 = arith.addf %3, %5 : vector<128x512xf32>
    %cst_5 = arith.constant 1.000000e-01 : f32
    %7 = vector.broadcast %cst_5 : f32 to vector<128x512xf32>
    %8 = arith.mulf %6, %7 : vector<128x512xf32>
    %9 = arith.truncf %8 : vector<128x512xf32> to vector<128x512xbf16>
    %c0_6 = arith.constant 0 : index
    %c0_7 = arith.constant 0 : index
    %10 = vector.load %arg21[%c0_6, %c0_7] : memref<128x512xbf16, #tpu.memory_space<vmem>>, vector<128x512xbf16>
    tpu.vector_store %arg21[%c0_6, %c0_7], %9 {strides = array<i32>} : memref<128x512xbf16, #tpu.memory_space<vmem>>, vector<128x512xbf16>,
    %c0_8 = arith.constant 0 : index
    %c0_9 = arith.constant 0 : index
    %11 = vector.load %arg8[%c0_8, %c0_9] : memref<400x512xbf16, #tpu.memory_space<vmem>>, vector<400x512xbf16>
    %cst_10 = arith.constant dense<0.000000e+00> : vector<128x512xf32>
    %12 = tpu.matmul %1, %11, %cst_10 {dimension_numbers = #tpu.dot_dimension_numbers<[1], [0], [0], [1], [0, 0, 1, 1], [], []>} : vector<128x400xbf16>, vector<400x512xbf16>, vector<128x512xf32> -> vector<128x512xf32>
    %c0_11 = arith.constant 0 : index
    %c0_12 = arith.constant 0 : index
    %13 = vector.load %arg9[%c0_11, %c0_12] : memref<1x512xf32, #tpu.memory_space<vmem>>, vector<1x512xf32>
    %14 = vector.broadcast %13 : vector<1x512xf32> to vector<128x512xf32>
    %15 = arith.addf %12, %14 : vector<128x512xf32>
    %16 = arith.truncf %15 : vector<128x512xf32> to vector<128x512xbf16>
    %c0_13 = arith.constant 0 : index
    %c0_14 = arith.constant 0 : index
    %17 = vector.load %arg22[%c0_13, %c0_14] : memref<128x512xbf16, #tpu.memory_space<vmem>>, vector<128x512xbf16>
    tpu.vector_store %arg22[%c0_13, %c0_14], %16 {strides = array<i32>} : memref<128x512xbf16, #tpu.memory_space<vmem>>, vector<128x512xbf16>,
    %c0_15 = arith.constant 0 : index
    %c0_16 = arith.constant 0 : index
    %18 = vector.load %arg10[%c0_15, %c0_16] : memref<400x512xbf16, #tpu.memory_space<vmem>>, vector<400x512xbf16>
    %cst_17 = arith.constant dense<0.000000e+00> : vector<128x512xf32>
    %19 = tpu.matmul %1, %18, %cst_17 {dimension_numbers = #tpu.dot_dimension_numbers<[1], [0], [0], [1], [0, 0, 1, 1], [], []>} : vector<128x400xbf16>, vector<400x512xbf16>, vector<128x512xf32> -> vector<128x512xf32>
    %c0_18 = arith.constant 0 : index
    %c0_19 = arith.constant 0 : index
    %20 = vector.load %arg11[%c0_18, %c0_19] : memref<1x512xf32, #tpu.memory_space<vmem>>, vector<1x512xf32>
    %21 = vector.broadcast %20 : vector<1x512xf32> to vector<128x512xf32>
    %22 = arith.addf %19, %21 : vector<128x512xf32>
    %23 = arith.truncf %22 : vector<128x512xf32> to vector<128x512xbf16>
    %c0_20 = arith.constant 0 : index
    %c0_21 = arith.constant 0 : index
    %24 = vector.load %arg23[%c0_20, %c0_21] : memref<128x512xbf16, #tpu.memory_space<vmem>>, vector<128x512xbf16>
    tpu.vector_store %arg23[%c0_20, %c0_21], %23 {strides = array<i32>} : memref<128x512xbf16, #tpu.memory_space<vmem>>, vector<128x512xbf16>,
    %c0_22 = arith.constant 0 : index
    %c0_23 = arith.constant 0 : index
    %25 = vector.load %arg4[%c0_22, %c0_23] : memref<128x128xf32, #tpu.memory_space<vmem>>, vector<128x128xf32>
    %c0_24 = arith.constant 0 : index
    %c0_25 = arith.constant 0 : index
    %c0_26 = arith.constant 0 : index
    %26 = vector.load %arg2[%c0_24, %c0_25, %c0_26] : memref<1x1x128xf32, #tpu.memory_space<vmem>>, vector<1x1x128xf32>
    %27 = vector.shape_cast %26 : vector<1x1x128xf32> to vector<1x128xf32>
    %28 = vector.broadcast %27 : vector<1x128xf32> to vector<128x128xf32>
    %29 = arith.mulf %25, %28 : vector<128x128xf32>
    %c0_27 = arith.constant 0 : index
    %c0_28 = arith.constant 0 : index
    %30 = vector.load %arg21[%c0_27, %c0_28] : memref<128x512xbf16, #tpu.memory_space<vmem>>, vector<128x128xbf16>
    %c0_29 = arith.constant 0 : index
    %c0_30 = arith.constant 0 : index
    %31 = vector.load %arg22[%c0_29, %c0_30] : memref<128x512xbf16, #tpu.memory_space<vmem>>, vector<128x128xbf16>
    %cst_31 = arith.constant dense<0.000000e+00> : vector<128x128xf32>
    %32 = tpu.matmul %30, %31, %cst_31 {dimension_numbers = #tpu.dot_dimension_numbers<[1], [1], [0], [0], [0, 0, 1, 0], [], []>} : vector<128x128xbf16>, vector<128x128xbf16>, vector<128x128xf32> -> vector<128x128xf32>
    %33 = math.exp %32 : vector<128x128xf32>
    %34 = arith.mulf %33, %29 : vector<128x128xf32>
    %cst_32 = arith.constant dense<0.000000e+00> : vector<128xf32>
    %35 = vector.multi_reduction <add>, %34, %cst_32 [1] : vector<128x128xf32> to vector<128xf32>
    %36 = vector.shape_cast %35 : vector<128xf32> to vector<128x1xf32>
    %cst_33 = arith.constant 9.99999993E-9 : f32
    %37 = vector.broadcast %cst_33 : f32 to vector<128x1xf32>
    %38 = arith.addf %36, %37 : vector<128x1xf32>
    %39 = tpu.reciprocal %38 {approx = true} : vector<128x1xf32> -> vector<128x1xf32>
    %40 = vector.broadcast %39 : vector<128x1xf32> to vector<128x128xf32>
    %41 = arith.mulf %34, %40 : vector<128x128xf32>
    %42 = arith.truncf %41 : vector<128x128xf32> to vector<128x128xbf16>
    %c0_34 = arith.constant 0 : index
    %c0_35 = arith.constant 0 : index
    %43 = vector.load %arg23[%c0_34, %c0_35] : memref<128x512xbf16, #tpu.memory_space<vmem>>, vector<128x128xbf16>
    %cst_36 = arith.constant dense<0.000000e+00> : vector<128x128xf32>
    %44 = tpu.matmul %42, %43, %cst_36 {dimension_numbers = #tpu.dot_dimension_numbers<[1], [0], [0], [1], [0, 0, 1, 1], [], []>} : vector<128x128xbf16>, vector<128x128xbf16>, vector<128x128xf32> -> vector<128x128xf32>
    %c0_37 = arith.constant 0 : index
    %c0_38 = arith.constant 0 : index
    %45 = vector.load %arg24[%c0_37, %c0_38] : memref<128x512xf32, #tpu.memory_space<vmem>>, vector<128x128xf32>
    tpu.vector_store %arg24[%c0_37, %c0_38], %44 {strides = array<i32>} : memref<128x512xf32, #tpu.memory_space<vmem>>, vector<128x128xf32>,
    %c0_39 = arith.constant 0 : index
    %c128 = arith.constant 128 : index
    %46 = vector.load %arg21[%c0_39, %c128] : memref<128x512xbf16, #tpu.memory_space<vmem>>, vector<128x128xbf16>
    %c0_40 = arith.constant 0 : index
    %c128_41 = arith.constant 128 : index
    %47 = vector.load %arg22[%c0_40, %c128_41] : memref<128x512xbf16, #tpu.memory_space<vmem>>, vector<128x128xbf16>
    %cst_42 = arith.constant dense<0.000000e+00> : vector<128x128xf32>
    %48 = tpu.matmul %46, %47, %cst_42 {dimension_numbers = #tpu.dot_dimension_numbers<[1], [1], [0], [0], [0, 0, 1, 0], [], []>} : vector<128x128xbf16>, vector<128x128xbf16>, vector<128x128xf32> -> vector<128x128xf32>
    %49 = math.exp %48 : vector<128x128xf32>
    %50 = arith.mulf %49, %29 : vector<128x128xf32>
    %cst_43 = arith.constant dense<0.000000e+00> : vector<128xf32>
    %51 = vector.multi_reduction <add>, %50, %cst_43 [1] : vector<128x128xf32> to vector<128xf32>
    %52 = vector.shape_cast %51 : vector<128xf32> to vector<128x1xf32>
    %cst_44 = arith.constant 9.99999993E-9 : f32
    %53 = vector.broadcast %cst_44 : f32 to vector<128x1xf32>
    %54 = arith.addf %52, %53 : vector<128x1xf32>
    %55 = tpu.reciprocal %54 {approx = true} : vector<128x1xf32> -> vector<128x1xf32>
    %56 = vector.broadcast %55 : vector<128x1xf32> to vector<128x128xf32>
    %57 = arith.mulf %50, %56 : vector<128x128xf32>
    %58 = arith.truncf %57 : vector<128x128xf32> to vector<128x128xbf16>
    %c0_45 = arith.constant 0 : index
    %c128_46 = arith.constant 128 : index
    %59 = vector.load %arg23[%c0_45, %c128_46] : memref<128x512xbf16, #tpu.memory_space<vmem>>, vector<128x128xbf16>
    %cst_47 = arith.constant dense<0.000000e+00> : vector<128x128xf32>
    %60 = tpu.matmul %58, %59, %cst_47 {dimension_numbers = #tpu.dot_dimension_numbers<[1], [0], [0], [1], [0, 0, 1, 1], [], []>} : vector<128x128xbf16>, vector<128x128xbf16>, vector<128x128xf32> -> vector<128x128xf32>
    %c0_48 = arith.constant 0 : index
    %c128_49 = arith.constant 128 : index
    %61 = vector.load %arg24[%c0_48, %c128_49] : memref<128x512xf32, #tpu.memory_space<vmem>>, vector<128x128xf32>
    tpu.vector_store %arg24[%c0_48, %c128_49], %60 {strides = array<i32>} : memref<128x512xf32, #tpu.memory_space<vmem>>, vector<128x128xf32>,
    %c0_50 = arith.constant 0 : index
    %c256 = arith.constant 256 : index
    %62 = vector.load %arg21[%c0_50, %c256] : memref<128x512xbf16, #tpu.memory_space<vmem>>, vector<128x128xbf16>
    %c0_51 = arith.constant 0 : index
    %c256_52 = arith.constant 256 : index
    %63 = vector.load %arg22[%c0_51, %c256_52] : memref<128x512xbf16, #tpu.memory_space<vmem>>, vector<128x128xbf16>
    %cst_53 = arith.constant dense<0.000000e+00> : vector<128x128xf32>
    %64 = tpu.matmul %62, %63, %cst_53 {dimension_numbers = #tpu.dot_dimension_numbers<[1], [1], [0], [0], [0, 0, 1, 0], [], []>} : vector<128x128xbf16>, vector<128x128xbf16>, vector<128x128xf32> -> vector<128x128xf32>
    %65 = math.exp %64 : vector<128x128xf32>
    %66 = arith.mulf %65, %29 : vector<128x128xf32>
    %cst_54 = arith.constant dense<0.000000e+00> : vector<128xf32>
    %67 = vector.multi_reduction <add>, %66, %cst_54 [1] : vector<128x128xf32> to vector<128xf32>
    %68 = vector.shape_cast %67 : vector<128xf32> to vector<128x1xf32>
    %cst_55 = arith.constant 9.99999993E-9 : f32
    %69 = vector.broadcast %cst_55 : f32 to vector<128x1xf32>
    %70 = arith.addf %68, %69 : vector<128x1xf32>
    %71 = tpu.reciprocal %70 {approx = true} : vector<128x1xf32> -> vector<128x1xf32>
    %72 = vector.broadcast %71 : vector<128x1xf32> to vector<128x128xf32>
    %73 = arith.mulf %66, %72 : vector<128x128xf32>
    %74 = arith.truncf %73 : vector<128x128xf32> to vector<128x128xbf16>
    %c0_56 = arith.constant 0 : index
    %c256_57 = arith.constant 256 : index
    %75 = vector.load %arg23[%c0_56, %c256_57] : memref<128x512xbf16, #tpu.memory_space<vmem>>, vector<128x128xbf16>
    %cst_58 = arith.constant dense<0.000000e+00> : vector<128x128xf32>
    %76 = tpu.matmul %74, %75, %cst_58 {dimension_numbers = #tpu.dot_dimension_numbers<[1], [0], [0], [1], [0, 0, 1, 1], [], []>} : vector<128x128xbf16>, vector<128x128xbf16>, vector<128x128xf32> -> vector<128x128xf32>
    %c0_59 = arith.constant 0 : index
    %c256_60 = arith.constant 256 : index
    %77 = vector.load %arg24[%c0_59, %c256_60] : memref<128x512xf32, #tpu.memory_space<vmem>>, vector<128x128xf32>
    tpu.vector_store %arg24[%c0_59, %c256_60], %76 {strides = array<i32>} : memref<128x512xf32, #tpu.memory_space<vmem>>, vector<128x128xf32>,
    %c0_61 = arith.constant 0 : index
    %c384 = arith.constant 384 : index
    %78 = vector.load %arg21[%c0_61, %c384] : memref<128x512xbf16, #tpu.memory_space<vmem>>, vector<128x128xbf16>
    %c0_62 = arith.constant 0 : index
    %c384_63 = arith.constant 384 : index
    %79 = vector.load %arg22[%c0_62, %c384_63] : memref<128x512xbf16, #tpu.memory_space<vmem>>, vector<128x128xbf16>
    %cst_64 = arith.constant dense<0.000000e+00> : vector<128x128xf32>
    %80 = tpu.matmul %78, %79, %cst_64 {dimension_numbers = #tpu.dot_dimension_numbers<[1], [1], [0], [0], [0, 0, 1, 0], [], []>} : vector<128x128xbf16>, vector<128x128xbf16>, vector<128x128xf32> -> vector<128x128xf32>
    %81 = math.exp %80 : vector<128x128xf32>
    %82 = arith.mulf %81, %29 : vector<128x128xf32>
    %cst_65 = arith.constant dense<0.000000e+00> : vector<128xf32>
    %83 = vector.multi_reduction <add>, %82, %cst_65 [1] : vector<128x128xf32> to vector<128xf32>
    %84 = vector.shape_cast %83 : vector<128xf32> to vector<128x1xf32>
    %cst_66 = arith.constant 9.99999993E-9 : f32
    %85 = vector.broadcast %cst_66 : f32 to vector<128x1xf32>
    %86 = arith.addf %84, %85 : vector<128x1xf32>
    %87 = tpu.reciprocal %86 {approx = true} : vector<128x1xf32> -> vector<128x1xf32>
    %88 = vector.broadcast %87 : vector<128x1xf32> to vector<128x128xf32>
    %89 = arith.mulf %82, %88 : vector<128x128xf32>
    %90 = arith.truncf %89 : vector<128x128xf32> to vector<128x128xbf16>
    %c0_67 = arith.constant 0 : index
    %c384_68 = arith.constant 384 : index
    %91 = vector.load %arg23[%c0_67, %c384_68] : memref<128x512xbf16, #tpu.memory_space<vmem>>, vector<128x128xbf16>
    %cst_69 = arith.constant dense<0.000000e+00> : vector<128x128xf32>
    %92 = tpu.matmul %90, %91, %cst_69 {dimension_numbers = #tpu.dot_dimension_numbers<[1], [0], [0], [1], [0, 0, 1, 1], [], []>} : vector<128x128xbf16>, vector<128x128xbf16>, vector<128x128xf32> -> vector<128x128xf32>
    %c0_70 = arith.constant 0 : index
    %c384_71 = arith.constant 384 : index
    %93 = vector.load %arg24[%c0_70, %c384_71] : memref<128x512xf32, #tpu.memory_space<vmem>>, vector<128x128xf32>
    tpu.vector_store %arg24[%c0_70, %c384_71], %92 {strides = array<i32>} : memref<128x512xf32, #tpu.memory_space<vmem>>, vector<128x128xf32>,
    %c0_72 = arith.constant 0 : index
    %c0_73 = arith.constant 0 : index
    %94 = vector.load %arg24[%c0_72, %c0_73] : memref<128x512xf32, #tpu.memory_space<vmem>>, vector<128x512xf32>
    %cst_74 = arith.constant dense<0.000000e+00> : vector<128xf32>
    %95 = vector.multi_reduction <add>, %94, %cst_74 [1] : vector<128x512xf32> to vector<128xf32>
    %96 = vector.shape_cast %95 : vector<128xf32> to vector<128x1xf32>
    %97 = arith.mulf %94, %94 : vector<128x512xf32>
    %cst_75 = arith.constant dense<0.000000e+00> : vector<128xf32>
    %98 = vector.multi_reduction <add>, %97, %cst_75 [1] : vector<128x512xf32> to vector<128xf32>
    %99 = vector.shape_cast %98 : vector<128xf32> to vector<128x1xf32>
    %cst_76 = arith.constant 2.500000e-03 : f32
    %100 = vector.broadcast %cst_76 : f32 to vector<128x1xf32>
    %101 = arith.mulf %96, %100 : vector<128x1xf32>
    %cst_77 = arith.constant 2.500000e-03 : f32
    %102 = vector.broadcast %cst_77 : f32 to vector<128x1xf32>
    %103 = arith.mulf %99, %102 : vector<128x1xf32>
    %104 = arith.mulf %101, %101 : vector<128x1xf32>
    %105 = arith.subf %103, %104 : vector<128x1xf32>
    %cst_78 = arith.constant 0.000000e+00 : f32
    %106 = vector.broadcast %cst_78 : f32 to vector<128x1xf32>
    %107 = arith.maximumf %105, %106 : vector<128x1xf32>
    %108 = vector.broadcast %101 : vector<128x1xf32> to vector<128x512xf32>
    %109 = arith.subf %94, %108 : vector<128x512xf32>
    %cst_79 = arith.constant 9.99999974E-6 : f32
    %110 = vector.broadcast %cst_79 : f32 to vector<128x1xf32>
    %111 = arith.addf %107, %110 : vector<128x1xf32>
    %112 = math.rsqrt %111 : vector<128x1xf32>
    %113 = vector.broadcast %112 : vector<128x1xf32> to vector<128x512xf32>
    %114 = arith.mulf %109, %113 : vector<128x512xf32>
    %c0_80 = arith.constant 0 : index
    %c0_81 = arith.constant 0 : index
    %115 = vector.load %arg12[%c0_80, %c0_81] : memref<1x512xf32, #tpu.memory_space<vmem>>, vector<1x512xf32>
    %116 = vector.broadcast %115 : vector<1x512xf32> to vector<128x512xf32>
    %117 = arith.mulf %114, %116 : vector<128x512xf32>
    %c0_82 = arith.constant 0 : index
    %c0_83 = arith.constant 0 : index
    %118 = vector.load %arg13[%c0_82, %c0_83] : memref<1x512xf32, #tpu.memory_space<vmem>>, vector<1x512xf32>
    %119 = vector.broadcast %118 : vector<1x512xf32> to vector<128x512xf32>
    %120 = arith.addf %117, %119 : vector<128x512xf32>
    %c0_84 = arith.constant 0 : index
    %c0_85 = arith.constant 0 : index
    %121 = vector.load %arg24[%c0_84, %c0_85] : memref<128x512xf32, #tpu.memory_space<vmem>>, vector<128x512xf32>
    tpu.vector_store %arg24[%c0_84, %c0_85], %120 {strides = array<i32>} : memref<128x512xf32, #tpu.memory_space<vmem>>, vector<128x512xf32>,
    %c0_86 = arith.constant 0 : index
    %c0_87 = arith.constant 0 : index
    %122 = vector.load %arg24[%c0_86, %c0_87] : memref<128x512xf32, #tpu.memory_space<vmem>>, vector<128x512xf32>
    %123 = arith.truncf %122 : vector<128x512xf32> to vector<128x512xbf16>
    %c0_88 = arith.constant 0 : index
    %c0_89 = arith.constant 0 : index
    %124 = vector.load %arg14[%c0_88, %c0_89] : memref<512x128xbf16, #tpu.memory_space<vmem>>, vector<512x128xbf16>
    %cst_90 = arith.constant dense<0.000000e+00> : vector<128x128xf32>
    %125 = tpu.matmul %123, %124, %cst_90 {dimension_numbers = #tpu.dot_dimension_numbers<[1], [0], [0], [1], [0, 0, 1, 1], [], []>} : vector<128x512xbf16>, vector<512x128xbf16>, vector<128x128xf32> -> vector<128x128xf32>
    %c0_91 = arith.constant 0 : index
    %c0_92 = arith.constant 0 : index
    %126 = vector.load %arg15[%c0_91, %c0_92] : memref<1x128xf32, #tpu.memory_space<vmem>>, vector<1x128xf32>
    %127 = vector.broadcast %126 : vector<1x128xf32> to vector<128x128xf32>
    %128 = arith.addf %125, %127 : vector<128x128xf32>
    %129 = math.tanh %128 : vector<128x128xf32>
    %c0_93 = arith.constant 0 : index
    %c0_94 = arith.constant 0 : index
    %130 = vector.load %arg16[%c0_93, %c0_94] : memref<1x128xf32, #tpu.memory_space<vmem>>, vector<1x128xf32>
    %131 = vector.broadcast %130 : vector<1x128xf32> to vector<128x128xf32>
    %132 = arith.mulf %129, %131 : vector<128x128xf32>
    %cst_95 = arith.constant dense<0.000000e+00> : vector<128xf32>
    %133 = vector.multi_reduction <add>, %132, %cst_95 [1] : vector<128x128xf32> to vector<128xf32>
    %134 = vector.shape_cast %133 : vector<128xf32> to vector<128x1xf32>
    %c0_96 = arith.constant 0 : index
    %c0_97 = arith.constant 0 : index
    %135 = vector.load %arg17[%c0_96, %c0_97] : memref<1x1xf32, #tpu.memory_space<vmem>>, vector<1x1xf32>
    %136 = vector.broadcast %135 : vector<1x1xf32> to vector<128x1xf32>
    %137 = arith.addf %134, %136 : vector<128x1xf32>
    %138 = math.exp %137 : vector<128x1xf32>
    %c0_98 = arith.constant 0 : index
    %c0_99 = arith.constant 0 : index
    %139 = vector.load %arg3[%c0_98, %c0_99] : memref<128x1xf32, #tpu.memory_space<vmem>>, vector<128x1xf32>
    %140 = arith.mulf %138, %139 : vector<128x1xf32>
    %c0_100 = arith.constant 0 : index
    %c0_101 = arith.constant 0 : index
    %141 = vector.load %arg5[%c0_100, %c0_101] : memref<16x128xf32, #tpu.memory_space<vmem>>, vector<16x128xf32>
    %142 = vector.broadcast %140 : vector<128x1xf32> to vector<128x512xf32>
    %143 = arith.mulf %142, %122 : vector<128x512xf32>
    %cst_102 = arith.constant dense<0.000000e+00> : vector<16x512xf32>
    %144 = tpu.matmul %141, %143, %cst_102 {dimension_numbers = #tpu.dot_dimension_numbers<[1], [0], [0], [1], [0, 0, 1, 1], [], []>} : vector<16x128xf32>, vector<128x512xf32>, vector<16x512xf32> -> vector<16x512xf32>
    %cst_103 = arith.constant dense<0.000000e+00> : vector<16x1xf32>
    %145 = tpu.matmul %141, %140, %cst_103 {dimension_numbers = #tpu.dot_dimension_numbers<[1], [0], [0], [1], [0, 0, 1, 1], [], []>} : vector<16x128xf32>, vector<128x1xf32>, vector<16x1xf32> -> vector<16x1xf32>
    %cst_104 = arith.constant 9.99999993E-9 : f32
    %146 = vector.broadcast %cst_104 : f32 to vector<16x1xf32>
    %147 = arith.addf %145, %146 : vector<16x1xf32>
    %148 = tpu.reciprocal %147 {approx = true} : vector<16x1xf32> -> vector<16x1xf32>
    %149 = vector.broadcast %148 : vector<16x1xf32> to vector<16x512xf32>
    %150 = arith.mulf %144, %149 : vector<16x512xf32>
    %cst_105 = arith.constant dense<0.000000e+00> : vector<16xf32>
    %151 = vector.multi_reduction <add>, %150, %cst_105 [1] : vector<16x512xf32> to vector<16xf32>
    %152 = vector.shape_cast %151 : vector<16xf32> to vector<16x1xf32>
    %153 = arith.mulf %150, %150 : vector<16x512xf32>
    %cst_106 = arith.constant dense<0.000000e+00> : vector<16xf32>
    %154 = vector.multi_reduction <add>, %153, %cst_106 [1] : vector<16x512xf32> to vector<16xf32>
    %155 = vector.shape_cast %154 : vector<16xf32> to vector<16x1xf32>
    %cst_107 = arith.constant 2.500000e-03 : f32
    %156 = vector.broadcast %cst_107 : f32 to vector<16x1xf32>
    %157 = arith.mulf %152, %156 : vector<16x1xf32>
    %cst_108 = arith.constant 2.500000e-03 : f32
    %158 = vector.broadcast %cst_108 : f32 to vector<16x1xf32>
    %159 = arith.mulf %155, %158 : vector<16x1xf32>
    %160 = arith.mulf %157, %157 : vector<16x1xf32>
    %161 = arith.subf %159, %160 : vector<16x1xf32>
    %cst_109 = arith.constant 0.000000e+00 : f32
    %162 = vector.broadcast %cst_109 : f32 to vector<16x1xf32>
    %163 = arith.maximumf %161, %162 : vector<16x1xf32>
    %164 = vector.broadcast %157 : vector<16x1xf32> to vector<16x512xf32>
    %165 = arith.subf %150, %164 : vector<16x512xf32>
    %cst_110 = arith.constant 9.99999974E-6 : f32
    %166 = vector.broadcast %cst_110 : f32 to vector<16x1xf32>
    %167 = arith.addf %163, %166 : vector<16x1xf32>
    %168 = math.rsqrt %167 : vector<16x1xf32>
    %169 = vector.broadcast %168 : vector<16x1xf32> to vector<16x512xf32>
    %170 = arith.mulf %165, %169 : vector<16x512xf32>
    %c0_111 = arith.constant 0 : index
    %c0_112 = arith.constant 0 : index
    %171 = vector.load %arg18[%c0_111, %c0_112] : memref<1x512xf32, #tpu.memory_space<vmem>>, vector<1x512xf32>
    %172 = vector.broadcast %171 : vector<1x512xf32> to vector<16x512xf32>
    %173 = arith.mulf %170, %172 : vector<16x512xf32>
    %c0_113 = arith.constant 0 : index
    %c0_114 = arith.constant 0 : index
    %174 = vector.load %arg19[%c0_113, %c0_114] : memref<1x512xf32, #tpu.memory_space<vmem>>, vector<1x512xf32>
    %175 = vector.broadcast %174 : vector<1x512xf32> to vector<16x512xf32>
    %176 = arith.addf %173, %175 : vector<16x512xf32>
    %c0_115 = arith.constant 0 : index
    %c0_116 = arith.constant 0 : index
    %177 = vector.load %arg20[%c0_115, %c0_116] : memref<16x512xf32, #tpu.memory_space<vmem>>, vector<16x512xf32>
    tpu.vector_store %arg20[%c0_115, %c0_116], %176 {strides = array<i32>} : memref<16x512xf32, #tpu.memory_space<vmem>>, vector<16x512xf32>,
    return
  }
  func.func @transform_0(%arg0: i32) -> (i32, i32) {
    %c0_i32 = arith.constant 0 : i32
    %c0_i32_0 = arith.constant 0 : i32
    return %arg0, %c0_i32 : i32, i32
  }
  func.func @transform_1(%arg0: i32) -> (i32, i32, i32) {
    %c0_i32 = arith.constant 0 : i32
    %c0_i32_0 = arith.constant 0 : i32
    %c0_i32_1 = arith.constant 0 : i32
    return %arg0, %c0_i32, %c0_i32_0 : i32, i32, i32
  }
  func.func @transform_2(%arg0: i32) -> (i32, i32) {
    %c0_i32 = arith.constant 0 : i32
    %c0_i32_0 = arith.constant 0 : i32
    return %arg0, %c0_i32 : i32, i32
  }
  func.func @transform_3(%arg0: i32) -> (i32, i32) {
    %c0_i32 = arith.constant 0 : i32
    %c0_i32_0 = arith.constant 0 : i32
    %c0_i32_1 = arith.constant 0 : i32
    return %c0_i32, %c0_i32_0 : i32, i32
  }
  func.func @transform_4(%arg0: i32) -> (i32, i32) {
    %c0_i32 = arith.constant 0 : i32
    %c0_i32_0 = arith.constant 0 : i32
    %c0_i32_1 = arith.constant 0 : i32
    return %c0_i32, %c0_i32_0 : i32, i32
  }
  func.func @transform_5(%arg0: i32) -> (i32, i32) {
    %c0_i32 = arith.constant 0 : i32
    %c0_i32_0 = arith.constant 0 : i32
    %c0_i32_1 = arith.constant 0 : i32
    return %c0_i32, %c0_i32_0 : i32, i32
  }
  func.func @transform_6(%arg0: i32) -> (i32, i32) {
    %c0_i32 = arith.constant 0 : i32
    %c0_i32_0 = arith.constant 0 : i32
    %c0_i32_1 = arith.constant 0 : i32
    return %c0_i32, %c0_i32_0 : i32, i32
  }
  func.func @transform_7(%arg0: i32) -> (i32, i32) {
    %c0_i32 = arith.constant 0 : i32
    %c0_i32_0 = arith.constant 0 : i32
    %c0_i32_1 = arith.constant 0 : i32
    return %c0_i32, %c0_i32_0 : i32, i32
  }
  func.func @transform_8(%arg0: i32) -> (i32, i32) {
    %c0_i32 = arith.constant 0 : i32
    %c0_i32_0 = arith.constant 0 : i32
    %c0_i32_1 = arith.constant 0 : i32
    return %c0_i32, %c0_i32_0 : i32, i32
  }
  func.func @transform_9(%arg0: i32) -> (i32, i32) {
    %c0_i32 = arith.constant 0 : i32
    %c0_i32_0 = arith.constant 0 : i32
    %c0_i32_1 = arith.constant 0 : i32
    return %c0_i32, %c0_i32_0 : i32, i32
  }
  func.func @transform_10(%arg0: i32) -> (i32, i32) {
    %c0_i32 = arith.constant 0 : i32
    %c0_i32_0 = arith.constant 0 : i32
    %c0_i32_1 = arith.constant 0 : i32
    return %c0_i32, %c0_i32_0 : i32, i32
  }
  func.func @transform_11(%arg0: i32) -> (i32, i32) {
    %c0_i32 = arith.constant 0 : i32
    %c0_i32_0 = arith.constant 0 : i32
    %c0_i32_1 = arith.constant 0 : i32
    return %c0_i32, %c0_i32_0 : i32, i32
  }
  func.func @transform_12(%arg0: i32) -> (i32, i32) {
    %c0_i32 = arith.constant 0 : i32
    %c0_i32_0 = arith.constant 0 : i32
    %c0_i32_1 = arith.constant 0 : i32
    return %c0_i32, %c0_i32_0 : i32, i32
  }
  func.func @transform_13(%arg0: i32) -> (i32, i32) {
    %c0_i32 = arith.constant 0 : i32
    %c0_i32_0 = arith.constant 0 : i32
    %c0_i32_1 = arith.constant 0 : i32
    return %c0_i32, %c0_i32_0 : i32, i32
  }
  func.func @transform_14(%arg0: i32) -> (i32, i32) {
    %c0_i32 = arith.constant 0 : i32
    %c0_i32_0 = arith.constant 0 : i32
    %c0_i32_1 = arith.constant 0 : i32
    return %c0_i32, %c0_i32_0 : i32, i32
  }
  func.func @transform_15(%arg0: i32) -> (i32, i32) {
    %c0_i32 = arith.constant 0 : i32
    %c0_i32_0 = arith.constant 0 : i32
    %c0_i32_1 = arith.constant 0 : i32
    return %c0_i32, %c0_i32_0 : i32, i32
  }
  func.func @transform_16(%arg0: i32) -> (i32, i32) {
    %c0_i32 = arith.constant 0 : i32
    %c0_i32_0 = arith.constant 0 : i32
    %c0_i32_1 = arith.constant 0 : i32
    return %c0_i32, %c0_i32_0 : i32, i32
  }
  func.func @transform_17(%arg0: i32) -> (i32, i32) {
    %c0_i32 = arith.constant 0 : i32
    %c0_i32_0 = arith.constant 0 : i32
    %c0_i32_1 = arith.constant 0 : i32
    return %c0_i32, %c0_i32_0 : i32, i32
  }
  func.func @transform_18(%arg0: i32) -> (i32, i32) {
    %c0_i32 = arith.constant 0 : i32
    %c0_i32_0 = arith.constant 0 : i32
    %c0_i32_1 = arith.constant 0 : i32
    return %c0_i32, %c0_i32_0 : i32, i32
  }
  func.func @transform_19(%arg0: i32) -> (i32, i32) {
    %c0_i32 = arith.constant 0 : i32
    %c0_i32_0 = arith.constant 0 : i32
    return %arg0, %c0_i32 : i32, i32
  }
}

</mosaic_0001>

<llo_original>
// kernel: tpu_custom_call.1
$region0: #{tpu_custom_call.1}
  #allocation0 [shape = 'u32[]', space=smem, size = 0x4, offset = 0x4, fixed_abs, tag = 'smem constant byte address 0x4 - core index']
  #allocation1 [shape = 'u32[144,128]{1,0:T(1,128)}', space=vmem, size = 0x12000, scoped, tag = 'internal scratch']
  #allocation2 [shape = 'bf16[128,512]{1,0:T(8,128)(2,1)}', space=vmem, size = 0x20000, scoped, tag = 'scratch operand']
  #allocation3 [shape = 'bf16[128,512]{1,0:T(8,128)(2,1)}', space=vmem, size = 0x20000, scoped, tag = 'scratch operand']
  #allocation4 [shape = 'bf16[128,512]{1,0:T(8,128)(2,1)}', space=vmem, size = 0x20000, scoped, tag = 'scratch operand']
  #allocation5 [shape = 'f32[128,512]{1,0:T(8,128)}', space=vmem, size = 0x40000, scoped, tag = 'scratch operand']
  #allocation6 [shape = 'f32[1,1]{1,0:T(1,128)S(1)}', space=vmem, size = 0x200, scoped, tag = 'scoped memory for tpu_custom_call.1']
  %s0 = inlined_call_operand.vmem [shape: f32[256,400], index: 0, kind: input, shape index: {}]
  %s1 = inlined_call_operand.vmem [shape: f32[2,1,128], index: 1, kind: input, shape index: {}]
  %s2 = inlined_call_operand.vmem [shape: f32[256,1], index: 2, kind: input, shape index: {}]
  %s3 = inlined_call_operand.vmem [shape: f32[128,128], index: 3, kind: input, shape index: {}]
  %s4 = inlined_call_operand.vmem [shape: f32[16,128], index: 4, kind: input, shape index: {}]
  %s5 = inlined_call_operand.vmem [shape: bf16[400,512], index: 5, kind: input, shape index: {}]
  %s6 = inlined_call_operand.vmem [shape: f32[1,512], index: 6, kind: input, shape index: {}]
  %s7 = inlined_call_operand.vmem [shape: bf16[400,512], index: 7, kind: input, shape index: {}]
  %s8 = inlined_call_operand.vmem [shape: f32[1,512], index: 8, kind: input, shape index: {}]
  %s9 = inlined_call_operand.hbm [shape: bf16[400,512], index: 9, kind: input, shape index: {}]
  %s10 = inlined_call_operand.vmem [shape: f32[1,512], index: 10, kind: input, shape index: {}]
  %s11 = inlined_call_operand.vmem [shape: f32[1,512], index: 11, kind: input, shape index: {}]
  %s12 = inlined_call_operand.vmem [shape: f32[1,512], index: 12, kind: input, shape index: {}]
  %s13 = inlined_call_operand.vmem [shape: bf16[512,128], index: 13, kind: input, shape index: {}]
  %s14 = inlined_call_operand.vmem [shape: f32[1,128], index: 14, kind: input, shape index: {}]
  %s15 = inlined_call_operand.vmem [shape: f32[1,128], index: 15, kind: input, shape index: {}]
  %s16 = inlined_call_operand.<no memory space> [shape: f32[1,1], index: 16, kind: input, shape index: {}]
  %s17 = inlined_call_operand.vmem [shape: f32[1,512], index: 17, kind: input, shape index: {}]
  %s18 = inlined_call_operand.vmem [shape: f32[1,512], index: 18, kind: input, shape index: {}]
  %s19 = inlined_call_operand.hbm [shape: f32[32,512], index: 19, kind: output, shape index: {}]
  %s20 = sld [smem:[#allocation0]]
  $region113: #{tpu_custom_call.1} parent=0
    _
  %s22 = ssub.s32 1, %s20
  %s23 = scalar_select 0, %s22, %s20
  %v24 = vstv %s16
  %25 = vst [vmem:[#allocation6] sm:$0x1] %v24
  $region1: #{tpu_custom_call.1} parent=0
    #allocation7 [shape = 'u8[409600]{0}', space=vmem, size = 0x64000, scoped, tag = 'input window, operand 9, single buffered']
    #allocation8 [shape = 's32[2]{0}', space=sflag, size = 0x8, scoped, tag = 'scoped memory for tpu_custom_call.1']
    #allocation9 [shape = 's32[2]{0}', space=sflag, size = 0x8, scoped, tag = 'scoped memory for tpu_custom_call.1']
    #allocation10 [shape = 'u8[65536]{0}', space=vmem, size = 0x10000, scoped, tag = 'output window, operand 0']
    %26 = vsyncpa [#allocation8], 0
    %27 = vsyncpa [#allocation9], 0
    %s28 = scalar_lea.sflag [#allocation9], 1
    %29 = vsyncpa %s28, 0
    loop: start=0, step=1, limit=4
    $region2: #{tpu_custom_call.1} parent=1 // loop_pre_header
      _
    $region3: #{tpu_custom_call.1} parent=1 // loop_header
      %s31 = sphi 0, %s35
      %p32 = scmp.ge.s32.totalorder %s31, 4
      %s41 = sphi 0, %s43
      %s44 = sphi 0, %s41
      %s45 = sphi 0, %s44
      %s61 = sphi 0, %s45
      %s67 = sphi 0, %s69
      %s70 = sphi 0, %s67
      %s71 = sphi 0, %s70
      %s87 = sphi 0, %s71
      %s93 = sphi 0, %s95
      %s96 = sphi 0, %s93
      %s97 = sphi 0, %s96
      %s113 = sphi 0, %s97
      %s117 = sphi 0, %s117
      %s119 = sphi 0, %s117
      %s120 = sphi 0, %s119
      %s134 = sphi 0, %s120
      %s138 = sphi 0, %s138
      %s140 = sphi 0, %s138
      %s141 = sphi 0, %s140
      %s155 = sphi 0, %s141
      %s159 = sphi 0, %s159
      %s161 = sphi 0, %s159
      %s162 = sphi 0, %s161
      %s176 = sphi 0, %s162
      %s180 = sphi 0, %s180
      %s182 = sphi 0, %s180
      %s183 = sphi 0, %s182
      %s197 = sphi 0, %s183
      %s201 = sphi 0, %s201
      %s203 = sphi 0, %s201
      %s204 = sphi 0, %s203
      %s218 = sphi 0, %s204
      %s222 = sphi 0, %s222
      %s224 = sphi 0, %s222
      %s225 = sphi 0, %s224
      %s239 = sphi 0, %s225
      %s243 = sphi 0, %s243
      %s245 = sphi 0, %s243
      %s246 = sphi 0, %s245
      %s260 = sphi 0, %s246
      %s264 = sphi 0, %s264
      %s266 = sphi 0, %s264
      %s267 = sphi 0, %s266
      %s281 = sphi 0, %s267
      %s285 = sphi 0, %s285
      %s287 = sphi 0, %s285
      %s288 = sphi 0, %s287
      %s302 = sphi 0, %s288
      %s306 = sphi 0, %s306
      %s308 = sphi 0, %s306
      %s309 = sphi 0, %s308
      %s323 = sphi 0, %s309
      %s327 = sphi 0, %s327
      %s329 = sphi 0, %s327
      %s330 = sphi 0, %s329
      %s344 = sphi 0, %s330
      %s348 = sphi 0, %s348
      %s350 = sphi 0, %s348
      %s351 = sphi 0, %s350
      %s365 = sphi 0, %s351
      %s369 = sphi 0, %s369
      %s371 = sphi 0, %s369
      %s372 = sphi 0, %s371
      %s386 = sphi 0, %s372
      %s390 = sphi 0, %s390
      %s392 = sphi 0, %s390
      %s393 = sphi 0, %s392
      %s407 = sphi 0, %s393
      %s411 = sphi 0, %s411
      %s413 = sphi 0, %s411
      %s414 = sphi 0, %s413
      %s428 = sphi 0, %s414
      %s432 = sphi 0, %s432
      %s434 = sphi 0, %s432
      %s435 = sphi 0, %s434
      %s449 = sphi 0, %s435
      %s455 = sphi 0, %s457
      %s458 = sphi 0, %s455
      %s459 = sphi 0, %s458
      %s475 = sphi 0, %s459
    $region4: #{tpu_custom_call.1} parent=1 // loop_header_branch
      %34 = sbr.rel (%p32) target = $region8
    $region5: #{tpu_custom_call.1} parent=1 // loop_body
      %s36 = ssub.s32 %s31, 1
      %s37 = ssub.s32 %s31, 2
      %s38 = sadd.s32 %s31, 1
      %s39 = ssub.s32 %s31, %s38
      %p40 = scmp.eq.s32.totalorder %s39, 0
      %s42 = sadd.s32 %s41, 1
      %s43 = scalar_select %p40, %s41, %s42
      %p46 = pneg %p40
      %p47 = scmp.eq.s32.totalorder %s31, 1
      %p48 = por %p46, %p47
      %p49 = scmp.ne.s32.totalorder %s41, %s44
      %p50 = scmp.eq.s32.totalorder %s31, 0
      %p51 = por %p49, %p50
      %p52 = scmp.ne.s32.totalorder %s41, %s44
      %p53 = scmp.eq.s32.totalorder %s36, 1
      %p54 = por %p52, %p53
      %p55 = scmp.ne.s32.totalorder %s44, %s45
      %p56 = scmp.eq.s32.totalorder %s36, 0
      %p57 = por %p55, %p56
      %p58 = scmp.ne.s32.totalorder %s44, %s45
      %p59 = scmp.eq.s32.totalorder %s37, 1
      %p60 = por %p58, %p59
      %p62 = scmp.ne.s32.totalorder %s45, %s61
      %p63 = scmp.eq.s32.totalorder %s37, 0
      %p64 = por %p62, %p63
      %s65 = ssub.s32 %s31, %s38
      %p66 = scmp.eq.s32.totalorder %s65, 0
      %s68 = sadd.s32 %s67, 1
      %s69 = scalar_select %p66, %s67, %s68
      %p72 = pneg %p66
      %p73 = scmp.eq.s32.totalorder %s31, 1
      %p74 = por %p72, %p73
      %p75 = scmp.ne.s32.totalorder %s67, %s70
      %p76 = scmp.eq.s32.totalorder %s31, 0
      %p77 = por %p75, %p76
      %p78 = scmp.ne.s32.totalorder %s67, %s70
      %p79 = scmp.eq.s32.totalorder %s36, 1
      %p80 = por %p78, %p79
      %p81 = scmp.ne.s32.totalorder %s70, %s71
      %p82 = scmp.eq.s32.totalorder %s36, 0
      %p83 = por %p81, %p82
      %p84 = scmp.ne.s32.totalorder %s70, %s71
      %p85 = scmp.eq.s32.totalorder %s37, 1
      %p86 = por %p84, %p85
      %p88 = scmp.ne.s32.totalorder %s71, %s87
      %p89 = scmp.eq.s32.totalorder %s37, 0
      %p90 = por %p88, %p89
      %s91 = ssub.s32 %s31, %s38
      %p92 = scmp.eq.s32.totalorder %s91, 0
      %s94 = sadd.s32 %s93, 1
      %s95 = scalar_select %p92, %s93, %s94
      %p98 = pneg %p92
      %p99 = scmp.eq.s32.totalorder %s31, 1
      %p100 = por %p98, %p99
      %p101 = scmp.ne.s32.totalorder %s93, %s96
      %p102 = scmp.eq.s32.totalorder %s31, 0
      %p103 = por %p101, %p102
      %p104 = scmp.ne.s32.totalorder %s93, %s96
      %p105 = scmp.eq.s32.totalorder %s36, 1
      %p106 = por %p104, %p105
      %p107 = scmp.ne.s32.totalorder %s96, %s97
      %p108 = scmp.eq.s32.totalorder %s36, 0
      %p109 = por %p107, %p108
      %p110 = scmp.ne.s32.totalorder %s96, %s97
      %p111 = scmp.eq.s32.totalorder %s37, 1
      %p112 = por %p110, %p111
      %p114 = scmp.ne.s32.totalorder %s97, %s113
      %p115 = scmp.eq.s32.totalorder %s37, 0
      %p116 = por %p114, %p115
      %s118 = sadd.s32 %s117, 1
      %p121 = scmp.eq.s32.totalorder %s31, 1
      %p122 = scmp.ne.s32.totalorder %s117, %s119
      %p123 = scmp.eq.s32.totalorder %s31, 0
      %p124 = por %p122, %p123
      %p125 = scmp.ne.s32.totalorder %s117, %s119
      %p126 = scmp.eq.s32.totalorder %s36, 1
      %p127 = por %p125, %p126
      %p128 = scmp.ne.s32.totalorder %s119, %s120
      %p129 = scmp.eq.s32.totalorder %s36, 0
      %p130 = por %p128, %p129
      %p131 = scmp.ne.s32.totalorder %s119, %s120
      %p132 = scmp.eq.s32.totalorder %s37, 1
      %p133 = por %p131, %p132
      %p135 = scmp.ne.s32.totalorder %s120, %s134
      %p136 = scmp.eq.s32.totalorder %s37, 0
      %p137 = por %p135, %p136
      %s139 = sadd.s32 %s138, 1
      %p142 = scmp.eq.s32.totalorder %s31, 1
      %p143 = scmp.ne.s32.totalorder %s138, %s140
      %p144 = scmp.eq.s32.totalorder %s31, 0
      %p145 = por %p143, %p144
      %p146 = scmp.ne.s32.totalorder %s138, %s140
      %p147 = scmp.eq.s32.totalorder %s36, 1
      %p148 = por %p146, %p147
      %p149 = scmp.ne.s32.totalorder %s140, %s141
      %p150 = scmp.eq.s32.totalorder %s36, 0
      %p151 = por %p149, %p150
      %p152 = scmp.ne.s32.totalorder %s140, %s141
      %p153 = scmp.eq.s32.totalorder %s37, 1
      %p154 = por %p152, %p153
      %p156 = scmp.ne.s32.totalorder %s141, %s155
      %p157 = scmp.eq.s32.totalorder %s37, 0
      %p158 = por %p156, %p157
      %s160 = sadd.s32 %s159, 1
      %p163 = scmp.eq.s32.totalorder %s31, 1
      %p164 = scmp.ne.s32.totalorder %s159, %s161
      %p165 = scmp.eq.s32.totalorder %s31, 0
      %p166 = por %p164, %p165
      %p167 = scmp.ne.s32.totalorder %s159, %s161
      %p168 = scmp.eq.s32.totalorder %s36, 1
      %p169 = por %p167, %p168
      %p170 = scmp.ne.s32.totalorder %s161, %s162
      %p171 = scmp.eq.s32.totalorder %s36, 0
      %p172 = por %p170, %p171
      %p173 = scmp.ne.s32.totalorder %s161, %s162
      %p174 = scmp.eq.s32.totalorder %s37, 1
      %p175 = por %p173, %p174
      %p177 = scmp.ne.s32.totalorder %s162, %s176
      %p178 = scmp.eq.s32.totalorder %s37, 0
      %p179 = por %p177, %p178
      %s181 = sadd.s32 %s180, 1
      %p184 = scmp.eq.s32.totalorder %s31, 1
      %p185 = scmp.ne.s32.totalorder %s180, %s182
      %p186 = scmp.eq.s32.totalorder %s31, 0
      %p187 = por %p185, %p186
      %p188 = scmp.ne.s32.totalorder %s180, %s182
      %p189 = scmp.eq.s32.totalorder %s36, 1
      %p190 = por %p188, %p189
      %p191 = scmp.ne.s32.totalorder %s182, %s183
      %p192 = scmp.eq.s32.totalorder %s36, 0
      %p193 = por %p191, %p192
      %p194 = scmp.ne.s32.totalorder %s182, %s183
      %p195 = scmp.eq.s32.totalorder %s37, 1
      %p196 = por %p194, %p195
      %p198 = scmp.ne.s32.totalorder %s183, %s197
      %p199 = scmp.eq.s32.totalorder %s37, 0
      %p200 = por %p198, %p199
      %s202 = sadd.s32 %s201, 1
      %p205 = scmp.eq.s32.totalorder %s31, 1
      %p206 = scmp.ne.s32.totalorder %s201, %s203
      %p207 = scmp.eq.s32.totalorder %s31, 0
      %p208 = por %p206, %p207
      %p209 = scmp.ne.s32.totalorder %s201, %s203
      %p210 = scmp.eq.s32.totalorder %s36, 1
      %p211 = por %p209, %p210
      %p212 = scmp.ne.s32.totalorder %s203, %s204
      %p213 = scmp.eq.s32.totalorder %s36, 0
      %p214 = por %p212, %p213
      %p215 = scmp.ne.s32.totalorder %s203, %s204
      %p216 = scmp.eq.s32.totalorder %s37, 1
      %p217 = por %p215, %p216
      %p219 = scmp.ne.s32.totalorder %s204, %s218
      %p220 = scmp.eq.s32.totalorder %s37, 0
      %p221 = por %p219, %p220
      %s223 = sadd.s32 %s222, 1
      %p226 = scmp.eq.s32.totalorder %s31, 1
      %p227 = scmp.ne.s32.totalorder %s222, %s224
      %p228 = scmp.eq.s32.totalorder %s31, 0
      %p229 = por %p227, %p228
      %p230 = scmp.ne.s32.totalorder %s222, %s224
      %p231 = scmp.eq.s32.totalorder %s36, 1
      %p232 = por %p230, %p231
      %p233 = scmp.ne.s32.totalorder %s224, %s225
      %p234 = scmp.eq.s32.totalorder %s36, 0
      %p235 = por %p233, %p234
      %p236 = scmp.ne.s32.totalorder %s224, %s225
      %p237 = scmp.eq.s32.totalorder %s37, 1
      %p238 = por %p236, %p237
      %p240 = scmp.ne.s32.totalorder %s225, %s239
      %p241 = scmp.eq.s32.totalorder %s37, 0
      %p242 = por %p240, %p241
      %s244 = sadd.s32 %s243, 1
      %p247 = scmp.eq.s32.totalorder %s31, 1
      %p248 = scmp.ne.s32.totalorder %s243, %s245
      %p249 = scmp.eq.s32.totalorder %s31, 0
      %p250 = por %p248, %p249
      %p251 = scmp.ne.s32.totalorder %s243, %s245
      %p252 = scmp.eq.s32.totalorder %s36, 1
      %p253 = por %p251, %p252
      %p254 = scmp.ne.s32.totalorder %s245, %s246
      %p255 = scmp.eq.s32.totalorder %s36, 0
      %p256 = por %p254, %p255
      %p257 = scmp.ne.s32.totalorder %s245, %s246
      %p258 = scmp.eq.s32.totalorder %s37, 1
      %p259 = por %p257, %p258
      %p261 = scmp.ne.s32.totalorder %s246, %s260
      %p262 = scmp.eq.s32.totalorder %s37, 0
      %p263 = por %p261, %p262
      %s265 = sadd.s32 %s264, 1
      %p268 = scmp.eq.s32.totalorder %s31, 1
      %p269 = scmp.ne.s32.totalorder %s264, %s266
      %p270 = scmp.eq.s32.totalorder %s31, 0
      %p271 = por %p269, %p270
      %p272 = scmp.ne.s32.totalorder %s264, %s266
      %p273 = scmp.eq.s32.totalorder %s36, 1
      %p274 = por %p272, %p273
      %p275 = scmp.ne.s32.totalorder %s266, %s267
      %p276 = scmp.eq.s32.totalorder %s36, 0
      %p277 = por %p275, %p276
      %p278 = scmp.ne.s32.totalorder %s266, %s267
      %p279 = scmp.eq.s32.totalorder %s37, 1
      %p280 = por %p278, %p279
      %p282 = scmp.ne.s32.totalorder %s267, %s281
      %p283 = scmp.eq.s32.totalorder %s37, 0
      %p284 = por %p282, %p283
      %s286 = sadd.s32 %s285, 1
      %p289 = scmp.eq.s32.totalorder %s31, 1
      %p290 = scmp.ne.s32.totalorder %s285, %s287
      %p291 = scmp.eq.s32.totalorder %s31, 0
      %p292 = por %p290, %p291
      %p293 = scmp.ne.s32.totalorder %s285, %s287
      %p294 = scmp.eq.s32.totalorder %s36, 1
      %p295 = por %p293, %p294
      %p296 = scmp.ne.s32.totalorder %s287, %s288
      %p297 = scmp.eq.s32.totalorder %s36, 0
      %p298 = por %p296, %p297
      %p299 = scmp.ne.s32.totalorder %s287, %s288
      %p300 = scmp.eq.s32.totalorder %s37, 1
      %p301 = por %p299, %p300
      %p303 = scmp.ne.s32.totalorder %s288, %s302
      %p304 = scmp.eq.s32.totalorder %s37, 0
      %p305 = por %p303, %p304
      %s307 = sadd.s32 %s306, 1
      %p310 = scmp.eq.s32.totalorder %s31, 1
      %p311 = scmp.ne.s32.totalorder %s306, %s308
      %p312 = scmp.eq.s32.totalorder %s31, 0
      %p313 = por %p311, %p312
      %p314 = scmp.ne.s32.totalorder %s306, %s308
      %p315 = scmp.eq.s32.totalorder %s36, 1
      %p316 = por %p314, %p315
      %p317 = scmp.ne.s32.totalorder %s308, %s309
      %p318 = scmp.eq.s32.totalorder %s36, 0
      %p319 = por %p317, %p318
      %p320 = scmp.ne.s32.totalorder %s308, %s309
      %p321 = scmp.eq.s32.totalorder %s37, 1
      %p322 = por %p320, %p321
      %p324 = scmp.ne.s32.totalorder %s309, %s323
      %p325 = scmp.eq.s32.totalorder %s37, 0
      %p326 = por %p324, %p325
      %s328 = sadd.s32 %s327, 1
      %p331 = scmp.eq.s32.totalorder %s31, 1
      %p332 = scmp.ne.s32.totalorder %s327, %s329
      %p333 = scmp.eq.s32.totalorder %s31, 0
      %p334 = por %p332, %p333
      %p335 = scmp.ne.s32.totalorder %s327, %s329
      %p336 = scmp.eq.s32.totalorder %s36, 1
      %p337 = por %p335, %p336
      %p338 = scmp.ne.s32.totalorder %s329, %s330
      %p339 = scmp.eq.s32.totalorder %s36, 0
      %p340 = por %p338, %p339
      %p341 = scmp.ne.s32.totalorder %s329, %s330
      %p342 = scmp.eq.s32.totalorder %s37, 1
      %p343 = por %p341, %p342
      %p345 = scmp.ne.s32.totalorder %s330, %s344
      %p346 = scmp.eq.s32.totalorder %s37, 0
      %p347 = por %p345, %p346
      %s349 = sadd.s32 %s348, 1
      %p352 = scmp.eq.s32.totalorder %s31, 1
      %p353 = scmp.ne.s32.totalorder %s348, %s350
      %p354 = scmp.eq.s32.totalorder %s31, 0
      %p355 = por %p353, %p354
      %p356 = scmp.ne.s32.totalorder %s348, %s350
      %p357 = scmp.eq.s32.totalorder %s36, 1
      %p358 = por %p356, %p357
      %p359 = scmp.ne.s32.totalorder %s350, %s351
      %p360 = scmp.eq.s32.totalorder %s36, 0
      %p361 = por %p359, %p360
      %p362 = scmp.ne.s32.totalorder %s350, %s351
      %p363 = scmp.eq.s32.totalorder %s37, 1
      %p364 = por %p362, %p363
      %p366 = scmp.ne.s32.totalorder %s351, %s365
      %p367 = scmp.eq.s32.totalorder %s37, 0
      %p368 = por %p366, %p367
      %s370 = sadd.s32 %s369, 1
      %p373 = scmp.eq.s32.totalorder %s31, 1
      %p374 = scmp.ne.s32.totalorder %s369, %s371
      %p375 = scmp.eq.s32.totalorder %s31, 0
      %p376 = por %p374, %p375
      %p377 = scmp.ne.s32.totalorder %s369, %s371
      %p378 = scmp.eq.s32.totalorder %s36, 1
      %p379 = por %p377, %p378
      %p380 = scmp.ne.s32.totalorder %s371, %s372
      %p381 = scmp.eq.s32.totalorder %s36, 0
      %p382 = por %p380, %p381
      %p383 = scmp.ne.s32.totalorder %s371, %s372
      %p384 = scmp.eq.s32.totalorder %s37, 1
      %p385 = por %p383, %p384
      %p387 = scmp.ne.s32.totalorder %s372, %s386
      %p388 = scmp.eq.s32.totalorder %s37, 0
      %p389 = por %p387, %p388
      %s391 = sadd.s32 %s390, 1
      %p394 = scmp.eq.s32.totalorder %s31, 1
      %p395 = scmp.ne.s32.totalorder %s390, %s392
      %p396 = scmp.eq.s32.totalorder %s31, 0
      %p397 = por %p395, %p396
      %p398 = scmp.ne.s32.totalorder %s390, %s392
      %p399 = scmp.eq.s32.totalorder %s36, 1
      %p400 = por %p398, %p399
      %p401 = scmp.ne.s32.totalorder %s392, %s393
      %p402 = scmp.eq.s32.totalorder %s36, 0
      %p403 = por %p401, %p402
      %p404 = scmp.ne.s32.totalorder %s392, %s393
      %p405 = scmp.eq.s32.totalorder %s37, 1
      %p406 = por %p404, %p405
      %p408 = scmp.ne.s32.totalorder %s393, %s407
      %p409 = scmp.eq.s32.totalorder %s37, 0
      %p410 = por %p408, %p409
      %s412 = sadd.s32 %s411, 1
      %p415 = scmp.eq.s32.totalorder %s31, 1
      %p416 = scmp.ne.s32.totalorder %s411, %s413
      %p417 = scmp.eq.s32.totalorder %s31, 0
      %p418 = por %p416, %p417
      %p419 = scmp.ne.s32.totalorder %s411, %s413
      %p420 = scmp.eq.s32.totalorder %s36, 1
      %p421 = por %p419, %p420
      %p422 = scmp.ne.s32.totalorder %s413, %s414
      %p423 = scmp.eq.s32.totalorder %s36, 0
      %p424 = por %p422, %p423
      %p425 = scmp.ne.s32.totalorder %s413, %s414
      %p426 = scmp.eq.s32.totalorder %s37, 1
      %p427 = por %p425, %p426
      %p429 = scmp.ne.s32.totalorder %s414, %s428
      %p430 = scmp.eq.s32.totalorder %s37, 0
      %p431 = por %p429, %p430
      %s433 = sadd.s32 %s432, 1
      %p436 = scmp.eq.s32.totalorder %s31, 1
      %p437 = scmp.ne.s32.totalorder %s432, %s434
      %p438 = scmp.eq.s32.totalorder %s31, 0
      %p439 = por %p437, %p438
      %p440 = scmp.ne.s32.totalorder %s432, %s434
      %p441 = scmp.eq.s32.totalorder %s36, 1
      %p442 = por %p440, %p441
      %p443 = scmp.ne.s32.totalorder %s434, %s435
      %p444 = scmp.eq.s32.totalorder %s36, 0
      %p445 = por %p443, %p444
      %p446 = scmp.ne.s32.totalorder %s434, %s435
      %p447 = scmp.eq.s32.totalorder %s37, 1
      %p448 = por %p446, %p447
      %p450 = scmp.ne.s32.totalorder %s435, %s449
      %p451 = scmp.eq.s32.totalorder %s37, 0
      %p452 = por %p450, %p451
      %s453 = ssub.s32 %s31, %s38
      %p454 = scmp.eq.s32.totalorder %s453, 0
      %s456 = sadd.s32 %s455, 1
      %s457 = scalar_select %p454, %s455, %s456
      %p460 = pneg %p454
      %p461 = scmp.eq.s32.totalorder %s31, 1
      %p462 = por %p460, %p461
      %p463 = scmp.ne.s32.totalorder %s455, %s458
      %p464 = scmp.eq.s32.totalorder %s31, 0
      %p465 = por %p463, %p464
      %p466 = scmp.ne.s32.totalorder %s455, %s458
      %p467 = scmp.eq.s32.totalorder %s36, 1
      %p468 = por %p466, %p467
      %p469 = scmp.ne.s32.totalorder %s458, %s459
      %p470 = scmp.eq.s32.totalorder %s36, 0
      %p471 = por %p469, %p470
      %p472 = scmp.ne.s32.totalorder %s458, %s459
      %p473 = scmp.eq.s32.totalorder %s37, 1
      %p474 = por %p472, %p473
      %p476 = scmp.ne.s32.totalorder %s459, %s475
      %p477 = scmp.eq.s32.totalorder %s37, 0
      %p478 = por %p476, %p477
      %p479 = scmp.le.s32.totalorder 1, %s31
      %p480 = scmp.lt.s32.totalorder %s31, 3
      %p481 = pnand %p479, %p480
      %p482 = pneg %p481
      // Predicated region
      $region9: #{tpu_custom_call.1} parent=5 // pred_check
        _
      $region10: #{tpu_custom_call.1} parent=5 // pred_check_branch
        %484 = sbr.rel (%p481) target = $region12
      $region11: #{tpu_custom_call.1} parent=5 // pred_region
        %s485 = ssub.s32 %s31, 1
        // Predicated region
        $region13: #{tpu_custom_call.1} parent=11 // pred_check
          %p486 = pneg %p130
        $region14: #{tpu_custom_call.1} parent=11 // pred_check_branch
          %488 = sbr.rel (%p486) target = $region16
        $region15: #{tpu_custom_call.1} parent=11 // pred_region
          _
        $region16: #{tpu_custom_call.1} parent=11 // pred_fallthru
          _
        // Predicated region
        $region17: #{tpu_custom_call.1} parent=11 // pred_check
          %p489 = pneg %p151
        $region18: #{tpu_custom_call.1} parent=11 // pred_check_branch
          %491 = sbr.rel (%p489) target = $region20
        $region19: #{tpu_custom_call.1} parent=11 // pred_region
          _
        $region20: #{tpu_custom_call.1} parent=11 // pred_fallthru
          _
        // Predicated region
        $region21: #{tpu_custom_call.1} parent=11 // pred_check
          %p492 = pneg %p172
        $region22: #{tpu_custom_call.1} parent=11 // pred_check_branch
          %494 = sbr.rel (%p492) target = $region24
        $region23: #{tpu_custom_call.1} parent=11 // pred_region
          _
        $region24: #{tpu_custom_call.1} parent=11 // pred_fallthru
          _
        // Predicated region
        $region25: #{tpu_custom_call.1} parent=11 // pred_check
          %p495 = pneg %p193
        $region26: #{tpu_custom_call.1} parent=11 // pred_check_branch
          %497 = sbr.rel (%p495) target = $region28
        $region27: #{tpu_custom_call.1} parent=11 // pred_region
          _
        $region28: #{tpu_custom_call.1} parent=11 // pred_fallthru
          _
        // Predicated region
        $region29: #{tpu_custom_call.1} parent=11 // pred_check
          %p498 = pneg %p214
        $region30: #{tpu_custom_call.1} parent=11 // pred_check_branch
          %500 = sbr.rel (%p498) target = $region32
        $region31: #{tpu_custom_call.1} parent=11 // pred_region
          _
        $region32: #{tpu_custom_call.1} parent=11 // pred_fallthru
          _
        // Predicated region
        $region33: #{tpu_custom_call.1} parent=11 // pred_check
          %p501 = pneg %p235
        $region34: #{tpu_custom_call.1} parent=11 // pred_check_branch
          %503 = sbr.rel (%p501) target = $region36
        $region35: #{tpu_custom_call.1} parent=11 // pred_region
          _
        $region36: #{tpu_custom_call.1} parent=11 // pred_fallthru
          _
        // Predicated region
        $region37: #{tpu_custom_call.1} parent=11 // pred_check
          %p504 = pneg %p256
        $region38: #{tpu_custom_call.1} parent=11 // pred_check_branch
          %506 = sbr.rel (%p504) target = $region40
        $region39: #{tpu_custom_call.1} parent=11 // pred_region
          %s508 = ssub.s32 12800, 12800
          %509 = vsyncadd [#allocation8], %s508
          %s510 = sshll.u32 [#allocation7], 4
          %s511 = int_to_ptr.vmem [resolvable:$true] %s510
          %516 = dma.hbm_to_vmem [thread:$0]  %s9, 12800, %s511, [#allocation8], 256, 256, 16
        $region40: #{tpu_custom_call.1} parent=11 // pred_fallthru
          _
        // Predicated region
        $region41: #{tpu_custom_call.1} parent=11 // pred_check
          %p517 = pneg %p277
        $region42: #{tpu_custom_call.1} parent=11 // pred_check_branch
          %519 = sbr.rel (%p517) target = $region44
        $region43: #{tpu_custom_call.1} parent=11 // pred_region
          _
        $region44: #{tpu_custom_call.1} parent=11 // pred_fallthru
          _
        // Predicated region
        $region45: #{tpu_custom_call.1} parent=11 // pred_check
          %p520 = pneg %p298
        $region46: #{tpu_custom_call.1} parent=11 // pred_check_branch
          %522 = sbr.rel (%p520) target = $region48
        $region47: #{tpu_custom_call.1} parent=11 // pred_region
          _
        $region48: #{tpu_custom_call.1} parent=11 // pred_fallthru
          _
        // Predicated region
        $region49: #{tpu_custom_call.1} parent=11 // pred_check
          %p523 = pneg %p319
        $region50: #{tpu_custom_call.1} parent=11 // pred_check_branch
          %525 = sbr.rel (%p523) target = $region52
        $region51: #{tpu_custom_call.1} parent=11 // pred_region
          _
        $region52: #{tpu_custom_call.1} parent=11 // pred_fallthru
          _
        // Predicated region
        $region53: #{tpu_custom_call.1} parent=11 // pred_check
          %p526 = pneg %p340
        $region54: #{tpu_custom_call.1} parent=11 // pred_check_branch
          %528 = sbr.rel (%p526) target = $region56
        $region55: #{tpu_custom_call.1} parent=11 // pred_region
          _
        $region56: #{tpu_custom_call.1} parent=11 // pred_fallthru
          _
        // Predicated region
        $region57: #{tpu_custom_call.1} parent=11 // pred_check
          %p529 = pneg %p361
        $region58: #{tpu_custom_call.1} parent=11 // pred_check_branch
          %531 = sbr.rel (%p529) target = $region60
        $region59: #{tpu_custom_call.1} parent=11 // pred_region
          _
        $region60: #{tpu_custom_call.1} parent=11 // pred_fallthru
          _
        // Predicated region
        $region61: #{tpu_custom_call.1} parent=11 // pred_check
          %p532 = pneg %p382
        $region62: #{tpu_custom_call.1} parent=11 // pred_check_branch
          %534 = sbr.rel (%p532) target = $region64
        $region63: #{tpu_custom_call.1} parent=11 // pred_region
          _
        $region64: #{tpu_custom_call.1} parent=11 // pred_fallthru
          _
        // Predicated region
        $region65: #{tpu_custom_call.1} parent=11 // pred_check
          %p535 = pneg %p403
        $region66: #{tpu_custom_call.1} parent=11 // pred_check_branch
          %537 = sbr.rel (%p535) target = $region68
        $region67: #{tpu_custom_call.1} parent=11 // pred_region
          _
        $region68: #{tpu_custom_call.1} parent=11 // pred_fallthru
          _
        // Predicated region
        $region69: #{tpu_custom_call.1} parent=11 // pred_check
          %p538 = pneg %p424
        $region70: #{tpu_custom_call.1} parent=11 // pred_check_branch
          %540 = sbr.rel (%p538) target = $region72
        $region71: #{tpu_custom_call.1} parent=11 // pred_region
          _
        $region72: #{tpu_custom_call.1} parent=11 // pred_fallthru
          _
        // Predicated region
        $region73: #{tpu_custom_call.1} parent=11 // pred_check
          %p541 = pneg %p445
        $region74: #{tpu_custom_call.1} parent=11 // pred_check_branch
          %543 = sbr.rel (%p541) target = $region76
        $region75: #{tpu_custom_call.1} parent=11 // pred_region
          _
        $region76: #{tpu_custom_call.1} parent=11 // pred_fallthru
          _
      $region12: #{tpu_custom_call.1} parent=5 // pred_fallthru
        _
      %p544 = scmp.lt.s32.totalorder %s31, 2
      // Predicated region
      $region77: #{tpu_custom_call.1} parent=5 // pred_check
        %p545 = pneg %p544
      $region78: #{tpu_custom_call.1} parent=5 // pred_check_branch
        %547 = sbr.rel (%p545) target = $region80
      $region79: #{tpu_custom_call.1} parent=5 // pred_region
        // Predicated region
        $region81: #{tpu_custom_call.1} parent=79 // pred_check
          %p548 = pneg %p51
        $region82: #{tpu_custom_call.1} parent=79 // pred_check_branch
          %550 = sbr.rel (%p548) target = $region84
        $region83: #{tpu_custom_call.1} parent=79 // pred_region
          %s551 = smul.u32 16, %s31
          %p552 = scmp.lt.s32.totalorder %s551, 31
          %s553 = scalar_select %p552, %s551, 31
          %s554 = smul.addr %s553, 4
          %s555 = smul.addr %s554, 8
          %s556 = scalar_lea.vmem %s0, %s555
          %s557 = smul.u32 16, %s31
        $region84: #{tpu_custom_call.1} parent=79 // pred_fallthru
          _
        // Predicated region
        $region85: #{tpu_custom_call.1} parent=79 // pred_check
          %p558 = pneg %p77
        $region86: #{tpu_custom_call.1} parent=79 // pred_check_branch
          %560 = sbr.rel (%p558) target = $region88
        $region87: #{tpu_custom_call.1} parent=79 // pred_region
          %p561 = scmp.lt.s32.totalorder %s31, 1
          %s562 = scalar_select %p561, %s31, 1
          %s563 = scalar_lea.vmem %s1, %s562
        $region88: #{tpu_custom_call.1} parent=79 // pred_fallthru
          _
        // Predicated region
        $region89: #{tpu_custom_call.1} parent=79 // pred_check
          %p564 = pneg %p103
        $region90: #{tpu_custom_call.1} parent=79 // pred_check_branch
          %566 = sbr.rel (%p564) target = $region92
        $region91: #{tpu_custom_call.1} parent=79 // pred_region
          %s567 = smul.u32 16, %s31
          %p568 = scmp.lt.s32.totalorder %s567, 31
          %s569 = scalar_select %p568, %s567, 31
          %s570 = smul.addr %s569, 8
          %s571 = scalar_lea.vmem %s2, %s570
          %s572 = smul.u32 16, %s31
        $region92: #{tpu_custom_call.1} parent=79 // pred_fallthru
          _
      $region80: #{tpu_custom_call.1} parent=5 // pred_fallthru
        _
      %p573 = scmp.le.s32.totalorder 1, %s31
      %p574 = scmp.lt.s32.totalorder %s31, 3
      %p575 = pnand %p573, %p574
      %p576 = pneg %p575
      // Predicated region
      $region93: #{tpu_custom_call.1} parent=5 // pred_check
        _
      $region94: #{tpu_custom_call.1} parent=5 // pred_check_branch
        %578 = sbr.rel (%p575) target = $region96
      $region95: #{tpu_custom_call.1} parent=5 // pred_region
        %s579 = ssub.s32 %s31, 1
        // Predicated region
        $region97: #{tpu_custom_call.1} parent=95 // pred_check
          %p580 = pneg %p256
        $region98: #{tpu_custom_call.1} parent=95 // pred_check_branch
          %582 = sbr.rel (%p580) target = $region100
        $region99: #{tpu_custom_call.1} parent=95 // pred_region
          %583 = dma.done [#allocation8], 12800
        $region100: #{tpu_custom_call.1} parent=95 // pred_fallthru
          _
        %s584 = smul.u32 16, %s36
        %p585 = scmp.lt.s32.totalorder %s584, 31
        %s586 = scalar_select %p585, %s584, 31
        %s587 = smul.addr %s586, 4
        %s588 = smul.addr %s587, 8
        %s589 = scalar_lea.vmem %s0, %s588
        %p590 = pneg %p57
        %p591 = pneg %p54
        %p592 = scmp.lt.s32.totalorder %s36, 1
        %s593 = scalar_select %p592, %s36, 1
        %s594 = scalar_lea.vmem %s1, %s593
        %p595 = pneg %p83
        %p596 = pneg %p80
        %s597 = smul.u32 16, %s36
        %p598 = scmp.lt.s32.totalorder %s597, 31
        %s599 = scalar_select %p598, %s597, 31
        %s600 = smul.addr %s599, 8
        %s601 = scalar_lea.vmem %s2, %s600
        %p602 = pneg %p109
        %p603 = pneg %p106
        %p604 = pneg %p130
        %p605 = pneg %p127
        %p606 = pneg %p151
        %p607 = pneg %p148
        %p608 = pneg %p172
        %p609 = pneg %p169
        %p610 = pneg %p193
        %p611 = pneg %p190
        %p612 = pneg %p214
        %p613 = pneg %p211
        %p614 = pneg %p235
        %p615 = pneg %p232
        %p616 = pneg %p256
        %p617 = pneg %p253
        %p618 = pneg %p277
        %p619 = pneg %p274
        %p620 = pneg %p298
        %p621 = pneg %p295
        %p622 = pneg %p319
        %p623 = pneg %p316
        %p624 = pneg %p340
        %p625 = pneg %p337
        %p626 = pneg %p361
        %p627 = pneg %p358
        %p628 = pneg %p382
        %p629 = pneg %p379
        %p630 = pneg %p403
        %p631 = pneg %p400
        %p632 = pneg %p424
        %p633 = pneg %p421
        %p634 = pneg %p445
        %p635 = pneg %p442
        %p636 = pneg %p471
        %p637 = pneg %p468
        %s638 = sand.u32 %s458, 1
        %s639 = scalar_lea.sflag [#allocation9], %s638
        %s640 = sand.u32 %s458, 1
        %s641 = smul.addr %s640, 64
        %s642 = scalar_lea.vmem [#allocation10], %s641
        %s643 = smul.u32 16, %s36
        %p644 = scmp.lt.s32.totalorder %s643, 31
        %s645 = scalar_select %p644, %s643, 31
        %s646 = smul.addr %s645, 4
        %s647 = smul.addr %s646, 8
        %s648 = scalar_lea.vmem %s0, %s647
        %s649 = smul.u32 16, %s36
        %p650 = scmp.lt.s32.totalorder %s36, 1
        %s651 = scalar_select %p650, %s36, 1
        %s652 = scalar_lea.vmem %s1, %s651
        %s653 = smul.u32 16, %s36
        %p654 = scmp.lt.s32.totalorder %s653, 31
        %s655 = scalar_select %p654, %s653, 31
        %s656 = smul.addr %s655, 8
        %s657 = scalar_lea.vmem %s2, %s656
        %s658 = smul.u32 16, %s36
        %s659 = smul.u32 2, %s36
        %v661 = vld [vmem:[%s648] sm:$0xff]
        %v662 = vld [vmem:[%s648 + $0x8] sm:$0xff]
        %v663 = vld [vmem:[%s648 + $0x10] sm:$0xff]
        %v664 = vld [vmem:[%s648 + $0x18] sm:$0xff]
        %v665 = vld [vmem:[%s648 + $0x20] sm:$0xff]
        %v666 = vld [vmem:[%s648 + $0x28] sm:$0xff]
        %v667 = vld [vmem:[%s648 + $0x30] sm:$0xff]
        %v668 = vld [vmem:[%s648 + $0x38] sm:$0xff]
        %v669 = vld [vmem:[%s648 + $0x40] sm:$0xff]
        %v670 = vld [vmem:[%s648 + $0x48] sm:$0xff]
        %v671 = vld [vmem:[%s648 + $0x50] sm:$0xff]
        %v672 = vld [vmem:[%s648 + $0x58] sm:$0xff]
        %v673 = vld [vmem:[%s648 + $0x60] sm:$0xff]
        %v674 = vld [vmem:[%s648 + $0x68] sm:$0xff]
        %v675 = vld [vmem:[%s648 + $0x70] sm:$0xff]
        %v676 = vld [vmem:[%s648 + $0x78] sm:$0xff]
        %v677 = vld [vmem:[%s648 + $0x80] sm:$0xff]
        %v678 = vld [vmem:[%s648 + $0x88] sm:$0xff]
        %v679 = vld [vmem:[%s648 + $0x90] sm:$0xff]
        %v680 = vld [vmem:[%s648 + $0x98] sm:$0xff]
        %v681 = vld [vmem:[%s648 + $0xa0] sm:$0xff]
        %v682 = vld [vmem:[%s648 + $0xa8] sm:$0xff]
        %v683 = vld [vmem:[%s648 + $0xb0] sm:$0xff]
        %v684 = vld [vmem:[%s648 + $0xb8] sm:$0xff]
        %v685 = vld [vmem:[%s648 + $0xc0] sm:$0xff]
        %v686 = vld [vmem:[%s648 + $0xc8] sm:$0xff]
        %v687 = vld [vmem:[%s648 + $0xd0] sm:$0xff]
        %v688 = vld [vmem:[%s648 + $0xd8] sm:$0xff]
        %v689 = vld [vmem:[%s648 + $0xe0] sm:$0xff]
        %v690 = vld [vmem:[%s648 + $0xe8] sm:$0xff]
        %v691 = vld [vmem:[%s648 + $0xf0] sm:$0xff]
        %v692 = vld [vmem:[%s648 + $0xf8] sm:$0xff]
        %v693 = vld [vmem:[%s648 + $0x100] sm:$0xff]
        %v694 = vld [vmem:[%s648 + $0x108] sm:$0xff]
        %v695 = vld [vmem:[%s648 + $0x110] sm:$0xff]
        %v696 = vld [vmem:[%s648 + $0x118] sm:$0xff]
        %v697 = vld [vmem:[%s648 + $0x120] sm:$0xff]
        %v698 = vld [vmem:[%s648 + $0x128] sm:$0xff]
        %v699 = vld [vmem:[%s648 + $0x130] sm:$0xff]
        %v700 = vld [vmem:[%s648 + $0x138] sm:$0xff]
        %v701 = vld [vmem:[%s648 + $0x140] sm:$0xff]
        %v702 = vld [vmem:[%s648 + $0x148] sm:$0xff]
        %v703 = vld [vmem:[%s648 + $0x150] sm:$0xff]
        %v704 = vld [vmem:[%s648 + $0x158] sm:$0xff]
        %v705 = vld [vmem:[%s648 + $0x160] sm:$0xff]
        %v706 = vld [vmem:[%s648 + $0x168] sm:$0xff]
        %v707 = vld [vmem:[%s648 + $0x170] sm:$0xff]
        %v708 = vld [vmem:[%s648 + $0x178] sm:$0xff]
        %v709 = vld [vmem:[%s648 + $0x180] sm:$0xff]
        %v710 = vld [vmem:[%s648 + $0x188] sm:$0xff]
        %v711 = vld [vmem:[%s648 + $0x190] sm:$0xff]
        %v712 = vld [vmem:[%s648 + $0x198] sm:$0xff]
        %v713 = vld [vmem:[%s648 + $0x1a0] sm:$0xff]
        %v714 = vld [vmem:[%s648 + $0x1a8] sm:$0xff]
        %v715 = vld [vmem:[%s648 + $0x1b0] sm:$0xff]
        %v716 = vld [vmem:[%s648 + $0x1b8] sm:$0xff]
        %v717 = vld [vmem:[%s648 + $0x1c0] sm:$0xff]
        %v718 = vld [vmem:[%s648 + $0x1c8] sm:$0xff]
        %v719 = vld [vmem:[%s648 + $0x1d0] sm:$0xff]
        %v720 = vld [vmem:[%s648 + $0x1d8] sm:$0xff]
        %v721 = vld [vmem:[%s648 + $0x1e0] sm:$0xff]
        %v722 = vld [vmem:[%s648 + $0x1e8] sm:$0xff]
        %v723 = vld [vmem:[%s648 + $0x1f0] sm:$0xff]
        %v724 = vld [vmem:[%s648 + $0x1f8] sm:$0xff]
        %v725 = vpack.c.bf16 %v665, %v661
        %v726 = vpack.c.bf16 %v666, %v662
        %v727 = vpack.c.bf16 %v667, %v663
        %v728 = vpack.c.bf16 %v668, %v664
        %v729 = vpack.c.bf16 %v673, %v669
        %v730 = vpack.c.bf16 %v674, %v670
        %v731 = vpack.c.bf16 %v675, %v671
        %v732 = vpack.c.bf16 %v676, %v672
        %v733 = vpack.c.bf16 %v681, %v677
        %v734 = vpack.c.bf16 %v682, %v678
        %v735 = vpack.c.bf16 %v683, %v679
        %v736 = vpack.c.bf16 %v684, %v680
        %v737 = vpack.c.bf16 %v689, %v685
        %v738 = vpack.c.bf16 %v690, %v686
        %v739 = vpack.c.bf16 %v691, %v687
        %v740 = vpack.c.bf16 %v692, %v688
        %v741 = vpack.c.bf16 %v697, %v693
        %v742 = vpack.c.bf16 %v698, %v694
        %v743 = vpack.c.bf16 %v699, %v695
        %v744 = vpack.c.bf16 %v700, %v696
        %v745 = vpack.c.bf16 %v705, %v701
        %v746 = vpack.c.bf16 %v706, %v702
        %v747 = vpack.c.bf16 %v707, %v703
        %v748 = vpack.c.bf16 %v708, %v704
        %v749 = vpack.c.bf16 %v713, %v709
        %v750 = vpack.c.bf16 %v714, %v710
        %v751 = vpack.c.bf16 %v715, %v711
        %v752 = vpack.c.bf16 %v716, %v712
        %v753 = vpack.c.bf16 %v721, %v717
        %v754 = vpack.c.bf16 %v722, %v718
        %v755 = vpack.c.bf16 %v723, %v719
        %v756 = vpack.c.bf16 %v724, %v720
        %v757 = vld [vmem:[%s5] sm:$0xff]
        %v758 = vld [vmem:[%s5 + $0x8] sm:$0xff]
        %v759 = vld [vmem:[%s5 + $0x10] sm:$0xff]
        %v760 = vld [vmem:[%s5 + $0x18] sm:$0xff]
        %v761 = vld [vmem:[%s5 + $0x20] sm:$0xff]
        %v762 = vld [vmem:[%s5 + $0x28] sm:$0xff]
        %v763 = vld [vmem:[%s5 + $0x30] sm:$0xff]
        %v764 = vld [vmem:[%s5 + $0x38] sm:$0xff]
        %v765 = vld [vmem:[%s5 + $0x40] sm:$0xff]
        %v766 = vld [vmem:[%s5 + $0x48] sm:$0xff]
        %v767 = vld [vmem:[%s5 + $0x50] sm:$0xff]
        %v768 = vld [vmem:[%s5 + $0x58] sm:$0xff]
        %v769 = vld [vmem:[%s5 + $0x60] sm:$0xff]
        %v770 = vld [vmem:[%s5 + $0x68] sm:$0xff]
        %v771 = vld [vmem:[%s5 + $0x70] sm:$0xff]
        %v772 = vld [vmem:[%s5 + $0x78] sm:$0xff]
        %v773 = vld [vmem:[%s5 + $0x80] sm:$0xff]
        %v774 = vld [vmem:[%s5 + $0x88] sm:$0xff]
        %v775 = vld [vmem:[%s5 + $0x90] sm:$0xff]
        %v776 = vld [vmem:[%s5 + $0x98] sm:$0xff]
        %v777 = vld [vmem:[%s5 + $0xa0] sm:$0xff]
        %v778 = vld [vmem:[%s5 + $0xa8] sm:$0xff]
        %v779 = vld [vmem:[%s5 + $0xb0] sm:$0xff]
        %v780 = vld [vmem:[%s5 + $0xb8] sm:$0xff]
        %v781 = vld [vmem:[%s5 + $0xc0] sm:$0xff]
        %v782 = vld [vmem:[%s5 + $0xc8] sm:$0xff]
        %v783 = vld [vmem:[%s5 + $0xd0] sm:$0xff]
        %v784 = vld [vmem:[%s5 + $0xd8] sm:$0xff]
        %v785 = vld [vmem:[%s5 + $0xe0] sm:$0xff]
        %v786 = vld [vmem:[%s5 + $0xe8] sm:$0xff]
        %v787 = vld [vmem:[%s5 + $0xf0] sm:$0xff]
        %v788 = vld [vmem:[%s5 + $0xf8] sm:$0xff]
        %v789 = vld [vmem:[%s5 + $0x100] sm:$0xff]
        %v790 = vld [vmem:[%s5 + $0x108] sm:$0xff]
        %v791 = vld [vmem:[%s5 + $0x110] sm:$0xff]
        %v792 = vld [vmem:[%s5 + $0x118] sm:$0xff]
        %v793 = vld [vmem:[%s5 + $0x120] sm:$0xff]
        %v794 = vld [vmem:[%s5 + $0x128] sm:$0xff]
        %v795 = vld [vmem:[%s5 + $0x130] sm:$0xff]
        %v796 = vld [vmem:[%s5 + $0x138] sm:$0xff]
        %v797 = vld [vmem:[%s5 + $0x140] sm:$0xff]
        %v798 = vld [vmem:[%s5 + $0x148] sm:$0xff]
        %v799 = vld [vmem:[%s5 + $0x150] sm:$0xff]
        %v800 = vld [vmem:[%s5 + $0x158] sm:$0xff]
        %v801 = vld [vmem:[%s5 + $0x160] sm:$0xff]
        %v802 = vld [vmem:[%s5 + $0x168] sm:$0xff]
        %v803 = vld [vmem:[%s5 + $0x170] sm:$0xff]
        %v804 = vld [vmem:[%s5 + $0x178] sm:$0xff]
        %v805 = vld [vmem:[%s5 + $0x180] sm:$0xff]
        %v806 = vld [vmem:[%s5 + $0x188] sm:$0xff]
        %v807 = vld [vmem:[%s5 + $0x190] sm:$0xff]
        %v808 = vld [vmem:[%s5 + $0x198] sm:$0xff]
        %v809 = vld [vmem:[%s5 + $0x1a0] sm:$0xff]
        %v810 = vld [vmem:[%s5 + $0x1a8] sm:$0xff]
        %v811 = vld [vmem:[%s5 + $0x1b0] sm:$0xff]
        %v812 = vld [vmem:[%s5 + $0x1b8] sm:$0xff]
        %v813 = vld [vmem:[%s5 + $0x1c0] sm:$0xff]
        %v814 = vld [vmem:[%s5 + $0x1c8] sm:$0xff]
        %v815 = vld [vmem:[%s5 + $0x1d0] sm:$0xff]
        %v816 = vld [vmem:[%s5 + $0x1d8] sm:$0xff]
        %v817 = vld [vmem:[%s5 + $0x1e0] sm:$0xff]
        %v818 = vld [vmem:[%s5 + $0x1e8] sm:$0xff]
        %v819 = vld [vmem:[%s5 + $0x1f0] sm:$0xff]
        %v820 = vld [vmem:[%s5 + $0x1f8] sm:$0xff]
        %v821 = vld [vmem:[%s5 + $0x200] sm:$0xff]
        %v822 = vld [vmem:[%s5 + $0x208] sm:$0xff]
        %v823 = vld [vmem:[%s5 + $0x210] sm:$0xff]
        %v824 = vld [vmem:[%s5 + $0x218] sm:$0xff]
        %v825 = vld [vmem:[%s5 + $0x220] sm:$0xff]
        %v826 = vld [vmem:[%s5 + $0x228] sm:$0xff]
        %v827 = vld [vmem:[%s5 + $0x230] sm:$0xff]
        %v828 = vld [vmem:[%s5 + $0x238] sm:$0xff]
        %v829 = vld [vmem:[%s5 + $0x240] sm:$0xff]
        %v830 = vld [vmem:[%s5 + $0x248] sm:$0xff]
        %v831 = vld [vmem:[%s5 + $0x250] sm:$0xff]
        %v832 = vld [vmem:[%s5 + $0x258] sm:$0xff]
        %v833 = vld [vmem:[%s5 + $0x260] sm:$0xff]
        %v834 = vld [vmem:[%s5 + $0x268] sm:$0xff]
        %v835 = vld [vmem:[%s5 + $0x270] sm:$0xff]
        %v836 = vld [vmem:[%s5 + $0x278] sm:$0xff]
        %v837 = vld [vmem:[%s5 + $0x280] sm:$0xff]
        %v838 = vld [vmem:[%s5 + $0x288] sm:$0xff]
        %v839 = vld [vmem:[%s5 + $0x290] sm:$0xff]
        %v840 = vld [vmem:[%s5 + $0x298] sm:$0xff]
        %v841 = vld [vmem:[%s5 + $0x2a0] sm:$0xff]
        %v842 = vld [vmem:[%s5 + $0x2a8] sm:$0xff]
        %v843 = vld [vmem:[%s5 + $0x2b0] sm:$0xff]
        %v844 = vld [vmem:[%s5 + $0x2b8] sm:$0xff]
        %v845 = vld [vmem:[%s5 + $0x2c0] sm:$0xff]
        %v846 = vld [vmem:[%s5 + $0x2c8] sm:$0xff]
        %v847 = vld [vmem:[%s5 + $0x2d0] sm:$0xff]
        %v848 = vld [vmem:[%s5 + $0x2d8] sm:$0xff]
        %v849 = vld [vmem:[%s5 + $0x2e0] sm:$0xff]
        %v850 = vld [vmem:[%s5 + $0x2e8] sm:$0xff]
        %v851 = vld [vmem:[%s5 + $0x2f0] sm:$0xff]
        %v852 = vld [vmem:[%s5 + $0x2f8] sm:$0xff]
        %v853 = vld [vmem:[%s5 + $0x300] sm:$0xff]
        %v854 = vld [vmem:[%s5 + $0x308] sm:$0xff]
        %v855 = vld [vmem:[%s5 + $0x310] sm:$0xff]
        %v856 = vld [vmem:[%s5 + $0x318] sm:$0xff]
        %v857 = vld [vmem:[%s6] sm:$0xf]
        %v859 = vlaneseq
        %v860 = vshrl.u32 %v859, 7
        %v861 = vsub.s32 0, %v860
        %v862 = vrot.slane %v857, %v861
        %v863 = vlaneseq
        %v864 = vshrl.u32 %v863, 7
        %v865 = vsub.s32 1, %v864
        %v866 = vrot.slane %v857, %v865
        %v867 = vlaneseq
        %v868 = vshrl.u32 %v867, 7
        %v869 = vsub.s32 2, %v868
        %v870 = vrot.slane %v857, %v869
        %v871 = vlaneseq
        %v872 = vshrl.u32 %v871, 7
        %v873 = vsub.s32 3, %v872
        %v874 = vrot.slane %v857, %v873
        %v979 = vunpack.c.l.b16 %v757
        %v980 = vunpack.c.h.b16 %v757
        %v981 = vunpack.c.l.b16 %v758
        %v982 = vunpack.c.h.b16 %v758
        %v983 = vunpack.c.l.b16 %v759
        %v984 = vunpack.c.h.b16 %v759
        %v985 = vunpack.c.l.b16 %v760
        %v986 = vunpack.c.h.b16 %v760
        %v987 = vunpack.c.l.b16 %v761
        %v988 = vunpack.c.h.b16 %v761
        %v989 = vunpack.c.l.b16 %v762
        %v990 = vunpack.c.h.b16 %v762
        %v991 = vunpack.c.l.b16 %v763
        %v992 = vunpack.c.h.b16 %v763
        %v993 = vunpack.c.l.b16 %v764
        %v994 = vunpack.c.h.b16 %v764
        %v995 = vunpack.c.l.b16 %v765
        %v996 = vunpack.c.h.b16 %v765
        %v997 = vunpack.c.l.b16 %v766
        %v998 = vunpack.c.h.b16 %v766
        %v999 = vunpack.c.l.b16 %v767
        %v1000 = vunpack.c.h.b16 %v767
        %v1001 = vunpack.c.l.b16 %v768
        %v1002 = vunpack.c.h.b16 %v768
        %v1003 = vunpack.c.l.b16 %v769
        %v1004 = vunpack.c.h.b16 %v769
        %v1005 = vunpack.c.l.b16 %v770
        %v1006 = vunpack.c.h.b16 %v770
        %v1007 = vunpack.c.l.b16 %v771
        %v1008 = vunpack.c.h.b16 %v771
        %v1009 = vunpack.c.l.b16 %v772
        %v1010 = vunpack.c.h.b16 %v772
        %v1011 = vunpack.c.l.b16 %v773
        %v1012 = vunpack.c.h.b16 %v773
        %v1013 = vunpack.c.l.b16 %v774
        %v1014 = vunpack.c.h.b16 %v774
        %v1015 = vunpack.c.l.b16 %v775
        %v1016 = vunpack.c.h.b16 %v775
        %v1017 = vunpack.c.l.b16 %v776
        %v1018 = vunpack.c.h.b16 %v776
        %v1019 = vunpack.c.l.b16 %v777
        %v1020 = vunpack.c.h.b16 %v777
        %v1021 = vunpack.c.l.b16 %v778
        %v1022 = vunpack.c.h.b16 %v778
        %v1023 = vunpack.c.l.b16 %v779
        %v1024 = vunpack.c.h.b16 %v779
        %v1025 = vunpack.c.l.b16 %v780
        %v1026 = vunpack.c.h.b16 %v780
        %v1027 = vunpack.c.l.b16 %v781
        %v1028 = vunpack.c.h.b16 %v781
        %v1029 = vunpack.c.l.b16 %v782
        %v1030 = vunpack.c.h.b16 %v782
        %v1031 = vunpack.c.l.b16 %v783
        %v1032 = vunpack.c.h.b16 %v783
        %v1033 = vunpack.c.l.b16 %v784
        %v1034 = vunpack.c.h.b16 %v784
        %v1035 = vunpack.c.l.b16 %v785
        %v1036 = vunpack.c.h.b16 %v785
        %v1037 = vunpack.c.l.b16 %v786
        %v1038 = vunpack.c.h.b16 %v786
        %v1039 = vunpack.c.l.b16 %v787
        %v1040 = vunpack.c.h.b16 %v787
        %v1041 = vunpack.c.l.b16 %v788
        %v1042 = vunpack.c.h.b16 %v788
        %v1043 = vunpack.c.l.b16 %v789
        %v1044 = vunpack.c.h.b16 %v789
        %v1045 = vunpack.c.l.b16 %v790
        %v1046 = vunpack.c.h.b16 %v790
        %v1047 = vunpack.c.l.b16 %v791
        %v1048 = vunpack.c.h.b16 %v791
        %v1049 = vunpack.c.l.b16 %v792
        %v1050 = vunpack.c.h.b16 %v792
        %v1051 = vunpack.c.l.b16 %v793
        %v1052 = vunpack.c.h.b16 %v793
        %v1053 = vunpack.c.l.b16 %v794
        %v1054 = vunpack.c.h.b16 %v794
        %v1055 = vunpack.c.l.b16 %v795
        %v1056 = vunpack.c.h.b16 %v795
        %v1057 = vunpack.c.l.b16 %v796
        %v1058 = vunpack.c.h.b16 %v796
        %v1059 = vunpack.c.l.b16 %v797
        %v1060 = vunpack.c.h.b16 %v797
        %v1061 = vunpack.c.l.b16 %v798
        %v1062 = vunpack.c.h.b16 %v798
        %v1063 = vunpack.c.l.b16 %v799
        %v1064 = vunpack.c.h.b16 %v799
        %v1065 = vunpack.c.l.b16 %v800
        %v1066 = vunpack.c.h.b16 %v800
        %v1067 = vunpack.c.l.b16 %v801
        %v1068 = vunpack.c.h.b16 %v801
        %v1069 = vunpack.c.l.b16 %v802
        %v1070 = vunpack.c.h.b16 %v802
        %v1071 = vunpack.c.l.b16 %v803
        %v1072 = vunpack.c.h.b16 %v803
        %v1073 = vunpack.c.l.b16 %v804
        %v1074 = vunpack.c.h.b16 %v804
        %v1075 = vunpack.c.l.b16 %v805
        %v1076 = vunpack.c.h.b16 %v805
        %v1077 = vunpack.c.l.b16 %v806
        %v1078 = vunpack.c.h.b16 %v806
        %v1079 = vunpack.c.l.b16 %v807
        %v1080 = vunpack.c.h.b16 %v807
        %v1081 = vunpack.c.l.b16 %v808
        %v1082 = vunpack.c.h.b16 %v808
        %v1083 = vunpack.c.l.b16 %v809
        %v1084 = vunpack.c.h.b16 %v809
        %v1085 = vunpack.c.l.b16 %v810
        %v1086 = vunpack.c.h.b16 %v810
        %v1087 = vunpack.c.l.b16 %v811
        %v1088 = vunpack.c.h.b16 %v811
        %v1089 = vunpack.c.l.b16 %v812
        %v1090 = vunpack.c.h.b16 %v812
        %v1091 = vunpack.c.l.b16 %v813
        %v1092 = vunpack.c.h.b16 %v813
        %v1093 = vunpack.c.l.b16 %v814
        %v1094 = vunpack.c.h.b16 %v814
        %v1095 = vunpack.c.l.b16 %v815
        %v1096 = vunpack.c.h.b16 %v815
        %v1097 = vunpack.c.l.b16 %v816
        %v1098 = vunpack.c.h.b16 %v816
        %v1099 = vunpack.c.l.b16 %v817
        %v1100 = vunpack.c.h.b16 %v817
        %v1101 = vunpack.c.l.b16 %v818
        %v1102 = vunpack.c.h.b16 %v818
        %v1103 = vunpack.c.l.b16 %v819
        %v1104 = vunpack.c.h.b16 %v819
        %v1105 = vunpack.c.l.b16 %v820
        %v1106 = vunpack.c.h.b16 %v820
        %v1107 = vunpack.c.l.b16 %v821
        %v1108 = vunpack.c.h.b16 %v821
        %v1109 = vunpack.c.l.b16 %v822
        %v1110 = vunpack.c.h.b16 %v822
        %v1111 = vunpack.c.l.b16 %v823
        %v1112 = vunpack.c.h.b16 %v823
        %v1113 = vunpack.c.l.b16 %v824
        %v1114 = vunpack.c.h.b16 %v824
        %v1115 = vunpack.c.l.b16 %v825
        %v1116 = vunpack.c.h.b16 %v825
        %v1117 = vunpack.c.l.b16 %v826
        %v1118 = vunpack.c.h.b16 %v826
        %v1119 = vunpack.c.l.b16 %v827
        %v1120 = vunpack.c.h.b16 %v827
        %v1121 = vunpack.c.l.b16 %v828
        %v1122 = vunpack.c.h.b16 %v828
        %v1123 = vunpack.c.l.b16 %v829
        %v1124 = vunpack.c.h.b16 %v829
        %v1125 = vunpack.c.l.b16 %v830
        %v1126 = vunpack.c.h.b16 %v830
        %v1127 = vunpack.c.l.b16 %v831
        %v1128 = vunpack.c.h.b16 %v831
        %v1129 = vunpack.c.l.b16 %v832
        %v1130 = vunpack.c.h.b16 %v832
        %v1131 = vunpack.c.l.b16 %v833
        %v1132 = vunpack.c.h.b16 %v833
        %v1133 = vunpack.c.l.b16 %v834
        %v1134 = vunpack.c.h.b16 %v834
        %v1135 = vunpack.c.l.b16 %v835
        %v1136 = vunpack.c.h.b16 %v835
        %v1137 = vunpack.c.l.b16 %v836
        %v1138 = vunpack.c.h.b16 %v836
        %v1139 = vunpack.c.l.b16 %v837
        %v1140 = vunpack.c.h.b16 %v837
        %v1141 = vunpack.c.l.b16 %v838
        %v1142 = vunpack.c.h.b16 %v838
        %v1143 = vunpack.c.l.b16 %v839
        %v1144 = vunpack.c.h.b16 %v839
        %v1145 = vunpack.c.l.b16 %v840
        %v1146 = vunpack.c.h.b16 %v840
        %v1147 = vunpack.c.l.b16 %v841
        %v1148 = vunpack.c.h.b16 %v841
        %v1149 = vunpack.c.l.b16 %v842
        %v1150 = vunpack.c.h.b16 %v842
        %v1151 = vunpack.c.l.b16 %v843
        %v1152 = vunpack.c.h.b16 %v843
        %v1153 = vunpack.c.l.b16 %v844
        %v1154 = vunpack.c.h.b16 %v844
        %v1155 = vunpack.c.l.b16 %v845
        %v1156 = vunpack.c.h.b16 %v845
        %v1157 = vunpack.c.l.b16 %v846
        %v1158 = vunpack.c.h.b16 %v846
        %v1159 = vunpack.c.l.b16 %v847
        %v1160 = vunpack.c.h.b16 %v847
        %v1161 = vunpack.c.l.b16 %v848
        %v1162 = vunpack.c.h.b16 %v848
        %v1163 = vunpack.c.l.b16 %v849
        %v1164 = vunpack.c.h.b16 %v849
        %v1165 = vunpack.c.l.b16 %v850
        %v1166 = vunpack.c.h.b16 %v850
        %v1167 = vunpack.c.l.b16 %v851
        %v1168 = vunpack.c.h.b16 %v851
        %v1169 = vunpack.c.l.b16 %v852
        %v1170 = vunpack.c.h.b16 %v852
        %v1171 = vunpack.c.l.b16 %v853
        %v1172 = vunpack.c.h.b16 %v853
        %v1173 = vunpack.c.l.b16 %v854
        %v1174 = vunpack.c.h.b16 %v854
        %v1175 = vunpack.c.l.b16 %v855
        %v1176 = vunpack.c.h.b16 %v855
        %v1177 = vunpack.c.l.b16 %v856
        %v1178 = vunpack.c.h.b16 %v856
        %v1179 = vpack.c.b16 %v983, %v979
        %v1180 = vpack.c.b16 %v984, %v980
        %v1181 = vpack.c.b16 %v985, %v981
        %v1182 = vpack.c.b16 %v986, %v982
        %v1183 = vpack.c.b16 %v991, %v987
        %v1184 = vpack.c.b16 %v992, %v988
        %v1185 = vpack.c.b16 %v993, %v989
        %v1186 = vpack.c.b16 %v994, %v990
        %v1187 = vpack.c.b16 %v999, %v995
        %v1188 = vpack.c.b16 %v1000, %v996
        %v1189 = vpack.c.b16 %v1001, %v997
        %v1190 = vpack.c.b16 %v1002, %v998
        %v1191 = vpack.c.b16 %v1007, %v1003
        %v1192 = vpack.c.b16 %v1008, %v1004
        %v1193 = vpack.c.b16 %v1009, %v1005
        %v1194 = vpack.c.b16 %v1010, %v1006
        %v1195 = vpack.c.b16 %v1015, %v1011
        %v1196 = vpack.c.b16 %v1016, %v1012
        %v1197 = vpack.c.b16 %v1017, %v1013
        %v1198 = vpack.c.b16 %v1018, %v1014
        %v1199 = vpack.c.b16 %v1023, %v1019
        %v1200 = vpack.c.b16 %v1024, %v1020
        %v1201 = vpack.c.b16 %v1025, %v1021
        %v1202 = vpack.c.b16 %v1026, %v1022
        %v1203 = vpack.c.b16 %v1031, %v1027
        %v1204 = vpack.c.b16 %v1032, %v1028
        %v1205 = vpack.c.b16 %v1033, %v1029
        %v1206 = vpack.c.b16 %v1034, %v1030
        %v1207 = vpack.c.b16 %v1039, %v1035
        %v1208 = vpack.c.b16 %v1040, %v1036
        %v1209 = vpack.c.b16 %v1041, %v1037
        %v1210 = vpack.c.b16 %v1042, %v1038
        %v1211 = vpack.c.b16 %v1047, %v1043
        %v1212 = vpack.c.b16 %v1048, %v1044
        %v1213 = vpack.c.b16 %v1049, %v1045
        %v1214 = vpack.c.b16 %v1050, %v1046
        %v1215 = vpack.c.b16 %v1055, %v1051
        %v1216 = vpack.c.b16 %v1056, %v1052
        %v1217 = vpack.c.b16 %v1057, %v1053
        %v1218 = vpack.c.b16 %v1058, %v1054
        %v1219 = vpack.c.b16 %v1063, %v1059
        %v1220 = vpack.c.b16 %v1064, %v1060
        %v1221 = vpack.c.b16 %v1065, %v1061
        %v1222 = vpack.c.b16 %v1066, %v1062
        %v1223 = vpack.c.b16 %v1071, %v1067
        %v1224 = vpack.c.b16 %v1072, %v1068
        %v1225 = vpack.c.b16 %v1073, %v1069
        %v1226 = vpack.c.b16 %v1074, %v1070
        %v1227 = vpack.c.b16 %v1079, %v1075
        %v1228 = vpack.c.b16 %v1080, %v1076
        %v1229 = vpack.c.b16 %v1081, %v1077
        %v1230 = vpack.c.b16 %v1082, %v1078
        %v1231 = vpack.c.b16 %v1087, %v1083
        %v1232 = vpack.c.b16 %v1088, %v1084
        %v1233 = vpack.c.b16 %v1089, %v1085
        %v1234 = vpack.c.b16 %v1090, %v1086
        %v1235 = vpack.c.b16 %v1095, %v1091
        %v1236 = vpack.c.b16 %v1096, %v1092
        %v1237 = vpack.c.b16 %v1097, %v1093
        %v1238 = vpack.c.b16 %v1098, %v1094
        %v1239 = vpack.c.b16 %v1103, %v1099
        %v1240 = vpack.c.b16 %v1104, %v1100
        %v1241 = vpack.c.b16 %v1105, %v1101
        %v1242 = vpack.c.b16 %v1106, %v1102
        %v1243 = vpack.c.b16 %v1111, %v1107
        %v1244 = vpack.c.b16 %v1112, %v1108
        %v1245 = vpack.c.b16 %v1113, %v1109
        %v1246 = vpack.c.b16 %v1114, %v1110
        %v1247 = vpack.c.b16 %v1119, %v1115
        %v1248 = vpack.c.b16 %v1120, %v1116
        %v1249 = vpack.c.b16 %v1121, %v1117
        %v1250 = vpack.c.b16 %v1122, %v1118
        %v1251 = vpack.c.b16 %v1127, %v1123
        %v1252 = vpack.c.b16 %v1128, %v1124
        %v1253 = vpack.c.b16 %v1129, %v1125
        %v1254 = vpack.c.b16 %v1130, %v1126
        %v1255 = vpack.c.b16 %v1135, %v1131
        %v1256 = vpack.c.b16 %v1136, %v1132
        %v1257 = vpack.c.b16 %v1137, %v1133
        %v1258 = vpack.c.b16 %v1138, %v1134
        %v1259 = vpack.c.b16 %v1143, %v1139
        %v1260 = vpack.c.b16 %v1144, %v1140
        %v1261 = vpack.c.b16 %v1145, %v1141
        %v1262 = vpack.c.b16 %v1146, %v1142
        %v1263 = vpack.c.b16 %v1151, %v1147
        %v1264 = vpack.c.b16 %v1152, %v1148
        %v1265 = vpack.c.b16 %v1153, %v1149
        %v1266 = vpack.c.b16 %v1154, %v1150
        %v1267 = vpack.c.b16 %v1159, %v1155
        %v1268 = vpack.c.b16 %v1160, %v1156
        %v1269 = vpack.c.b16 %v1161, %v1157
        %v1270 = vpack.c.b16 %v1162, %v1158
        %v1271 = vpack.c.b16 %v1167, %v1163
        %v1272 = vpack.c.b16 %v1168, %v1164
        %v1273 = vpack.c.b16 %v1169, %v1165
        %v1274 = vpack.c.b16 %v1170, %v1166
        %v1275 = vpack.c.b16 %v1175, %v1171
        %v1276 = vpack.c.b16 %v1176, %v1172
        %v1277 = vpack.c.b16 %v1177, %v1173
        %v1278 = vpack.c.b16 %v1178, %v1174
        %vm1379 = vcmask 130048
        %v1381 = vsel %vm1379, %v728, 0
        %v1384 = vsel %vm1379, %v732, 0
        %v1387 = vsel %vm1379, %v736, 0
        %v1390 = vsel %vm1379, %v740, 0
        %v1393 = vsel %vm1379, %v744, 0
        %v1396 = vsel %vm1379, %v748, 0
        %v1399 = vsel %vm1379, %v752, 0
        %v1402 = vsel %vm1379, %v756, 0
        %1404 = vmatprep.subr.bf16.mxu0 %v1208
        %1405 = vmatpush1.bf16.msra.mxu0 %v1207
        %1406 = vmatprep.subr.bf16.mxu0 %v1204
        %1407 = vmatpush1.bf16.msra.mxu0 %v1203
        %1408 = vmatprep.subr.bf16.mxu0 %v1200
        %1409 = vmatpush1.bf16.msra.mxu0 %v1199
        %1410 = vmatprep.subr.bf16.mxu0 %v1196
        %1411 = vmatpush1.bf16.msra.mxu0 %v1195
        %1412 = vmatprep.subr.bf16.mxu0 %v1192
        %1413 = vmatpush1.bf16.msra.mxu0 %v1191
        %1414 = vmatprep.subr.bf16.mxu0 %v1188
        %1415 = vmatpush1.bf16.msra.mxu0 %v1187
        %1416 = vmatprep.subr.bf16.mxu0 %v1184
        %1417 = vmatpush1.bf16.msra.mxu0 %v1183
        %1418 = vmatprep.subr.bf16.mxu0 %v1180
        %1419 = vmatpush1.bf16.msra.mxu0 %v1179
        %1420 = vmatprep.subr.bf16.mxu0 %v1240
        %1421 = vmatpush2.bf16.msra.mxu0 %v1239
        %1422 = vmatprep.subr.bf16.mxu0 %v1236
        %1423 = vmatpush2.bf16.msra.mxu0 %v1235
        %1424 = vmatprep.subr.bf16.mxu0 %v1232
        %1425 = vmatpush2.bf16.msra.mxu0 %v1231
        %1426 = vmatprep.subr.bf16.mxu0 %v1228
        %1427 = vmatpush2.bf16.msra.mxu0 %v1227
        %1428 = vmatprep.subr.bf16.mxu0 %v1224
        %1429 = vmatpush2.bf16.msra.mxu0 %v1223
        %1430 = vmatprep.subr.bf16.mxu0 %v1220
        %1431 = vmatpush2.bf16.msra.mxu0 %v1219
        %1432 = vmatprep.subr.bf16.mxu0 %v1216
        %1433 = vmatpush2.bf16.msra.mxu0 %v1215
        %1434 = vmatprep.subr.bf16.mxu0 %v1212
        %1435 = vmatpush2.bf16.msra.mxu0 %v1211
        %1436 = vmatprep.mubr.bf16.mxu0 %v726
        %1437 = vmatmul.mubr.bf16.gmra.mxu0 %v725
        %v1438 = vpop.f32.mrf.mxu0
        %v1439 = vadd.f32 %v862, %v1438
        %v1440 = vpop.f32.mrf.mxu0
        %v1441 = vadd.f32 %v866, %v1440
        %v1442 = vpop.f32.mrf.mxu0
        %v1443 = vadd.f32 %v862, %v1442
        %v1444 = vpop.f32.mrf.mxu0
        %v1445 = vadd.f32 %v866, %v1444
        %1446 = vmatprep.mubr.bf16.mxu0 %v730
        %1447 = vmatmul.mubr.bf16.gmra.mxu0 %v729
        %v1448 = vpop.f32.mrf.mxu0
        %v1449 = vadd.f32 %v862, %v1448
        %v1450 = vpop.f32.mrf.mxu0
        %v1451 = vadd.f32 %v866, %v1450
        %v1452 = vpop.f32.mrf.mxu0
        %v1453 = vadd.f32 %v862, %v1452
        %v1454 = vpop.f32.mrf.mxu0
        %v1455 = vadd.f32 %v866, %v1454
        %1456 = vmatprep.mubr.bf16.mxu0 %v734
        %1457 = vmatmul.mubr.bf16.gmra.mxu0 %v733
        %v1458 = vpop.f32.mrf.mxu0
        %v1459 = vadd.f32 %v862, %v1458
        %v1460 = vpop.f32.mrf.mxu0
        %v1461 = vadd.f32 %v866, %v1460
        %v1462 = vpop.f32.mrf.mxu0
        %v1463 = vadd.f32 %v862, %v1462
        %v1464 = vpop.f32.mrf.mxu0
        %v1465 = vadd.f32 %v866, %v1464
        %1466 = vmatprep.mubr.bf16.mxu0 %v738
        %1467 = vmatmul.mubr.bf16.gmra.mxu0 %v737
        %v1468 = vpop.f32.mrf.mxu0
        %v1469 = vadd.f32 %v862, %v1468
        %v1470 = vpop.f32.mrf.mxu0
        %v1471 = vadd.f32 %v866, %v1470
        %v1472 = vpop.f32.mrf.mxu0
        %v1473 = vadd.f32 %v862, %v1472
        %v1474 = vpop.f32.mrf.mxu0
        %v1475 = vadd.f32 %v866, %v1474
        %1476 = vmatprep.mubr.bf16.mxu0 %v742
        %1477 = vmatmul.mubr.bf16.gmra.mxu0 %v741
        %v1478 = vpop.f32.mrf.mxu0
        %v1479 = vadd.f32 %v862, %v1478
        %v1480 = vpop.f32.mrf.mxu0
        %v1481 = vadd.f32 %v866, %v1480
        %v1482 = vpop.f32.mrf.mxu0
        %v1483 = vadd.f32 %v862, %v1482
        %v1484 = vpop.f32.mrf.mxu0
        %v1485 = vadd.f32 %v866, %v1484
        %1486 = vmatprep.mubr.bf16.mxu0 %v746
        %1487 = vmatmul.mubr.bf16.gmra.mxu0 %v745
        %v1488 = vpop.f32.mrf.mxu0
        %v1489 = vadd.f32 %v862, %v1488
        %v1490 = vpop.f32.mrf.mxu0
        %v1491 = vadd.f32 %v866, %v1490
        %v1492 = vpop.f32.mrf.mxu0
        %v1493 = vadd.f32 %v862, %v1492
        %v1494 = vpop.f32.mrf.mxu0
        %v1495 = vadd.f32 %v866, %v1494
        %1496 = vmatprep.mubr.bf16.mxu0 %v750
        %1497 = vmatmul.mubr.bf16.gmra.mxu0 %v749
        %v1498 = vpop.f32.mrf.mxu0
        %v1499 = vadd.f32 %v862, %v1498
        %v1500 = vpop.f32.mrf.mxu0
        %v1501 = vadd.f32 %v866, %v1500
        %v1502 = vpop.f32.mrf.mxu0
        %v1503 = vadd.f32 %v862, %v1502
        %v1504 = vpop.f32.mrf.mxu0
        %v1505 = vadd.f32 %v866, %v1504
        %1506 = vmatprep.mubr.bf16.mxu0 %v754
        %1507 = vmatmul.mubr.bf16.gmra.mxu0 %v753
        %v1508 = vpop.f32.mrf.mxu0
        %v1509 = vadd.f32 %v862, %v1508
        %v1510 = vpop.f32.mrf.mxu0
        %v1511 = vadd.f32 %v866, %v1510
        %v1512 = vpop.f32.mrf.mxu0
        %v1513 = vadd.f32 %v862, %v1512
        %v1514 = vpop.f32.mrf.mxu0
        %v1515 = vadd.f32 %v866, %v1514
        %1516 = vdwg.mxu0
        %1517 = vmatprep.subr.bf16.mxu0 %v1272
        %1518 = vmatpush1.bf16.msra.mxu0 %v1271
        %1519 = vmatprep.subr.bf16.mxu0 %v1268
        %1520 = vmatpush1.bf16.msra.mxu0 %v1267
        %1521 = vmatprep.subr.bf16.mxu0 %v1264
        %1522 = vmatpush1.bf16.msra.mxu0 %v1263
        %1523 = vmatprep.subr.bf16.mxu0 %v1260
        %1524 = vmatpush1.bf16.msra.mxu0 %v1259
        %1525 = vmatprep.subr.bf16.mxu0 %v1256
        %1526 = vmatpush1.bf16.msra.mxu0 %v1255
        %1527 = vmatprep.subr.bf16.mxu0 %v1252
        %1528 = vmatpush1.bf16.msra.mxu0 %v1251
        %1529 = vmatprep.subr.bf16.mxu0 %v1248
        %1530 = vmatpush1.bf16.msra.mxu0 %v1247
        %1531 = vmatprep.subr.bf16.mxu0 %v1244
        %1532 = vmatpush1.bf16.msra.mxu0 %v1243
        %1533 = vmatprep.subr.bf16.mxu0 0
        %1534 = vmatpush2.bf16.msra.mxu0 0
        %1535 = vmatprep.subr.bf16.mxu0 0
        %1536 = vmatpush2.bf16.msra.mxu0 0
        %1537 = vmatprep.subr.bf16.mxu0 0
        %1538 = vmatpush2.bf16.msra.mxu0 0
        %1539 = vmatprep.subr.bf16.mxu0 0
        %1540 = vmatpush2.bf16.msra.mxu0 0
        %1541 = vmatprep.subr.bf16.mxu0 0
        %1542 = vmatpush2.bf16.msra.mxu0 0
        %1543 = vmatprep.subr.bf16.mxu0 0
        %1544 = vmatpush2.bf16.msra.mxu0 0
        %1545 = vmatprep.subr.bf16.mxu0 0
        %1546 = vmatpush2.bf16.msra.mxu0 0
        %1547 = vmatprep.subr.bf16.mxu0 %v1276
        %1548 = vmatpush2.bf16.msra.mxu0 %v1275
        %1549 = vmatprep.mubr.bf16.mxu0 %v1381
        %1550 = vmatmul.mubr.bf16.gmra.mxu0 %v727
        %v1551 = vpop.f32.mrf.mxu0
        %v1552 = vadd.f32 %v1439, %v1551
        %v1553 = vpop.f32.mrf.mxu0
        %v1554 = vadd.f32 %v1441, %v1553
        %v1555 = vpop.f32.mrf.mxu0
        %v1556 = vadd.f32 %v1443, %v1555
        %v1557 = vpop.f32.mrf.mxu0
        %v1558 = vadd.f32 %v1445, %v1557
        %1559 = vmatprep.mubr.bf16.mxu0 %v1384
        %1560 = vmatmul.mubr.bf16.gmra.mxu0 %v731
        %v1561 = vpop.f32.mrf.mxu0
        %v1562 = vadd.f32 %v1449, %v1561
        %v1563 = vpop.f32.mrf.mxu0
        %v1564 = vadd.f32 %v1451, %v1563
        %v1565 = vpop.f32.mrf.mxu0
        %v1566 = vadd.f32 %v1453, %v1565
        %v1567 = vpop.f32.mrf.mxu0
        %v1568 = vadd.f32 %v1455, %v1567
        %1569 = vmatprep.mubr.bf16.mxu0 %v1387
        %1570 = vmatmul.mubr.bf16.gmra.mxu0 %v735
        %v1571 = vpop.f32.mrf.mxu0
        %v1572 = vadd.f32 %v1459, %v1571
        %v1573 = vpop.f32.mrf.mxu0
        %v1574 = vadd.f32 %v1461, %v1573
        %v1575 = vpop.f32.mrf.mxu0
        %v1576 = vadd.f32 %v1463, %v1575
        %v1577 = vpop.f32.mrf.mxu0
        %v1578 = vadd.f32 %v1465, %v1577
        %1579 = vmatprep.mubr.bf16.mxu0 %v1390
        %1580 = vmatmul.mubr.bf16.gmra.mxu0 %v739
        %v1581 = vpop.f32.mrf.mxu0
        %v1582 = vadd.f32 %v1469, %v1581
        %v1583 = vpop.f32.mrf.mxu0
        %v1584 = vadd.f32 %v1471, %v1583
        %v1585 = vpop.f32.mrf.mxu0
        %v1586 = vadd.f32 %v1473, %v1585
        %v1587 = vpop.f32.mrf.mxu0
        %v1588 = vadd.f32 %v1475, %v1587
        %1589 = vmatprep.mubr.bf16.mxu0 %v1393
        %1590 = vmatmul.mubr.bf16.gmra.mxu0 %v743
        %v1591 = vpop.f32.mrf.mxu0
        %v1592 = vadd.f32 %v1479, %v1591
        %v1593 = vpop.f32.mrf.mxu0
        %v1594 = vadd.f32 %v1481, %v1593
        %v1595 = vpop.f32.mrf.mxu0
        %v1596 = vadd.f32 %v1483, %v1595
        %v1597 = vpop.f32.mrf.mxu0
        %v1598 = vadd.f32 %v1485, %v1597
        %1599 = vmatprep.mubr.bf16.mxu0 %v1396
        %1600 = vmatmul.mubr.bf16.gmra.mxu0 %v747
        %v1601 = vpop.f32.mrf.mxu0
        %v1602 = vadd.f32 %v1489, %v1601
        %v1603 = vpop.f32.mrf.mxu0
        %v1604 = vadd.f32 %v1491, %v1603
        %v1605 = vpop.f32.mrf.mxu0
        %v1606 = vadd.f32 %v1493, %v1605
        %v1607 = vpop.f32.mrf.mxu0
        %v1608 = vadd.f32 %v1495, %v1607
        %1609 = vmatprep.mubr.bf16.mxu0 %v1399
        %1610 = vmatmul.mubr.bf16.gmra.mxu0 %v751
        %v1611 = vpop.f32.mrf.mxu0
        %v1612 = vadd.f32 %v1499, %v1611
        %v1613 = vpop.f32.mrf.mxu0
        %v1614 = vadd.f32 %v1501, %v1613
        %v1615 = vpop.f32.mrf.mxu0
        %v1616 = vadd.f32 %v1503, %v1615
        %v1617 = vpop.f32.mrf.mxu0
        %v1618 = vadd.f32 %v1505, %v1617
        %1619 = vmatprep.mubr.bf16.mxu0 %v1402
        %1620 = vmatmul.mubr.bf16.gmra.mxu0 %v755
        %v1621 = vpop.f32.mrf.mxu0
        %v1622 = vadd.f32 %v1509, %v1621
        %v1623 = vpop.f32.mrf.mxu0
        %v1624 = vadd.f32 %v1511, %v1623
        %v1625 = vpop.f32.mrf.mxu0
        %v1626 = vadd.f32 %v1513, %v1625
        %v1627 = vpop.f32.mrf.mxu0
        %v1628 = vadd.f32 %v1515, %v1627
        %1629 = vdwg.mxu0
        %1630 = vmatprep.subr.bf16.mxu0 %v1210
        %1631 = vmatpush1.bf16.msra.mxu0 %v1209
        %1632 = vmatprep.subr.bf16.mxu0 %v1206
        %1633 = vmatpush1.bf16.msra.mxu0 %v1205
        %1634 = vmatprep.subr.bf16.mxu0 %v1202
        %1635 = vmatpush1.bf16.msra.mxu0 %v1201
        %1636 = vmatprep.subr.bf16.mxu0 %v1198
        %1637 = vmatpush1.bf16.msra.mxu0 %v1197
        %1638 = vmatprep.subr.bf16.mxu0 %v1194
        %1639 = vmatpush1.bf16.msra.mxu0 %v1193
        %1640 = vmatprep.subr.bf16.mxu0 %v1190
        %1641 = vmatpush1.bf16.msra.mxu0 %v1189
        %1642 = vmatprep.subr.bf16.mxu0 %v1186
        %1643 = vmatpush1.bf16.msra.mxu0 %v1185
        %1644 = vmatprep.subr.bf16.mxu0 %v1182
        %1645 = vmatpush1.bf16.msra.mxu0 %v1181
        %1646 = vmatprep.subr.bf16.mxu0 %v1242
        %1647 = vmatpush2.bf16.msra.mxu0 %v1241
        %1648 = vmatprep.subr.bf16.mxu0 %v1238
        %1649 = vmatpush2.bf16.msra.mxu0 %v1237
        %1650 = vmatprep.subr.bf16.mxu0 %v1234
        %1651 = vmatpush2.bf16.msra.mxu0 %v1233
        %1652 = vmatprep.subr.bf16.mxu0 %v1230
        %1653 = vmatpush2.bf16.msra.mxu0 %v1229
        %1654 = vmatprep.subr.bf16.mxu0 %v1226
        %1655 = vmatpush2.bf16.msra.mxu0 %v1225
        %1656 = vmatprep.subr.bf16.mxu0 %v1222
        %1657 = vmatpush2.bf16.msra.mxu0 %v1221
        %1658 = vmatprep.subr.bf16.mxu0 %v1218
        %1659 = vmatpush2.bf16.msra.mxu0 %v1217
        %1660 = vmatprep.subr.bf16.mxu0 %v1214
        %1661 = vmatpush2.bf16.msra.mxu0 %v1213
        %1662 = vmatprep.mubr.bf16.mxu0 %v726
        %1663 = vmatmul.mubr.bf16.gmra.mxu0 %v725
        %v1664 = vpop.f32.mrf.mxu0
        %v1665 = vadd.f32 %v870, %v1664
        %v1666 = vpop.f32.mrf.mxu0
        %v1667 = vadd.f32 %v874, %v1666
        %v1668 = vpop.f32.mrf.mxu0
        %v1669 = vadd.f32 %v870, %v1668
        %v1670 = vpop.f32.mrf.mxu0
        %v1671 = vadd.f32 %v874, %v1670
        %1672 = vmatprep.mubr.bf16.mxu0 %v730
        %1673 = vmatmul.mubr.bf16.gmra.mxu0 %v729
        %v1674 = vpop.f32.mrf.mxu0
        %v1675 = vadd.f32 %v870, %v1674
        %v1676 = vpop.f32.mrf.mxu0
        %v1677 = vadd.f32 %v874, %v1676
        %v1678 = vpop.f32.mrf.mxu0
        %v1679 = vadd.f32 %v870, %v1678
        %v1680 = vpop.f32.mrf.mxu0
        %v1681 = vadd.f32 %v874, %v1680
        %1682 = vmatprep.mubr.bf16.mxu0 %v734
        %1683 = vmatmul.mubr.bf16.gmra.mxu0 %v733
        %v1684 = vpop.f32.mrf.mxu0
        %v1685 = vadd.f32 %v870, %v1684
        %v1686 = vpop.f32.mrf.mxu0
        %v1687 = vadd.f32 %v874, %v1686
        %v1688 = vpop.f32.mrf.mxu0
        %v1689 = vadd.f32 %v870, %v1688
        %v1690 = vpop.f32.mrf.mxu0
        %v1691 = vadd.f32 %v874, %v1690
        %1692 = vmatprep.mubr.bf16.mxu0 %v738
        %1693 = vmatmul.mubr.bf16.gmra.mxu0 %v737
        %v1694 = vpop.f32.mrf.mxu0
        %v1695 = vadd.f32 %v870, %v1694
        %v1696 = vpop.f32.mrf.mxu0
        %v1697 = vadd.f32 %v874, %v1696
        %v1698 = vpop.f32.mrf.mxu0
        %v1699 = vadd.f32 %v870, %v1698
        %v1700 = vpop.f32.mrf.mxu0
        %v1701 = vadd.f32 %v874, %v1700
        %1702 = vmatprep.mubr.bf16.mxu0 %v742
        %1703 = vmatmul.mubr.bf16.gmra.mxu0 %v741
        %v1704 = vpop.f32.mrf.mxu0
        %v1705 = vadd.f32 %v870, %v1704
        %v1706 = vpop.f32.mrf.mxu0
        %v1707 = vadd.f32 %v874, %v1706
        %v1708 = vpop.f32.mrf.mxu0
        %v1709 = vadd.f32 %v870, %v1708
        %v1710 = vpop.f32.mrf.mxu0
        %v1711 = vadd.f32 %v874, %v1710
        %1712 = vmatprep.mubr.bf16.mxu0 %v746
        %1713 = vmatmul.mubr.bf16.gmra.mxu0 %v745
        %v1714 = vpop.f32.mrf.mxu0
        %v1715 = vadd.f32 %v870, %v1714
        %v1716 = vpop.f32.mrf.mxu0
        %v1717 = vadd.f32 %v874, %v1716
        %v1718 = vpop.f32.mrf.mxu0
        %v1719 = vadd.f32 %v870, %v1718
        %v1720 = vpop.f32.mrf.mxu0
        %v1721 = vadd.f32 %v874, %v1720
        %1722 = vmatprep.mubr.bf16.mxu0 %v750
        %1723 = vmatmul.mubr.bf16.gmra.mxu0 %v749
        %v1724 = vpop.f32.mrf.mxu0
        %v1725 = vadd.f32 %v870, %v1724
        %v1726 = vpop.f32.mrf.mxu0
        %v1727 = vadd.f32 %v874, %v1726
        %v1728 = vpop.f32.mrf.mxu0
        %v1729 = vadd.f32 %v870, %v1728
        %v1730 = vpop.f32.mrf.mxu0
        %v1731 = vadd.f32 %v874, %v1730
        %1732 = vmatprep.mubr.bf16.mxu0 %v754
        %1733 = vmatmul.mubr.bf16.gmra.mxu0 %v753
        %v1734 = vpop.f32.mrf.mxu0
        %v1735 = vadd.f32 %v870, %v1734
        %v1736 = vpop.f32.mrf.mxu0
        %v1737 = vadd.f32 %v874, %v1736
        %v1738 = vpop.f32.mrf.mxu0
        %v1739 = vadd.f32 %v870, %v1738
        %v1740 = vpop.f32.mrf.mxu0
        %v1741 = vadd.f32 %v874, %v1740
        %1742 = vdwg.mxu0
        %1743 = vmatprep.subr.bf16.mxu0 %v1274
        %1744 = vmatpush1.bf16.msra.mxu0 %v1273
        %1745 = vmatprep.subr.bf16.mxu0 %v1270
        %1746 = vmatpush1.bf16.msra.mxu0 %v1269
        %1747 = vmatprep.subr.bf16.mxu0 %v1266
        %1748 = vmatpush1.bf16.msra.mxu0 %v1265
        %1749 = vmatprep.subr.bf16.mxu0 %v1262
        %1750 = vmatpush1.bf16.msra.mxu0 %v1261
        %1751 = vmatprep.subr.bf16.mxu0 %v1258
        %1752 = vmatpush1.bf16.msra.mxu0 %v1257
        %1753 = vmatprep.subr.bf16.mxu0 %v1254
        %1754 = vmatpush1.bf16.msra.mxu0 %v1253
        %1755 = vmatprep.subr.bf16.mxu0 %v1250
        %1756 = vmatpush1.bf16.msra.mxu0 %v1249
        %1757 = vmatprep.subr.bf16.mxu0 %v1246
        %1758 = vmatpush1.bf16.msra.mxu0 %v1245
        %1759 = vmatprep.subr.bf16.mxu0 0
        %1760 = vmatpush2.bf16.msra.mxu0 0
        %1761 = vmatprep.subr.bf16.mxu0 0
        %1762 = vmatpush2.bf16.msra.mxu0 0
        %1763 = vmatprep.subr.bf16.mxu0 0
        %1764 = vmatpush2.bf16.msra.mxu0 0
        %1765 = vmatprep.subr.bf16.mxu0 0
        %1766 = vmatpush2.bf16.msra.mxu0 0
        %1767 = vmatprep.subr.bf16.mxu0 0
        %1768 = vmatpush2.bf16.msra.mxu0 0
        %1769 = vmatprep.subr.bf16.mxu0 0
        %1770 = vmatpush2.bf16.msra.mxu0 0
        %1771 = vmatprep.subr.bf16.mxu0 0
        %1772 = vmatpush2.bf16.msra.mxu0 0
        %1773 = vmatprep.subr.bf16.mxu0 %v1278
        %1774 = vmatpush2.bf16.msra.mxu0 %v1277
        %1775 = vmatprep.mubr.bf16.mxu0 %v1381
        %1776 = vmatmul.mubr.bf16.gmra.mxu0 %v727
        %v1777 = vpop.f32.mrf.mxu0
        %v1778 = vadd.f32 %v1665, %v1777
        %v1779 = vpop.f32.mrf.mxu0
        %v1780 = vadd.f32 %v1667, %v1779
        %v1781 = vpop.f32.mrf.mxu0
        %v1782 = vadd.f32 %v1669, %v1781
        %v1783 = vpop.f32.mrf.mxu0
        %v1784 = vadd.f32 %v1671, %v1783
        %1785 = vmatprep.mubr.bf16.mxu0 %v1384
        %1786 = vmatmul.mubr.bf16.gmra.mxu0 %v731
        %v1787 = vpop.f32.mrf.mxu0
        %v1788 = vadd.f32 %v1675, %v1787
        %v1789 = vpop.f32.mrf.mxu0
        %v1790 = vadd.f32 %v1677, %v1789
        %v1791 = vpop.f32.mrf.mxu0
        %v1792 = vadd.f32 %v1679, %v1791
        %v1793 = vpop.f32.mrf.mxu0
        %v1794 = vadd.f32 %v1681, %v1793
        %1795 = vmatprep.mubr.bf16.mxu0 %v1387
        %1796 = vmatmul.mubr.bf16.gmra.mxu0 %v735
        %v1797 = vpop.f32.mrf.mxu0
        %v1798 = vadd.f32 %v1685, %v1797
        %v1799 = vpop.f32.mrf.mxu0
        %v1800 = vadd.f32 %v1687, %v1799
        %v1801 = vpop.f32.mrf.mxu0
        %v1802 = vadd.f32 %v1689, %v1801
        %v1803 = vpop.f32.mrf.mxu0
        %v1804 = vadd.f32 %v1691, %v1803
        %1805 = vmatprep.mubr.bf16.mxu0 %v1390
        %1806 = vmatmul.mubr.bf16.gmra.mxu0 %v739
        %v1807 = vpop.f32.mrf.mxu0
        %v1808 = vadd.f32 %v1695, %v1807
        %v1809 = vpop.f32.mrf.mxu0
        %v1810 = vadd.f32 %v1697, %v1809
        %v1811 = vpop.f32.mrf.mxu0
        %v1812 = vadd.f32 %v1699, %v1811
        %v1813 = vpop.f32.mrf.mxu0
        %v1814 = vadd.f32 %v1701, %v1813
        %1815 = vmatprep.mubr.bf16.mxu0 %v1393
        %1816 = vmatmul.mubr.bf16.gmra.mxu0 %v743
        %v1817 = vpop.f32.mrf.mxu0
        %v1818 = vadd.f32 %v1705, %v1817
        %v1819 = vpop.f32.mrf.mxu0
        %v1820 = vadd.f32 %v1707, %v1819
        %v1821 = vpop.f32.mrf.mxu0
        %v1822 = vadd.f32 %v1709, %v1821
        %v1823 = vpop.f32.mrf.mxu0
        %v1824 = vadd.f32 %v1711, %v1823
        %1825 = vmatprep.mubr.bf16.mxu0 %v1396
        %1826 = vmatmul.mubr.bf16.gmra.mxu0 %v747
        %v1827 = vpop.f32.mrf.mxu0
        %v1828 = vadd.f32 %v1715, %v1827
        %v1829 = vpop.f32.mrf.mxu0
        %v1830 = vadd.f32 %v1717, %v1829
        %v1831 = vpop.f32.mrf.mxu0
        %v1832 = vadd.f32 %v1719, %v1831
        %v1833 = vpop.f32.mrf.mxu0
        %v1834 = vadd.f32 %v1721, %v1833
        %1835 = vmatprep.mubr.bf16.mxu0 %v1399
        %1836 = vmatmul.mubr.bf16.gmra.mxu0 %v751
        %v1837 = vpop.f32.mrf.mxu0
        %v1838 = vadd.f32 %v1725, %v1837
        %v1839 = vpop.f32.mrf.mxu0
        %v1840 = vadd.f32 %v1727, %v1839
        %v1841 = vpop.f32.mrf.mxu0
        %v1842 = vadd.f32 %v1729, %v1841
        %v1843 = vpop.f32.mrf.mxu0
        %v1844 = vadd.f32 %v1731, %v1843
        %1845 = vmatprep.mubr.bf16.mxu0 %v1402
        %1846 = vmatmul.mubr.bf16.gmra.mxu0 %v755
        %v1847 = vpop.f32.mrf.mxu0
        %v1848 = vadd.f32 %v1735, %v1847
        %v1849 = vpop.f32.mrf.mxu0
        %v1850 = vadd.f32 %v1737, %v1849
        %v1851 = vpop.f32.mrf.mxu0
        %v1852 = vadd.f32 %v1739, %v1851
        %v1853 = vpop.f32.mrf.mxu0
        %v1854 = vadd.f32 %v1741, %v1853
        %1855 = vdwg.mxu0
        %v1856 = vmul.f32 %v1552, 0.1
        %v1857 = vmul.f32 %v1554, 0.1
        %v1858 = vmul.f32 %v1778, 0.1
        %v1859 = vmul.f32 %v1780, 0.1
        %v1860 = vmul.f32 %v1556, 0.1
        %v1861 = vmul.f32 %v1558, 0.1
        %v1862 = vmul.f32 %v1782, 0.1
        %v1863 = vmul.f32 %v1784, 0.1
        %v1864 = vmul.f32 %v1562, 0.1
        %v1865 = vmul.f32 %v1564, 0.1
        %v1866 = vmul.f32 %v1788, 0.1
        %v1867 = vmul.f32 %v1790, 0.1
        %v1868 = vmul.f32 %v1566, 0.1
        %v1869 = vmul.f32 %v1568, 0.1
        %v1870 = vmul.f32 %v1792, 0.1
        %v1871 = vmul.f32 %v1794, 0.1
        %v1872 = vmul.f32 %v1572, 0.1
        %v1873 = vmul.f32 %v1574, 0.1
        %v1874 = vmul.f32 %v1798, 0.1
        %v1875 = vmul.f32 %v1800, 0.1
        %v1876 = vmul.f32 %v1576, 0.1
        %v1877 = vmul.f32 %v1578, 0.1
        %v1878 = vmul.f32 %v1802, 0.1
        %v1879 = vmul.f32 %v1804, 0.1
        %v1880 = vmul.f32 %v1582, 0.1
        %v1881 = vmul.f32 %v1584, 0.1
        %v1882 = vmul.f32 %v1808, 0.1
        %v1883 = vmul.f32 %v1810, 0.1
        %v1884 = vmul.f32 %v1586, 0.1
        %v1885 = vmul.f32 %v1588, 0.1
        %v1886 = vmul.f32 %v1812, 0.1
        %v1887 = vmul.f32 %v1814, 0.1
        %v1888 = vmul.f32 %v1592, 0.1
        %v1889 = vmul.f32 %v1594, 0.1
        %v1890 = vmul.f32 %v1818, 0.1
        %v1891 = vmul.f32 %v1820, 0.1
        %v1892 = vmul.f32 %v1596, 0.1
        %v1893 = vmul.f32 %v1598, 0.1
        %v1894 = vmul.f32 %v1822, 0.1
        %v1895 = vmul.f32 %v1824, 0.1
        %v1896 = vmul.f32 %v1602, 0.1
        %v1897 = vmul.f32 %v1604, 0.1
        %v1898 = vmul.f32 %v1828, 0.1
        %v1899 = vmul.f32 %v1830, 0.1
        %v1900 = vmul.f32 %v1606, 0.1
        %v1901 = vmul.f32 %v1608, 0.1
        %v1902 = vmul.f32 %v1832, 0.1
        %v1903 = vmul.f32 %v1834, 0.1
        %v1904 = vmul.f32 %v1612, 0.1
        %v1905 = vmul.f32 %v1614, 0.1
        %v1906 = vmul.f32 %v1838, 0.1
        %v1907 = vmul.f32 %v1840, 0.1
        %v1908 = vmul.f32 %v1616, 0.1
        %v1909 = vmul.f32 %v1618, 0.1
        %v1910 = vmul.f32 %v1842, 0.1
        %v1911 = vmul.f32 %v1844, 0.1
        %v1912 = vmul.f32 %v1622, 0.1
        %v1913 = vmul.f32 %v1624, 0.1
        %v1914 = vmul.f32 %v1848, 0.1
        %v1915 = vmul.f32 %v1850, 0.1
        %v1916 = vmul.f32 %v1626, 0.1
        %v1917 = vmul.f32 %v1628, 0.1
        %v1918 = vmul.f32 %v1852, 0.1
        %v1919 = vmul.f32 %v1854, 0.1
        %v1920 = vpack.c.bf16 %v1860, %v1856
        %v1921 = vpack.c.bf16 %v1861, %v1857
        %v1922 = vpack.c.bf16 %v1862, %v1858
        %v1923 = vpack.c.bf16 %v1863, %v1859
        %v1924 = vpack.c.bf16 %v1868, %v1864
        %v1925 = vpack.c.bf16 %v1869, %v1865
        %v1926 = vpack.c.bf16 %v1870, %v1866
        %v1927 = vpack.c.bf16 %v1871, %v1867
        %v1928 = vpack.c.bf16 %v1876, %v1872
        %v1929 = vpack.c.bf16 %v1877, %v1873
        %v1930 = vpack.c.bf16 %v1878, %v1874
        %v1931 = vpack.c.bf16 %v1879, %v1875
        %v1932 = vpack.c.bf16 %v1884, %v1880
        %v1933 = vpack.c.bf16 %v1885, %v1881
        %v1934 = vpack.c.bf16 %v1886, %v1882
        %v1935 = vpack.c.bf16 %v1887, %v1883
        %v1936 = vpack.c.bf16 %v1892, %v1888
        %v1937 = vpack.c.bf16 %v1893, %v1889
        %v1938 = vpack.c.bf16 %v1894, %v1890
        %v1939 = vpack.c.bf16 %v1895, %v1891
        %v1940 = vpack.c.bf16 %v1900, %v1896
        %v1941 = vpack.c.bf16 %v1901, %v1897
        %v1942 = vpack.c.bf16 %v1902, %v1898
        %v1943 = vpack.c.bf16 %v1903, %v1899
        %v1944 = vpack.c.bf16 %v1908, %v1904
        %v1945 = vpack.c.bf16 %v1909, %v1905
        %v1946 = vpack.c.bf16 %v1910, %v1906
        %v1947 = vpack.c.bf16 %v1911, %v1907
        %v1948 = vpack.c.bf16 %v1916, %v1912
        %v1949 = vpack.c.bf16 %v1917, %v1913
        %v1950 = vpack.c.bf16 %v1918, %v1914
        %v1951 = vpack.c.bf16 %v1919, %v1915
        %v1984 = vunpack.c.l.b16 %v1920
        %v1985 = vunpack.c.l.b16 %v1921
        %v1986 = vunpack.c.l.b16 %v1922
        %v1987 = vunpack.c.l.b16 %v1923
        %v1988 = vunpack.c.h.b16 %v1920
        %v1989 = vunpack.c.h.b16 %v1921
        %v1990 = vunpack.c.h.b16 %v1922
        %v1991 = vunpack.c.h.b16 %v1923
        %v1992 = vunpack.c.l.b16 %v1924
        %v1993 = vunpack.c.l.b16 %v1925
        %v1994 = vunpack.c.l.b16 %v1926
        %v1995 = vunpack.c.l.b16 %v1927
        %v1996 = vunpack.c.h.b16 %v1924
        %v1997 = vunpack.c.h.b16 %v1925
        %v1998 = vunpack.c.h.b16 %v1926
        %v1999 = vunpack.c.h.b16 %v1927
        %v2000 = vunpack.c.l.b16 %v1928
        %v2001 = vunpack.c.l.b16 %v1929
        %v2002 = vunpack.c.l.b16 %v1930
        %v2003 = vunpack.c.l.b16 %v1931
        %v2004 = vunpack.c.h.b16 %v1928
        %v2005 = vunpack.c.h.b16 %v1929
        %v2006 = vunpack.c.h.b16 %v1930
        %v2007 = vunpack.c.h.b16 %v1931
        %v2008 = vunpack.c.l.b16 %v1932
        %v2009 = vunpack.c.l.b16 %v1933
        %v2010 = vunpack.c.l.b16 %v1934
        %v2011 = vunpack.c.l.b16 %v1935
        %v2012 = vunpack.c.h.b16 %v1932
        %v2013 = vunpack.c.h.b16 %v1933
        %v2014 = vunpack.c.h.b16 %v1934
        %v2015 = vunpack.c.h.b16 %v1935
        %v2016 = vunpack.c.l.b16 %v1936
        %v2017 = vunpack.c.l.b16 %v1937
        %v2018 = vunpack.c.l.b16 %v1938
        %v2019 = vunpack.c.l.b16 %v1939
        %v2020 = vunpack.c.h.b16 %v1936
        %v2021 = vunpack.c.h.b16 %v1937
        %v2022 = vunpack.c.h.b16 %v1938
        %v2023 = vunpack.c.h.b16 %v1939
        %v2024 = vunpack.c.l.b16 %v1940
        %v2025 = vunpack.c.l.b16 %v1941
        %v2026 = vunpack.c.l.b16 %v1942
        %v2027 = vunpack.c.l.b16 %v1943
        %v2028 = vunpack.c.h.b16 %v1940
        %v2029 = vunpack.c.h.b16 %v1941
        %v2030 = vunpack.c.h.b16 %v1942
        %v2031 = vunpack.c.h.b16 %v1943
        %v2032 = vunpack.c.l.b16 %v1944
        %v2033 = vunpack.c.l.b16 %v1945
        %v2034 = vunpack.c.l.b16 %v1946
        %v2035 = vunpack.c.l.b16 %v1947
        %v2036 = vunpack.c.h.b16 %v1944
        %v2037 = vunpack.c.h.b16 %v1945
        %v2038 = vunpack.c.h.b16 %v1946
        %v2039 = vunpack.c.h.b16 %v1947
        %v2040 = vunpack.c.l.b16 %v1948
        %v2041 = vunpack.c.l.b16 %v1949
        %v2042 = vunpack.c.l.b16 %v1950
        %v2043 = vunpack.c.l.b16 %v1951
        %v2044 = vunpack.c.h.b16 %v1948
        %v2045 = vunpack.c.h.b16 %v1949
        %v2046 = vunpack.c.h.b16 %v1950
        %v2047 = vunpack.c.h.b16 %v1951
        %v2048 = vpack.c.b16 %v1985, %v1984
        %v2049 = vpack.c.b16 %v1987, %v1986
        %v2050 = vpack.c.b16 %v1989, %v1988
        %v2051 = vpack.c.b16 %v1991, %v1990
        %v2052 = vpack.c.b16 %v1993, %v1992
        %v2053 = vpack.c.b16 %v1995, %v1994
        %v2054 = vpack.c.b16 %v1997, %v1996
        %v2055 = vpack.c.b16 %v1999, %v1998
        %v2056 = vpack.c.b16 %v2001, %v2000
        %v2057 = vpack.c.b16 %v2003, %v2002
        %v2058 = vpack.c.b16 %v2005, %v2004
        %v2059 = vpack.c.b16 %v2007, %v2006
        %v2060 = vpack.c.b16 %v2009, %v2008
        %v2061 = vpack.c.b16 %v2011, %v2010
        %v2062 = vpack.c.b16 %v2013, %v2012
        %v2063 = vpack.c.b16 %v2015, %v2014
        %v2064 = vpack.c.b16 %v2017, %v2016
        %v2065 = vpack.c.b16 %v2019, %v2018
        %v2066 = vpack.c.b16 %v2021, %v2020
        %v2067 = vpack.c.b16 %v2023, %v2022
        %v2068 = vpack.c.b16 %v2025, %v2024
        %v2069 = vpack.c.b16 %v2027, %v2026
        %v2070 = vpack.c.b16 %v2029, %v2028
        %v2071 = vpack.c.b16 %v2031, %v2030
        %v2072 = vpack.c.b16 %v2033, %v2032
        %v2073 = vpack.c.b16 %v2035, %v2034
        %v2074 = vpack.c.b16 %v2037, %v2036
        %v2075 = vpack.c.b16 %v2039, %v2038
        %v2076 = vpack.c.b16 %v2041, %v2040
        %v2077 = vpack.c.b16 %v2043, %v2042
        %v2078 = vpack.c.b16 %v2045, %v2044
        %v2079 = vpack.c.b16 %v2047, %v2046
        %2112 = vst [vmem:[#allocation2] sm:$0xff] %v2048
        %2113 = vst [vmem:[#allocation2 + $0x8] sm:$0xff] %v2049
        %2114 = vst [vmem:[#allocation2 + $0x10] sm:$0xff] %v2050
        %2115 = vst [vmem:[#allocation2 + $0x18] sm:$0xff] %v2051
        %2116 = vst [vmem:[#allocation2 + $0x20] sm:$0xff] %v2052
        %2117 = vst [vmem:[#allocation2 + $0x28] sm:$0xff] %v2053
        %2118 = vst [vmem:[#allocation2 + $0x30] sm:$0xff] %v2054
        %2119 = vst [vmem:[#allocation2 + $0x38] sm:$0xff] %v2055
        %2120 = vst [vmem:[#allocation2 + $0x40] sm:$0xff] %v2056
        %2121 = vst [vmem:[#allocation2 + $0x48] sm:$0xff] %v2057
        %2122 = vst [vmem:[#allocation2 + $0x50] sm:$0xff] %v2058
        %2123 = vst [vmem:[#allocation2 + $0x58] sm:$0xff] %v2059
        %2124 = vst [vmem:[#allocation2 + $0x60] sm:$0xff] %v2060
        %2125 = vst [vmem:[#allocation2 + $0x68] sm:$0xff] %v2061
        %2126 = vst [vmem:[#allocation2 + $0x70] sm:$0xff] %v2062
        %2127 = vst [vmem:[#allocation2 + $0x78] sm:$0xff] %v2063
        %2128 = vst [vmem:[#allocation2 + $0x80] sm:$0xff] %v2064
        %2129 = vst [vmem:[#allocation2 + $0x88] sm:$0xff] %v2065
        %2130 = vst [vmem:[#allocation2 + $0x90] sm:$0xff] %v2066
        %2131 = vst [vmem:[#allocation2 + $0x98] sm:$0xff] %v2067
        %2132 = vst [vmem:[#allocation2 + $0xa0] sm:$0xff] %v2068
        %2133 = vst [vmem:[#allocation2 + $0xa8] sm:$0xff] %v2069
        %2134 = vst [vmem:[#allocation2 + $0xb0] sm:$0xff] %v2070
        %2135 = vst [vmem:[#allocation2 + $0xb8] sm:$0xff] %v2071
        %2136 = vst [vmem:[#allocation2 + $0xc0] sm:$0xff] %v2072
        %2137 = vst [vmem:[#allocation2 + $0xc8] sm:$0xff] %v2073
        %2138 = vst [vmem:[#allocation2 + $0xd0] sm:$0xff] %v2074
        %2139 = vst [vmem:[#allocation2 + $0xd8] sm:$0xff] %v2075
        %2140 = vst [vmem:[#allocation2 + $0xe0] sm:$0xff] %v2076
        %2141 = vst [vmem:[#allocation2 + $0xe8] sm:$0xff] %v2077
        %2142 = vst [vmem:[#allocation2 + $0xf0] sm:$0xff] %v2078
        %2143 = vst [vmem:[#allocation2 + $0xf8] sm:$0xff] %v2079
        %v2144 = vld [vmem:[%s7] sm:$0xff]
        %v2145 = vld [vmem:[%s7 + $0x8] sm:$0xff]
        %v2146 = vld [vmem:[%s7 + $0x10] sm:$0xff]
        %v2147 = vld [vmem:[%s7 + $0x18] sm:$0xff]
        %v2148 = vld [vmem:[%s7 + $0x20] sm:$0xff]
        %v2149 = vld [vmem:[%s7 + $0x28] sm:$0xff]
        %v2150 = vld [vmem:[%s7 + $0x30] sm:$0xff]
        %v2151 = vld [vmem:[%s7 + $0x38] sm:$0xff]
        %v2152 = vld [vmem:[%s7 + $0x40] sm:$0xff]
        %v2153 = vld [vmem:[%s7 + $0x48] sm:$0xff]
        %v2154 = vld [vmem:[%s7 + $0x50] sm:$0xff]
        %v2155 = vld [vmem:[%s7 + $0x58] sm:$0xff]
        %v2156 = vld [vmem:[%s7 + $0x60] sm:$0xff]
        %v2157 = vld [vmem:[%s7 + $0x68] sm:$0xff]
        %v2158 = vld [vmem:[%s7 + $0x70] sm:$0xff]
        %v2159 = vld [vmem:[%s7 + $0x78] sm:$0xff]
        %v2160 = vld [vmem:[%s7 + $0x80] sm:$0xff]
        %v2161 = vld [vmem:[%s7 + $0x88] sm:$0xff]
        %v2162 = vld [vmem:[%s7 + $0x90] sm:$0xff]
        %v2163 = vld [vmem:[%s7 + $0x98] sm:$0xff]
        %v2164 = vld [vmem:[%s7 + $0xa0] sm:$0xff]
        %v2165 = vld [vmem:[%s7 + $0xa8] sm:$0xff]
        %v2166 = vld [vmem:[%s7 + $0xb0] sm:$0xff]
        %v2167 = vld [vmem:[%s7 + $0xb8] sm:$0xff]
        %v2168 = vld [vmem:[%s7 + $0xc0] sm:$0xff]
        %v2169 = vld [vmem:[%s7 + $0xc8] sm:$0xff]
        %v2170 = vld [vmem:[%s7 + $0xd0] sm:$0xff]
        %v2171 = vld [vmem:[%s7 + $0xd8] sm:$0xff]
        %v2172 = vld [vmem:[%s7 + $0xe0] sm:$0xff]
        %v2173 = vld [vmem:[%s7 + $0xe8] sm:$0xff]
        %v2174 = vld [vmem:[%s7 + $0xf0] sm:$0xff]
        %v2175 = vld [vmem:[%s7 + $0xf8] sm:$0xff]
        %v2176 = vld [vmem:[%s7 + $0x100] sm:$0xff]
        %v2177 = vld [vmem:[%s7 + $0x108] sm:$0xff]
        %v2178 = vld [vmem:[%s7 + $0x110] sm:$0xff]
        %v2179 = vld [vmem:[%s7 + $0x118] sm:$0xff]
        %v2180 = vld [vmem:[%s7 + $0x120] sm:$0xff]
        %v2181 = vld [vmem:[%s7 + $0x128] sm:$0xff]
        %v2182 = vld [vmem:[%s7 + $0x130] sm:$0xff]
        %v2183 = vld [vmem:[%s7 + $0x138] sm:$0xff]
        %v2184 = vld [vmem:[%s7 + $0x140] sm:$0xff]
        %v2185 = vld [vmem:[%s7 + $0x148] sm:$0xff]
        %v2186 = vld [vmem:[%s7 + $0x150] sm:$0xff]
        %v2187 = vld [vmem:[%s7 + $0x158] sm:$0xff]
        %v2188 = vld [vmem:[%s7 + $0x160] sm:$0xff]
        %v2189 = vld [vmem:[%s7 + $0x168] sm:$0xff]
        %v2190 = vld [vmem:[%s7 + $0x170] sm:$0xff]
        %v2191 = vld [vmem:[%s7 + $0x178] sm:$0xff]
        %v2192 = vld [vmem:[%s7 + $0x180] sm:$0xff]
        %v2193 = vld [vmem:[%s7 + $0x188] sm:$0xff]
        %v2194 = vld [vmem:[%s7 + $0x190] sm:$0xff]
        %v2195 = vld [vmem:[%s7 + $0x198] sm:$0xff]
        %v2196 = vld [vmem:[%s7 + $0x1a0] sm:$0xff]
        %v2197 = vld [vmem:[%s7 + $0x1a8] sm:$0xff]
        %v2198 = vld [vmem:[%s7 + $0x1b0] sm:$0xff]
        %v2199 = vld [vmem:[%s7 + $0x1b8] sm:$0xff]
        %v2200 = vld [vmem:[%s7 + $0x1c0] sm:$0xff]
        %v2201 = vld [vmem:[%s7 + $0x1c8] sm:$0xff]
        %v2202 = vld [vmem:[%s7 + $0x1d0] sm:$0xff]
        %v2203 = vld [vmem:[%s7 + $0x1d8] sm:$0xff]
        %v2204 = vld [vmem:[%s7 + $0x1e0] sm:$0xff]
        %v2205 = vld [vmem:[%s7 + $0x1e8] sm:$0xff]
        %v2206 = vld [vmem:[%s7 + $0x1f0] sm:$0xff]
        %v2207 = vld [vmem:[%s7 + $0x1f8] sm:$0xff]
        %v2208 = vld [vmem:[%s7 + $0x200] sm:$0xff]
        %v2209 = vld [vmem:[%s7 + $0x208] sm:$0xff]
        %v2210 = vld [vmem:[%s7 + $0x210] sm:$0xff]
        %v2211 = vld [vmem:[%s7 + $0x218] sm:$0xff]
        %v2212 = vld [vmem:[%s7 + $0x220] sm:$0xff]
        %v2213 = vld [vmem:[%s7 + $0x228] sm:$0xff]
        %v2214 = vld [vmem:[%s7 + $0x230] sm:$0xff]
        %v2215 = vld [vmem:[%s7 + $0x238] sm:$0xff]
        %v2216 = vld [vmem:[%s7 + $0x240] sm:$0xff]
        %v2217 = vld [vmem:[%s7 + $0x248] sm:$0xff]
        %v2218 = vld [vmem:[%s7 + $0x250] sm:$0xff]
        %v2219 = vld [vmem:[%s7 + $0x258] sm:$0xff]
        %v2220 = vld [vmem:[%s7 + $0x260] sm:$0xff]
        %v2221 = vld [vmem:[%s7 + $0x268] sm:$0xff]
        %v2222 = vld [vmem:[%s7 + $0x270] sm:$0xff]
        %v2223 = vld [vmem:[%s7 + $0x278] sm:$0xff]
        %v2224 = vld [vmem:[%s7 + $0x280] sm:$0xff]
        %v2225 = vld [vmem:[%s7 + $0x288] sm:$0xff]
        %v2226 = vld [vmem:[%s7 + $0x290] sm:$0xff]
        %v2227 = vld [vmem:[%s7 + $0x298] sm:$0xff]
        %v2228 = vld [vmem:[%s7 + $0x2a0] sm:$0xff]
        %v2229 = vld [vmem:[%s7 + $0x2a8] sm:$0xff]
        %v2230 = vld [vmem:[%s7 + $0x2b0] sm:$0xff]
        %v2231 = vld [vmem:[%s7 + $0x2b8] sm:$0xff]
        %v2232 = vld [vmem:[%s7 + $0x2c0] sm:$0xff]
        %v2233 = vld [vmem:[%s7 + $0x2c8] sm:$0xff]
        %v2234 = vld [vmem:[%s7 + $0x2d0] sm:$0xff]
        %v2235 = vld [vmem:[%s7 + $0x2d8] sm:$0xff]
        %v2236 = vld [vmem:[%s7 + $0x2e0] sm:$0xff]
        %v2237 = vld [vmem:[%s7 + $0x2e8] sm:$0xff]
        %v2238 = vld [vmem:[%s7 + $0x2f0] sm:$0xff]
        %v2239 = vld [vmem:[%s7 + $0x2f8] sm:$0xff]
        %v2240 = vld [vmem:[%s7 + $0x300] sm:$0xff]
        %v2241 = vld [vmem:[%s7 + $0x308] sm:$0xff]
        %v2242 = vld [vmem:[%s7 + $0x310] sm:$0xff]
        %v2243 = vld [vmem:[%s7 + $0x318] sm:$0xff]
        %v2244 = vld [vmem:[%s8] sm:$0xf]
        %v2246 = vlaneseq
        %v2247 = vshrl.u32 %v2246, 7
        %v2248 = vsub.s32 0, %v2247
        %v2249 = vrot.slane %v2244, %v2248
        %v2250 = vlaneseq
        %v2251 = vshrl.u32 %v2250, 7
        %v2252 = vsub.s32 1, %v2251
        %v2253 = vrot.slane %v2244, %v2252
        %v2254 = vlaneseq
        %v2255 = vshrl.u32 %v2254, 7
        %v2256 = vsub.s32 2, %v2255
        %v2257 = vrot.slane %v2244, %v2256
        %v2258 = vlaneseq
        %v2259 = vshrl.u32 %v2258, 7
        %v2260 = vsub.s32 3, %v2259
        %v2261 = vrot.slane %v2244, %v2260
        %v2366 = vunpack.c.l.b16 %v2144
        %v2367 = vunpack.c.h.b16 %v2144
        %v2368 = vunpack.c.l.b16 %v2145
        %v2369 = vunpack.c.h.b16 %v2145
        %v2370 = vunpack.c.l.b16 %v2146
        %v2371 = vunpack.c.h.b16 %v2146
        %v2372 = vunpack.c.l.b16 %v2147
        %v2373 = vunpack.c.h.b16 %v2147
        %v2374 = vunpack.c.l.b16 %v2148
        %v2375 = vunpack.c.h.b16 %v2148
        %v2376 = vunpack.c.l.b16 %v2149
        %v2377 = vunpack.c.h.b16 %v2149
        %v2378 = vunpack.c.l.b16 %v2150
        %v2379 = vunpack.c.h.b16 %v2150
        %v2380 = vunpack.c.l.b16 %v2151
        %v2381 = vunpack.c.h.b16 %v2151
        %v2382 = vunpack.c.l.b16 %v2152
        %v2383 = vunpack.c.h.b16 %v2152
        %v2384 = vunpack.c.l.b16 %v2153
        %v2385 = vunpack.c.h.b16 %v2153
        %v2386 = vunpack.c.l.b16 %v2154
        %v2387 = vunpack.c.h.b16 %v2154
        %v2388 = vunpack.c.l.b16 %v2155
        %v2389 = vunpack.c.h.b16 %v2155
        %v2390 = vunpack.c.l.b16 %v2156
        %v2391 = vunpack.c.h.b16 %v2156
        %v2392 = vunpack.c.l.b16 %v2157
        %v2393 = vunpack.c.h.b16 %v2157
        %v2394 = vunpack.c.l.b16 %v2158
        %v2395 = vunpack.c.h.b16 %v2158
        %v2396 = vunpack.c.l.b16 %v2159
        %v2397 = vunpack.c.h.b16 %v2159
        %v2398 = vunpack.c.l.b16 %v2160
        %v2399 = vunpack.c.h.b16 %v2160
        %v2400 = vunpack.c.l.b16 %v2161
        %v2401 = vunpack.c.h.b16 %v2161
        %v2402 = vunpack.c.l.b16 %v2162
        %v2403 = vunpack.c.h.b16 %v2162
        %v2404 = vunpack.c.l.b16 %v2163
        %v2405 = vunpack.c.h.b16 %v2163
        %v2406 = vunpack.c.l.b16 %v2164
        %v2407 = vunpack.c.h.b16 %v2164
        %v2408 = vunpack.c.l.b16 %v2165
        %v2409 = vunpack.c.h.b16 %v2165
        %v2410 = vunpack.c.l.b16 %v2166
        %v2411 = vunpack.c.h.b16 %v2166
        %v2412 = vunpack.c.l.b16 %v2167
        %v2413 = vunpack.c.h.b16 %v2167
        %v2414 = vunpack.c.l.b16 %v2168
        %v2415 = vunpack.c.h.b16 %v2168
        %v2416 = vunpack.c.l.b16 %v2169
        %v2417 = vunpack.c.h.b16 %v2169
        %v2418 = vunpack.c.l.b16 %v2170
        %v2419 = vunpack.c.h.b16 %v2170
        %v2420 = vunpack.c.l.b16 %v2171
        %v2421 = vunpack.c.h.b16 %v2171
        %v2422 = vunpack.c.l.b16 %v2172
        %v2423 = vunpack.c.h.b16 %v2172
        %v2424 = vunpack.c.l.b16 %v2173
        %v2425 = vunpack.c.h.b16 %v2173
        %v2426 = vunpack.c.l.b16 %v2174
        %v2427 = vunpack.c.h.b16 %v2174
        %v2428 = vunpack.c.l.b16 %v2175
        %v2429 = vunpack.c.h.b16 %v2175
        %v2430 = vunpack.c.l.b16 %v2176
        %v2431 = vunpack.c.h.b16 %v2176
        %v2432 = vunpack.c.l.b16 %v2177
        %v2433 = vunpack.c.h.b16 %v2177
        %v2434 = vunpack.c.l.b16 %v2178
        %v2435 = vunpack.c.h.b16 %v2178
        %v2436 = vunpack.c.l.b16 %v2179
        %v2437 = vunpack.c.h.b16 %v2179
        %v2438 = vunpack.c.l.b16 %v2180
        %v2439 = vunpack.c.h.b16 %v2180
        %v2440 = vunpack.c.l.b16 %v2181
        %v2441 = vunpack.c.h.b16 %v2181
        %v2442 = vunpack.c.l.b16 %v2182
        %v2443 = vunpack.c.h.b16 %v2182
        %v2444 = vunpack.c.l.b16 %v2183
        %v2445 = vunpack.c.h.b16 %v2183
        %v2446 = vunpack.c.l.b16 %v2184
        %v2447 = vunpack.c.h.b16 %v2184
        %v2448 = vunpack.c.l.b16 %v2185
        %v2449 = vunpack.c.h.b16 %v2185
        %v2450 = vunpack.c.l.b16 %v2186
        %v2451 = vunpack.c.h.b16 %v2186
        %v2452 = vunpack.c.l.b16 %v2187
        %v2453 = vunpack.c.h.b16 %v2187
        %v2454 = vunpack.c.l.b16 %v2188
        %v2455 = vunpack.c.h.b16 %v2188
        %v2456 = vunpack.c.l.b16 %v2189
        %v2457 = vunpack.c.h.b16 %v2189
        %v2458 = vunpack.c.l.b16 %v2190
        %v2459 = vunpack.c.h.b16 %v2190
        %v2460 = vunpack.c.l.b16 %v2191
        %v2461 = vunpack.c.h.b16 %v2191
        %v2462 = vunpack.c.l.b16 %v2192
        %v2463 = vunpack.c.h.b16 %v2192
        %v2464 = vunpack.c.l.b16 %v2193
        %v2465 = vunpack.c.h.b16 %v2193
        %v2466 = vunpack.c.l.b16 %v2194
        %v2467 = vunpack.c.h.b16 %v2194
        %v2468 = vunpack.c.l.b16 %v2195
        %v2469 = vunpack.c.h.b16 %v2195
        %v2470 = vunpack.c.l.b16 %v2196
        %v2471 = vunpack.c.h.b16 %v2196
        %v2472 = vunpack.c.l.b16 %v2197
        %v2473 = vunpack.c.h.b16 %v2197
        %v2474 = vunpack.c.l.b16 %v2198
        %v2475 = vunpack.c.h.b16 %v2198
        %v2476 = vunpack.c.l.b16 %v2199
        %v2477 = vunpack.c.h.b16 %v2199
        %v2478 = vunpack.c.l.b16 %v2200
        %v2479 = vunpack.c.h.b16 %v2200
        %v2480 = vunpack.c.l.b16 %v2201
        %v2481 = vunpack.c.h.b16 %v2201
        %v2482 = vunpack.c.l.b16 %v2202
        %v2483 = vunpack.c.h.b16 %v2202
        %v2484 = vunpack.c.l.b16 %v2203
        %v2485 = vunpack.c.h.b16 %v2203
        %v2486 = vunpack.c.l.b16 %v2204
        %v2487 = vunpack.c.h.b16 %v2204
        %v2488 = vunpack.c.l.b16 %v2205
        %v2489 = vunpack.c.h.b16 %v2205
        %v2490 = vunpack.c.l.b16 %v2206
        %v2491 = vunpack.c.h.b16 %v2206
        %v2492 = vunpack.c.l.b16 %v2207
        %v2493 = vunpack.c.h.b16 %v2207
        %v2494 = vunpack.c.l.b16 %v2208
        %v2495 = vunpack.c.h.b16 %v2208
        %v2496 = vunpack.c.l.b16 %v2209
        %v2497 = vunpack.c.h.b16 %v2209
        %v2498 = vunpack.c.l.b16 %v2210
        %v2499 = vunpack.c.h.b16 %v2210
        %v2500 = vunpack.c.l.b16 %v2211
        %v2501 = vunpack.c.h.b16 %v2211
        %v2502 = vunpack.c.l.b16 %v2212
        %v2503 = vunpack.c.h.b16 %v2212
        %v2504 = vunpack.c.l.b16 %v2213
        %v2505 = vunpack.c.h.b16 %v2213
        %v2506 = vunpack.c.l.b16 %v2214
        %v2507 = vunpack.c.h.b16 %v2214
        %v2508 = vunpack.c.l.b16 %v2215
        %v2509 = vunpack.c.h.b16 %v2215
        %v2510 = vunpack.c.l.b16 %v2216
        %v2511 = vunpack.c.h.b16 %v2216
        %v2512 = vunpack.c.l.b16 %v2217
        %v2513 = vunpack.c.h.b16 %v2217
        %v2514 = vunpack.c.l.b16 %v2218
        %v2515 = vunpack.c.h.b16 %v2218
        %v2516 = vunpack.c.l.b16 %v2219
        %v2517 = vunpack.c.h.b16 %v2219
        %v2518 = vunpack.c.l.b16 %v2220
        %v2519 = vunpack.c.h.b16 %v2220
        %v2520 = vunpack.c.l.b16 %v2221
        %v2521 = vunpack.c.h.b16 %v2221
        %v2522 = vunpack.c.l.b16 %v2222
        %v2523 = vunpack.c.h.b16 %v2222
        %v2524 = vunpack.c.l.b16 %v2223
        %v2525 = vunpack.c.h.b16 %v2223
        %v2526 = vunpack.c.l.b16 %v2224
        %v2527 = vunpack.c.h.b16 %v2224
        %v2528 = vunpack.c.l.b16 %v2225
        %v2529 = vunpack.c.h.b16 %v2225
        %v2530 = vunpack.c.l.b16 %v2226
        %v2531 = vunpack.c.h.b16 %v2226
        %v2532 = vunpack.c.l.b16 %v2227
        %v2533 = vunpack.c.h.b16 %v2227
        %v2534 = vunpack.c.l.b16 %v2228
        %v2535 = vunpack.c.h.b16 %v2228
        %v2536 = vunpack.c.l.b16 %v2229
        %v2537 = vunpack.c.h.b16 %v2229
        %v2538 = vunpack.c.l.b16 %v2230
        %v2539 = vunpack.c.h.b16 %v2230
        %v2540 = vunpack.c.l.b16 %v2231
        %v2541 = vunpack.c.h.b16 %v2231
        %v2542 = vunpack.c.l.b16 %v2232
        %v2543 = vunpack.c.h.b16 %v2232
        %v2544 = vunpack.c.l.b16 %v2233
        %v2545 = vunpack.c.h.b16 %v2233
        %v2546 = vunpack.c.l.b16 %v2234
        %v2547 = vunpack.c.h.b16 %v2234
        %v2548 = vunpack.c.l.b16 %v2235
        %v2549 = vunpack.c.h.b16 %v2235
        %v2550 = vunpack.c.l.b16 %v2236
        %v2551 = vunpack.c.h.b16 %v2236
        %v2552 = vunpack.c.l.b16 %v2237
        %v2553 = vunpack.c.h.b16 %v2237
        %v2554 = vunpack.c.l.b16 %v2238
        %v2555 = vunpack.c.h.b16 %v2238
        %v2556 = vunpack.c.l.b16 %v2239
        %v2557 = vunpack.c.h.b16 %v2239
        %v2558 = vunpack.c.l.b16 %v2240
        %v2559 = vunpack.c.h.b16 %v2240
        %v2560 = vunpack.c.l.b16 %v2241
        %v2561 = vunpack.c.h.b16 %v2241
        %v2562 = vunpack.c.l.b16 %v2242
        %v2563 = vunpack.c.h.b16 %v2242
        %v2564 = vunpack.c.l.b16 %v2243
        %v2565 = vunpack.c.h.b16 %v2243
        %v2566 = vpack.c.b16 %v2370, %v2366
        %v2567 = vpack.c.b16 %v2371, %v2367
        %v2568 = vpack.c.b16 %v2372, %v2368
        %v2569 = vpack.c.b16 %v2373, %v2369
        %v2570 = vpack.c.b16 %v2378, %v2374
        %v2571 = vpack.c.b16 %v2379, %v2375
        %v2572 = vpack.c.b16 %v2380, %v2376
        %v2573 = vpack.c.b16 %v2381, %v2377
        %v2574 = vpack.c.b16 %v2386, %v2382
        %v2575 = vpack.c.b16 %v2387, %v2383
        %v2576 = vpack.c.b16 %v2388, %v2384
        %v2577 = vpack.c.b16 %v2389, %v2385
        %v2578 = vpack.c.b16 %v2394, %v2390
        %v2579 = vpack.c.b16 %v2395, %v2391
        %v2580 = vpack.c.b16 %v2396, %v2392
        %v2581 = vpack.c.b16 %v2397, %v2393
        %v2582 = vpack.c.b16 %v2402, %v2398
        %v2583 = vpack.c.b16 %v2403, %v2399
        %v2584 = vpack.c.b16 %v2404, %v2400
        %v2585 = vpack.c.b16 %v2405, %v2401
        %v2586 = vpack.c.b16 %v2410, %v2406
        %v2587 = vpack.c.b16 %v2411, %v2407
        %v2588 = vpack.c.b16 %v2412, %v2408
        %v2589 = vpack.c.b16 %v2413, %v2409
        %v2590 = vpack.c.b16 %v2418, %v2414
        %v2591 = vpack.c.b16 %v2419, %v2415
        %v2592 = vpack.c.b16 %v2420, %v2416
        %v2593 = vpack.c.b16 %v2421, %v2417
        %v2594 = vpack.c.b16 %v2426, %v2422
        %v2595 = vpack.c.b16 %v2427, %v2423
        %v2596 = vpack.c.b16 %v2428, %v2424
        %v2597 = vpack.c.b16 %v2429, %v2425
        %v2598 = vpack.c.b16 %v2434, %v2430
        %v2599 = vpack.c.b16 %v2435, %v2431
        %v2600 = vpack.c.b16 %v2436, %v2432
        %v2601 = vpack.c.b16 %v2437, %v2433
        %v2602 = vpack.c.b16 %v2442, %v2438
        %v2603 = vpack.c.b16 %v2443, %v2439
        %v2604 = vpack.c.b16 %v2444, %v2440
        %v2605 = vpack.c.b16 %v2445, %v2441
        %v2606 = vpack.c.b16 %v2450, %v2446
        %v2607 = vpack.c.b16 %v2451, %v2447
        %v2608 = vpack.c.b16 %v2452, %v2448
        %v2609 = vpack.c.b16 %v2453, %v2449
        %v2610 = vpack.c.b16 %v2458, %v2454
        %v2611 = vpack.c.b16 %v2459, %v2455
        %v2612 = vpack.c.b16 %v2460, %v2456
        %v2613 = vpack.c.b16 %v2461, %v2457
        %v2614 = vpack.c.b16 %v2466, %v2462
        %v2615 = vpack.c.b16 %v2467, %v2463
        %v2616 = vpack.c.b16 %v2468, %v2464
        %v2617 = vpack.c.b16 %v2469, %v2465
        %v2618 = vpack.c.b16 %v2474, %v2470
        %v2619 = vpack.c.b16 %v2475, %v2471
        %v2620 = vpack.c.b16 %v2476, %v2472
        %v2621 = vpack.c.b16 %v2477, %v2473
        %v2622 = vpack.c.b16 %v2482, %v2478
        %v2623 = vpack.c.b16 %v2483, %v2479
        %v2624 = vpack.c.b16 %v2484, %v2480
        %v2625 = vpack.c.b16 %v2485, %v2481
        %v2626 = vpack.c.b16 %v2490, %v2486
        %v2627 = vpack.c.b16 %v2491, %v2487
        %v2628 = vpack.c.b16 %v2492, %v2488
        %v2629 = vpack.c.b16 %v2493, %v2489
        %v2630 = vpack.c.b16 %v2498, %v2494
        %v2631 = vpack.c.b16 %v2499, %v2495
        %v2632 = vpack.c.b16 %v2500, %v2496
        %v2633 = vpack.c.b16 %v2501, %v2497
        %v2634 = vpack.c.b16 %v2506, %v2502
        %v2635 = vpack.c.b16 %v2507, %v2503
        %v2636 = vpack.c.b16 %v2508, %v2504
        %v2637 = vpack.c.b16 %v2509, %v2505
        %v2638 = vpack.c.b16 %v2514, %v2510
        %v2639 = vpack.c.b16 %v2515, %v2511
        %v2640 = vpack.c.b16 %v2516, %v2512
        %v2641 = vpack.c.b16 %v2517, %v2513
        %v2642 = vpack.c.b16 %v2522, %v2518
        %v2643 = vpack.c.b16 %v2523, %v2519
        %v2644 = vpack.c.b16 %v2524, %v2520
        %v2645 = vpack.c.b16 %v2525, %v2521
        %v2646 = vpack.c.b16 %v2530, %v2526
        %v2647 = vpack.c.b16 %v2531, %v2527
        %v2648 = vpack.c.b16 %v2532, %v2528
        %v2649 = vpack.c.b16 %v2533, %v2529
        %v2650 = vpack.c.b16 %v2538, %v2534
        %v2651 = vpack.c.b16 %v2539, %v2535
        %v2652 = vpack.c.b16 %v2540, %v2536
        %v2653 = vpack.c.b16 %v2541, %v2537
        %v2654 = vpack.c.b16 %v2546, %v2542
        %v2655 = vpack.c.b16 %v2547, %v2543
        %v2656 = vpack.c.b16 %v2548, %v2544
        %v2657 = vpack.c.b16 %v2549, %v2545
        %v2658 = vpack.c.b16 %v2554, %v2550
        %v2659 = vpack.c.b16 %v2555, %v2551
        %v2660 = vpack.c.b16 %v2556, %v2552
        %v2661 = vpack.c.b16 %v2557, %v2553
        %v2662 = vpack.c.b16 %v2562, %v2558
        %v2663 = vpack.c.b16 %v2563, %v2559
        %v2664 = vpack.c.b16 %v2564, %v2560
        %v2665 = vpack.c.b16 %v2565, %v2561
        %2766 = vmatprep.subr.bf16.mxu0 %v2595
        %2767 = vmatpush1.bf16.msra.mxu0 %v2594
        %2768 = vmatprep.subr.bf16.mxu0 %v2591
        %2769 = vmatpush1.bf16.msra.mxu0 %v2590
        %2770 = vmatprep.subr.bf16.mxu0 %v2587
        %2771 = vmatpush1.bf16.msra.mxu0 %v2586
        %2772 = vmatprep.subr.bf16.mxu0 %v2583
        %2773 = vmatpush1.bf16.msra.mxu0 %v2582
        %2774 = vmatprep.subr.bf16.mxu0 %v2579
        %2775 = vmatpush1.bf16.msra.mxu0 %v2578
        %2776 = vmatprep.subr.bf16.mxu0 %v2575
        %2777 = vmatpush1.bf16.msra.mxu0 %v2574
        %2778 = vmatprep.subr.bf16.mxu0 %v2571
        %2779 = vmatpush1.bf16.msra.mxu0 %v2570
        %2780 = vmatprep.subr.bf16.mxu0 %v2567
        %2781 = vmatpush1.bf16.msra.mxu0 %v2566
        %2782 = vmatprep.subr.bf16.mxu0 %v2627
        %2783 = vmatpush2.bf16.msra.mxu0 %v2626
        %2784 = vmatprep.subr.bf16.mxu0 %v2623
        %2785 = vmatpush2.bf16.msra.mxu0 %v2622
        %2786 = vmatprep.subr.bf16.mxu0 %v2619
        %2787 = vmatpush2.bf16.msra.mxu0 %v2618
        %2788 = vmatprep.subr.bf16.mxu0 %v2615
        %2789 = vmatpush2.bf16.msra.mxu0 %v2614
        %2790 = vmatprep.subr.bf16.mxu0 %v2611
        %2791 = vmatpush2.bf16.msra.mxu0 %v2610
        %2792 = vmatprep.subr.bf16.mxu0 %v2607
        %2793 = vmatpush2.bf16.msra.mxu0 %v2606
        %2794 = vmatprep.subr.bf16.mxu0 %v2603
        %2795 = vmatpush2.bf16.msra.mxu0 %v2602
        %2796 = vmatprep.subr.bf16.mxu0 %v2599
        %2797 = vmatpush2.bf16.msra.mxu0 %v2598
        %2798 = vmatprep.mubr.bf16.mxu0 %v726
        %2799 = vmatmul.mubr.bf16.gmra.mxu0 %v725
        %v2800 = vpop.f32.mrf.mxu0
        %v2801 = vadd.f32 %v2249, %v2800
        %v2802 = vpop.f32.mrf.mxu0
        %v2803 = vadd.f32 %v2253, %v2802
        %v2804 = vpop.f32.mrf.mxu0
        %v2805 = vadd.f32 %v2249, %v2804
        %v2806 = vpop.f32.mrf.mxu0
        %v2807 = vadd.f32 %v2253, %v2806
        %2808 = vmatprep.mubr.bf16.mxu0 %v730
        %2809 = vmatmul.mubr.bf16.gmra.mxu0 %v729
        %v2810 = vpop.f32.mrf.mxu0
        %v2811 = vadd.f32 %v2249, %v2810
        %v2812 = vpop.f32.mrf.mxu0
        %v2813 = vadd.f32 %v2253, %v2812
        %v2814 = vpop.f32.mrf.mxu0
        %v2815 = vadd.f32 %v2249, %v2814
        %v2816 = vpop.f32.mrf.mxu0
        %v2817 = vadd.f32 %v2253, %v2816
        %2818 = vmatprep.mubr.bf16.mxu0 %v734
        %2819 = vmatmul.mubr.bf16.gmra.mxu0 %v733
        %v2820 = vpop.f32.mrf.mxu0
        %v2821 = vadd.f32 %v2249, %v2820
        %v2822 = vpop.f32.mrf.mxu0
        %v2823 = vadd.f32 %v2253, %v2822
        %v2824 = vpop.f32.mrf.mxu0
        %v2825 = vadd.f32 %v2249, %v2824
        %v2826 = vpop.f32.mrf.mxu0
        %v2827 = vadd.f32 %v2253, %v2826
        %2828 = vmatprep.mubr.bf16.mxu0 %v738
        %2829 = vmatmul.mubr.bf16.gmra.mxu0 %v737
        %v2830 = vpop.f32.mrf.mxu0
        %v2831 = vadd.f32 %v2249, %v2830
        %v2832 = vpop.f32.mrf.mxu0
        %v2833 = vadd.f32 %v2253, %v2832
        %v2834 = vpop.f32.mrf.mxu0
        %v2835 = vadd.f32 %v2249, %v2834
        %v2836 = vpop.f32.mrf.mxu0
        %v2837 = vadd.f32 %v2253, %v2836
        %2838 = vmatprep.mubr.bf16.mxu0 %v742
        %2839 = vmatmul.mubr.bf16.gmra.mxu0 %v741
        %v2840 = vpop.f32.mrf.mxu0
        %v2841 = vadd.f32 %v2249, %v2840
        %v2842 = vpop.f32.mrf.mxu0
        %v2843 = vadd.f32 %v2253, %v2842
        %v2844 = vpop.f32.mrf.mxu0
        %v2845 = vadd.f32 %v2249, %v2844
        %v2846 = vpop.f32.mrf.mxu0
        %v2847 = vadd.f32 %v2253, %v2846
        %2848 = vmatprep.mubr.bf16.mxu0 %v746
        %2849 = vmatmul.mubr.bf16.gmra.mxu0 %v745
        %v2850 = vpop.f32.mrf.mxu0
        %v2851 = vadd.f32 %v2249, %v2850
        %v2852 = vpop.f32.mrf.mxu0
        %v2853 = vadd.f32 %v2253, %v2852
        %v2854 = vpop.f32.mrf.mxu0
        %v2855 = vadd.f32 %v2249, %v2854
        %v2856 = vpop.f32.mrf.mxu0
        %v2857 = vadd.f32 %v2253, %v2856
        %2858 = vmatprep.mubr.bf16.mxu0 %v750
        %2859 = vmatmul.mubr.bf16.gmra.mxu0 %v749
        %v2860 = vpop.f32.mrf.mxu0
        %v2861 = vadd.f32 %v2249, %v2860
        %v2862 = vpop.f32.mrf.mxu0
        %v2863 = vadd.f32 %v2253, %v2862
        %v2864 = vpop.f32.mrf.mxu0
        %v2865 = vadd.f32 %v2249, %v2864
        %v2866 = vpop.f32.mrf.mxu0
        %v2867 = vadd.f32 %v2253, %v2866
        %2868 = vmatprep.mubr.bf16.mxu0 %v754
        %2869 = vmatmul.mubr.bf16.gmra.mxu0 %v753
        %v2870 = vpop.f32.mrf.mxu0
        %v2871 = vadd.f32 %v2249, %v2870
        %v2872 = vpop.f32.mrf.mxu0
        %v2873 = vadd.f32 %v2253, %v2872
        %v2874 = vpop.f32.mrf.mxu0
        %v2875 = vadd.f32 %v2249, %v2874
        %v2876 = vpop.f32.mrf.mxu0
        %v2877 = vadd.f32 %v2253, %v2876
        %2878 = vdwg.mxu0
        %2879 = vmatprep.subr.bf16.mxu0 %v2659
        %2880 = vmatpush1.bf16.msra.mxu0 %v2658
        %2881 = vmatprep.subr.bf16.mxu0 %v2655
        %2882 = vmatpush1.bf16.msra.mxu0 %v2654
        %2883 = vmatprep.subr.bf16.mxu0 %v2651
        %2884 = vmatpush1.bf16.msra.mxu0 %v2650
        %2885 = vmatprep.subr.bf16.mxu0 %v2647
        %2886 = vmatpush1.bf16.msra.mxu0 %v2646
        %2887 = vmatprep.subr.bf16.mxu0 %v2643
        %2888 = vmatpush1.bf16.msra.mxu0 %v2642
        %2889 = vmatprep.subr.bf16.mxu0 %v2639
        %2890 = vmatpush1.bf16.msra.mxu0 %v2638
        %2891 = vmatprep.subr.bf16.mxu0 %v2635
        %2892 = vmatpush1.bf16.msra.mxu0 %v2634
        %2893 = vmatprep.subr.bf16.mxu0 %v2631
        %2894 = vmatpush1.bf16.msra.mxu0 %v2630
        %2895 = vmatprep.subr.bf16.mxu0 0
        %2896 = vmatpush2.bf16.msra.mxu0 0
        %2897 = vmatprep.subr.bf16.mxu0 0
        %2898 = vmatpush2.bf16.msra.mxu0 0
        %2899 = vmatprep.subr.bf16.mxu0 0
        %2900 = vmatpush2.bf16.msra.mxu0 0
        %2901 = vmatprep.subr.bf16.mxu0 0
        %2902 = vmatpush2.bf16.msra.mxu0 0
        %2903 = vmatprep.subr.bf16.mxu0 0
        %2904 = vmatpush2.bf16.msra.mxu0 0
        %2905 = vmatprep.subr.bf16.mxu0 0
        %2906 = vmatpush2.bf16.msra.mxu0 0
        %2907 = vmatprep.subr.bf16.mxu0 0
        %2908 = vmatpush2.bf16.msra.mxu0 0
        %2909 = vmatprep.subr.bf16.mxu0 %v2663
        %2910 = vmatpush2.bf16.msra.mxu0 %v2662
        %2911 = vmatprep.mubr.bf16.mxu0 %v1381
        %2912 = vmatmul.mubr.bf16.gmra.mxu0 %v727
        %v2913 = vpop.f32.mrf.mxu0
        %v2914 = vadd.f32 %v2801, %v2913
        %v2915 = vpop.f32.mrf.mxu0
        %v2916 = vadd.f32 %v2803, %v2915
        %v2917 = vpop.f32.mrf.mxu0
        %v2918 = vadd.f32 %v2805, %v2917
        %v2919 = vpop.f32.mrf.mxu0
        %v2920 = vadd.f32 %v2807, %v2919
        %2921 = vmatprep.mubr.bf16.mxu0 %v1384
        %2922 = vmatmul.mubr.bf16.gmra.mxu0 %v731
        %v2923 = vpop.f32.mrf.mxu0
        %v2924 = vadd.f32 %v2811, %v2923
        %v2925 = vpop.f32.mrf.mxu0
        %v2926 = vadd.f32 %v2813, %v2925
        %v2927 = vpop.f32.mrf.mxu0
        %v2928 = vadd.f32 %v2815, %v2927
        %v2929 = vpop.f32.mrf.mxu0
        %v2930 = vadd.f32 %v2817, %v2929
        %2931 = vmatprep.mubr.bf16.mxu0 %v1387
        %2932 = vmatmul.mubr.bf16.gmra.mxu0 %v735
        %v2933 = vpop.f32.mrf.mxu0
        %v2934 = vadd.f32 %v2821, %v2933
        %v2935 = vpop.f32.mrf.mxu0
        %v2936 = vadd.f32 %v2823, %v2935
        %v2937 = vpop.f32.mrf.mxu0
        %v2938 = vadd.f32 %v2825, %v2937
        %v2939 = vpop.f32.mrf.mxu0
        %v2940 = vadd.f32 %v2827, %v2939
        %2941 = vmatprep.mubr.bf16.mxu0 %v1390
        %2942 = vmatmul.mubr.bf16.gmra.mxu0 %v739
        %v2943 = vpop.f32.mrf.mxu0
        %v2944 = vadd.f32 %v2831, %v2943
        %v2945 = vpop.f32.mrf.mxu0
        %v2946 = vadd.f32 %v2833, %v2945
        %v2947 = vpop.f32.mrf.mxu0
        %v2948 = vadd.f32 %v2835, %v2947
        %v2949 = vpop.f32.mrf.mxu0
        %v2950 = vadd.f32 %v2837, %v2949
        %2951 = vmatprep.mubr.bf16.mxu0 %v1393
        %2952 = vmatmul.mubr.bf16.gmra.mxu0 %v743
        %v2953 = vpop.f32.mrf.mxu0
        %v2954 = vadd.f32 %v2841, %v2953
        %v2955 = vpop.f32.mrf.mxu0
        %v2956 = vadd.f32 %v2843, %v2955
        %v2957 = vpop.f32.mrf.mxu0
        %v2958 = vadd.f32 %v2845, %v2957
        %v2959 = vpop.f32.mrf.mxu0
        %v2960 = vadd.f32 %v2847, %v2959
        %2961 = vmatprep.mubr.bf16.mxu0 %v1396
        %2962 = vmatmul.mubr.bf16.gmra.mxu0 %v747
        %v2963 = vpop.f32.mrf.mxu0
        %v2964 = vadd.f32 %v2851, %v2963
        %v2965 = vpop.f32.mrf.mxu0
        %v2966 = vadd.f32 %v2853, %v2965
        %v2967 = vpop.f32.mrf.mxu0
        %v2968 = vadd.f32 %v2855, %v2967
        %v2969 = vpop.f32.mrf.mxu0
        %v2970 = vadd.f32 %v2857, %v2969
        %2971 = vmatprep.mubr.bf16.mxu0 %v1399
        %2972 = vmatmul.mubr.bf16.gmra.mxu0 %v751
        %v2973 = vpop.f32.mrf.mxu0
        %v2974 = vadd.f32 %v2861, %v2973
        %v2975 = vpop.f32.mrf.mxu0
        %v2976 = vadd.f32 %v2863, %v2975
        %v2977 = vpop.f32.mrf.mxu0
        %v2978 = vadd.f32 %v2865, %v2977
        %v2979 = vpop.f32.mrf.mxu0
        %v2980 = vadd.f32 %v2867, %v2979
        %2981 = vmatprep.mubr.bf16.mxu0 %v1402
        %2982 = vmatmul.mubr.bf16.gmra.mxu0 %v755
        %v2983 = vpop.f32.mrf.mxu0
        %v2984 = vadd.f32 %v2871, %v2983
        %v2985 = vpop.f32.mrf.mxu0
        %v2986 = vadd.f32 %v2873, %v2985
        %v2987 = vpop.f32.mrf.mxu0
        %v2988 = vadd.f32 %v2875, %v2987
        %v2989 = vpop.f32.mrf.mxu0
        %v2990 = vadd.f32 %v2877, %v2989
        %2991 = vdwg.mxu0
        %2992 = vmatprep.subr.bf16.mxu0 %v2597
        %2993 = vmatpush1.bf16.msra.mxu0 %v2596
        %2994 = vmatprep.subr.bf16.mxu0 %v2593
        %2995 = vmatpush1.bf16.msra.mxu0 %v2592
        %2996 = vmatprep.subr.bf16.mxu0 %v2589
        %2997 = vmatpush1.bf16.msra.mxu0 %v2588
        %2998 = vmatprep.subr.bf16.mxu0 %v2585
        %2999 = vmatpush1.bf16.msra.mxu0 %v2584
        %3000 = vmatprep.subr.bf16.mxu0 %v2581
        %3001 = vmatpush1.bf16.msra.mxu0 %v2580
        %3002 = vmatprep.subr.bf16.mxu0 %v2577
        %3003 = vmatpush1.bf16.msra.mxu0 %v2576
        %3004 = vmatprep.subr.bf16.mxu0 %v2573
        %3005 = vmatpush1.bf16.msra.mxu0 %v2572
        %3006 = vmatprep.subr.bf16.mxu0 %v2569
        %3007 = vmatpush1.bf16.msra.mxu0 %v2568
        %3008 = vmatprep.subr.bf16.mxu0 %v2629
        %3009 = vmatpush2.bf16.msra.mxu0 %v2628
        %3010 = vmatprep.subr.bf16.mxu0 %v2625
        %3011 = vmatpush2.bf16.msra.mxu0 %v2624
        %3012 = vmatprep.subr.bf16.mxu0 %v2621
        %3013 = vmatpush2.bf16.msra.mxu0 %v2620
        %3014 = vmatprep.subr.bf16.mxu0 %v2617
        %3015 = vmatpush2.bf16.msra.mxu0 %v2616
        %3016 = vmatprep.subr.bf16.mxu0 %v2613
        %3017 = vmatpush2.bf16.msra.mxu0 %v2612
        %3018 = vmatprep.subr.bf16.mxu0 %v2609
        %3019 = vmatpush2.bf16.msra.mxu0 %v2608
        %3020 = vmatprep.subr.bf16.mxu0 %v2605
        %3021 = vmatpush2.bf16.msra.mxu0 %v2604
        %3022 = vmatprep.subr.bf16.mxu0 %v2601
        %3023 = vmatpush2.bf16.msra.mxu0 %v2600
        %3024 = vmatprep.mubr.bf16.mxu0 %v726
        %3025 = vmatmul.mubr.bf16.gmra.mxu0 %v725
        %v3026 = vpop.f32.mrf.mxu0
        %v3027 = vadd.f32 %v2257, %v3026
        %v3028 = vpop.f32.mrf.mxu0
        %v3029 = vadd.f32 %v2261, %v3028
        %v3030 = vpop.f32.mrf.mxu0
        %v3031 = vadd.f32 %v2257, %v3030
        %v3032 = vpop.f32.mrf.mxu0
        %v3033 = vadd.f32 %v2261, %v3032
        %3034 = vmatprep.mubr.bf16.mxu0 %v730
        %3035 = vmatmul.mubr.bf16.gmra.mxu0 %v729
        %v3036 = vpop.f32.mrf.mxu0
        %v3037 = vadd.f32 %v2257, %v3036
        %v3038 = vpop.f32.mrf.mxu0
        %v3039 = vadd.f32 %v2261, %v3038
        %v3040 = vpop.f32.mrf.mxu0
        %v3041 = vadd.f32 %v2257, %v3040
        %v3042 = vpop.f32.mrf.mxu0
        %v3043 = vadd.f32 %v2261, %v3042
        %3044 = vmatprep.mubr.bf16.mxu0 %v734
        %3045 = vmatmul.mubr.bf16.gmra.mxu0 %v733
        %v3046 = vpop.f32.mrf.mxu0
        %v3047 = vadd.f32 %v2257, %v3046
        %v3048 = vpop.f32.mrf.mxu0
        %v3049 = vadd.f32 %v2261, %v3048
        %v3050 = vpop.f32.mrf.mxu0
        %v3051 = vadd.f32 %v2257, %v3050
        %v3052 = vpop.f32.mrf.mxu0
        %v3053 = vadd.f32 %v2261, %v3052
        %3054 = vmatprep.mubr.bf16.mxu0 %v738
        %3055 = vmatmul.mubr.bf16.gmra.mxu0 %v737
        %v3056 = vpop.f32.mrf.mxu0
        %v3057 = vadd.f32 %v2257, %v3056
        %v3058 = vpop.f32.mrf.mxu0
        %v3059 = vadd.f32 %v2261, %v3058
        %v3060 = vpop.f32.mrf.mxu0
        %v3061 = vadd.f32 %v2257, %v3060
        %v3062 = vpop.f32.mrf.mxu0
        %v3063 = vadd.f32 %v2261, %v3062
        %3064 = vmatprep.mubr.bf16.mxu0 %v742
        %3065 = vmatmul.mubr.bf16.gmra.mxu0 %v741
        %v3066 = vpop.f32.mrf.mxu0
        %v3067 = vadd.f32 %v2257, %v3066
        %v3068 = vpop.f32.mrf.mxu0
        %v3069 = vadd.f32 %v2261, %v3068
        %v3070 = vpop.f32.mrf.mxu0
        %v3071 = vadd.f32 %v2257, %v3070
        %v3072 = vpop.f32.mrf.mxu0
        %v3073 = vadd.f32 %v2261, %v3072
        %3074 = vmatprep.mubr.bf16.mxu0 %v746
        %3075 = vmatmul.mubr.bf16.gmra.mxu0 %v745
        %v3076 = vpop.f32.mrf.mxu0
        %v3077 = vadd.f32 %v2257, %v3076
        %v3078 = vpop.f32.mrf.mxu0
        %v3079 = vadd.f32 %v2261, %v3078
        %v3080 = vpop.f32.mrf.mxu0
        %v3081 = vadd.f32 %v2257, %v3080
        %v3082 = vpop.f32.mrf.mxu0
        %v3083 = vadd.f32 %v2261, %v3082
        %3084 = vmatprep.mubr.bf16.mxu0 %v750
        %3085 = vmatmul.mubr.bf16.gmra.mxu0 %v749
        %v3086 = vpop.f32.mrf.mxu0
        %v3087 = vadd.f32 %v2257, %v3086
        %v3088 = vpop.f32.mrf.mxu0
        %v3089 = vadd.f32 %v2261, %v3088
        %v3090 = vpop.f32.mrf.mxu0
        %v3091 = vadd.f32 %v2257, %v3090
        %v3092 = vpop.f32.mrf.mxu0
        %v3093 = vadd.f32 %v2261, %v3092
        %3094 = vmatprep.mubr.bf16.mxu0 %v754
        %3095 = vmatmul.mubr.bf16.gmra.mxu0 %v753
        %v3096 = vpop.f32.mrf.mxu0
        %v3097 = vadd.f32 %v2257, %v3096
        %v3098 = vpop.f32.mrf.mxu0
        %v3099 = vadd.f32 %v2261, %v3098
        %v3100 = vpop.f32.mrf.mxu0
        %v3101 = vadd.f32 %v2257, %v3100
        %v3102 = vpop.f32.mrf.mxu0
        %v3103 = vadd.f32 %v2261, %v3102
        %3104 = vdwg.mxu0
        %3105 = vmatprep.subr.bf16.mxu0 %v2661
        %3106 = vmatpush1.bf16.msra.mxu0 %v2660
        %3107 = vmatprep.subr.bf16.mxu0 %v2657
        %3108 = vmatpush1.bf16.msra.mxu0 %v2656
        %3109 = vmatprep.subr.bf16.mxu0 %v2653
        %3110 = vmatpush1.bf16.msra.mxu0 %v2652
        %3111 = vmatprep.subr.bf16.mxu0 %v2649
        %3112 = vmatpush1.bf16.msra.mxu0 %v2648
        %3113 = vmatprep.subr.bf16.mxu0 %v2645
        %3114 = vmatpush1.bf16.msra.mxu0 %v2644
        %3115 = vmatprep.subr.bf16.mxu0 %v2641
        %3116 = vmatpush1.bf16.msra.mxu0 %v2640
        %3117 = vmatprep.subr.bf16.mxu0 %v2637
        %3118 = vmatpush1.bf16.msra.mxu0 %v2636
        %3119 = vmatprep.subr.bf16.mxu0 %v2633
        %3120 = vmatpush1.bf16.msra.mxu0 %v2632
        %3121 = vmatprep.subr.bf16.mxu0 0
        %3122 = vmatpush2.bf16.msra.mxu0 0
        %3123 = vmatprep.subr.bf16.mxu0 0
        %3124 = vmatpush2.bf16.msra.mxu0 0
        %3125 = vmatprep.subr.bf16.mxu0 0
        %3126 = vmatpush2.bf16.msra.mxu0 0
        %3127 = vmatprep.subr.bf16.mxu0 0
        %3128 = vmatpush2.bf16.msra.mxu0 0
        %3129 = vmatprep.subr.bf16.mxu0 0
        %3130 = vmatpush2.bf16.msra.mxu0 0
        %3131 = vmatprep.subr.bf16.mxu0 0
        %3132 = vmatpush2.bf16.msra.mxu0 0
        %3133 = vmatprep.subr.bf16.mxu0 0
        %3134 = vmatpush2.bf16.msra.mxu0 0
        %3135 = vmatprep.subr.bf16.mxu0 %v2665
        %3136 = vmatpush2.bf16.msra.mxu0 %v2664
        %3137 = vmatprep.mubr.bf16.mxu0 %v1381
        %3138 = vmatmul.mubr.bf16.gmra.mxu0 %v727
        %v3139 = vpop.f32.mrf.mxu0
        %v3140 = vadd.f32 %v3027, %v3139
        %v3141 = vpop.f32.mrf.mxu0
        %v3142 = vadd.f32 %v3029, %v3141
        %v3143 = vpop.f32.mrf.mxu0
        %v3144 = vadd.f32 %v3031, %v3143
        %v3145 = vpop.f32.mrf.mxu0
        %v3146 = vadd.f32 %v3033, %v3145
        %3147 = vmatprep.mubr.bf16.mxu0 %v1384
        %3148 = vmatmul.mubr.bf16.gmra.mxu0 %v731
        %v3149 = vpop.f32.mrf.mxu0
        %v3150 = vadd.f32 %v3037, %v3149
        %v3151 = vpop.f32.mrf.mxu0
        %v3152 = vadd.f32 %v3039, %v3151
        %v3153 = vpop.f32.mrf.mxu0
        %v3154 = vadd.f32 %v3041, %v3153
        %v3155 = vpop.f32.mrf.mxu0
        %v3156 = vadd.f32 %v3043, %v3155
        %3157 = vmatprep.mubr.bf16.mxu0 %v1387
        %3158 = vmatmul.mubr.bf16.gmra.mxu0 %v735
        %v3159 = vpop.f32.mrf.mxu0
        %v3160 = vadd.f32 %v3047, %v3159
        %v3161 = vpop.f32.mrf.mxu0
        %v3162 = vadd.f32 %v3049, %v3161
        %v3163 = vpop.f32.mrf.mxu0
        %v3164 = vadd.f32 %v3051, %v3163
        %v3165 = vpop.f32.mrf.mxu0
        %v3166 = vadd.f32 %v3053, %v3165
        %3167 = vmatprep.mubr.bf16.mxu0 %v1390
        %3168 = vmatmul.mubr.bf16.gmra.mxu0 %v739
        %v3169 = vpop.f32.mrf.mxu0
        %v3170 = vadd.f32 %v3057, %v3169
        %v3171 = vpop.f32.mrf.mxu0
        %v3172 = vadd.f32 %v3059, %v3171
        %v3173 = vpop.f32.mrf.mxu0
        %v3174 = vadd.f32 %v3061, %v3173
        %v3175 = vpop.f32.mrf.mxu0
        %v3176 = vadd.f32 %v3063, %v3175
        %3177 = vmatprep.mubr.bf16.mxu0 %v1393
        %3178 = vmatmul.mubr.bf16.gmra.mxu0 %v743
        %v3179 = vpop.f32.mrf.mxu0
        %v3180 = vadd.f32 %v3067, %v3179
        %v3181 = vpop.f32.mrf.mxu0
        %v3182 = vadd.f32 %v3069, %v3181
        %v3183 = vpop.f32.mrf.mxu0
        %v3184 = vadd.f32 %v3071, %v3183
        %v3185 = vpop.f32.mrf.mxu0
        %v3186 = vadd.f32 %v3073, %v3185
        %3187 = vmatprep.mubr.bf16.mxu0 %v1396
        %3188 = vmatmul.mubr.bf16.gmra.mxu0 %v747
        %v3189 = vpop.f32.mrf.mxu0
        %v3190 = vadd.f32 %v3077, %v3189
        %v3191 = vpop.f32.mrf.mxu0
        %v3192 = vadd.f32 %v3079, %v3191
        %v3193 = vpop.f32.mrf.mxu0
        %v3194 = vadd.f32 %v3081, %v3193
        %v3195 = vpop.f32.mrf.mxu0
        %v3196 = vadd.f32 %v3083, %v3195
        %3197 = vmatprep.mubr.bf16.mxu0 %v1399
        %3198 = vmatmul.mubr.bf16.gmra.mxu0 %v751
        %v3199 = vpop.f32.mrf.mxu0
        %v3200 = vadd.f32 %v3087, %v3199
        %v3201 = vpop.f32.mrf.mxu0
        %v3202 = vadd.f32 %v3089, %v3201
        %v3203 = vpop.f32.mrf.mxu0
        %v3204 = vadd.f32 %v3091, %v3203
        %v3205 = vpop.f32.mrf.mxu0
        %v3206 = vadd.f32 %v3093, %v3205
        %3207 = vmatprep.mubr.bf16.mxu0 %v1402
        %3208 = vmatmul.mubr.bf16.gmra.mxu0 %v755
        %v3209 = vpop.f32.mrf.mxu0
        %v3210 = vadd.f32 %v3097, %v3209
        %v3211 = vpop.f32.mrf.mxu0
        %v3212 = vadd.f32 %v3099, %v3211
        %v3213 = vpop.f32.mrf.mxu0
        %v3214 = vadd.f32 %v3101, %v3213
        %v3215 = vpop.f32.mrf.mxu0
        %v3216 = vadd.f32 %v3103, %v3215
        %3217 = vdwg.mxu0
        %v3218 = vpack.c.bf16 %v2918, %v2914
        %v3219 = vpack.c.bf16 %v2920, %v2916
        %v3220 = vpack.c.bf16 %v3144, %v3140
        %v3221 = vpack.c.bf16 %v3146, %v3142
        %v3222 = vpack.c.bf16 %v2928, %v2924
        %v3223 = vpack.c.bf16 %v2930, %v2926
        %v3224 = vpack.c.bf16 %v3154, %v3150
        %v3225 = vpack.c.bf16 %v3156, %v3152
        %v3226 = vpack.c.bf16 %v2938, %v2934
        %v3227 = vpack.c.bf16 %v2940, %v2936
        %v3228 = vpack.c.bf16 %v3164, %v3160
        %v3229 = vpack.c.bf16 %v3166, %v3162
        %v3230 = vpack.c.bf16 %v2948, %v2944
        %v3231 = vpack.c.bf16 %v2950, %v2946
        %v3232 = vpack.c.bf16 %v3174, %v3170
        %v3233 = vpack.c.bf16 %v3176, %v3172
        %v3234 = vpack.c.bf16 %v2958, %v2954
        %v3235 = vpack.c.bf16 %v2960, %v2956
        %v3236 = vpack.c.bf16 %v3184, %v3180
        %v3237 = vpack.c.bf16 %v3186, %v3182
        %v3238 = vpack.c.bf16 %v2968, %v2964
        %v3239 = vpack.c.bf16 %v2970, %v2966
        %v3240 = vpack.c.bf16 %v3194, %v3190
        %v3241 = vpack.c.bf16 %v3196, %v3192
        %v3242 = vpack.c.bf16 %v2978, %v2974
        %v3243 = vpack.c.bf16 %v2980, %v2976
        %v3244 = vpack.c.bf16 %v3204, %v3200
        %v3245 = vpack.c.bf16 %v3206, %v3202
        %v3246 = vpack.c.bf16 %v2988, %v2984
        %v3247 = vpack.c.bf16 %v2990, %v2986
        %v3248 = vpack.c.bf16 %v3214, %v3210
        %v3249 = vpack.c.bf16 %v3216, %v3212
        %v3282 = vunpack.c.l.b16 %v3218
        %v3283 = vunpack.c.l.b16 %v3219
        %v3284 = vunpack.c.l.b16 %v3220
        %v3285 = vunpack.c.l.b16 %v3221
        %v3286 = vunpack.c.h.b16 %v3218
        %v3287 = vunpack.c.h.b16 %v3219
        %v3288 = vunpack.c.h.b16 %v3220
        %v3289 = vunpack.c.h.b16 %v3221
        %v3290 = vunpack.c.l.b16 %v3222
        %v3291 = vunpack.c.l.b16 %v3223
        %v3292 = vunpack.c.l.b16 %v3224
        %v3293 = vunpack.c.l.b16 %v3225
        %v3294 = vunpack.c.h.b16 %v3222
        %v3295 = vunpack.c.h.b16 %v3223
        %v3296 = vunpack.c.h.b16 %v3224
        %v3297 = vunpack.c.h.b16 %v3225
        %v3298 = vunpack.c.l.b16 %v3226
        %v3299 = vunpack.c.l.b16 %v3227
        %v3300 = vunpack.c.l.b16 %v3228
        %v3301 = vunpack.c.l.b16 %v3229
        %v3302 = vunpack.c.h.b16 %v3226
        %v3303 = vunpack.c.h.b16 %v3227
        %v3304 = vunpack.c.h.b16 %v3228
        %v3305 = vunpack.c.h.b16 %v3229
        %v3306 = vunpack.c.l.b16 %v3230
        %v3307 = vunpack.c.l.b16 %v3231
        %v3308 = vunpack.c.l.b16 %v3232
        %v3309 = vunpack.c.l.b16 %v3233
        %v3310 = vunpack.c.h.b16 %v3230
        %v3311 = vunpack.c.h.b16 %v3231
        %v3312 = vunpack.c.h.b16 %v3232
        %v3313 = vunpack.c.h.b16 %v3233
        %v3314 = vunpack.c.l.b16 %v3234
        %v3315 = vunpack.c.l.b16 %v3235
        %v3316 = vunpack.c.l.b16 %v3236
        %v3317 = vunpack.c.l.b16 %v3237
        %v3318 = vunpack.c.h.b16 %v3234
        %v3319 = vunpack.c.h.b16 %v3235
        %v3320 = vunpack.c.h.b16 %v3236
        %v3321 = vunpack.c.h.b16 %v3237
        %v3322 = vunpack.c.l.b16 %v3238
        %v3323 = vunpack.c.l.b16 %v3239
        %v3324 = vunpack.c.l.b16 %v3240
        %v3325 = vunpack.c.l.b16 %v3241
        %v3326 = vunpack.c.h.b16 %v3238
        %v3327 = vunpack.c.h.b16 %v3239
        %v3328 = vunpack.c.h.b16 %v3240
        %v3329 = vunpack.c.h.b16 %v3241
        %v3330 = vunpack.c.l.b16 %v3242
        %v3331 = vunpack.c.l.b16 %v3243
        %v3332 = vunpack.c.l.b16 %v3244
        %v3333 = vunpack.c.l.b16 %v3245
        %v3334 = vunpack.c.h.b16 %v3242
        %v3335 = vunpack.c.h.b16 %v3243
        %v3336 = vunpack.c.h.b16 %v3244
        %v3337 = vunpack.c.h.b16 %v3245
        %v3338 = vunpack.c.l.b16 %v3246
        %v3339 = vunpack.c.l.b16 %v3247
        %v3340 = vunpack.c.l.b16 %v3248
        %v3341 = vunpack.c.l.b16 %v3249
        %v3342 = vunpack.c.h.b16 %v3246
        %v3343 = vunpack.c.h.b16 %v3247
        %v3344 = vunpack.c.h.b16 %v3248
        %v3345 = vunpack.c.h.b16 %v3249
        %v3346 = vpack.c.b16 %v3283, %v3282
        %v3347 = vpack.c.b16 %v3285, %v3284
        %v3348 = vpack.c.b16 %v3287, %v3286
        %v3349 = vpack.c.b16 %v3289, %v3288
        %v3350 = vpack.c.b16 %v3291, %v3290
        %v3351 = vpack.c.b16 %v3293, %v3292
        %v3352 = vpack.c.b16 %v3295, %v3294
        %v3353 = vpack.c.b16 %v3297, %v3296
        %v3354 = vpack.c.b16 %v3299, %v3298
        %v3355 = vpack.c.b16 %v3301, %v3300
        %v3356 = vpack.c.b16 %v3303, %v3302
        %v3357 = vpack.c.b16 %v3305, %v3304
        %v3358 = vpack.c.b16 %v3307, %v3306
        %v3359 = vpack.c.b16 %v3309, %v3308
        %v3360 = vpack.c.b16 %v3311, %v3310
        %v3361 = vpack.c.b16 %v3313, %v3312
        %v3362 = vpack.c.b16 %v3315, %v3314
        %v3363 = vpack.c.b16 %v3317, %v3316
        %v3364 = vpack.c.b16 %v3319, %v3318
        %v3365 = vpack.c.b16 %v3321, %v3320
        %v3366 = vpack.c.b16 %v3323, %v3322
        %v3367 = vpack.c.b16 %v3325, %v3324
        %v3368 = vpack.c.b16 %v3327, %v3326
        %v3369 = vpack.c.b16 %v3329, %v3328
        %v3370 = vpack.c.b16 %v3331, %v3330
        %v3371 = vpack.c.b16 %v3333, %v3332
        %v3372 = vpack.c.b16 %v3335, %v3334
        %v3373 = vpack.c.b16 %v3337, %v3336
        %v3374 = vpack.c.b16 %v3339, %v3338
        %v3375 = vpack.c.b16 %v3341, %v3340
        %v3376 = vpack.c.b16 %v3343, %v3342
        %v3377 = vpack.c.b16 %v3345, %v3344
        %3410 = vst [vmem:[#allocation3] sm:$0xff] %v3346
        %3411 = vst [vmem:[#allocation3 + $0x8] sm:$0xff] %v3347
        %3412 = vst [vmem:[#allocation3 + $0x10] sm:$0xff] %v3348
        %3413 = vst [vmem:[#allocation3 + $0x18] sm:$0xff] %v3349
        %3414 = vst [vmem:[#allocation3 + $0x20] sm:$0xff] %v3350
        %3415 = vst [vmem:[#allocation3 + $0x28] sm:$0xff] %v3351
        %3416 = vst [vmem:[#allocation3 + $0x30] sm:$0xff] %v3352
        %3417 = vst [vmem:[#allocation3 + $0x38] sm:$0xff] %v3353
        %3418 = vst [vmem:[#allocation3 + $0x40] sm:$0xff] %v3354
        %3419 = vst [vmem:[#allocation3 + $0x48] sm:$0xff] %v3355
        %3420 = vst [vmem:[#allocation3 + $0x50] sm:$0xff] %v3356
        %3421 = vst [vmem:[#allocation3 + $0x58] sm:$0xff] %v3357
        %3422 = vst [vmem:[#allocation3 + $0x60] sm:$0xff] %v3358
        %3423 = vst [vmem:[#allocation3 + $0x68] sm:$0xff] %v3359
        %3424 = vst [vmem:[#allocation3 + $0x70] sm:$0xff] %v3360
        %3425 = vst [vmem:[#allocation3 + $0x78] sm:$0xff] %v3361
        %3426 = vst [vmem:[#allocation3 + $0x80] sm:$0xff] %v3362
        %3427 = vst [vmem:[#allocation3 + $0x88] sm:$0xff] %v3363
        %3428 = vst [vmem:[#allocation3 + $0x90] sm:$0xff] %v3364
        %3429 = vst [vmem:[#allocation3 + $0x98] sm:$0xff] %v3365
        %3430 = vst [vmem:[#allocation3 + $0xa0] sm:$0xff] %v3366
        %3431 = vst [vmem:[#allocation3 + $0xa8] sm:$0xff] %v3367
        %3432 = vst [vmem:[#allocation3 + $0xb0] sm:$0xff] %v3368
        %3433 = vst [vmem:[#allocation3 + $0xb8] sm:$0xff] %v3369
        %3434 = vst [vmem:[#allocation3 + $0xc0] sm:$0xff] %v3370
        %3435 = vst [vmem:[#allocation3 + $0xc8] sm:$0xff] %v3371
        %3436 = vst [vmem:[#allocation3 + $0xd0] sm:$0xff] %v3372
        %3437 = vst [vmem:[#allocation3 + $0xd8] sm:$0xff] %v3373
        %3438 = vst [vmem:[#allocation3 + $0xe0] sm:$0xff] %v3374
        %3439 = vst [vmem:[#allocation3 + $0xe8] sm:$0xff] %v3375
        %3440 = vst [vmem:[#allocation3 + $0xf0] sm:$0xff] %v3376
        %3441 = vst [vmem:[#allocation3 + $0xf8] sm:$0xff] %v3377
        %v3442 = vld [vmem:[#allocation7] sm:$0xff]
        %v3443 = vld [vmem:[#allocation7 + $0x8] sm:$0xff]
        %v3444 = vld [vmem:[#allocation7 + $0x10] sm:$0xff]
        %v3445 = vld [vmem:[#allocation7 + $0x18] sm:$0xff]
        %v3446 = vld [vmem:[#allocation7 + $0x20] sm:$0xff]
        %v3447 = vld [vmem:[#allocation7 + $0x28] sm:$0xff]
        %v3448 = vld [vmem:[#allocation7 + $0x30] sm:$0xff]
        %v3449 = vld [vmem:[#allocation7 + $0x38] sm:$0xff]
        %v3450 = vld [vmem:[#allocation7 + $0x40] sm:$0xff]
        %v3451 = vld [vmem:[#allocation7 + $0x48] sm:$0xff]
        %v3452 = vld [vmem:[#allocation7 + $0x50] sm:$0xff]
        %v3453 = vld [vmem:[#allocation7 + $0x58] sm:$0xff]
        %v3454 = vld [vmem:[#allocation7 + $0x60] sm:$0xff]
        %v3455 = vld [vmem:[#allocation7 + $0x68] sm:$0xff]
        %v3456 = vld [vmem:[#allocation7 + $0x70] sm:$0xff]
        %v3457 = vld [vmem:[#allocation7 + $0x78] sm:$0xff]
        %v3458 = vld [vmem:[#allocation7 + $0x80] sm:$0xff]
        %v3459 = vld [vmem:[#allocation7 + $0x88] sm:$0xff]
        %v3460 = vld [vmem:[#allocation7 + $0x90] sm:$0xff]
        %v3461 = vld [vmem:[#allocation7 + $0x98] sm:$0xff]
        %v3462 = vld [vmem:[#allocation7 + $0xa0] sm:$0xff]
        %v3463 = vld [vmem:[#allocation7 + $0xa8] sm:$0xff]
        %v3464 = vld [vmem:[#allocation7 + $0xb0] sm:$0xff]
        %v3465 = vld [vmem:[#allocation7 + $0xb8] sm:$0xff]
        %v3466 = vld [vmem:[#allocation7 + $0xc0] sm:$0xff]
        %v3467 = vld [vmem:[#allocation7 + $0xc8] sm:$0xff]
        %v3468 = vld [vmem:[#allocation7 + $0xd0] sm:$0xff]
        %v3469 = vld [vmem:[#allocation7 + $0xd8] sm:$0xff]
        %v3470 = vld [vmem:[#allocation7 + $0xe0] sm:$0xff]
        %v3471 = vld [vmem:[#allocation7 + $0xe8] sm:$0xff]
        %v3472 = vld [vmem:[#allocation7 + $0xf0] sm:$0xff]
        %v3473 = vld [vmem:[#allocation7 + $0xf8] sm:$0xff]
        %v3474 = vld [vmem:[#allocation7 + $0x100] sm:$0xff]
        %v3475 = vld [vmem:[#allocation7 + $0x108] sm:$0xff]
        %v3476 = vld [vmem:[#allocation7 + $0x110] sm:$0xff]
        %v3477 = vld [vmem:[#allocation7 + $0x118] sm:$0xff]
        %v3478 = vld [vmem:[#allocation7 + $0x120] sm:$0xff]
        %v3479 = vld [vmem:[#allocation7 + $0x128] sm:$0xff]
        %v3480 = vld [vmem:[#allocation7 + $0x130] sm:$0xff]
        %v3481 = vld [vmem:[#allocation7 + $0x138] sm:$0xff]
        %v3482 = vld [vmem:[#allocation7 + $0x140] sm:$0xff]
        %v3483 = vld [vmem:[#allocation7 + $0x148] sm:$0xff]
        %v3484 = vld [vmem:[#allocation7 + $0x150] sm:$0xff]
        %v3485 = vld [vmem:[#allocation7 + $0x158] sm:$0xff]
        %v3486 = vld [vmem:[#allocation7 + $0x160] sm:$0xff]
        %v3487 = vld [vmem:[#allocation7 + $0x168] sm:$0xff]
        %v3488 = vld [vmem:[#allocation7 + $0x170] sm:$0xff]
        %v3489 = vld [vmem:[#allocation7 + $0x178] sm:$0xff]
        %v3490 = vld [vmem:[#allocation7 + $0x180] sm:$0xff]
        %v3491 = vld [vmem:[#allocation7 + $0x188] sm:$0xff]
        %v3492 = vld [vmem:[#allocation7 + $0x190] sm:$0xff]
        %v3493 = vld [vmem:[#allocation7 + $0x198] sm:$0xff]
        %v3494 = vld [vmem:[#allocation7 + $0x1a0] sm:$0xff]
        %v3495 = vld [vmem:[#allocation7 + $0x1a8] sm:$0xff]
        %v3496 = vld [vmem:[#allocation7 + $0x1b0] sm:$0xff]
        %v3497 = vld [vmem:[#allocation7 + $0x1b8] sm:$0xff]
        %v3498 = vld [vmem:[#allocation7 + $0x1c0] sm:$0xff]
        %v3499 = vld [vmem:[#allocation7 + $0x1c8] sm:$0xff]
        %v3500 = vld [vmem:[#allocation7 + $0x1d0] sm:$0xff]
        %v3501 = vld [vmem:[#allocation7 + $0x1d8] sm:$0xff]
        %v3502 = vld [vmem:[#allocation7 + $0x1e0] sm:$0xff]
        %v3503 = vld [vmem:[#allocation7 + $0x1e8] sm:$0xff]
        %v3504 = vld [vmem:[#allocation7 + $0x1f0] sm:$0xff]
        %v3505 = vld [vmem:[#allocation7 + $0x1f8] sm:$0xff]
        %v3506 = vld [vmem:[#allocation7 + $0x200] sm:$0xff]
        %v3507 = vld [vmem:[#allocation7 + $0x208] sm:$0xff]
        %v3508 = vld [vmem:[#allocation7 + $0x210] sm:$0xff]
        %v3509 = vld [vmem:[#allocation7 + $0x218] sm:$0xff]
        %v3510 = vld [vmem:[#allocation7 + $0x220] sm:$0xff]
        %v3511 = vld [vmem:[#allocation7 + $0x228] sm:$0xff]
        %v3512 = vld [vmem:[#allocation7 + $0x230] sm:$0xff]
        %v3513 = vld [vmem:[#allocation7 + $0x238] sm:$0xff]
        %v3514 = vld [vmem:[#allocation7 + $0x240] sm:$0xff]
        %v3515 = vld [vmem:[#allocation7 + $0x248] sm:$0xff]
        %v3516 = vld [vmem:[#allocation7 + $0x250] sm:$0xff]
        %v3517 = vld [vmem:[#allocation7 + $0x258] sm:$0xff]
        %v3518 = vld [vmem:[#allocation7 + $0x260] sm:$0xff]
        %v3519 = vld [vmem:[#allocation7 + $0x268] sm:$0xff]
        %v3520 = vld [vmem:[#allocation7 + $0x270] sm:$0xff]
        %v3521 = vld [vmem:[#allocation7 + $0x278] sm:$0xff]
        %v3522 = vld [vmem:[#allocation7 + $0x280] sm:$0xff]
        %v3523 = vld [vmem:[#allocation7 + $0x288] sm:$0xff]
        %v3524 = vld [vmem:[#allocation7 + $0x290] sm:$0xff]
        %v3525 = vld [vmem:[#allocation7 + $0x298] sm:$0xff]
        %v3526 = vld [vmem:[#allocation7 + $0x2a0] sm:$0xff]
        %v3527 = vld [vmem:[#allocation7 + $0x2a8] sm:$0xff]
        %v3528 = vld [vmem:[#allocation7 + $0x2b0] sm:$0xff]
        %v3529 = vld [vmem:[#allocation7 + $0x2b8] sm:$0xff]
        %v3530 = vld [vmem:[#allocation7 + $0x2c0] sm:$0xff]
        %v3531 = vld [vmem:[#allocation7 + $0x2c8] sm:$0xff]
        %v3532 = vld [vmem:[#allocation7 + $0x2d0] sm:$0xff]
        %v3533 = vld [vmem:[#allocation7 + $0x2d8] sm:$0xff]
        %v3534 = vld [vmem:[#allocation7 + $0x2e0] sm:$0xff]
        %v3535 = vld [vmem:[#allocation7 + $0x2e8] sm:$0xff]
        %v3536 = vld [vmem:[#allocation7 + $0x2f0] sm:$0xff]
        %v3537 = vld [vmem:[#allocation7 + $0x2f8] sm:$0xff]
        %v3538 = vld [vmem:[#allocation7 + $0x300] sm:$0xff]
        %v3539 = vld [vmem:[#allocation7 + $0x308] sm:$0xff]
        %v3540 = vld [vmem:[#allocation7 + $0x310] sm:$0xff]
        %v3541 = vld [vmem:[#allocation7 + $0x318] sm:$0xff]
        %v3542 = vld [vmem:[%s10] sm:$0xf]
        %v3544 = vlaneseq
        %v3545 = vshrl.u32 %v3544, 7
        %v3546 = vsub.s32 0, %v3545
        %v3547 = vrot.slane %v3542, %v3546
        %v3548 = vlaneseq
        %v3549 = vshrl.u32 %v3548, 7
        %v3550 = vsub.s32 1, %v3549
        %v3551 = vrot.slane %v3542, %v3550
        %v3552 = vlaneseq
        %v3553 = vshrl.u32 %v3552, 7
        %v3554 = vsub.s32 2, %v3553
        %v3555 = vrot.slane %v3542, %v3554
        %v3556 = vlaneseq
        %v3557 = vshrl.u32 %v3556, 7
        %v3558 = vsub.s32 3, %v3557
        %v3559 = vrot.slane %v3542, %v3558
        %v3664 = vunpack.c.l.b16 %v3442
        %v3665 = vunpack.c.h.b16 %v3442
        %v3666 = vunpack.c.l.b16 %v3443
        %v3667 = vunpack.c.h.b16 %v3443
        %v3668 = vunpack.c.l.b16 %v3444
        %v3669 = vunpack.c.h.b16 %v3444
        %v3670 = vunpack.c.l.b16 %v3445
        %v3671 = vunpack.c.h.b16 %v3445
        %v3672 = vunpack.c.l.b16 %v3446
        %v3673 = vunpack.c.h.b16 %v3446
        %v3674 = vunpack.c.l.b16 %v3447
        %v3675 = vunpack.c.h.b16 %v3447
        %v3676 = vunpack.c.l.b16 %v3448
        %v3677 = vunpack.c.h.b16 %v3448
        %v3678 = vunpack.c.l.b16 %v3449
        %v3679 = vunpack.c.h.b16 %v3449
        %v3680 = vunpack.c.l.b16 %v3450
        %v3681 = vunpack.c.h.b16 %v3450
        %v3682 = vunpack.c.l.b16 %v3451
        %v3683 = vunpack.c.h.b16 %v3451
        %v3684 = vunpack.c.l.b16 %v3452
        %v3685 = vunpack.c.h.b16 %v3452
        %v3686 = vunpack.c.l.b16 %v3453
        %v3687 = vunpack.c.h.b16 %v3453
        %v3688 = vunpack.c.l.b16 %v3454
        %v3689 = vunpack.c.h.b16 %v3454
        %v3690 = vunpack.c.l.b16 %v3455
        %v3691 = vunpack.c.h.b16 %v3455
        %v3692 = vunpack.c.l.b16 %v3456
        %v3693 = vunpack.c.h.b16 %v3456
        %v3694 = vunpack.c.l.b16 %v3457
        %v3695 = vunpack.c.h.b16 %v3457
        %v3696 = vunpack.c.l.b16 %v3458
        %v3697 = vunpack.c.h.b16 %v3458
        %v3698 = vunpack.c.l.b16 %v3459
        %v3699 = vunpack.c.h.b16 %v3459
        %v3700 = vunpack.c.l.b16 %v3460
        %v3701 = vunpack.c.h.b16 %v3460
        %v3702 = vunpack.c.l.b16 %v3461
        %v3703 = vunpack.c.h.b16 %v3461
        %v3704 = vunpack.c.l.b16 %v3462
        %v3705 = vunpack.c.h.b16 %v3462
        %v3706 = vunpack.c.l.b16 %v3463
        %v3707 = vunpack.c.h.b16 %v3463
        %v3708 = vunpack.c.l.b16 %v3464
        %v3709 = vunpack.c.h.b16 %v3464
        %v3710 = vunpack.c.l.b16 %v3465
        %v3711 = vunpack.c.h.b16 %v3465
        %v3712 = vunpack.c.l.b16 %v3466
        %v3713 = vunpack.c.h.b16 %v3466
        %v3714 = vunpack.c.l.b16 %v3467
        %v3715 = vunpack.c.h.b16 %v3467
        %v3716 = vunpack.c.l.b16 %v3468
        %v3717 = vunpack.c.h.b16 %v3468
        %v3718 = vunpack.c.l.b16 %v3469
        %v3719 = vunpack.c.h.b16 %v3469
        %v3720 = vunpack.c.l.b16 %v3470
        %v3721 = vunpack.c.h.b16 %v3470
        %v3722 = vunpack.c.l.b16 %v3471
        %v3723 = vunpack.c.h.b16 %v3471
        %v3724 = vunpack.c.l.b16 %v3472
        %v3725 = vunpack.c.h.b16 %v3472
        %v3726 = vunpack.c.l.b16 %v3473
        %v3727 = vunpack.c.h.b16 %v3473
        %v3728 = vunpack.c.l.b16 %v3474
        %v3729 = vunpack.c.h.b16 %v3474
        %v3730 = vunpack.c.l.b16 %v3475
        %v3731 = vunpack.c.h.b16 %v3475
        %v3732 = vunpack.c.l.b16 %v3476
        %v3733 = vunpack.c.h.b16 %v3476
        %v3734 = vunpack.c.l.b16 %v3477
        %v3735 = vunpack.c.h.b16 %v3477
        %v3736 = vunpack.c.l.b16 %v3478
        %v3737 = vunpack.c.h.b16 %v3478
        %v3738 = vunpack.c.l.b16 %v3479
        %v3739 = vunpack.c.h.b16 %v3479
        %v3740 = vunpack.c.l.b16 %v3480
        %v3741 = vunpack.c.h.b16 %v3480
        %v3742 = vunpack.c.l.b16 %v3481
        %v3743 = vunpack.c.h.b16 %v3481
        %v3744 = vunpack.c.l.b16 %v3482
        %v3745 = vunpack.c.h.b16 %v3482
        %v3746 = vunpack.c.l.b16 %v3483
        %v3747 = vunpack.c.h.b16 %v3483
        %v3748 = vunpack.c.l.b16 %v3484
        %v3749 = vunpack.c.h.b16 %v3484
        %v3750 = vunpack.c.l.b16 %v3485
        %v3751 = vunpack.c.h.b16 %v3485
        %v3752 = vunpack.c.l.b16 %v3486
        %v3753 = vunpack.c.h.b16 %v3486
        %v3754 = vunpack.c.l.b16 %v3487
        %v3755 = vunpack.c.h.b16 %v3487
        %v3756 = vunpack.c.l.b16 %v3488
        %v3757 = vunpack.c.h.b16 %v3488
        %v3758 = vunpack.c.l.b16 %v3489
        %v3759 = vunpack.c.h.b16 %v3489
        %v3760 = vunpack.c.l.b16 %v3490
        %v3761 = vunpack.c.h.b16 %v3490
        %v3762 = vunpack.c.l.b16 %v3491
        %v3763 = vunpack.c.h.b16 %v3491
        %v3764 = vunpack.c.l.b16 %v3492
        %v3765 = vunpack.c.h.b16 %v3492
        %v3766 = vunpack.c.l.b16 %v3493
        %v3767 = vunpack.c.h.b16 %v3493
        %v3768 = vunpack.c.l.b16 %v3494
        %v3769 = vunpack.c.h.b16 %v3494
        %v3770 = vunpack.c.l.b16 %v3495
        %v3771 = vunpack.c.h.b16 %v3495
        %v3772 = vunpack.c.l.b16 %v3496
        %v3773 = vunpack.c.h.b16 %v3496
        %v3774 = vunpack.c.l.b16 %v3497
        %v3775 = vunpack.c.h.b16 %v3497
        %v3776 = vunpack.c.l.b16 %v3498
        %v3777 = vunpack.c.h.b16 %v3498
        %v3778 = vunpack.c.l.b16 %v3499
        %v3779 = vunpack.c.h.b16 %v3499
        %v3780 = vunpack.c.l.b16 %v3500
        %v3781 = vunpack.c.h.b16 %v3500
        %v3782 = vunpack.c.l.b16 %v3501
        %v3783 = vunpack.c.h.b16 %v3501
        %v3784 = vunpack.c.l.b16 %v3502
        %v3785 = vunpack.c.h.b16 %v3502
        %v3786 = vunpack.c.l.b16 %v3503
        %v3787 = vunpack.c.h.b16 %v3503
        %v3788 = vunpack.c.l.b16 %v3504
        %v3789 = vunpack.c.h.b16 %v3504
        %v3790 = vunpack.c.l.b16 %v3505
        %v3791 = vunpack.c.h.b16 %v3505
        %v3792 = vunpack.c.l.b16 %v3506
        %v3793 = vunpack.c.h.b16 %v3506
        %v3794 = vunpack.c.l.b16 %v3507
        %v3795 = vunpack.c.h.b16 %v3507
        %v3796 = vunpack.c.l.b16 %v3508
        %v3797 = vunpack.c.h.b16 %v3508
        %v3798 = vunpack.c.l.b16 %v3509
        %v3799 = vunpack.c.h.b16 %v3509
        %v3800 = vunpack.c.l.b16 %v3510
        %v3801 = vunpack.c.h.b16 %v3510
        %v3802 = vunpack.c.l.b16 %v3511
        %v3803 = vunpack.c.h.b16 %v3511
        %v3804 = vunpack.c.l.b16 %v3512
        %v3805 = vunpack.c.h.b16 %v3512
        %v3806 = vunpack.c.l.b16 %v3513
        %v3807 = vunpack.c.h.b16 %v3513
        %v3808 = vunpack.c.l.b16 %v3514
        %v3809 = vunpack.c.h.b16 %v3514
        %v3810 = vunpack.c.l.b16 %v3515
        %v3811 = vunpack.c.h.b16 %v3515
        %v3812 = vunpack.c.l.b16 %v3516
        %v3813 = vunpack.c.h.b16 %v3516
        %v3814 = vunpack.c.l.b16 %v3517
        %v3815 = vunpack.c.h.b16 %v3517
        %v3816 = vunpack.c.l.b16 %v3518
        %v3817 = vunpack.c.h.b16 %v3518
        %v3818 = vunpack.c.l.b16 %v3519
        %v3819 = vunpack.c.h.b16 %v3519
        %v3820 = vunpack.c.l.b16 %v3520
        %v3821 = vunpack.c.h.b16 %v3520
        %v3822 = vunpack.c.l.b16 %v3521
        %v3823 = vunpack.c.h.b16 %v3521
        %v3824 = vunpack.c.l.b16 %v3522
        %v3825 = vunpack.c.h.b16 %v3522
        %v3826 = vunpack.c.l.b16 %v3523
        %v3827 = vunpack.c.h.b16 %v3523
        %v3828 = vunpack.c.l.b16 %v3524
        %v3829 = vunpack.c.h.b16 %v3524
        %v3830 = vunpack.c.l.b16 %v3525
        %v3831 = vunpack.c.h.b16 %v3525
        %v3832 = vunpack.c.l.b16 %v3526
        %v3833 = vunpack.c.h.b16 %v3526
        %v3834 = vunpack.c.l.b16 %v3527
        %v3835 = vunpack.c.h.b16 %v3527
        %v3836 = vunpack.c.l.b16 %v3528
        %v3837 = vunpack.c.h.b16 %v3528
        %v3838 = vunpack.c.l.b16 %v3529
        %v3839 = vunpack.c.h.b16 %v3529
        %v3840 = vunpack.c.l.b16 %v3530
        %v3841 = vunpack.c.h.b16 %v3530
        %v3842 = vunpack.c.l.b16 %v3531
        %v3843 = vunpack.c.h.b16 %v3531
        %v3844 = vunpack.c.l.b16 %v3532
        %v3845 = vunpack.c.h.b16 %v3532
        %v3846 = vunpack.c.l.b16 %v3533
        %v3847 = vunpack.c.h.b16 %v3533
        %v3848 = vunpack.c.l.b16 %v3534
        %v3849 = vunpack.c.h.b16 %v3534
        %v3850 = vunpack.c.l.b16 %v3535
        %v3851 = vunpack.c.h.b16 %v3535
        %v3852 = vunpack.c.l.b16 %v3536
        %v3853 = vunpack.c.h.b16 %v3536
        %v3854 = vunpack.c.l.b16 %v3537
        %v3855 = vunpack.c.h.b16 %v3537
        %v3856 = vunpack.c.l.b16 %v3538
        %v3857 = vunpack.c.h.b16 %v3538
        %v3858 = vunpack.c.l.b16 %v3539
        %v3859 = vunpack.c.h.b16 %v3539
        %v3860 = vunpack.c.l.b16 %v3540
        %v3861 = vunpack.c.h.b16 %v3540
        %v3862 = vunpack.c.l.b16 %v3541
        %v3863 = vunpack.c.h.b16 %v3541
        %v3864 = vpack.c.b16 %v3668, %v3664
        %v3865 = vpack.c.b16 %v3669, %v3665
        %v3866 = vpack.c.b16 %v3670, %v3666
        %v3867 = vpack.c.b16 %v3671, %v3667
        %v3868 = vpack.c.b16 %v3676, %v3672
        %v3869 = vpack.c.b16 %v3677, %v3673
        %v3870 = vpack.c.b16 %v3678, %v3674
        %v3871 = vpack.c.b16 %v3679, %v3675
        %v3872 = vpack.c.b16 %v3684, %v3680
        %v3873 = vpack.c.b16 %v3685, %v3681
        %v3874 = vpack.c.b16 %v3686, %v3682
        %v3875 = vpack.c.b16 %v3687, %v3683
        %v3876 = vpack.c.b16 %v3692, %v3688
        %v3877 = vpack.c.b16 %v3693, %v3689
        %v3878 = vpack.c.b16 %v3694, %v3690
        %v3879 = vpack.c.b16 %v3695, %v3691
        %v3880 = vpack.c.b16 %v3700, %v3696
        %v3881 = vpack.c.b16 %v3701, %v3697
        %v3882 = vpack.c.b16 %v3702, %v3698
        %v3883 = vpack.c.b16 %v3703, %v3699
        %v3884 = vpack.c.b16 %v3708, %v3704
        %v3885 = vpack.c.b16 %v3709, %v3705
        %v3886 = vpack.c.b16 %v3710, %v3706
        %v3887 = vpack.c.b16 %v3711, %v3707
        %v3888 = vpack.c.b16 %v3716, %v3712
        %v3889 = vpack.c.b16 %v3717, %v3713
        %v3890 = vpack.c.b16 %v3718, %v3714
        %v3891 = vpack.c.b16 %v3719, %v3715
        %v3892 = vpack.c.b16 %v3724, %v3720
        %v3893 = vpack.c.b16 %v3725, %v3721
        %v3894 = vpack.c.b16 %v3726, %v3722
        %v3895 = vpack.c.b16 %v3727, %v3723
        %v3896 = vpack.c.b16 %v3732, %v3728
        %v3897 = vpack.c.b16 %v3733, %v3729
        %v3898 = vpack.c.b16 %v3734, %v3730
        %v3899 = vpack.c.b16 %v3735, %v3731
        %v3900 = vpack.c.b16 %v3740, %v3736
        %v3901 = vpack.c.b16 %v3741, %v3737
        %v3902 = vpack.c.b16 %v3742, %v3738
        %v3903 = vpack.c.b16 %v3743, %v3739
        %v3904 = vpack.c.b16 %v3748, %v3744
        %v3905 = vpack.c.b16 %v3749, %v3745
        %v3906 = vpack.c.b16 %v3750, %v3746
        %v3907 = vpack.c.b16 %v3751, %v3747
        %v3908 = vpack.c.b16 %v3756, %v3752
        %v3909 = vpack.c.b16 %v3757, %v3753
        %v3910 = vpack.c.b16 %v3758, %v3754
        %v3911 = vpack.c.b16 %v3759, %v3755
        %v3912 = vpack.c.b16 %v3764, %v3760
        %v3913 = vpack.c.b16 %v3765, %v3761
        %v3914 = vpack.c.b16 %v3766, %v3762
        %v3915 = vpack.c.b16 %v3767, %v3763
        %v3916 = vpack.c.b16 %v3772, %v3768
        %v3917 = vpack.c.b16 %v3773, %v3769
        %v3918 = vpack.c.b16 %v3774, %v3770
        %v3919 = vpack.c.b16 %v3775, %v3771
        %v3920 = vpack.c.b16 %v3780, %v3776
        %v3921 = vpack.c.b16 %v3781, %v3777
        %v3922 = vpack.c.b16 %v3782, %v3778
        %v3923 = vpack.c.b16 %v3783, %v3779
        %v3924 = vpack.c.b16 %v3788, %v3784
        %v3925 = vpack.c.b16 %v3789, %v3785
        %v3926 = vpack.c.b16 %v3790, %v3786
        %v3927 = vpack.c.b16 %v3791, %v3787
        %v3928 = vpack.c.b16 %v3796, %v3792
        %v3929 = vpack.c.b16 %v3797, %v3793
        %v3930 = vpack.c.b16 %v3798, %v3794
        %v3931 = vpack.c.b16 %v3799, %v3795
        %v3932 = vpack.c.b16 %v3804, %v3800
        %v3933 = vpack.c.b16 %v3805, %v3801
        %v3934 = vpack.c.b16 %v3806, %v3802
        %v3935 = vpack.c.b16 %v3807, %v3803
        %v3936 = vpack.c.b16 %v3812, %v3808
        %v3937 = vpack.c.b16 %v3813, %v3809
        %v3938 = vpack.c.b16 %v3814, %v3810
        %v3939 = vpack.c.b16 %v3815, %v3811
        %v3940 = vpack.c.b16 %v3820, %v3816
        %v3941 = vpack.c.b16 %v3821, %v3817
        %v3942 = vpack.c.b16 %v3822, %v3818
        %v3943 = vpack.c.b16 %v3823, %v3819
        %v3944 = vpack.c.b16 %v3828, %v3824
        %v3945 = vpack.c.b16 %v3829, %v3825
        %v3946 = vpack.c.b16 %v3830, %v3826
        %v3947 = vpack.c.b16 %v3831, %v3827
        %v3948 = vpack.c.b16 %v3836, %v3832
        %v3949 = vpack.c.b16 %v3837, %v3833
        %v3950 = vpack.c.b16 %v3838, %v3834
        %v3951 = vpack.c.b16 %v3839, %v3835
        %v3952 = vpack.c.b16 %v3844, %v3840
        %v3953 = vpack.c.b16 %v3845, %v3841
        %v3954 = vpack.c.b16 %v3846, %v3842
        %v3955 = vpack.c.b16 %v3847, %v3843
        %v3956 = vpack.c.b16 %v3852, %v3848
        %v3957 = vpack.c.b16 %v3853, %v3849
        %v3958 = vpack.c.b16 %v3854, %v3850
        %v3959 = vpack.c.b16 %v3855, %v3851
        %v3960 = vpack.c.b16 %v3860, %v3856
        %v3961 = vpack.c.b16 %v3861, %v3857
        %v3962 = vpack.c.b16 %v3862, %v3858
        %v3963 = vpack.c.b16 %v3863, %v3859
        %4064 = vmatprep.subr.bf16.mxu0 %v3893
        %4065 = vmatpush1.bf16.msra.mxu0 %v3892
        %4066 = vmatprep.subr.bf16.mxu0 %v3889
        %4067 = vmatpush1.bf16.msra.mxu0 %v3888
        %4068 = vmatprep.subr.bf16.mxu0 %v3885
        %4069 = vmatpush1.bf16.msra.mxu0 %v3884
        %4070 = vmatprep.subr.bf16.mxu0 %v3881
        %4071 = vmatpush1.bf16.msra.mxu0 %v3880
        %4072 = vmatprep.subr.bf16.mxu0 %v3877
        %4073 = vmatpush1.bf16.msra.mxu0 %v3876
        %4074 = vmatprep.subr.bf16.mxu0 %v3873
        %4075 = vmatpush1.bf16.msra.mxu0 %v3872
        %4076 = vmatprep.subr.bf16.mxu0 %v3869
        %4077 = vmatpush1.bf16.msra.mxu0 %v3868
        %4078 = vmatprep.subr.bf16.mxu0 %v3865
        %4079 = vmatpush1.bf16.msra.mxu0 %v3864
        %4080 = vmatprep.subr.bf16.mxu0 %v3925
        %4081 = vmatpush2.bf16.msra.mxu0 %v3924
        %4082 = vmatprep.subr.bf16.mxu0 %v3921
        %4083 = vmatpush2.bf16.msra.mxu0 %v3920
        %4084 = vmatprep.subr.bf16.mxu0 %v3917
        %4085 = vmatpush2.bf16.msra.mxu0 %v3916
        %4086 = vmatprep.subr.bf16.mxu0 %v3913
        %4087 = vmatpush2.bf16.msra.mxu0 %v3912
        %4088 = vmatprep.subr.bf16.mxu0 %v3909
        %4089 = vmatpush2.bf16.msra.mxu0 %v3908
        %4090 = vmatprep.subr.bf16.mxu0 %v3905
        %4091 = vmatpush2.bf16.msra.mxu0 %v3904
        %4092 = vmatprep.subr.bf16.mxu0 %v3901
        %4093 = vmatpush2.bf16.msra.mxu0 %v3900
        %4094 = vmatprep.subr.bf16.mxu0 %v3897
        %4095 = vmatpush2.bf16.msra.mxu0 %v3896
        %4096 = vmatprep.mubr.bf16.mxu0 %v726
        %4097 = vmatmul.mubr.bf16.gmra.mxu0 %v725
        %v4098 = vpop.f32.mrf.mxu0
        %v4099 = vadd.f32 %v3547, %v4098
        %v4100 = vpop.f32.mrf.mxu0
        %v4101 = vadd.f32 %v3551, %v4100
        %v4102 = vpop.f32.mrf.mxu0
        %v4103 = vadd.f32 %v3547, %v4102
        %v4104 = vpop.f32.mrf.mxu0
        %v4105 = vadd.f32 %v3551, %v4104
        %4106 = vmatprep.mubr.bf16.mxu0 %v730
        %4107 = vmatmul.mubr.bf16.gmra.mxu0 %v729
        %v4108 = vpop.f32.mrf.mxu0
        %v4109 = vadd.f32 %v3547, %v4108
        %v4110 = vpop.f32.mrf.mxu0
        %v4111 = vadd.f32 %v3551, %v4110
        %v4112 = vpop.f32.mrf.mxu0
        %v4113 = vadd.f32 %v3547, %v4112
        %v4114 = vpop.f32.mrf.mxu0
        %v4115 = vadd.f32 %v3551, %v4114
        %4116 = vmatprep.mubr.bf16.mxu0 %v734
        %4117 = vmatmul.mubr.bf16.gmra.mxu0 %v733
        %v4118 = vpop.f32.mrf.mxu0
        %v4119 = vadd.f32 %v3547, %v4118
        %v4120 = vpop.f32.mrf.mxu0
        %v4121 = vadd.f32 %v3551, %v4120
        %v4122 = vpop.f32.mrf.mxu0
        %v4123 = vadd.f32 %v3547, %v4122
        %v4124 = vpop.f32.mrf.mxu0
        %v4125 = vadd.f32 %v3551, %v4124
        %4126 = vmatprep.mubr.bf16.mxu0 %v738
        %4127 = vmatmul.mubr.bf16.gmra.mxu0 %v737
        %v4128 = vpop.f32.mrf.mxu0
        %v4129 = vadd.f32 %v3547, %v4128
        %v4130 = vpop.f32.mrf.mxu0
        %v4131 = vadd.f32 %v3551, %v4130
        %v4132 = vpop.f32.mrf.mxu0
        %v4133 = vadd.f32 %v3547, %v4132
        %v4134 = vpop.f32.mrf.mxu0
        %v4135 = vadd.f32 %v3551, %v4134
        %4136 = vmatprep.mubr.bf16.mxu0 %v742
        %4137 = vmatmul.mubr.bf16.gmra.mxu0 %v741
        %v4138 = vpop.f32.mrf.mxu0
        %v4139 = vadd.f32 %v3547, %v4138
        %v4140 = vpop.f32.mrf.mxu0
        %v4141 = vadd.f32 %v3551, %v4140
        %v4142 = vpop.f32.mrf.mxu0
        %v4143 = vadd.f32 %v3547, %v4142
        %v4144 = vpop.f32.mrf.mxu0
        %v4145 = vadd.f32 %v3551, %v4144
        %4146 = vmatprep.mubr.bf16.mxu0 %v746
        %4147 = vmatmul.mubr.bf16.gmra.mxu0 %v745
        %v4148 = vpop.f32.mrf.mxu0
        %v4149 = vadd.f32 %v3547, %v4148
        %v4150 = vpop.f32.mrf.mxu0
        %v4151 = vadd.f32 %v3551, %v4150
        %v4152 = vpop.f32.mrf.mxu0
        %v4153 = vadd.f32 %v3547, %v4152
        %v4154 = vpop.f32.mrf.mxu0
        %v4155 = vadd.f32 %v3551, %v4154
        %4156 = vmatprep.mubr.bf16.mxu0 %v750
        %4157 = vmatmul.mubr.bf16.gmra.mxu0 %v749
        %v4158 = vpop.f32.mrf.mxu0
        %v4159 = vadd.f32 %v3547, %v4158
        %v4160 = vpop.f32.mrf.mxu0
        %v4161 = vadd.f32 %v3551, %v4160
        %v4162 = vpop.f32.mrf.mxu0
        %v4163 = vadd.f32 %v3547, %v4162
        %v4164 = vpop.f32.mrf.mxu0
        %v4165 = vadd.f32 %v3551, %v4164
        %4166 = vmatprep.mubr.bf16.mxu0 %v754
        %4167 = vmatmul.mubr.bf16.gmra.mxu0 %v753
        %v4168 = vpop.f32.mrf.mxu0
        %v4169 = vadd.f32 %v3547, %v4168
        %v4170 = vpop.f32.mrf.mxu0
        %v4171 = vadd.f32 %v3551, %v4170
        %v4172 = vpop.f32.mrf.mxu0
        %v4173 = vadd.f32 %v3547, %v4172
        %v4174 = vpop.f32.mrf.mxu0
        %v4175 = vadd.f32 %v3551, %v4174
        %4176 = vdwg.mxu0
        %4177 = vmatprep.subr.bf16.mxu0 %v3957
        %4178 = vmatpush1.bf16.msra.mxu0 %v3956
        %4179 = vmatprep.subr.bf16.mxu0 %v3953
        %4180 = vmatpush1.bf16.msra.mxu0 %v3952
        %4181 = vmatprep.subr.bf16.mxu0 %v3949
        %4182 = vmatpush1.bf16.msra.mxu0 %v3948
        %4183 = vmatprep.subr.bf16.mxu0 %v3945
        %4184 = vmatpush1.bf16.msra.mxu0 %v3944
        %4185 = vmatprep.subr.bf16.mxu0 %v3941
        %4186 = vmatpush1.bf16.msra.mxu0 %v3940
        %4187 = vmatprep.subr.bf16.mxu0 %v3937
        %4188 = vmatpush1.bf16.msra.mxu0 %v3936
        %4189 = vmatprep.subr.bf16.mxu0 %v3933
        %4190 = vmatpush1.bf16.msra.mxu0 %v3932
        %4191 = vmatprep.subr.bf16.mxu0 %v3929
        %4192 = vmatpush1.bf16.msra.mxu0 %v3928
        %4193 = vmatprep.subr.bf16.mxu0 0
        %4194 = vmatpush2.bf16.msra.mxu0 0
        %4195 = vmatprep.subr.bf16.mxu0 0
        %4196 = vmatpush2.bf16.msra.mxu0 0
        %4197 = vmatprep.subr.bf16.mxu0 0
        %4198 = vmatpush2.bf16.msra.mxu0 0
        %4199 = vmatprep.subr.bf16.mxu0 0
        %4200 = vmatpush2.bf16.msra.mxu0 0
        %4201 = vmatprep.subr.bf16.mxu0 0
        %4202 = vmatpush2.bf16.msra.mxu0 0
        %4203 = vmatprep.subr.bf16.mxu0 0
        %4204 = vmatpush2.bf16.msra.mxu0 0
        %4205 = vmatprep.subr.bf16.mxu0 0
        %4206 = vmatpush2.bf16.msra.mxu0 0
        %4207 = vmatprep.subr.bf16.mxu0 %v3961
        %4208 = vmatpush2.bf16.msra.mxu0 %v3960
        %4209 = vmatprep.mubr.bf16.mxu0 %v1381
        %4210 = vmatmul.mubr.bf16.gmra.mxu0 %v727
        %v4211 = vpop.f32.mrf.mxu0
        %v4212 = vadd.f32 %v4099, %v4211
        %v4213 = vpop.f32.mrf.mxu0
        %v4214 = vadd.f32 %v4101, %v4213
        %v4215 = vpop.f32.mrf.mxu0
        %v4216 = vadd.f32 %v4103, %v4215
        %v4217 = vpop.f32.mrf.mxu0
        %v4218 = vadd.f32 %v4105, %v4217
        %4219 = vmatprep.mubr.bf16.mxu0 %v1384
        %4220 = vmatmul.mubr.bf16.gmra.mxu0 %v731
        %v4221 = vpop.f32.mrf.mxu0
        %v4222 = vadd.f32 %v4109, %v4221
        %v4223 = vpop.f32.mrf.mxu0
        %v4224 = vadd.f32 %v4111, %v4223
        %v4225 = vpop.f32.mrf.mxu0
        %v4226 = vadd.f32 %v4113, %v4225
        %v4227 = vpop.f32.mrf.mxu0
        %v4228 = vadd.f32 %v4115, %v4227
        %4229 = vmatprep.mubr.bf16.mxu0 %v1387
        %4230 = vmatmul.mubr.bf16.gmra.mxu0 %v735
        %v4231 = vpop.f32.mrf.mxu0
        %v4232 = vadd.f32 %v4119, %v4231
        %v4233 = vpop.f32.mrf.mxu0
        %v4234 = vadd.f32 %v4121, %v4233
        %v4235 = vpop.f32.mrf.mxu0
        %v4236 = vadd.f32 %v4123, %v4235
        %v4237 = vpop.f32.mrf.mxu0
        %v4238 = vadd.f32 %v4125, %v4237
        %4239 = vmatprep.mubr.bf16.mxu0 %v1390
        %4240 = vmatmul.mubr.bf16.gmra.mxu0 %v739
        %v4241 = vpop.f32.mrf.mxu0
        %v4242 = vadd.f32 %v4129, %v4241
        %v4243 = vpop.f32.mrf.mxu0
        %v4244 = vadd.f32 %v4131, %v4243
        %v4245 = vpop.f32.mrf.mxu0
        %v4246 = vadd.f32 %v4133, %v4245
        %v4247 = vpop.f32.mrf.mxu0
        %v4248 = vadd.f32 %v4135, %v4247
        %4249 = vmatprep.mubr.bf16.mxu0 %v1393
        %4250 = vmatmul.mubr.bf16.gmra.mxu0 %v743
        %v4251 = vpop.f32.mrf.mxu0
        %v4252 = vadd.f32 %v4139, %v4251
        %v4253 = vpop.f32.mrf.mxu0
        %v4254 = vadd.f32 %v4141, %v4253
        %v4255 = vpop.f32.mrf.mxu0
        %v4256 = vadd.f32 %v4143, %v4255
        %v4257 = vpop.f32.mrf.mxu0
        %v4258 = vadd.f32 %v4145, %v4257
        %4259 = vmatprep.mubr.bf16.mxu0 %v1396
        %4260 = vmatmul.mubr.bf16.gmra.mxu0 %v747
        %v4261 = vpop.f32.mrf.mxu0
        %v4262 = vadd.f32 %v4149, %v4261
        %v4263 = vpop.f32.mrf.mxu0
        %v4264 = vadd.f32 %v4151, %v4263
        %v4265 = vpop.f32.mrf.mxu0
        %v4266 = vadd.f32 %v4153, %v4265
        %v4267 = vpop.f32.mrf.mxu0
        %v4268 = vadd.f32 %v4155, %v4267
        %4269 = vmatprep.mubr.bf16.mxu0 %v1399
        %4270 = vmatmul.mubr.bf16.gmra.mxu0 %v751
        %v4271 = vpop.f32.mrf.mxu0
        %v4272 = vadd.f32 %v4159, %v4271
        %v4273 = vpop.f32.mrf.mxu0
        %v4274 = vadd.f32 %v4161, %v4273
        %v4275 = vpop.f32.mrf.mxu0
        %v4276 = vadd.f32 %v4163, %v4275
        %v4277 = vpop.f32.mrf.mxu0
        %v4278 = vadd.f32 %v4165, %v4277
        %4279 = vmatprep.mubr.bf16.mxu0 %v1402
        %4280 = vmatmul.mubr.bf16.gmra.mxu0 %v755
        %v4281 = vpop.f32.mrf.mxu0
        %v4282 = vadd.f32 %v4169, %v4281
        %v4283 = vpop.f32.mrf.mxu0
        %v4284 = vadd.f32 %v4171, %v4283
        %v4285 = vpop.f32.mrf.mxu0
        %v4286 = vadd.f32 %v4173, %v4285
        %v4287 = vpop.f32.mrf.mxu0
        %v4288 = vadd.f32 %v4175, %v4287
        %4289 = vdwg.mxu0
        %4290 = vmatprep.subr.bf16.mxu0 %v3895
        %4291 = vmatpush1.bf16.msra.mxu0 %v3894
        %4292 = vmatprep.subr.bf16.mxu0 %v3891
        %4293 = vmatpush1.bf16.msra.mxu0 %v3890
        %4294 = vmatprep.subr.bf16.mxu0 %v3887
        %4295 = vmatpush1.bf16.msra.mxu0 %v3886
        %4296 = vmatprep.subr.bf16.mxu0 %v3883
        %4297 = vmatpush1.bf16.msra.mxu0 %v3882
        %4298 = vmatprep.subr.bf16.mxu0 %v3879
        %4299 = vmatpush1.bf16.msra.mxu0 %v3878
        %4300 = vmatprep.subr.bf16.mxu0 %v3875
        %4301 = vmatpush1.bf16.msra.mxu0 %v3874
        %4302 = vmatprep.subr.bf16.mxu0 %v3871
        %4303 = vmatpush1.bf16.msra.mxu0 %v3870
        %4304 = vmatprep.subr.bf16.mxu0 %v3867
        %4305 = vmatpush1.bf16.msra.mxu0 %v3866
        %4306 = vmatprep.subr.bf16.mxu0 %v3927
        %4307 = vmatpush2.bf16.msra.mxu0 %v3926
        %4308 = vmatprep.subr.bf16.mxu0 %v3923
        %4309 = vmatpush2.bf16.msra.mxu0 %v3922
        %4310 = vmatprep.subr.bf16.mxu0 %v3919
        %4311 = vmatpush2.bf16.msra.mxu0 %v3918
        %4312 = vmatprep.subr.bf16.mxu0 %v3915
        %4313 = vmatpush2.bf16.msra.mxu0 %v3914
        %4314 = vmatprep.subr.bf16.mxu0 %v3911
        %4315 = vmatpush2.bf16.msra.mxu0 %v3910
        %4316 = vmatprep.subr.bf16.mxu0 %v3907
        %4317 = vmatpush2.bf16.msra.mxu0 %v3906
        %4318 = vmatprep.subr.bf16.mxu0 %v3903
        %4319 = vmatpush2.bf16.msra.mxu0 %v3902
        %4320 = vmatprep.subr.bf16.mxu0 %v3899
        %4321 = vmatpush2.bf16.msra.mxu0 %v3898
        %4322 = vmatprep.mubr.bf16.mxu0 %v726
        %4323 = vmatmul.mubr.bf16.gmra.mxu0 %v725
        %v4324 = vpop.f32.mrf.mxu0
        %v4325 = vadd.f32 %v3555, %v4324
        %v4326 = vpop.f32.mrf.mxu0
        %v4327 = vadd.f32 %v3559, %v4326
        %v4328 = vpop.f32.mrf.mxu0
        %v4329 = vadd.f32 %v3555, %v4328
        %v4330 = vpop.f32.mrf.mxu0
        %v4331 = vadd.f32 %v3559, %v4330
        %4332 = vmatprep.mubr.bf16.mxu0 %v730
        %4333 = vmatmul.mubr.bf16.gmra.mxu0 %v729
        %v4334 = vpop.f32.mrf.mxu0
        %v4335 = vadd.f32 %v3555, %v4334
        %v4336 = vpop.f32.mrf.mxu0
        %v4337 = vadd.f32 %v3559, %v4336
        %v4338 = vpop.f32.mrf.mxu0
        %v4339 = vadd.f32 %v3555, %v4338
        %v4340 = vpop.f32.mrf.mxu0
        %v4341 = vadd.f32 %v3559, %v4340
        %4342 = vmatprep.mubr.bf16.mxu0 %v734
        %4343 = vmatmul.mubr.bf16.gmra.mxu0 %v733
        %v4344 = vpop.f32.mrf.mxu0
        %v4345 = vadd.f32 %v3555, %v4344
        %v4346 = vpop.f32.mrf.mxu0
        %v4347 = vadd.f32 %v3559, %v4346
        %v4348 = vpop.f32.mrf.mxu0
        %v4349 = vadd.f32 %v3555, %v4348
        %v4350 = vpop.f32.mrf.mxu0
        %v4351 = vadd.f32 %v3559, %v4350
        %4352 = vmatprep.mubr.bf16.mxu0 %v738
        %4353 = vmatmul.mubr.bf16.gmra.mxu0 %v737
        %v4354 = vpop.f32.mrf.mxu0
        %v4355 = vadd.f32 %v3555, %v4354
        %v4356 = vpop.f32.mrf.mxu0
        %v4357 = vadd.f32 %v3559, %v4356
        %v4358 = vpop.f32.mrf.mxu0
        %v4359 = vadd.f32 %v3555, %v4358
        %v4360 = vpop.f32.mrf.mxu0
        %v4361 = vadd.f32 %v3559, %v4360
        %4362 = vmatprep.mubr.bf16.mxu0 %v742
        %4363 = vmatmul.mubr.bf16.gmra.mxu0 %v741
        %v4364 = vpop.f32.mrf.mxu0
        %v4365 = vadd.f32 %v3555, %v4364
        %v4366 = vpop.f32.mrf.mxu0
        %v4367 = vadd.f32 %v3559, %v4366
        %v4368 = vpop.f32.mrf.mxu0
        %v4369 = vadd.f32 %v3555, %v4368
        %v4370 = vpop.f32.mrf.mxu0
        %v4371 = vadd.f32 %v3559, %v4370
        %4372 = vmatprep.mubr.bf16.mxu0 %v746
        %4373 = vmatmul.mubr.bf16.gmra.mxu0 %v745
        %v4374 = vpop.f32.mrf.mxu0
        %v4375 = vadd.f32 %v3555, %v4374
        %v4376 = vpop.f32.mrf.mxu0
        %v4377 = vadd.f32 %v3559, %v4376
        %v4378 = vpop.f32.mrf.mxu0
        %v4379 = vadd.f32 %v3555, %v4378
        %v4380 = vpop.f32.mrf.mxu0
        %v4381 = vadd.f32 %v3559, %v4380
        %4382 = vmatprep.mubr.bf16.mxu0 %v750
        %4383 = vmatmul.mubr.bf16.gmra.mxu0 %v749
        %v4384 = vpop.f32.mrf.mxu0
        %v4385 = vadd.f32 %v3555, %v4384
        %v4386 = vpop.f32.mrf.mxu0
        %v4387 = vadd.f32 %v3559, %v4386
        %v4388 = vpop.f32.mrf.mxu0
        %v4389 = vadd.f32 %v3555, %v4388
        %v4390 = vpop.f32.mrf.mxu0
        %v4391 = vadd.f32 %v3559, %v4390
        %4392 = vmatprep.mubr.bf16.mxu0 %v754
        %4393 = vmatmul.mubr.bf16.gmra.mxu0 %v753
        %v4394 = vpop.f32.mrf.mxu0
        %v4395 = vadd.f32 %v3555, %v4394
        %v4396 = vpop.f32.mrf.mxu0
        %v4397 = vadd.f32 %v3559, %v4396
        %v4398 = vpop.f32.mrf.mxu0
        %v4399 = vadd.f32 %v3555, %v4398
        %v4400 = vpop.f32.mrf.mxu0
        %v4401 = vadd.f32 %v3559, %v4400
        %4402 = vdwg.mxu0
        %4403 = vmatprep.subr.bf16.mxu0 %v3959
        %4404 = vmatpush1.bf16.msra.mxu0 %v3958
        %4405 = vmatprep.subr.bf16.mxu0 %v3955
        %4406 = vmatpush1.bf16.msra.mxu0 %v3954
        %4407 = vmatprep.subr.bf16.mxu0 %v3951
        %4408 = vmatpush1.bf16.msra.mxu0 %v3950
        %4409 = vmatprep.subr.bf16.mxu0 %v3947
        %4410 = vmatpush1.bf16.msra.mxu0 %v3946
        %4411 = vmatprep.subr.bf16.mxu0 %v3943
        %4412 = vmatpush1.bf16.msra.mxu0 %v3942
        %4413 = vmatprep.subr.bf16.mxu0 %v3939
        %4414 = vmatpush1.bf16.msra.mxu0 %v3938
        %4415 = vmatprep.subr.bf16.mxu0 %v3935
        %4416 = vmatpush1.bf16.msra.mxu0 %v3934
        %4417 = vmatprep.subr.bf16.mxu0 %v3931
        %4418 = vmatpush1.bf16.msra.mxu0 %v3930
        %4419 = vmatprep.subr.bf16.mxu0 0
        %4420 = vmatpush2.bf16.msra.mxu0 0
        %4421 = vmatprep.subr.bf16.mxu0 0
        %4422 = vmatpush2.bf16.msra.mxu0 0
        %4423 = vmatprep.subr.bf16.mxu0 0
        %4424 = vmatpush2.bf16.msra.mxu0 0
        %4425 = vmatprep.subr.bf16.mxu0 0
        %4426 = vmatpush2.bf16.msra.mxu0 0
        %4427 = vmatprep.subr.bf16.mxu0 0
        %4428 = vmatpush2.bf16.msra.mxu0 0
        %4429 = vmatprep.subr.bf16.mxu0 0
        %4430 = vmatpush2.bf16.msra.mxu0 0
        %4431 = vmatprep.subr.bf16.mxu0 0
        %4432 = vmatpush2.bf16.msra.mxu0 0
        %4433 = vmatprep.subr.bf16.mxu0 %v3963
        %4434 = vmatpush2.bf16.msra.mxu0 %v3962
        %4435 = vmatprep.mubr.bf16.mxu0 %v1381
        %4436 = vmatmul.mubr.bf16.gmra.mxu0 %v727
        %v4437 = vpop.f32.mrf.mxu0
        %v4438 = vadd.f32 %v4325, %v4437
        %v4439 = vpop.f32.mrf.mxu0
        %v4440 = vadd.f32 %v4327, %v4439
        %v4441 = vpop.f32.mrf.mxu0
        %v4442 = vadd.f32 %v4329, %v4441
        %v4443 = vpop.f32.mrf.mxu0
        %v4444 = vadd.f32 %v4331, %v4443
        %4445 = vmatprep.mubr.bf16.mxu0 %v1384
        %4446 = vmatmul.mubr.bf16.gmra.mxu0 %v731
        %v4447 = vpop.f32.mrf.mxu0
        %v4448 = vadd.f32 %v4335, %v4447
        %v4449 = vpop.f32.mrf.mxu0
        %v4450 = vadd.f32 %v4337, %v4449
        %v4451 = vpop.f32.mrf.mxu0
        %v4452 = vadd.f32 %v4339, %v4451
        %v4453 = vpop.f32.mrf.mxu0
        %v4454 = vadd.f32 %v4341, %v4453
        %4455 = vmatprep.mubr.bf16.mxu0 %v1387
        %4456 = vmatmul.mubr.bf16.gmra.mxu0 %v735
        %v4457 = vpop.f32.mrf.mxu0
        %v4458 = vadd.f32 %v4345, %v4457
        %v4459 = vpop.f32.mrf.mxu0
        %v4460 = vadd.f32 %v4347, %v4459
        %v4461 = vpop.f32.mrf.mxu0
        %v4462 = vadd.f32 %v4349, %v4461
        %v4463 = vpop.f32.mrf.mxu0
        %v4464 = vadd.f32 %v4351, %v4463
        %4465 = vmatprep.mubr.bf16.mxu0 %v1390
        %4466 = vmatmul.mubr.bf16.gmra.mxu0 %v739
        %v4467 = vpop.f32.mrf.mxu0
        %v4468 = vadd.f32 %v4355, %v4467
        %v4469 = vpop.f32.mrf.mxu0
        %v4470 = vadd.f32 %v4357, %v4469
        %v4471 = vpop.f32.mrf.mxu0
        %v4472 = vadd.f32 %v4359, %v4471
        %v4473 = vpop.f32.mrf.mxu0
        %v4474 = vadd.f32 %v4361, %v4473
        %4475 = vmatprep.mubr.bf16.mxu0 %v1393
        %4476 = vmatmul.mubr.bf16.gmra.mxu0 %v743
        %v4477 = vpop.f32.mrf.mxu0
        %v4478 = vadd.f32 %v4365, %v4477
        %v4479 = vpop.f32.mrf.mxu0
        %v4480 = vadd.f32 %v4367, %v4479
        %v4481 = vpop.f32.mrf.mxu0
        %v4482 = vadd.f32 %v4369, %v4481
        %v4483 = vpop.f32.mrf.mxu0
        %v4484 = vadd.f32 %v4371, %v4483
        %4485 = vmatprep.mubr.bf16.mxu0 %v1396
        %4486 = vmatmul.mubr.bf16.gmra.mxu0 %v747
        %v4487 = vpop.f32.mrf.mxu0
        %v4488 = vadd.f32 %v4375, %v4487
        %v4489 = vpop.f32.mrf.mxu0
        %v4490 = vadd.f32 %v4377, %v4489
        %v4491 = vpop.f32.mrf.mxu0
        %v4492 = vadd.f32 %v4379, %v4491
        %v4493 = vpop.f32.mrf.mxu0
        %v4494 = vadd.f32 %v4381, %v4493
        %4495 = vmatprep.mubr.bf16.mxu0 %v1399
        %4496 = vmatmul.mubr.bf16.gmra.mxu0 %v751
        %v4497 = vpop.f32.mrf.mxu0
        %v4498 = vadd.f32 %v4385, %v4497
        %v4499 = vpop.f32.mrf.mxu0
        %v4500 = vadd.f32 %v4387, %v4499
        %v4501 = vpop.f32.mrf.mxu0
        %v4502 = vadd.f32 %v4389, %v4501
        %v4503 = vpop.f32.mrf.mxu0
        %v4504 = vadd.f32 %v4391, %v4503
        %4505 = vmatprep.mubr.bf16.mxu0 %v1402
        %4506 = vmatmul.mubr.bf16.gmra.mxu0 %v755
        %v4507 = vpop.f32.mrf.mxu0
        %v4508 = vadd.f32 %v4395, %v4507
        %v4509 = vpop.f32.mrf.mxu0
        %v4510 = vadd.f32 %v4397, %v4509
        %v4511 = vpop.f32.mrf.mxu0
        %v4512 = vadd.f32 %v4399, %v4511
        %v4513 = vpop.f32.mrf.mxu0
        %v4514 = vadd.f32 %v4401, %v4513
        %4515 = vdwg.mxu0
        %v4516 = vpack.c.bf16 %v4216, %v4212
        %v4517 = vpack.c.bf16 %v4218, %v4214
        %v4518 = vpack.c.bf16 %v4442, %v4438
        %v4519 = vpack.c.bf16 %v4444, %v4440
        %v4520 = vpack.c.bf16 %v4226, %v4222
        %v4521 = vpack.c.bf16 %v4228, %v4224
        %v4522 = vpack.c.bf16 %v4452, %v4448
        %v4523 = vpack.c.bf16 %v4454, %v4450
        %v4524 = vpack.c.bf16 %v4236, %v4232
        %v4525 = vpack.c.bf16 %v4238, %v4234
        %v4526 = vpack.c.bf16 %v4462, %v4458
        %v4527 = vpack.c.bf16 %v4464, %v4460
        %v4528 = vpack.c.bf16 %v4246, %v4242
        %v4529 = vpack.c.bf16 %v4248, %v4244
        %v4530 = vpack.c.bf16 %v4472, %v4468
        %v4531 = vpack.c.bf16 %v4474, %v4470
        %v4532 = vpack.c.bf16 %v4256, %v4252
        %v4533 = vpack.c.bf16 %v4258, %v4254
        %v4534 = vpack.c.bf16 %v4482, %v4478
        %v4535 = vpack.c.bf16 %v4484, %v4480
        %v4536 = vpack.c.bf16 %v4266, %v4262
        %v4537 = vpack.c.bf16 %v4268, %v4264
        %v4538 = vpack.c.bf16 %v4492, %v4488
        %v4539 = vpack.c.bf16 %v4494, %v4490
        %v4540 = vpack.c.bf16 %v4276, %v4272
        %v4541 = vpack.c.bf16 %v4278, %v4274
        %v4542 = vpack.c.bf16 %v4502, %v4498
        %v4543 = vpack.c.bf16 %v4504, %v4500
        %v4544 = vpack.c.bf16 %v4286, %v4282
        %v4545 = vpack.c.bf16 %v4288, %v4284
        %v4546 = vpack.c.bf16 %v4512, %v4508
        %v4547 = vpack.c.bf16 %v4514, %v4510
        %v4580 = vunpack.c.l.b16 %v4516
        %v4581 = vunpack.c.l.b16 %v4517
        %v4582 = vunpack.c.l.b16 %v4518
        %v4583 = vunpack.c.l.b16 %v4519
        %v4584 = vunpack.c.h.b16 %v4516
        %v4585 = vunpack.c.h.b16 %v4517
        %v4586 = vunpack.c.h.b16 %v4518
        %v4587 = vunpack.c.h.b16 %v4519
        %v4588 = vunpack.c.l.b16 %v4520
        %v4589 = vunpack.c.l.b16 %v4521
        %v4590 = vunpack.c.l.b16 %v4522
        %v4591 = vunpack.c.l.b16 %v4523
        %v4592 = vunpack.c.h.b16 %v4520
        %v4593 = vunpack.c.h.b16 %v4521
        %v4594 = vunpack.c.h.b16 %v4522
        %v4595 = vunpack.c.h.b16 %v4523
        %v4596 = vunpack.c.l.b16 %v4524
        %v4597 = vunpack.c.l.b16 %v4525
        %v4598 = vunpack.c.l.b16 %v4526
        %v4599 = vunpack.c.l.b16 %v4527
        %v4600 = vunpack.c.h.b16 %v4524
        %v4601 = vunpack.c.h.b16 %v4525
        %v4602 = vunpack.c.h.b16 %v4526
        %v4603 = vunpack.c.h.b16 %v4527
        %v4604 = vunpack.c.l.b16 %v4528
        %v4605 = vunpack.c.l.b16 %v4529
        %v4606 = vunpack.c.l.b16 %v4530
        %v4607 = vunpack.c.l.b16 %v4531
        %v4608 = vunpack.c.h.b16 %v4528
        %v4609 = vunpack.c.h.b16 %v4529
        %v4610 = vunpack.c.h.b16 %v4530
        %v4611 = vunpack.c.h.b16 %v4531
        %v4612 = vunpack.c.l.b16 %v4532
        %v4613 = vunpack.c.l.b16 %v4533
        %v4614 = vunpack.c.l.b16 %v4534
        %v4615 = vunpack.c.l.b16 %v4535
        %v4616 = vunpack.c.h.b16 %v4532
        %v4617 = vunpack.c.h.b16 %v4533
        %v4618 = vunpack.c.h.b16 %v4534
        %v4619 = vunpack.c.h.b16 %v4535
        %v4620 = vunpack.c.l.b16 %v4536
        %v4621 = vunpack.c.l.b16 %v4537
        %v4622 = vunpack.c.l.b16 %v4538
        %v4623 = vunpack.c.l.b16 %v4539
        %v4624 = vunpack.c.h.b16 %v4536
        %v4625 = vunpack.c.h.b16 %v4537
        %v4626 = vunpack.c.h.b16 %v4538
        %v4627 = vunpack.c.h.b16 %v4539
        %v4628 = vunpack.c.l.b16 %v4540
        %v4629 = vunpack.c.l.b16 %v4541
        %v4630 = vunpack.c.l.b16 %v4542
        %v4631 = vunpack.c.l.b16 %v4543
        %v4632 = vunpack.c.h.b16 %v4540
        %v4633 = vunpack.c.h.b16 %v4541
        %v4634 = vunpack.c.h.b16 %v4542
        %v4635 = vunpack.c.h.b16 %v4543
        %v4636 = vunpack.c.l.b16 %v4544
        %v4637 = vunpack.c.l.b16 %v4545
        %v4638 = vunpack.c.l.b16 %v4546
        %v4639 = vunpack.c.l.b16 %v4547
        %v4640 = vunpack.c.h.b16 %v4544
        %v4641 = vunpack.c.h.b16 %v4545
        %v4642 = vunpack.c.h.b16 %v4546
        %v4643 = vunpack.c.h.b16 %v4547
        %v4644 = vpack.c.b16 %v4581, %v4580
        %v4645 = vpack.c.b16 %v4583, %v4582
        %v4646 = vpack.c.b16 %v4585, %v4584
        %v4647 = vpack.c.b16 %v4587, %v4586
        %v4648 = vpack.c.b16 %v4589, %v4588
        %v4649 = vpack.c.b16 %v4591, %v4590
        %v4650 = vpack.c.b16 %v4593, %v4592
        %v4651 = vpack.c.b16 %v4595, %v4594
        %v4652 = vpack.c.b16 %v4597, %v4596
        %v4653 = vpack.c.b16 %v4599, %v4598
        %v4654 = vpack.c.b16 %v4601, %v4600
        %v4655 = vpack.c.b16 %v4603, %v4602
        %v4656 = vpack.c.b16 %v4605, %v4604
        %v4657 = vpack.c.b16 %v4607, %v4606
        %v4658 = vpack.c.b16 %v4609, %v4608
        %v4659 = vpack.c.b16 %v4611, %v4610
        %v4660 = vpack.c.b16 %v4613, %v4612
        %v4661 = vpack.c.b16 %v4615, %v4614
        %v4662 = vpack.c.b16 %v4617, %v4616
        %v4663 = vpack.c.b16 %v4619, %v4618
        %v4664 = vpack.c.b16 %v4621, %v4620
        %v4665 = vpack.c.b16 %v4623, %v4622
        %v4666 = vpack.c.b16 %v4625, %v4624
        %v4667 = vpack.c.b16 %v4627, %v4626
        %v4668 = vpack.c.b16 %v4629, %v4628
        %v4669 = vpack.c.b16 %v4631, %v4630
        %v4670 = vpack.c.b16 %v4633, %v4632
        %v4671 = vpack.c.b16 %v4635, %v4634
        %v4672 = vpack.c.b16 %v4637, %v4636
        %v4673 = vpack.c.b16 %v4639, %v4638
        %v4674 = vpack.c.b16 %v4641, %v4640
        %v4675 = vpack.c.b16 %v4643, %v4642
        %4708 = vst [vmem:[#allocation4] sm:$0xff] %v4644
        %4709 = vst [vmem:[#allocation4 + $0x8] sm:$0xff] %v4645
        %4710 = vst [vmem:[#allocation4 + $0x10] sm:$0xff] %v4646
        %4711 = vst [vmem:[#allocation4 + $0x18] sm:$0xff] %v4647
        %4712 = vst [vmem:[#allocation4 + $0x20] sm:$0xff] %v4648
        %4713 = vst [vmem:[#allocation4 + $0x28] sm:$0xff] %v4649
        %4714 = vst [vmem:[#allocation4 + $0x30] sm:$0xff] %v4650
        %4715 = vst [vmem:[#allocation4 + $0x38] sm:$0xff] %v4651
        %4716 = vst [vmem:[#allocation4 + $0x40] sm:$0xff] %v4652
        %4717 = vst [vmem:[#allocation4 + $0x48] sm:$0xff] %v4653
        %4718 = vst [vmem:[#allocation4 + $0x50] sm:$0xff] %v4654
        %4719 = vst [vmem:[#allocation4 + $0x58] sm:$0xff] %v4655
        %4720 = vst [vmem:[#allocation4 + $0x60] sm:$0xff] %v4656
        %4721 = vst [vmem:[#allocation4 + $0x68] sm:$0xff] %v4657
        %4722 = vst [vmem:[#allocation4 + $0x70] sm:$0xff] %v4658
        %4723 = vst [vmem:[#allocation4 + $0x78] sm:$0xff] %v4659
        %4724 = vst [vmem:[#allocation4 + $0x80] sm:$0xff] %v4660
        %4725 = vst [vmem:[#allocation4 + $0x88] sm:$0xff] %v4661
        %4726 = vst [vmem:[#allocation4 + $0x90] sm:$0xff] %v4662
        %4727 = vst [vmem:[#allocation4 + $0x98] sm:$0xff] %v4663
        %4728 = vst [vmem:[#allocation4 + $0xa0] sm:$0xff] %v4664
        %4729 = vst [vmem:[#allocation4 + $0xa8] sm:$0xff] %v4665
        %4730 = vst [vmem:[#allocation4 + $0xb0] sm:$0xff] %v4666
        %4731 = vst [vmem:[#allocation4 + $0xb8] sm:$0xff] %v4667
        %4732 = vst [vmem:[#allocation4 + $0xc0] sm:$0xff] %v4668
        %4733 = vst [vmem:[#allocation4 + $0xc8] sm:$0xff] %v4669
        %4734 = vst [vmem:[#allocation4 + $0xd0] sm:$0xff] %v4670
        %4735 = vst [vmem:[#allocation4 + $0xd8] sm:$0xff] %v4671
        %4736 = vst [vmem:[#allocation4 + $0xe0] sm:$0xff] %v4672
        %4737 = vst [vmem:[#allocation4 + $0xe8] sm:$0xff] %v4673
        %4738 = vst [vmem:[#allocation4 + $0xf0] sm:$0xff] %v4674
        %4739 = vst [vmem:[#allocation4 + $0xf8] sm:$0xff] %v4675
        %v4740 = vld [vmem:[%s3] sm:$0xff]
        %v4741 = vld [vmem:[%s3 + $0x8] sm:$0xff]
        %v4742 = vld [vmem:[%s3 + $0x10] sm:$0xff]
        %v4743 = vld [vmem:[%s3 + $0x18] sm:$0xff]
        %v4744 = vld [vmem:[%s3 + $0x20] sm:$0xff]
        %v4745 = vld [vmem:[%s3 + $0x28] sm:$0xff]
        %v4746 = vld [vmem:[%s3 + $0x30] sm:$0xff]
        %v4747 = vld [vmem:[%s3 + $0x38] sm:$0xff]
        %v4748 = vld [vmem:[%s3 + $0x40] sm:$0xff]
        %v4749 = vld [vmem:[%s3 + $0x48] sm:$0xff]
        %v4750 = vld [vmem:[%s3 + $0x50] sm:$0xff]
        %v4751 = vld [vmem:[%s3 + $0x58] sm:$0xff]
        %v4752 = vld [vmem:[%s3 + $0x60] sm:$0xff]
        %v4753 = vld [vmem:[%s3 + $0x68] sm:$0xff]
        %v4754 = vld [vmem:[%s3 + $0x70] sm:$0xff]
        %v4755 = vld [vmem:[%s3 + $0x78] sm:$0xff]
        %v4756 = vld [vmem:[%s652] sm:$0x1]
        %v4758 = vlaneseq
        %v4759 = vshrl.u32 %v4758, 7
        %v4760 = vsub.s32 0, %v4759
        %v4761 = vrot.slane %v4756, %v4760
        %v4763 = vmul.f32 %v4740, %v4761
        %v4764 = vmul.f32 %v4741, %v4761
        %v4765 = vmul.f32 %v4742, %v4761
        %v4766 = vmul.f32 %v4743, %v4761
        %v4767 = vmul.f32 %v4744, %v4761
        %v4768 = vmul.f32 %v4745, %v4761
        %v4769 = vmul.f32 %v4746, %v4761
        %v4770 = vmul.f32 %v4747, %v4761
        %v4771 = vmul.f32 %v4748, %v4761
        %v4772 = vmul.f32 %v4749, %v4761
        %v4773 = vmul.f32 %v4750, %v4761
        %v4774 = vmul.f32 %v4751, %v4761
        %v4775 = vmul.f32 %v4752, %v4761
        %v4776 = vmul.f32 %v4753, %v4761
        %v4777 = vmul.f32 %v4754, %v4761
        %v4778 = vmul.f32 %v4755, %v4761
        %v4779 = vld [vmem:[#allocation2] sm:$0xf]
        %v4780 = vld [vmem:[#allocation2 + $0x10] sm:$0xf]
        %v4781 = vld [vmem:[#allocation2 + $0x20] sm:$0xf]
        %v4782 = vld [vmem:[#allocation2 + $0x30] sm:$0xf]
        %v4783 = vld [vmem:[#allocation2 + $0x40] sm:$0xf]
        %v4784 = vld [vmem:[#allocation2 + $0x50] sm:$0xf]
        %v4785 = vld [vmem:[#allocation2 + $0x60] sm:$0xf]
        %v4786 = vld [vmem:[#allocation2 + $0x70] sm:$0xf]
        %v4787 = vld [vmem:[#allocation2 + $0x80] sm:$0xf]
        %v4788 = vld [vmem:[#allocation2 + $0x90] sm:$0xf]
        %v4789 = vld [vmem:[#allocation2 + $0xa0] sm:$0xf]
        %v4790 = vld [vmem:[#allocation2 + $0xb0] sm:$0xf]
        %v4791 = vld [vmem:[#allocation2 + $0xc0] sm:$0xf]
        %v4792 = vld [vmem:[#allocation2 + $0xd0] sm:$0xf]
        %v4793 = vld [vmem:[#allocation2 + $0xe0] sm:$0xf]
        %v4794 = vld [vmem:[#allocation2 + $0xf0] sm:$0xf]
        %v4795 = vld [vmem:[#allocation3] sm:$0xf]
        %v4796 = vld [vmem:[#allocation3 + $0x10] sm:$0xf]
        %v4797 = vld [vmem:[#allocation3 + $0x20] sm:$0xf]
        %v4798 = vld [vmem:[#allocation3 + $0x30] sm:$0xf]
        %v4799 = vld [vmem:[#allocation3 + $0x40] sm:$0xf]
        %v4800 = vld [vmem:[#allocation3 + $0x50] sm:$0xf]
        %v4801 = vld [vmem:[#allocation3 + $0x60] sm:$0xf]
        %v4802 = vld [vmem:[#allocation3 + $0x70] sm:$0xf]
        %v4803 = vld [vmem:[#allocation3 + $0x80] sm:$0xf]
        %v4804 = vld [vmem:[#allocation3 + $0x90] sm:$0xf]
        %v4805 = vld [vmem:[#allocation3 + $0xa0] sm:$0xf]
        %v4806 = vld [vmem:[#allocation3 + $0xb0] sm:$0xf]
        %v4807 = vld [vmem:[#allocation3 + $0xc0] sm:$0xf]
        %v4808 = vld [vmem:[#allocation3 + $0xd0] sm:$0xf]
        %v4809 = vld [vmem:[#allocation3 + $0xe0] sm:$0xf]
        %v4810 = vld [vmem:[#allocation3 + $0xf0] sm:$0xf]
        %v4827 = vunpack.c.l.b16 %v4779
        %v4828 = vunpack.c.l.b16 %v4780
        %v4829 = vunpack.c.l.b16 %v4781
        %v4830 = vunpack.c.l.b16 %v4782
        %v4831 = vunpack.c.l.b16 %v4783
        %v4832 = vunpack.c.l.b16 %v4784
        %v4833 = vunpack.c.l.b16 %v4785
        %v4834 = vunpack.c.l.b16 %v4786
        %v4835 = vunpack.c.l.b16 %v4787
        %v4836 = vunpack.c.l.b16 %v4788
        %v4837 = vunpack.c.l.b16 %v4789
        %v4838 = vunpack.c.l.b16 %v4790
        %v4839 = vunpack.c.l.b16 %v4791
        %v4840 = vunpack.c.l.b16 %v4792
        %v4841 = vunpack.c.l.b16 %v4793
        %v4842 = vunpack.c.l.b16 %v4794
        %v4843 = vpack.c.b16 %v4828, %v4827
        %v4844 = vpack.c.b16 %v4830, %v4829
        %v4845 = vpack.c.b16 %v4832, %v4831
        %v4846 = vpack.c.b16 %v4834, %v4833
        %v4847 = vpack.c.b16 %v4836, %v4835
        %v4848 = vpack.c.b16 %v4838, %v4837
        %v4849 = vpack.c.b16 %v4840, %v4839
        %v4850 = vpack.c.b16 %v4842, %v4841
        %v4875 = vunpack.c.l.b16 %v4795
        %v4876 = vunpack.c.l.b16 %v4796
        %v4877 = vunpack.c.l.b16 %v4797
        %v4878 = vunpack.c.l.b16 %v4798
        %v4879 = vunpack.c.l.b16 %v4799
        %v4880 = vunpack.c.l.b16 %v4800
        %v4881 = vunpack.c.l.b16 %v4801
        %v4882 = vunpack.c.l.b16 %v4802
        %v4883 = vunpack.c.l.b16 %v4803
        %v4884 = vunpack.c.l.b16 %v4804
        %v4885 = vunpack.c.l.b16 %v4805
        %v4886 = vunpack.c.l.b16 %v4806
        %v4887 = vunpack.c.l.b16 %v4807
        %v4888 = vunpack.c.l.b16 %v4808
        %v4889 = vunpack.c.l.b16 %v4809
        %v4890 = vunpack.c.l.b16 %v4810
        %v4891 = vpack.c.b16 %v4876, %v4875
        %v4892 = vpack.c.b16 %v4878, %v4877
        %v4893 = vpack.c.b16 %v4880, %v4879
        %v4894 = vpack.c.b16 %v4882, %v4881
        %v4895 = vpack.c.b16 %v4884, %v4883
        %v4896 = vpack.c.b16 %v4886, %v4885
        %v4897 = vpack.c.b16 %v4888, %v4887
        %v4898 = vpack.c.b16 %v4890, %v4889
        %4907 = vmatprep.subr.bf16.mxu0 0
        %4908 = vmatpush1.bf16.xpose.msra.mxu0 %v4898
        %4909 = vmatprep.subr.bf16.mxu0 0
        %4910 = vmatpush1.bf16.xpose.msra.mxu0 %v4897
        %4911 = vmatprep.subr.bf16.mxu0 0
        %4912 = vmatpush1.bf16.xpose.msra.mxu0 %v4896
        %4913 = vmatprep.subr.bf16.mxu0 0
        %4914 = vmatpush1.bf16.xpose.msra.mxu0 %v4895
        %4915 = vmatprep.subr.bf16.mxu0 0
        %4916 = vmatpush1.bf16.xpose.msra.mxu0 %v4894
        %4917 = vmatprep.subr.bf16.mxu0 0
        %4918 = vmatpush1.bf16.xpose.msra.mxu0 %v4893
        %4919 = vmatprep.subr.bf16.mxu0 0
        %4920 = vmatpush1.bf16.xpose.msra.mxu0 %v4892
        %4921 = vmatprep.subr.bf16.mxu0 0
        %4922 = vmatpush1.bf16.xpose.msra.mxu0 %v4891
        %4923 = vmatprep.subr.bf16.mxu0 0
        %4924 = vmatpush2.bf16.xpose.msra.mxu0 0
        %4925 = vmatprep.subr.bf16.mxu0 0
        %4926 = vmatpush2.bf16.xpose.msra.mxu0 0
        %4927 = vmatprep.subr.bf16.mxu0 0
        %4928 = vmatpush2.bf16.xpose.msra.mxu0 0
        %4929 = vmatprep.subr.bf16.mxu0 0
        %4930 = vmatpush2.bf16.xpose.msra.mxu0 0
        %4931 = vmatprep.subr.bf16.mxu0 0
        %4932 = vmatpush2.bf16.xpose.msra.mxu0 0
        %4933 = vmatprep.subr.bf16.mxu0 0
        %4934 = vmatpush2.bf16.xpose.msra.mxu0 0
        %4935 = vmatprep.subr.bf16.mxu0 0
        %4936 = vmatpush2.bf16.xpose.msra.mxu0 0
        %4937 = vmatprep.subr.bf16.mxu0 0
        %4938 = vmatpush2.bf16.xpose.msra.mxu0 0
        %4939 = vmatprep.mubr.bf16.mxu0 0
        %4940 = vmatmul.mubr.bf16.gmra.mxu0 %v4843
        %v4941 = vpop.f32.mrf.mxu0
        %v4942 = vadd.f32 0.0, %v4941
        %v4943 = vpop.f32.mrf.mxu0
        %v4944 = vpop.f32.mrf.mxu0
        %v4945 = vadd.f32 0.0, %v4944
        %v4946 = vpop.f32.mrf.mxu0
        %4947 = vmatprep.mubr.bf16.mxu0 0
        %4948 = vmatmul.mubr.bf16.gmra.mxu0 %v4844
        %v4949 = vpop.f32.mrf.mxu0
        %v4950 = vadd.f32 0.0, %v4949
        %v4951 = vpop.f32.mrf.mxu0
        %v4952 = vpop.f32.mrf.mxu0
        %v4953 = vadd.f32 0.0, %v4952
        %v4954 = vpop.f32.mrf.mxu0
        %4955 = vmatprep.mubr.bf16.mxu0 0
        %4956 = vmatmul.mubr.bf16.gmra.mxu0 %v4845
        %v4957 = vpop.f32.mrf.mxu0
        %v4958 = vadd.f32 0.0, %v4957
        %v4959 = vpop.f32.mrf.mxu0
        %v4960 = vpop.f32.mrf.mxu0
        %v4961 = vadd.f32 0.0, %v4960
        %v4962 = vpop.f32.mrf.mxu0
        %4963 = vmatprep.mubr.bf16.mxu0 0
        %4964 = vmatmul.mubr.bf16.gmra.mxu0 %v4846
        %v4965 = vpop.f32.mrf.mxu0
        %v4966 = vadd.f32 0.0, %v4965
        %v4967 = vpop.f32.mrf.mxu0
        %v4968 = vpop.f32.mrf.mxu0
        %v4969 = vadd.f32 0.0, %v4968
        %v4970 = vpop.f32.mrf.mxu0
        %4971 = vmatprep.mubr.bf16.mxu0 0
        %4972 = vmatmul.mubr.bf16.gmra.mxu0 %v4847
        %v4973 = vpop.f32.mrf.mxu0
        %v4974 = vadd.f32 0.0, %v4973
        %v4975 = vpop.f32.mrf.mxu0
        %v4976 = vpop.f32.mrf.mxu0
        %v4977 = vadd.f32 0.0, %v4976
        %v4978 = vpop.f32.mrf.mxu0
        %4979 = vmatprep.mubr.bf16.mxu0 0
        %4980 = vmatmul.mubr.bf16.gmra.mxu0 %v4848
        %v4981 = vpop.f32.mrf.mxu0
        %v4982 = vadd.f32 0.0, %v4981
        %v4983 = vpop.f32.mrf.mxu0
        %v4984 = vpop.f32.mrf.mxu0
        %v4985 = vadd.f32 0.0, %v4984
        %v4986 = vpop.f32.mrf.mxu0
        %4987 = vmatprep.mubr.bf16.mxu0 0
        %4988 = vmatmul.mubr.bf16.gmra.mxu0 %v4849
        %v4989 = vpop.f32.mrf.mxu0
        %v4990 = vadd.f32 0.0, %v4989
        %v4991 = vpop.f32.mrf.mxu0
        %v4992 = vpop.f32.mrf.mxu0
        %v4993 = vadd.f32 0.0, %v4992
        %v4994 = vpop.f32.mrf.mxu0
        %4995 = vmatprep.mubr.bf16.mxu0 0
        %4996 = vmatmul.mubr.bf16.gmra.mxu0 %v4850
        %v4997 = vpop.f32.mrf.mxu0
        %v4998 = vadd.f32 0.0, %v4997
        %v4999 = vpop.f32.mrf.mxu0
        %v5000 = vpop.f32.mrf.mxu0
        %v5001 = vadd.f32 0.0, %v5000
        %v5002 = vpop.f32.mrf.mxu0
        %5003 = vdwg.mxu0
        %v5004 = vmul.f32 %v4942, 1.442695
        %v5005 = vpow.pop %v5004
        %v5006 = vmul.f32 %v4945, 1.442695
        %v5007 = vpow.pop %v5006
        %v5008 = vmul.f32 %v4950, 1.442695
        %v5009 = vpow.pop %v5008
        %v5010 = vmul.f32 %v4953, 1.442695
        %v5011 = vpow.pop %v5010
        %v5012 = vmul.f32 %v4958, 1.442695
        %v5013 = vpow.pop %v5012
        %v5014 = vmul.f32 %v4961, 1.442695
        %v5015 = vpow.pop %v5014
        %v5016 = vmul.f32 %v4966, 1.442695
        %v5017 = vpow.pop %v5016
        %v5018 = vmul.f32 %v4969, 1.442695
        %v5019 = vpow.pop %v5018
        %v5020 = vmul.f32 %v4974, 1.442695
        %v5021 = vpow.pop %v5020
        %v5022 = vmul.f32 %v4977, 1.442695
        %v5023 = vpow.pop %v5022
        %v5024 = vmul.f32 %v4982, 1.442695
        %v5025 = vpow.pop %v5024
        %v5026 = vmul.f32 %v4985, 1.442695
        %v5027 = vpow.pop %v5026
        %v5028 = vmul.f32 %v4990, 1.442695
        %v5029 = vpow.pop %v5028
        %v5030 = vmul.f32 %v4993, 1.442695
        %v5031 = vpow.pop %v5030
        %v5032 = vmul.f32 %v4998, 1.442695
        %v5033 = vpow.pop %v5032
        %v5034 = vmul.f32 %v5001, 1.442695
        %v5035 = vpow.pop %v5034
        %v5036 = vmul.f32 %v5005, %v4763
        %v5037 = vmul.f32 %v5007, %v4764
        %v5038 = vmul.f32 %v5009, %v4765
        %v5039 = vmul.f32 %v5011, %v4766
        %v5040 = vmul.f32 %v5013, %v4767
        %v5041 = vmul.f32 %v5015, %v4768
        %v5042 = vmul.f32 %v5017, %v4769
        %v5043 = vmul.f32 %v5019, %v4770
        %v5044 = vmul.f32 %v5021, %v4771
        %v5045 = vmul.f32 %v5023, %v4772
        %v5046 = vmul.f32 %v5025, %v4773
        %v5047 = vmul.f32 %v5027, %v4774
        %v5048 = vmul.f32 %v5029, %v4775
        %v5049 = vmul.f32 %v5031, %v4776
        %v5050 = vmul.f32 %v5033, %v4777
        %v5051 = vmul.f32 %v5035, %v4778
        %5052 = vadd.xlane.f32.xlu0 %v5036
        %v5053 = vpop.xlane.xlu0 %5052
        %5054 = vadd.xlane.f32.xlu0 %v5037
        %v5055 = vpop.xlane.xlu0 %5054
        %5056 = vadd.xlane.f32.xlu0 %v5038
        %v5057 = vpop.xlane.xlu0 %5056
        %5058 = vadd.xlane.f32.xlu0 %v5039
        %v5059 = vpop.xlane.xlu0 %5058
        %5060 = vadd.xlane.f32.xlu0 %v5040
        %v5061 = vpop.xlane.xlu0 %5060
        %5062 = vadd.xlane.f32.xlu0 %v5041
        %v5063 = vpop.xlane.xlu0 %5062
        %5064 = vadd.xlane.f32.xlu0 %v5042
        %v5065 = vpop.xlane.xlu0 %5064
        %5066 = vadd.xlane.f32.xlu0 %v5043
        %v5067 = vpop.xlane.xlu0 %5066
        %5068 = vadd.xlane.f32.xlu0 %v5044
        %v5069 = vpop.xlane.xlu0 %5068
        %5070 = vadd.xlane.f32.xlu0 %v5045
        %v5071 = vpop.xlane.xlu0 %5070
        %5072 = vadd.xlane.f32.xlu0 %v5046
        %v5073 = vpop.xlane.xlu0 %5072
        %5074 = vadd.xlane.f32.xlu0 %v5047
        %v5075 = vpop.xlane.xlu0 %5074
        %5076 = vadd.xlane.f32.xlu0 %v5048
        %v5077 = vpop.xlane.xlu0 %5076
        %5078 = vadd.xlane.f32.xlu0 %v5049
        %v5079 = vpop.xlane.xlu0 %5078
        %5080 = vadd.xlane.f32.xlu0 %v5050
        %v5081 = vpop.xlane.xlu0 %5080
        %5082 = vadd.xlane.f32.xlu0 %v5051
        %v5083 = vpop.xlane.xlu0 %5082
        %v5084 = vadd.f32 %v5053, 1e-08
        %v5085 = vadd.f32 %v5055, 1e-08
        %v5086 = vadd.f32 %v5057, 1e-08
        %v5087 = vadd.f32 %v5059, 1e-08
        %v5088 = vadd.f32 %v5061, 1e-08
        %v5089 = vadd.f32 %v5063, 1e-08
        %v5090 = vadd.f32 %v5065, 1e-08
        %v5091 = vadd.f32 %v5067, 1e-08
        %v5092 = vadd.f32 %v5069, 1e-08
        %v5093 = vadd.f32 %v5071, 1e-08
        %v5094 = vadd.f32 %v5073, 1e-08
        %v5095 = vadd.f32 %v5075, 1e-08
        %v5096 = vadd.f32 %v5077, 1e-08
        %v5097 = vadd.f32 %v5079, 1e-08
        %v5098 = vadd.f32 %v5081, 1e-08
        %v5099 = vadd.f32 %v5083, 1e-08
        %v5100 = vrcp.pop %v5084
        %v5101 = vrcp.pop %v5085
        %v5102 = vrcp.pop %v5086
        %v5103 = vrcp.pop %v5087
        %v5104 = vrcp.pop %v5088
        %v5105 = vrcp.pop %v5089
        %v5106 = vrcp.pop %v5090
        %v5107 = vrcp.pop %v5091
        %v5108 = vrcp.pop %v5092
        %v5109 = vrcp.pop %v5093
        %v5110 = vrcp.pop %v5094
        %v5111 = vrcp.pop %v5095
        %v5112 = vrcp.pop %v5096
        %v5113 = vrcp.pop %v5097
        %v5114 = vrcp.pop %v5098
        %v5115 = vrcp.pop %v5099
        %v5116 = vmul.f32 %v5036, %v5100
        %v5117 = vmul.f32 %v5037, %v5101
        %v5118 = vmul.f32 %v5038, %v5102
        %v5119 = vmul.f32 %v5039, %v5103
        %v5120 = vmul.f32 %v5040, %v5104
        %v5121 = vmul.f32 %v5041, %v5105
        %v5122 = vmul.f32 %v5042, %v5106
        %v5123 = vmul.f32 %v5043, %v5107
        %v5124 = vmul.f32 %v5044, %v5108
        %v5125 = vmul.f32 %v5045, %v5109
        %v5126 = vmul.f32 %v5046, %v5110
        %v5127 = vmul.f32 %v5047, %v5111
        %v5128 = vmul.f32 %v5048, %v5112
        %v5129 = vmul.f32 %v5049, %v5113
        %v5130 = vmul.f32 %v5050, %v5114
        %v5131 = vmul.f32 %v5051, %v5115
        %v5132 = vpack.c.bf16 %v5117, %v5116
        %v5133 = vpack.c.bf16 %v5119, %v5118
        %v5134 = vpack.c.bf16 %v5121, %v5120
        %v5135 = vpack.c.bf16 %v5123, %v5122
        %v5136 = vpack.c.bf16 %v5125, %v5124
        %v5137 = vpack.c.bf16 %v5127, %v5126
        %v5138 = vpack.c.bf16 %v5129, %v5128
        %v5139 = vpack.c.bf16 %v5131, %v5130
        %v5140 = vld [vmem:[#allocation4] sm:$0xf]
        %v5141 = vld [vmem:[#allocation4 + $0x10] sm:$0xf]
        %v5142 = vld [vmem:[#allocation4 + $0x20] sm:$0xf]
        %v5143 = vld [vmem:[#allocation4 + $0x30] sm:$0xf]
        %v5144 = vld [vmem:[#allocation4 + $0x40] sm:$0xf]
        %v5145 = vld [vmem:[#allocation4 + $0x50] sm:$0xf]
        %v5146 = vld [vmem:[#allocation4 + $0x60] sm:$0xf]
        %v5147 = vld [vmem:[#allocation4 + $0x70] sm:$0xf]
        %v5148 = vld [vmem:[#allocation4 + $0x80] sm:$0xf]
        %v5149 = vld [vmem:[#allocation4 + $0x90] sm:$0xf]
        %v5150 = vld [vmem:[#allocation4 + $0xa0] sm:$0xf]
        %v5151 = vld [vmem:[#allocation4 + $0xb0] sm:$0xf]
        %v5152 = vld [vmem:[#allocation4 + $0xc0] sm:$0xf]
        %v5153 = vld [vmem:[#allocation4 + $0xd0] sm:$0xf]
        %v5154 = vld [vmem:[#allocation4 + $0xe0] sm:$0xf]
        %v5155 = vld [vmem:[#allocation4 + $0xf0] sm:$0xf]
        %v5172 = vunpack.c.l.b16 %v5140
        %v5173 = vunpack.c.l.b16 %v5141
        %v5174 = vunpack.c.l.b16 %v5142
        %v5175 = vunpack.c.l.b16 %v5143
        %v5176 = vunpack.c.l.b16 %v5144
        %v5177 = vunpack.c.l.b16 %v5145
        %v5178 = vunpack.c.l.b16 %v5146
        %v5179 = vunpack.c.l.b16 %v5147
        %v5180 = vunpack.c.l.b16 %v5148
        %v5181 = vunpack.c.l.b16 %v5149
        %v5182 = vunpack.c.l.b16 %v5150
        %v5183 = vunpack.c.l.b16 %v5151
        %v5184 = vunpack.c.l.b16 %v5152
        %v5185 = vunpack.c.l.b16 %v5153
        %v5186 = vunpack.c.l.b16 %v5154
        %v5187 = vunpack.c.l.b16 %v5155
        %v5188 = vpack.c.b16 %v5173, %v5172
        %v5189 = vpack.c.b16 %v5175, %v5174
        %v5190 = vpack.c.b16 %v5177, %v5176
        %v5191 = vpack.c.b16 %v5179, %v5178
        %v5192 = vpack.c.b16 %v5181, %v5180
        %v5193 = vpack.c.b16 %v5183, %v5182
        %v5194 = vpack.c.b16 %v5185, %v5184
        %v5195 = vpack.c.b16 %v5187, %v5186
        %5204 = vmatprep.subr.bf16.mxu0 0
        %5205 = vmatpush1.bf16.msra.mxu0 %v5195
        %5206 = vmatprep.subr.bf16.mxu0 0
        %5207 = vmatpush1.bf16.msra.mxu0 %v5194
        %5208 = vmatprep.subr.bf16.mxu0 0
        %5209 = vmatpush1.bf16.msra.mxu0 %v5193
        %5210 = vmatprep.subr.bf16.mxu0 0
        %5211 = vmatpush1.bf16.msra.mxu0 %v5192
        %5212 = vmatprep.subr.bf16.mxu0 0
        %5213 = vmatpush1.bf16.msra.mxu0 %v5191
        %5214 = vmatprep.subr.bf16.mxu0 0
        %5215 = vmatpush1.bf16.msra.mxu0 %v5190
        %5216 = vmatprep.subr.bf16.mxu0 0
        %5217 = vmatpush1.bf16.msra.mxu0 %v5189
        %5218 = vmatprep.subr.bf16.mxu0 0
        %5219 = vmatpush1.bf16.msra.mxu0 %v5188
        %5220 = vmatprep.subr.bf16.mxu0 0
        %5221 = vmatpush2.bf16.msra.mxu0 0
        %5222 = vmatprep.subr.bf16.mxu0 0
        %5223 = vmatpush2.bf16.msra.mxu0 0
        %5224 = vmatprep.subr.bf16.mxu0 0
        %5225 = vmatpush2.bf16.msra.mxu0 0
        %5226 = vmatprep.subr.bf16.mxu0 0
        %5227 = vmatpush2.bf16.msra.mxu0 0
        %5228 = vmatprep.subr.bf16.mxu0 0
        %5229 = vmatpush2.bf16.msra.mxu0 0
        %5230 = vmatprep.subr.bf16.mxu0 0
        %5231 = vmatpush2.bf16.msra.mxu0 0
        %5232 = vmatprep.subr.bf16.mxu0 0
        %5233 = vmatpush2.bf16.msra.mxu0 0
        %5234 = vmatprep.subr.bf16.mxu0 0
        %5235 = vmatpush2.bf16.msra.mxu0 0
        %5236 = vmatprep.mubr.bf16.mxu0 0
        %5237 = vmatmul.mubr.bf16.gmra.mxu0 %v5132
        %v5238 = vpop.f32.mrf.mxu0
        %v5239 = vadd.f32 0.0, %v5238
        %v5240 = vpop.f32.mrf.mxu0
        %v5241 = vpop.f32.mrf.mxu0
        %v5242 = vadd.f32 0.0, %v5241
        %v5243 = vpop.f32.mrf.mxu0
        %5244 = vmatprep.mubr.bf16.mxu0 0
        %5245 = vmatmul.mubr.bf16.gmra.mxu0 %v5133
        %v5246 = vpop.f32.mrf.mxu0
        %v5247 = vadd.f32 0.0, %v5246
        %v5248 = vpop.f32.mrf.mxu0
        %v5249 = vpop.f32.mrf.mxu0
        %v5250 = vadd.f32 0.0, %v5249
        %v5251 = vpop.f32.mrf.mxu0
        %5252 = vmatprep.mubr.bf16.mxu0 0
        %5253 = vmatmul.mubr.bf16.gmra.mxu0 %v5134
        %v5254 = vpop.f32.mrf.mxu0
        %v5255 = vadd.f32 0.0, %v5254
        %v5256 = vpop.f32.mrf.mxu0
        %v5257 = vpop.f32.mrf.mxu0
        %v5258 = vadd.f32 0.0, %v5257
        %v5259 = vpop.f32.mrf.mxu0
        %5260 = vmatprep.mubr.bf16.mxu0 0
        %5261 = vmatmul.mubr.bf16.gmra.mxu0 %v5135
        %v5262 = vpop.f32.mrf.mxu0
        %v5263 = vadd.f32 0.0, %v5262
        %v5264 = vpop.f32.mrf.mxu0
        %v5265 = vpop.f32.mrf.mxu0
        %v5266 = vadd.f32 0.0, %v5265
        %v5267 = vpop.f32.mrf.mxu0
        %5268 = vmatprep.mubr.bf16.mxu0 0
        %5269 = vmatmul.mubr.bf16.gmra.mxu0 %v5136
        %v5270 = vpop.f32.mrf.mxu0
        %v5271 = vadd.f32 0.0, %v5270
        %v5272 = vpop.f32.mrf.mxu0
        %v5273 = vpop.f32.mrf.mxu0
        %v5274 = vadd.f32 0.0, %v5273
        %v5275 = vpop.f32.mrf.mxu0
        %5276 = vmatprep.mubr.bf16.mxu0 0
        %5277 = vmatmul.mubr.bf16.gmra.mxu0 %v5137
        %v5278 = vpop.f32.mrf.mxu0
        %v5279 = vadd.f32 0.0, %v5278
        %v5280 = vpop.f32.mrf.mxu0
        %v5281 = vpop.f32.mrf.mxu0
        %v5282 = vadd.f32 0.0, %v5281
        %v5283 = vpop.f32.mrf.mxu0
        %5284 = vmatprep.mubr.bf16.mxu0 0
        %5285 = vmatmul.mubr.bf16.gmra.mxu0 %v5138
        %v5286 = vpop.f32.mrf.mxu0
        %v5287 = vadd.f32 0.0, %v5286
        %v5288 = vpop.f32.mrf.mxu0
        %v5289 = vpop.f32.mrf.mxu0
        %v5290 = vadd.f32 0.0, %v5289
        %v5291 = vpop.f32.mrf.mxu0
        %5292 = vmatprep.mubr.bf16.mxu0 0
        %5293 = vmatmul.mubr.bf16.gmra.mxu0 %v5139
        %v5294 = vpop.f32.mrf.mxu0
        %v5295 = vadd.f32 0.0, %v5294
        %v5296 = vpop.f32.mrf.mxu0
        %v5297 = vpop.f32.mrf.mxu0
        %v5298 = vadd.f32 0.0, %v5297
        %v5299 = vpop.f32.mrf.mxu0
        %5300 = vdwg.mxu0
        %5301 = vst [vmem:[#allocation5] sm:$0xff] %v5239
        %5302 = vst [vmem:[#allocation5 + $0x20] sm:$0xff] %v5242
        %5303 = vst [vmem:[#allocation5 + $0x40] sm:$0xff] %v5247
        %5304 = vst [vmem:[#allocation5 + $0x60] sm:$0xff] %v5250
        %5305 = vst [vmem:[#allocation5 + $0x80] sm:$0xff] %v5255
        %5306 = vst [vmem:[#allocation5 + $0xa0] sm:$0xff] %v5258
        %5307 = vst [vmem:[#allocation5 + $0xc0] sm:$0xff] %v5263
        %5308 = vst [vmem:[#allocation5 + $0xe0] sm:$0xff] %v5266
        %5309 = vst [vmem:[#allocation5 + $0x100] sm:$0xff] %v5271
        %5310 = vst [vmem:[#allocation5 + $0x120] sm:$0xff] %v5274
        %5311 = vst [vmem:[#allocation5 + $0x140] sm:$0xff] %v5279
        %5312 = vst [vmem:[#allocation5 + $0x160] sm:$0xff] %v5282
        %5313 = vst [vmem:[#allocation5 + $0x180] sm:$0xff] %v5287
        %5314 = vst [vmem:[#allocation5 + $0x1a0] sm:$0xff] %v5290
        %5315 = vst [vmem:[#allocation5 + $0x1c0] sm:$0xff] %v5295
        %5316 = vst [vmem:[#allocation5 + $0x1e0] sm:$0xff] %v5298
        %v5317 = vld [vmem:[#allocation2 + $0x4] sm:$0xf]
        %v5318 = vld [vmem:[#allocation2 + $0x14] sm:$0xf]
        %v5319 = vld [vmem:[#allocation2 + $0x24] sm:$0xf]
        %v5320 = vld [vmem:[#allocation2 + $0x34] sm:$0xf]
        %v5321 = vld [vmem:[#allocation2 + $0x44] sm:$0xf]
        %v5322 = vld [vmem:[#allocation2 + $0x54] sm:$0xf]
        %v5323 = vld [vmem:[#allocation2 + $0x64] sm:$0xf]
        %v5324 = vld [vmem:[#allocation2 + $0x74] sm:$0xf]
        %v5325 = vld [vmem:[#allocation2 + $0x84] sm:$0xf]
        %v5326 = vld [vmem:[#allocation2 + $0x94] sm:$0xf]
        %v5327 = vld [vmem:[#allocation2 + $0xa4] sm:$0xf]
        %v5328 = vld [vmem:[#allocation2 + $0xb4] sm:$0xf]
        %v5329 = vld [vmem:[#allocation2 + $0xc4] sm:$0xf]
        %v5330 = vld [vmem:[#allocation2 + $0xd4] sm:$0xf]
        %v5331 = vld [vmem:[#allocation2 + $0xe4] sm:$0xf]
        %v5332 = vld [vmem:[#allocation2 + $0xf4] sm:$0xf]
        %v5333 = vld [vmem:[#allocation3 + $0x4] sm:$0xf]
        %v5334 = vld [vmem:[#allocation3 + $0x14] sm:$0xf]
        %v5335 = vld [vmem:[#allocation3 + $0x24] sm:$0xf]
        %v5336 = vld [vmem:[#allocation3 + $0x34] sm:$0xf]
        %v5337 = vld [vmem:[#allocation3 + $0x44] sm:$0xf]
        %v5338 = vld [vmem:[#allocation3 + $0x54] sm:$0xf]
        %v5339 = vld [vmem:[#allocation3 + $0x64] sm:$0xf]
        %v5340 = vld [vmem:[#allocation3 + $0x74] sm:$0xf]
        %v5341 = vld [vmem:[#allocation3 + $0x84] sm:$0xf]
        %v5342 = vld [vmem:[#allocation3 + $0x94] sm:$0xf]
        %v5343 = vld [vmem:[#allocation3 + $0xa4] sm:$0xf]
        %v5344 = vld [vmem:[#allocation3 + $0xb4] sm:$0xf]
        %v5345 = vld [vmem:[#allocation3 + $0xc4] sm:$0xf]
        %v5346 = vld [vmem:[#allocation3 + $0xd4] sm:$0xf]
        %v5347 = vld [vmem:[#allocation3 + $0xe4] sm:$0xf]
        %v5348 = vld [vmem:[#allocation3 + $0xf4] sm:$0xf]
        %v5365 = vunpack.c.l.b16 %v5317
        %v5366 = vunpack.c.l.b16 %v5318
        %v5367 = vunpack.c.l.b16 %v5319
        %v5368 = vunpack.c.l.b16 %v5320
        %v5369 = vunpack.c.l.b16 %v5321
        %v5370 = vunpack.c.l.b16 %v5322
        %v5371 = vunpack.c.l.b16 %v5323
        %v5372 = vunpack.c.l.b16 %v5324
        %v5373 = vunpack.c.l.b16 %v5325
        %v5374 = vunpack.c.l.b16 %v5326
        %v5375 = vunpack.c.l.b16 %v5327
        %v5376 = vunpack.c.l.b16 %v5328
        %v5377 = vunpack.c.l.b16 %v5329
        %v5378 = vunpack.c.l.b16 %v5330
        %v5379 = vunpack.c.l.b16 %v5331
        %v5380 = vunpack.c.l.b16 %v5332
        %v5381 = vpack.c.b16 %v5366, %v5365
        %v5382 = vpack.c.b16 %v5368, %v5367
        %v5383 = vpack.c.b16 %v5370, %v5369
        %v5384 = vpack.c.b16 %v5372, %v5371
        %v5385 = vpack.c.b16 %v5374, %v5373
        %v5386 = vpack.c.b16 %v5376, %v5375
        %v5387 = vpack.c.b16 %v5378, %v5377
        %v5388 = vpack.c.b16 %v5380, %v5379
        %v5413 = vunpack.c.l.b16 %v5333
        %v5414 = vunpack.c.l.b16 %v5334
        %v5415 = vunpack.c.l.b16 %v5335
        %v5416 = vunpack.c.l.b16 %v5336
        %v5417 = vunpack.c.l.b16 %v5337
        %v5418 = vunpack.c.l.b16 %v5338
        %v5419 = vunpack.c.l.b16 %v5339
        %v5420 = vunpack.c.l.b16 %v5340
        %v5421 = vunpack.c.l.b16 %v5341
        %v5422 = vunpack.c.l.b16 %v5342
        %v5423 = vunpack.c.l.b16 %v5343
        %v5424 = vunpack.c.l.b16 %v5344
        %v5425 = vunpack.c.l.b16 %v5345
        %v5426 = vunpack.c.l.b16 %v5346
        %v5427 = vunpack.c.l.b16 %v5347
        %v5428 = vunpack.c.l.b16 %v5348
        %v5429 = vpack.c.b16 %v5414, %v5413
        %v5430 = vpack.c.b16 %v5416, %v5415
        %v5431 = vpack.c.b16 %v5418, %v5417
        %v5432 = vpack.c.b16 %v5420, %v5419
        %v5433 = vpack.c.b16 %v5422, %v5421
        %v5434 = vpack.c.b16 %v5424, %v5423
        %v5435 = vpack.c.b16 %v5426, %v5425
        %v5436 = vpack.c.b16 %v5428, %v5427
        %5445 = vmatprep.subr.bf16.mxu0 0
        %5446 = vmatpush1.bf16.xpose.msra.mxu0 %v5436
        %5447 = vmatprep.subr.bf16.mxu0 0
        %5448 = vmatpush1.bf16.xpose.msra.mxu0 %v5435
        %5449 = vmatprep.subr.bf16.mxu0 0
        %5450 = vmatpush1.bf16.xpose.msra.mxu0 %v5434
        %5451 = vmatprep.subr.bf16.mxu0 0
        %5452 = vmatpush1.bf16.xpose.msra.mxu0 %v5433
        %5453 = vmatprep.subr.bf16.mxu0 0
        %5454 = vmatpush1.bf16.xpose.msra.mxu0 %v5432
        %5455 = vmatprep.subr.bf16.mxu0 0
        %5456 = vmatpush1.bf16.xpose.msra.mxu0 %v5431
        %5457 = vmatprep.subr.bf16.mxu0 0
        %5458 = vmatpush1.bf16.xpose.msra.mxu0 %v5430
        %5459 = vmatprep.subr.bf16.mxu0 0
        %5460 = vmatpush1.bf16.xpose.msra.mxu0 %v5429
        %5461 = vmatprep.subr.bf16.mxu0 0
        %5462 = vmatpush2.bf16.xpose.msra.mxu0 0
        %5463 = vmatprep.subr.bf16.mxu0 0
        %5464 = vmatpush2.bf16.xpose.msra.mxu0 0
        %5465 = vmatprep.subr.bf16.mxu0 0
        %5466 = vmatpush2.bf16.xpose.msra.mxu0 0
        %5467 = vmatprep.subr.bf16.mxu0 0
        %5468 = vmatpush2.bf16.xpose.msra.mxu0 0
        %5469 = vmatprep.subr.bf16.mxu0 0
        %5470 = vmatpush2.bf16.xpose.msra.mxu0 0
        %5471 = vmatprep.subr.bf16.mxu0 0
        %5472 = vmatpush2.bf16.xpose.msra.mxu0 0
        %5473 = vmatprep.subr.bf16.mxu0 0
        %5474 = vmatpush2.bf16.xpose.msra.mxu0 0
        %5475 = vmatprep.subr.bf16.mxu0 0
        %5476 = vmatpush2.bf16.xpose.msra.mxu0 0
        %5477 = vmatprep.mubr.bf16.mxu0 0
        %5478 = vmatmul.mubr.bf16.gmra.mxu0 %v5381
        %v5479 = vpop.f32.mrf.mxu0
        %v5480 = vadd.f32 0.0, %v5479
        %v5481 = vpop.f32.mrf.mxu0
        %v5482 = vpop.f32.mrf.mxu0
        %v5483 = vadd.f32 0.0, %v5482
        %v5484 = vpop.f32.mrf.mxu0
        %5485 = vmatprep.mubr.bf16.mxu0 0
        %5486 = vmatmul.mubr.bf16.gmra.mxu0 %v5382
        %v5487 = vpop.f32.mrf.mxu0
        %v5488 = vadd.f32 0.0, %v5487
        %v5489 = vpop.f32.mrf.mxu0
        %v5490 = vpop.f32.mrf.mxu0
        %v5491 = vadd.f32 0.0, %v5490
        %v5492 = vpop.f32.mrf.mxu0
        %5493 = vmatprep.mubr.bf16.mxu0 0
        %5494 = vmatmul.mubr.bf16.gmra.mxu0 %v5383
        %v5495 = vpop.f32.mrf.mxu0
        %v5496 = vadd.f32 0.0, %v5495
        %v5497 = vpop.f32.mrf.mxu0
        %v5498 = vpop.f32.mrf.mxu0
        %v5499 = vadd.f32 0.0, %v5498
        %v5500 = vpop.f32.mrf.mxu0
        %5501 = vmatprep.mubr.bf16.mxu0 0
        %5502 = vmatmul.mubr.bf16.gmra.mxu0 %v5384
        %v5503 = vpop.f32.mrf.mxu0
        %v5504 = vadd.f32 0.0, %v5503
        %v5505 = vpop.f32.mrf.mxu0
        %v5506 = vpop.f32.mrf.mxu0
        %v5507 = vadd.f32 0.0, %v5506
        %v5508 = vpop.f32.mrf.mxu0
        %5509 = vmatprep.mubr.bf16.mxu0 0
        %5510 = vmatmul.mubr.bf16.gmra.mxu0 %v5385
        %v5511 = vpop.f32.mrf.mxu0
        %v5512 = vadd.f32 0.0, %v5511
        %v5513 = vpop.f32.mrf.mxu0
        %v5514 = vpop.f32.mrf.mxu0
        %v5515 = vadd.f32 0.0, %v5514
        %v5516 = vpop.f32.mrf.mxu0
        %5517 = vmatprep.mubr.bf16.mxu0 0
        %5518 = vmatmul.mubr.bf16.gmra.mxu0 %v5386
        %v5519 = vpop.f32.mrf.mxu0
        %v5520 = vadd.f32 0.0, %v5519
        %v5521 = vpop.f32.mrf.mxu0
        %v5522 = vpop.f32.mrf.mxu0
        %v5523 = vadd.f32 0.0, %v5522
        %v5524 = vpop.f32.mrf.mxu0
        %5525 = vmatprep.mubr.bf16.mxu0 0
        %5526 = vmatmul.mubr.bf16.gmra.mxu0 %v5387
        %v5527 = vpop.f32.mrf.mxu0
        %v5528 = vadd.f32 0.0, %v5527
        %v5529 = vpop.f32.mrf.mxu0
        %v5530 = vpop.f32.mrf.mxu0
        %v5531 = vadd.f32 0.0, %v5530
        %v5532 = vpop.f32.mrf.mxu0
        %5533 = vmatprep.mubr.bf16.mxu0 0
        %5534 = vmatmul.mubr.bf16.gmra.mxu0 %v5388
        %v5535 = vpop.f32.mrf.mxu0
        %v5536 = vadd.f32 0.0, %v5535
        %v5537 = vpop.f32.mrf.mxu0
        %v5538 = vpop.f32.mrf.mxu0
        %v5539 = vadd.f32 0.0, %v5538
        %v5540 = vpop.f32.mrf.mxu0
        %5541 = vdwg.mxu0
        %v5542 = vmul.f32 %v5480, 1.442695
        %v5543 = vpow.pop %v5542
        %v5544 = vmul.f32 %v5483, 1.442695
        %v5545 = vpow.pop %v5544
        %v5546 = vmul.f32 %v5488, 1.442695
        %v5547 = vpow.pop %v5546
        %v5548 = vmul.f32 %v5491, 1.442695
        %v5549 = vpow.pop %v5548
        %v5550 = vmul.f32 %v5496, 1.442695
        %v5551 = vpow.pop %v5550
        %v5552 = vmul.f32 %v5499, 1.442695
        %v5553 = vpow.pop %v5552
        %v5554 = vmul.f32 %v5504, 1.442695
        %v5555 = vpow.pop %v5554
        %v5556 = vmul.f32 %v5507, 1.442695
        %v5557 = vpow.pop %v5556
        %v5558 = vmul.f32 %v5512, 1.442695
        %v5559 = vpow.pop %v5558
        %v5560 = vmul.f32 %v5515, 1.442695
        %v5561 = vpow.pop %v5560
        %v5562 = vmul.f32 %v5520, 1.442695
        %v5563 = vpow.pop %v5562
        %v5564 = vmul.f32 %v5523, 1.442695
        %v5565 = vpow.pop %v5564
        %v5566 = vmul.f32 %v5528, 1.442695
        %v5567 = vpow.pop %v5566
        %v5568 = vmul.f32 %v5531, 1.442695
        %v5569 = vpow.pop %v5568
        %v5570 = vmul.f32 %v5536, 1.442695
        %v5571 = vpow.pop %v5570
        %v5572 = vmul.f32 %v5539, 1.442695
        %v5573 = vpow.pop %v5572
        %v5574 = vmul.f32 %v5543, %v4763
        %v5575 = vmul.f32 %v5545, %v4764
        %v5576 = vmul.f32 %v5547, %v4765
        %v5577 = vmul.f32 %v5549, %v4766
        %v5578 = vmul.f32 %v5551, %v4767
        %v5579 = vmul.f32 %v5553, %v4768
        %v5580 = vmul.f32 %v5555, %v4769
        %v5581 = vmul.f32 %v5557, %v4770
        %v5582 = vmul.f32 %v5559, %v4771
        %v5583 = vmul.f32 %v5561, %v4772
        %v5584 = vmul.f32 %v5563, %v4773
        %v5585 = vmul.f32 %v5565, %v4774
        %v5586 = vmul.f32 %v5567, %v4775
        %v5587 = vmul.f32 %v5569, %v4776
        %v5588 = vmul.f32 %v5571, %v4777
        %v5589 = vmul.f32 %v5573, %v4778
        %5590 = vadd.xlane.f32.xlu0 %v5574
        %v5591 = vpop.xlane.xlu0 %5590
        %5592 = vadd.xlane.f32.xlu0 %v5575
        %v5593 = vpop.xlane.xlu0 %5592
        %5594 = vadd.xlane.f32.xlu0 %v5576
        %v5595 = vpop.xlane.xlu0 %5594
        %5596 = vadd.xlane.f32.xlu0 %v5577
        %v5597 = vpop.xlane.xlu0 %5596
        %5598 = vadd.xlane.f32.xlu0 %v5578
        %v5599 = vpop.xlane.xlu0 %5598
        %5600 = vadd.xlane.f32.xlu0 %v5579
        %v5601 = vpop.xlane.xlu0 %5600
        %5602 = vadd.xlane.f32.xlu0 %v5580
        %v5603 = vpop.xlane.xlu0 %5602
        %5604 = vadd.xlane.f32.xlu0 %v5581
        %v5605 = vpop.xlane.xlu0 %5604
        %5606 = vadd.xlane.f32.xlu0 %v5582
        %v5607 = vpop.xlane.xlu0 %5606
        %5608 = vadd.xlane.f32.xlu0 %v5583
        %v5609 = vpop.xlane.xlu0 %5608
        %5610 = vadd.xlane.f32.xlu0 %v5584
        %v5611 = vpop.xlane.xlu0 %5610
        %5612 = vadd.xlane.f32.xlu0 %v5585
        %v5613 = vpop.xlane.xlu0 %5612
        %5614 = vadd.xlane.f32.xlu0 %v5586
        %v5615 = vpop.xlane.xlu0 %5614
        %5616 = vadd.xlane.f32.xlu0 %v5587
        %v5617 = vpop.xlane.xlu0 %5616
        %5618 = vadd.xlane.f32.xlu0 %v5588
        %v5619 = vpop.xlane.xlu0 %5618
        %5620 = vadd.xlane.f32.xlu0 %v5589
        %v5621 = vpop.xlane.xlu0 %5620
        %v5622 = vadd.f32 %v5591, 1e-08
        %v5623 = vadd.f32 %v5593, 1e-08
        %v5624 = vadd.f32 %v5595, 1e-08
        %v5625 = vadd.f32 %v5597, 1e-08
        %v5626 = vadd.f32 %v5599, 1e-08
        %v5627 = vadd.f32 %v5601, 1e-08
        %v5628 = vadd.f32 %v5603, 1e-08
        %v5629 = vadd.f32 %v5605, 1e-08
        %v5630 = vadd.f32 %v5607, 1e-08
        %v5631 = vadd.f32 %v5609, 1e-08
        %v5632 = vadd.f32 %v5611, 1e-08
        %v5633 = vadd.f32 %v5613, 1e-08
        %v5634 = vadd.f32 %v5615, 1e-08
        %v5635 = vadd.f32 %v5617, 1e-08
        %v5636 = vadd.f32 %v5619, 1e-08
        %v5637 = vadd.f32 %v5621, 1e-08
        %v5638 = vrcp.pop %v5622
        %v5639 = vrcp.pop %v5623
        %v5640 = vrcp.pop %v5624
        %v5641 = vrcp.pop %v5625
        %v5642 = vrcp.pop %v5626
        %v5643 = vrcp.pop %v5627
        %v5644 = vrcp.pop %v5628
        %v5645 = vrcp.pop %v5629
        %v5646 = vrcp.pop %v5630
        %v5647 = vrcp.pop %v5631
        %v5648 = vrcp.pop %v5632
        %v5649 = vrcp.pop %v5633
        %v5650 = vrcp.pop %v5634
        %v5651 = vrcp.pop %v5635
        %v5652 = vrcp.pop %v5636
        %v5653 = vrcp.pop %v5637
        %v5654 = vmul.f32 %v5574, %v5638
        %v5655 = vmul.f32 %v5575, %v5639
        %v5656 = vmul.f32 %v5576, %v5640
        %v5657 = vmul.f32 %v5577, %v5641
        %v5658 = vmul.f32 %v5578, %v5642
        %v5659 = vmul.f32 %v5579, %v5643
        %v5660 = vmul.f32 %v5580, %v5644
        %v5661 = vmul.f32 %v5581, %v5645
        %v5662 = vmul.f32 %v5582, %v5646
        %v5663 = vmul.f32 %v5583, %v5647
        %v5664 = vmul.f32 %v5584, %v5648
        %v5665 = vmul.f32 %v5585, %v5649
        %v5666 = vmul.f32 %v5586, %v5650
        %v5667 = vmul.f32 %v5587, %v5651
        %v5668 = vmul.f32 %v5588, %v5652
        %v5669 = vmul.f32 %v5589, %v5653
        %v5670 = vpack.c.bf16 %v5655, %v5654
        %v5671 = vpack.c.bf16 %v5657, %v5656
        %v5672 = vpack.c.bf16 %v5659, %v5658
        %v5673 = vpack.c.bf16 %v5661, %v5660
        %v5674 = vpack.c.bf16 %v5663, %v5662
        %v5675 = vpack.c.bf16 %v5665, %v5664
        %v5676 = vpack.c.bf16 %v5667, %v5666
        %v5677 = vpack.c.bf16 %v5669, %v5668
        %v5678 = vld [vmem:[#allocation4 + $0x4] sm:$0xf]
        %v5679 = vld [vmem:[#allocation4 + $0x14] sm:$0xf]
        %v5680 = vld [vmem:[#allocation4 + $0x24] sm:$0xf]
        %v5681 = vld [vmem:[#allocation4 + $0x34] sm:$0xf]
        %v5682 = vld [vmem:[#allocation4 + $0x44] sm:$0xf]
        %v5683 = vld [vmem:[#allocation4 + $0x54] sm:$0xf]
        %v5684 = vld [vmem:[#allocation4 + $0x64] sm:$0xf]
        %v5685 = vld [vmem:[#allocation4 + $0x74] sm:$0xf]
        %v5686 = vld [vmem:[#allocation4 + $0x84] sm:$0xf]
        %v5687 = vld [vmem:[#allocation4 + $0x94] sm:$0xf]
        %v5688 = vld [vmem:[#allocation4 + $0xa4] sm:$0xf]
        %v5689 = vld [vmem:[#allocation4 + $0xb4] sm:$0xf]
        %v5690 = vld [vmem:[#allocation4 + $0xc4] sm:$0xf]
        %v5691 = vld [vmem:[#allocation4 + $0xd4] sm:$0xf]
        %v5692 = vld [vmem:[#allocation4 + $0xe4] sm:$0xf]
        %v5693 = vld [vmem:[#allocation4 + $0xf4] sm:$0xf]
        %v5710 = vunpack.c.l.b16 %v5678
        %v5711 = vunpack.c.l.b16 %v5679
        %v5712 = vunpack.c.l.b16 %v5680
        %v5713 = vunpack.c.l.b16 %v5681
        %v5714 = vunpack.c.l.b16 %v5682
        %v5715 = vunpack.c.l.b16 %v5683
        %v5716 = vunpack.c.l.b16 %v5684
        %v5717 = vunpack.c.l.b16 %v5685
        %v5718 = vunpack.c.l.b16 %v5686
        %v5719 = vunpack.c.l.b16 %v5687
        %v5720 = vunpack.c.l.b16 %v5688
        %v5721 = vunpack.c.l.b16 %v5689
        %v5722 = vunpack.c.l.b16 %v5690
        %v5723 = vunpack.c.l.b16 %v5691
        %v5724 = vunpack.c.l.b16 %v5692
        %v5725 = vunpack.c.l.b16 %v5693
        %v5726 = vpack.c.b16 %v5711, %v5710
        %v5727 = vpack.c.b16 %v5713, %v5712
        %v5728 = vpack.c.b16 %v5715, %v5714
        %v5729 = vpack.c.b16 %v5717, %v5716
        %v5730 = vpack.c.b16 %v5719, %v5718
        %v5731 = vpack.c.b16 %v5721, %v5720
        %v5732 = vpack.c.b16 %v5723, %v5722
        %v5733 = vpack.c.b16 %v5725, %v5724
        %5742 = vmatprep.subr.bf16.mxu0 0
        %5743 = vmatpush1.bf16.msra.mxu0 %v5733
        %5744 = vmatprep.subr.bf16.mxu0 0
        %5745 = vmatpush1.bf16.msra.mxu0 %v5732
        %5746 = vmatprep.subr.bf16.mxu0 0
        %5747 = vmatpush1.bf16.msra.mxu0 %v5731
        %5748 = vmatprep.subr.bf16.mxu0 0
        %5749 = vmatpush1.bf16.msra.mxu0 %v5730
        %5750 = vmatprep.subr.bf16.mxu0 0
        %5751 = vmatpush1.bf16.msra.mxu0 %v5729
        %5752 = vmatprep.subr.bf16.mxu0 0
        %5753 = vmatpush1.bf16.msra.mxu0 %v5728
        %5754 = vmatprep.subr.bf16.mxu0 0
        %5755 = vmatpush1.bf16.msra.mxu0 %v5727
        %5756 = vmatprep.subr.bf16.mxu0 0
        %5757 = vmatpush1.bf16.msra.mxu0 %v5726
        %5758 = vmatprep.subr.bf16.mxu0 0
        %5759 = vmatpush2.bf16.msra.mxu0 0
        %5760 = vmatprep.subr.bf16.mxu0 0
        %5761 = vmatpush2.bf16.msra.mxu0 0
        %5762 = vmatprep.subr.bf16.mxu0 0
        %5763 = vmatpush2.bf16.msra.mxu0 0
        %5764 = vmatprep.subr.bf16.mxu0 0
        %5765 = vmatpush2.bf16.msra.mxu0 0
        %5766 = vmatprep.subr.bf16.mxu0 0
        %5767 = vmatpush2.bf16.msra.mxu0 0
        %5768 = vmatprep.subr.bf16.mxu0 0
        %5769 = vmatpush2.bf16.msra.mxu0 0
        %5770 = vmatprep.subr.bf16.mxu0 0
        %5771 = vmatpush2.bf16.msra.mxu0 0
        %5772 = vmatprep.subr.bf16.mxu0 0
        %5773 = vmatpush2.bf16.msra.mxu0 0
        %5774 = vmatprep.mubr.bf16.mxu0 0
        %5775 = vmatmul.mubr.bf16.gmra.mxu0 %v5670
        %v5776 = vpop.f32.mrf.mxu0
        %v5777 = vadd.f32 0.0, %v5776
        %v5778 = vpop.f32.mrf.mxu0
        %v5779 = vpop.f32.mrf.mxu0
        %v5780 = vadd.f32 0.0, %v5779
        %v5781 = vpop.f32.mrf.mxu0
        %5782 = vmatprep.mubr.bf16.mxu0 0
        %5783 = vmatmul.mubr.bf16.gmra.mxu0 %v5671
        %v5784 = vpop.f32.mrf.mxu0
        %v5785 = vadd.f32 0.0, %v5784
        %v5786 = vpop.f32.mrf.mxu0
        %v5787 = vpop.f32.mrf.mxu0
        %v5788 = vadd.f32 0.0, %v5787
        %v5789 = vpop.f32.mrf.mxu0
        %5790 = vmatprep.mubr.bf16.mxu0 0
        %5791 = vmatmul.mubr.bf16.gmra.mxu0 %v5672
        %v5792 = vpop.f32.mrf.mxu0
        %v5793 = vadd.f32 0.0, %v5792
        %v5794 = vpop.f32.mrf.mxu0
        %v5795 = vpop.f32.mrf.mxu0
        %v5796 = vadd.f32 0.0, %v5795
        %v5797 = vpop.f32.mrf.mxu0
        %5798 = vmatprep.mubr.bf16.mxu0 0
        %5799 = vmatmul.mubr.bf16.gmra.mxu0 %v5673
        %v5800 = vpop.f32.mrf.mxu0
        %v5801 = vadd.f32 0.0, %v5800
        %v5802 = vpop.f32.mrf.mxu0
        %v5803 = vpop.f32.mrf.mxu0
        %v5804 = vadd.f32 0.0, %v5803
        %v5805 = vpop.f32.mrf.mxu0
        %5806 = vmatprep.mubr.bf16.mxu0 0
        %5807 = vmatmul.mubr.bf16.gmra.mxu0 %v5674
        %v5808 = vpop.f32.mrf.mxu0
        %v5809 = vadd.f32 0.0, %v5808
        %v5810 = vpop.f32.mrf.mxu0
        %v5811 = vpop.f32.mrf.mxu0
        %v5812 = vadd.f32 0.0, %v5811
        %v5813 = vpop.f32.mrf.mxu0
        %5814 = vmatprep.mubr.bf16.mxu0 0
        %5815 = vmatmul.mubr.bf16.gmra.mxu0 %v5675
        %v5816 = vpop.f32.mrf.mxu0
        %v5817 = vadd.f32 0.0, %v5816
        %v5818 = vpop.f32.mrf.mxu0
        %v5819 = vpop.f32.mrf.mxu0
        %v5820 = vadd.f32 0.0, %v5819
        %v5821 = vpop.f32.mrf.mxu0
        %5822 = vmatprep.mubr.bf16.mxu0 0
        %5823 = vmatmul.mubr.bf16.gmra.mxu0 %v5676
        %v5824 = vpop.f32.mrf.mxu0
        %v5825 = vadd.f32 0.0, %v5824
        %v5826 = vpop.f32.mrf.mxu0
        %v5827 = vpop.f32.mrf.mxu0
        %v5828 = vadd.f32 0.0, %v5827
        %v5829 = vpop.f32.mrf.mxu0
        %5830 = vmatprep.mubr.bf16.mxu0 0
        %5831 = vmatmul.mubr.bf16.gmra.mxu0 %v5677
        %v5832 = vpop.f32.mrf.mxu0
        %v5833 = vadd.f32 0.0, %v5832
        %v5834 = vpop.f32.mrf.mxu0
        %v5835 = vpop.f32.mrf.mxu0
        %v5836 = vadd.f32 0.0, %v5835
        %v5837 = vpop.f32.mrf.mxu0
        %5838 = vdwg.mxu0
        %5839 = vst [vmem:[#allocation5 + $0x8] sm:$0xff] %v5777
        %5840 = vst [vmem:[#allocation5 + $0x28] sm:$0xff] %v5780
        %5841 = vst [vmem:[#allocation5 + $0x48] sm:$0xff] %v5785
        %5842 = vst [vmem:[#allocation5 + $0x68] sm:$0xff] %v5788
        %5843 = vst [vmem:[#allocation5 + $0x88] sm:$0xff] %v5793
        %5844 = vst [vmem:[#allocation5 + $0xa8] sm:$0xff] %v5796
        %5845 = vst [vmem:[#allocation5 + $0xc8] sm:$0xff] %v5801
        %5846 = vst [vmem:[#allocation5 + $0xe8] sm:$0xff] %v5804
        %5847 = vst [vmem:[#allocation5 + $0x108] sm:$0xff] %v5809
        %5848 = vst [vmem:[#allocation5 + $0x128] sm:$0xff] %v5812
        %5849 = vst [vmem:[#allocation5 + $0x148] sm:$0xff] %v5817
        %5850 = vst [vmem:[#allocation5 + $0x168] sm:$0xff] %v5820
        %5851 = vst [vmem:[#allocation5 + $0x188] sm:$0xff] %v5825
        %5852 = vst [vmem:[#allocation5 + $0x1a8] sm:$0xff] %v5828
        %5853 = vst [vmem:[#allocation5 + $0x1c8] sm:$0xff] %v5833
        %5854 = vst [vmem:[#allocation5 + $0x1e8] sm:$0xff] %v5836
        %v5855 = vld [vmem:[#allocation2 + $0x8] sm:$0xf]
        %v5856 = vld [vmem:[#allocation2 + $0x18] sm:$0xf]
        %v5857 = vld [vmem:[#allocation2 + $0x28] sm:$0xf]
        %v5858 = vld [vmem:[#allocation2 + $0x38] sm:$0xf]
        %v5859 = vld [vmem:[#allocation2 + $0x48] sm:$0xf]
        %v5860 = vld [vmem:[#allocation2 + $0x58] sm:$0xf]
        %v5861 = vld [vmem:[#allocation2 + $0x68] sm:$0xf]
        %v5862 = vld [vmem:[#allocation2 + $0x78] sm:$0xf]
        %v5863 = vld [vmem:[#allocation2 + $0x88] sm:$0xf]
        %v5864 = vld [vmem:[#allocation2 + $0x98] sm:$0xf]
        %v5865 = vld [vmem:[#allocation2 + $0xa8] sm:$0xf]
        %v5866 = vld [vmem:[#allocation2 + $0xb8] sm:$0xf]
        %v5867 = vld [vmem:[#allocation2 + $0xc8] sm:$0xf]
        %v5868 = vld [vmem:[#allocation2 + $0xd8] sm:$0xf]
        %v5869 = vld [vmem:[#allocation2 + $0xe8] sm:$0xf]
        %v5870 = vld [vmem:[#allocation2 + $0xf8] sm:$0xf]
        %v5871 = vld [vmem:[#allocation3 + $0x8] sm:$0xf]
        %v5872 = vld [vmem:[#allocation3 + $0x18] sm:$0xf]
        %v5873 = vld [vmem:[#allocation3 + $0x28] sm:$0xf]
        %v5874 = vld [vmem:[#allocation3 + $0x38] sm:$0xf]
        %v5875 = vld [vmem:[#allocation3 + $0x48] sm:$0xf]
        %v5876 = vld [vmem:[#allocation3 + $0x58] sm:$0xf]
        %v5877 = vld [vmem:[#allocation3 + $0x68] sm:$0xf]
        %v5878 = vld [vmem:[#allocation3 + $0x78] sm:$0xf]
        %v5879 = vld [vmem:[#allocation3 + $0x88] sm:$0xf]
        %v5880 = vld [vmem:[#allocation3 + $0x98] sm:$0xf]
        %v5881 = vld [vmem:[#allocation3 + $0xa8] sm:$0xf]
        %v5882 = vld [vmem:[#allocation3 + $0xb8] sm:$0xf]
        %v5883 = vld [vmem:[#allocation3 + $0xc8] sm:$0xf]
        %v5884 = vld [vmem:[#allocation3 + $0xd8] sm:$0xf]
        %v5885 = vld [vmem:[#allocation3 + $0xe8] sm:$0xf]
        %v5886 = vld [vmem:[#allocation3 + $0xf8] sm:$0xf]
        %v5903 = vunpack.c.l.b16 %v5855
        %v5904 = vunpack.c.l.b16 %v5856
        %v5905 = vunpack.c.l.b16 %v5857
        %v5906 = vunpack.c.l.b16 %v5858
        %v5907 = vunpack.c.l.b16 %v5859
        %v5908 = vunpack.c.l.b16 %v5860
        %v5909 = vunpack.c.l.b16 %v5861
        %v5910 = vunpack.c.l.b16 %v5862
        %v5911 = vunpack.c.l.b16 %v5863
        %v5912 = vunpack.c.l.b16 %v5864
        %v5913 = vunpack.c.l.b16 %v5865
        %v5914 = vunpack.c.l.b16 %v5866
        %v5915 = vunpack.c.l.b16 %v5867
        %v5916 = vunpack.c.l.b16 %v5868
        %v5917 = vunpack.c.l.b16 %v5869
        %v5918 = vunpack.c.l.b16 %v5870
        %v5919 = vpack.c.b16 %v5904, %v5903
        %v5920 = vpack.c.b16 %v5906, %v5905
        %v5921 = vpack.c.b16 %v5908, %v5907
        %v5922 = vpack.c.b16 %v5910, %v5909
        %v5923 = vpack.c.b16 %v5912, %v5911
        %v5924 = vpack.c.b16 %v5914, %v5913
        %v5925 = vpack.c.b16 %v5916, %v5915
        %v5926 = vpack.c.b16 %v5918, %v5917
        %v5951 = vunpack.c.l.b16 %v5871
        %v5952 = vunpack.c.l.b16 %v5872
        %v5953 = vunpack.c.l.b16 %v5873
        %v5954 = vunpack.c.l.b16 %v5874
        %v5955 = vunpack.c.l.b16 %v5875
        %v5956 = vunpack.c.l.b16 %v5876
        %v5957 = vunpack.c.l.b16 %v5877
        %v5958 = vunpack.c.l.b16 %v5878
        %v5959 = vunpack.c.l.b16 %v5879
        %v5960 = vunpack.c.l.b16 %v5880
        %v5961 = vunpack.c.l.b16 %v5881
        %v5962 = vunpack.c.l.b16 %v5882
        %v5963 = vunpack.c.l.b16 %v5883
        %v5964 = vunpack.c.l.b16 %v5884
        %v5965 = vunpack.c.l.b16 %v5885
        %v5966 = vunpack.c.l.b16 %v5886
        %v5967 = vpack.c.b16 %v5952, %v5951
        %v5968 = vpack.c.b16 %v5954, %v5953
        %v5969 = vpack.c.b16 %v5956, %v5955
        %v5970 = vpack.c.b16 %v5958, %v5957
        %v5971 = vpack.c.b16 %v5960, %v5959
        %v5972 = vpack.c.b16 %v5962, %v5961
        %v5973 = vpack.c.b16 %v5964, %v5963
        %v5974 = vpack.c.b16 %v5966, %v5965
        %5983 = vmatprep.subr.bf16.mxu0 0
        %5984 = vmatpush1.bf16.xpose.msra.mxu0 %v5974
        %5985 = vmatprep.subr.bf16.mxu0 0
        %5986 = vmatpush1.bf16.xpose.msra.mxu0 %v5973
        %5987 = vmatprep.subr.bf16.mxu0 0
        %5988 = vmatpush1.bf16.xpose.msra.mxu0 %v5972
        %5989 = vmatprep.subr.bf16.mxu0 0
        %5990 = vmatpush1.bf16.xpose.msra.mxu0 %v5971
        %5991 = vmatprep.subr.bf16.mxu0 0
        %5992 = vmatpush1.bf16.xpose.msra.mxu0 %v5970
        %5993 = vmatprep.subr.bf16.mxu0 0
        %5994 = vmatpush1.bf16.xpose.msra.mxu0 %v5969
        %5995 = vmatprep.subr.bf16.mxu0 0
        %5996 = vmatpush1.bf16.xpose.msra.mxu0 %v5968
        %5997 = vmatprep.subr.bf16.mxu0 0
        %5998 = vmatpush1.bf16.xpose.msra.mxu0 %v5967
        %5999 = vmatprep.subr.bf16.mxu0 0
        %6000 = vmatpush2.bf16.xpose.msra.mxu0 0
        %6001 = vmatprep.subr.bf16.mxu0 0
        %6002 = vmatpush2.bf16.xpose.msra.mxu0 0
        %6003 = vmatprep.subr.bf16.mxu0 0
        %6004 = vmatpush2.bf16.xpose.msra.mxu0 0
        %6005 = vmatprep.subr.bf16.mxu0 0
        %6006 = vmatpush2.bf16.xpose.msra.mxu0 0
        %6007 = vmatprep.subr.bf16.mxu0 0
        %6008 = vmatpush2.bf16.xpose.msra.mxu0 0
        %6009 = vmatprep.subr.bf16.mxu0 0
        %6010 = vmatpush2.bf16.xpose.msra.mxu0 0
        %6011 = vmatprep.subr.bf16.mxu0 0
        %6012 = vmatpush2.bf16.xpose.msra.mxu0 0
        %6013 = vmatprep.subr.bf16.mxu0 0
        %6014 = vmatpush2.bf16.xpose.msra.mxu0 0
        %6015 = vmatprep.mubr.bf16.mxu0 0
        %6016 = vmatmul.mubr.bf16.gmra.mxu0 %v5919
        %v6017 = vpop.f32.mrf.mxu0
        %v6018 = vadd.f32 0.0, %v6017
        %v6019 = vpop.f32.mrf.mxu0
        %v6020 = vpop.f32.mrf.mxu0
        %v6021 = vadd.f32 0.0, %v6020
        %v6022 = vpop.f32.mrf.mxu0
        %6023 = vmatprep.mubr.bf16.mxu0 0
        %6024 = vmatmul.mubr.bf16.gmra.mxu0 %v5920
        %v6025 = vpop.f32.mrf.mxu0
        %v6026 = vadd.f32 0.0, %v6025
        %v6027 = vpop.f32.mrf.mxu0
        %v6028 = vpop.f32.mrf.mxu0
        %v6029 = vadd.f32 0.0, %v6028
        %v6030 = vpop.f32.mrf.mxu0
        %6031 = vmatprep.mubr.bf16.mxu0 0
        %6032 = vmatmul.mubr.bf16.gmra.mxu0 %v5921
        %v6033 = vpop.f32.mrf.mxu0
        %v6034 = vadd.f32 0.0, %v6033
        %v6035 = vpop.f32.mrf.mxu0
        %v6036 = vpop.f32.mrf.mxu0
        %v6037 = vadd.f32 0.0, %v6036
        %v6038 = vpop.f32.mrf.mxu0
        %6039 = vmatprep.mubr.bf16.mxu0 0
        %6040 = vmatmul.mubr.bf16.gmra.mxu0 %v5922
        %v6041 = vpop.f32.mrf.mxu0
        %v6042 = vadd.f32 0.0, %v6041
        %v6043 = vpop.f32.mrf.mxu0
        %v6044 = vpop.f32.mrf.mxu0
        %v6045 = vadd.f32 0.0, %v6044
        %v6046 = vpop.f32.mrf.mxu0
        %6047 = vmatprep.mubr.bf16.mxu0 0
        %6048 = vmatmul.mubr.bf16.gmra.mxu0 %v5923
        %v6049 = vpop.f32.mrf.mxu0
        %v6050 = vadd.f32 0.0, %v6049
        %v6051 = vpop.f32.mrf.mxu0
        %v6052 = vpop.f32.mrf.mxu0
        %v6053 = vadd.f32 0.0, %v6052
        %v6054 = vpop.f32.mrf.mxu0
        %6055 = vmatprep.mubr.bf16.mxu0 0
        %6056 = vmatmul.mubr.bf16.gmra.mxu0 %v5924
        %v6057 = vpop.f32.mrf.mxu0
        %v6058 = vadd.f32 0.0, %v6057
        %v6059 = vpop.f32.mrf.mxu0
        %v6060 = vpop.f32.mrf.mxu0
        %v6061 = vadd.f32 0.0, %v6060
        %v6062 = vpop.f32.mrf.mxu0
        %6063 = vmatprep.mubr.bf16.mxu0 0
        %6064 = vmatmul.mubr.bf16.gmra.mxu0 %v5925
        %v6065 = vpop.f32.mrf.mxu0
        %v6066 = vadd.f32 0.0, %v6065
        %v6067 = vpop.f32.mrf.mxu0
        %v6068 = vpop.f32.mrf.mxu0
        %v6069 = vadd.f32 0.0, %v6068
        %v6070 = vpop.f32.mrf.mxu0
        %6071 = vmatprep.mubr.bf16.mxu0 0
        %6072 = vmatmul.mubr.bf16.gmra.mxu0 %v5926
        %v6073 = vpop.f32.mrf.mxu0
        %v6074 = vadd.f32 0.0, %v6073
        %v6075 = vpop.f32.mrf.mxu0
        %v6076 = vpop.f32.mrf.mxu0
        %v6077 = vadd.f32 0.0, %v6076
        %v6078 = vpop.f32.mrf.mxu0
        %6079 = vdwg.mxu0
        %v6080 = vmul.f32 %v6018, 1.442695
        %v6081 = vpow.pop %v6080
        %v6082 = vmul.f32 %v6021, 1.442695
        %v6083 = vpow.pop %v6082
        %v6084 = vmul.f32 %v6026, 1.442695
        %v6085 = vpow.pop %v6084
        %v6086 = vmul.f32 %v6029, 1.442695
        %v6087 = vpow.pop %v6086
        %v6088 = vmul.f32 %v6034, 1.442695
        %v6089 = vpow.pop %v6088
        %v6090 = vmul.f32 %v6037, 1.442695
        %v6091 = vpow.pop %v6090
        %v6092 = vmul.f32 %v6042, 1.442695
        %v6093 = vpow.pop %v6092
        %v6094 = vmul.f32 %v6045, 1.442695
        %v6095 = vpow.pop %v6094
        %v6096 = vmul.f32 %v6050, 1.442695
        %v6097 = vpow.pop %v6096
        %v6098 = vmul.f32 %v6053, 1.442695
        %v6099 = vpow.pop %v6098
        %v6100 = vmul.f32 %v6058, 1.442695
        %v6101 = vpow.pop %v6100
        %v6102 = vmul.f32 %v6061, 1.442695
        %v6103 = vpow.pop %v6102
        %v6104 = vmul.f32 %v6066, 1.442695
        %v6105 = vpow.pop %v6104
        %v6106 = vmul.f32 %v6069, 1.442695
        %v6107 = vpow.pop %v6106
        %v6108 = vmul.f32 %v6074, 1.442695
        %v6109 = vpow.pop %v6108
        %v6110 = vmul.f32 %v6077, 1.442695
        %v6111 = vpow.pop %v6110
        %v6112 = vmul.f32 %v6081, %v4763
        %v6113 = vmul.f32 %v6083, %v4764
        %v6114 = vmul.f32 %v6085, %v4765
        %v6115 = vmul.f32 %v6087, %v4766
        %v6116 = vmul.f32 %v6089, %v4767
        %v6117 = vmul.f32 %v6091, %v4768
        %v6118 = vmul.f32 %v6093, %v4769
        %v6119 = vmul.f32 %v6095, %v4770
        %v6120 = vmul.f32 %v6097, %v4771
        %v6121 = vmul.f32 %v6099, %v4772
        %v6122 = vmul.f32 %v6101, %v4773
        %v6123 = vmul.f32 %v6103, %v4774
        %v6124 = vmul.f32 %v6105, %v4775
        %v6125 = vmul.f32 %v6107, %v4776
        %v6126 = vmul.f32 %v6109, %v4777
        %v6127 = vmul.f32 %v6111, %v4778
        %6128 = vadd.xlane.f32.xlu0 %v6112
        %v6129 = vpop.xlane.xlu0 %6128
        %6130 = vadd.xlane.f32.xlu0 %v6113
        %v6131 = vpop.xlane.xlu0 %6130
        %6132 = vadd.xlane.f32.xlu0 %v6114
        %v6133 = vpop.xlane.xlu0 %6132
        %6134 = vadd.xlane.f32.xlu0 %v6115
        %v6135 = vpop.xlane.xlu0 %6134
        %6136 = vadd.xlane.f32.xlu0 %v6116
        %v6137 = vpop.xlane.xlu0 %6136
        %6138 = vadd.xlane.f32.xlu0 %v6117
        %v6139 = vpop.xlane.xlu0 %6138
        %6140 = vadd.xlane.f32.xlu0 %v6118
        %v6141 = vpop.xlane.xlu0 %6140
        %6142 = vadd.xlane.f32.xlu0 %v6119
        %v6143 = vpop.xlane.xlu0 %6142
        %6144 = vadd.xlane.f32.xlu0 %v6120
        %v6145 = vpop.xlane.xlu0 %6144
        %6146 = vadd.xlane.f32.xlu0 %v6121
        %v6147 = vpop.xlane.xlu0 %6146
        %6148 = vadd.xlane.f32.xlu0 %v6122
        %v6149 = vpop.xlane.xlu0 %6148
        %6150 = vadd.xlane.f32.xlu0 %v6123
        %v6151 = vpop.xlane.xlu0 %6150
        %6152 = vadd.xlane.f32.xlu0 %v6124
        %v6153 = vpop.xlane.xlu0 %6152
        %6154 = vadd.xlane.f32.xlu0 %v6125
        %v6155 = vpop.xlane.xlu0 %6154
        %6156 = vadd.xlane.f32.xlu0 %v6126
        %v6157 = vpop.xlane.xlu0 %6156
        %6158 = vadd.xlane.f32.xlu0 %v6127
        %v6159 = vpop.xlane.xlu0 %6158
        %v6160 = vadd.f32 %v6129, 1e-08
        %v6161 = vadd.f32 %v6131, 1e-08
        %v6162 = vadd.f32 %v6133, 1e-08
        %v6163 = vadd.f32 %v6135, 1e-08
        %v6164 = vadd.f32 %v6137, 1e-08
        %v6165 = vadd.f32 %v6139, 1e-08
        %v6166 = vadd.f32 %v6141, 1e-08
        %v6167 = vadd.f32 %v6143, 1e-08
        %v6168 = vadd.f32 %v6145, 1e-08
        %v6169 = vadd.f32 %v6147, 1e-08
        %v6170 = vadd.f32 %v6149, 1e-08
        %v6171 = vadd.f32 %v6151, 1e-08
        %v6172 = vadd.f32 %v6153, 1e-08
        %v6173 = vadd.f32 %v6155, 1e-08
        %v6174 = vadd.f32 %v6157, 1e-08
        %v6175 = vadd.f32 %v6159, 1e-08
        %v6176 = vrcp.pop %v6160
        %v6177 = vrcp.pop %v6161
        %v6178 = vrcp.pop %v6162
        %v6179 = vrcp.pop %v6163
        %v6180 = vrcp.pop %v6164
        %v6181 = vrcp.pop %v6165
        %v6182 = vrcp.pop %v6166
        %v6183 = vrcp.pop %v6167
        %v6184 = vrcp.pop %v6168
        %v6185 = vrcp.pop %v6169
        %v6186 = vrcp.pop %v6170
        %v6187 = vrcp.pop %v6171
        %v6188 = vrcp.pop %v6172
        %v6189 = vrcp.pop %v6173
        %v6190 = vrcp.pop %v6174
        %v6191 = vrcp.pop %v6175
        %v6192 = vmul.f32 %v6112, %v6176
        %v6193 = vmul.f32 %v6113, %v6177
        %v6194 = vmul.f32 %v6114, %v6178
        %v6195 = vmul.f32 %v6115, %v6179
        %v6196 = vmul.f32 %v6116, %v6180
        %v6197 = vmul.f32 %v6117, %v6181
        %v6198 = vmul.f32 %v6118, %v6182
        %v6199 = vmul.f32 %v6119, %v6183
        %v6200 = vmul.f32 %v6120, %v6184
        %v6201 = vmul.f32 %v6121, %v6185
        %v6202 = vmul.f32 %v6122, %v6186
        %v6203 = vmul.f32 %v6123, %v6187
        %v6204 = vmul.f32 %v6124, %v6188
        %v6205 = vmul.f32 %v6125, %v6189
        %v6206 = vmul.f32 %v6126, %v6190
        %v6207 = vmul.f32 %v6127, %v6191
        %v6208 = vpack.c.bf16 %v6193, %v6192
        %v6209 = vpack.c.bf16 %v6195, %v6194
        %v6210 = vpack.c.bf16 %v6197, %v6196
        %v6211 = vpack.c.bf16 %v6199, %v6198
        %v6212 = vpack.c.bf16 %v6201, %v6200
        %v6213 = vpack.c.bf16 %v6203, %v6202
        %v6214 = vpack.c.bf16 %v6205, %v6204
        %v6215 = vpack.c.bf16 %v6207, %v6206
        %v6216 = vld [vmem:[#allocation4 + $0x8] sm:$0xf]
        %v6217 = vld [vmem:[#allocation4 + $0x18] sm:$0xf]
        %v6218 = vld [vmem:[#allocation4 + $0x28] sm:$0xf]
        %v6219 = vld [vmem:[#allocation4 + $0x38] sm:$0xf]
        %v6220 = vld [vmem:[#allocation4 + $0x48] sm:$0xf]
        %v6221 = vld [vmem:[#allocation4 + $0x58] sm:$0xf]
        %v6222 = vld [vmem:[#allocation4 + $0x68] sm:$0xf]
        %v6223 = vld [vmem:[#allocation4 + $0x78] sm:$0xf]
        %v6224 = vld [vmem:[#allocation4 + $0x88] sm:$0xf]
        %v6225 = vld [vmem:[#allocation4 + $0x98] sm:$0xf]
        %v6226 = vld [vmem:[#allocation4 + $0xa8] sm:$0xf]
        %v6227 = vld [vmem:[#allocation4 + $0xb8] sm:$0xf]
        %v6228 = vld [vmem:[#allocation4 + $0xc8] sm:$0xf]
        %v6229 = vld [vmem:[#allocation4 + $0xd8] sm:$0xf]
        %v6230 = vld [vmem:[#allocation4 + $0xe8] sm:$0xf]
        %v6231 = vld [vmem:[#allocation4 + $0xf8] sm:$0xf]
        %v6248 = vunpack.c.l.b16 %v6216
        %v6249 = vunpack.c.l.b16 %v6217
        %v6250 = vunpack.c.l.b16 %v6218
        %v6251 = vunpack.c.l.b16 %v6219
        %v6252 = vunpack.c.l.b16 %v6220
        %v6253 = vunpack.c.l.b16 %v6221
        %v6254 = vunpack.c.l.b16 %v6222
        %v6255 = vunpack.c.l.b16 %v6223
        %v6256 = vunpack.c.l.b16 %v6224
        %v6257 = vunpack.c.l.b16 %v6225
        %v6258 = vunpack.c.l.b16 %v6226
        %v6259 = vunpack.c.l.b16 %v6227
        %v6260 = vunpack.c.l.b16 %v6228
        %v6261 = vunpack.c.l.b16 %v6229
        %v6262 = vunpack.c.l.b16 %v6230
        %v6263 = vunpack.c.l.b16 %v6231
        %v6264 = vpack.c.b16 %v6249, %v6248
        %v6265 = vpack.c.b16 %v6251, %v6250
        %v6266 = vpack.c.b16 %v6253, %v6252
        %v6267 = vpack.c.b16 %v6255, %v6254
        %v6268 = vpack.c.b16 %v6257, %v6256
        %v6269 = vpack.c.b16 %v6259, %v6258
        %v6270 = vpack.c.b16 %v6261, %v6260
        %v6271 = vpack.c.b16 %v6263, %v6262
        %6280 = vmatprep.subr.bf16.mxu0 0
        %6281 = vmatpush1.bf16.msra.mxu0 %v6271
        %6282 = vmatprep.subr.bf16.mxu0 0
        %6283 = vmatpush1.bf16.msra.mxu0 %v6270
        %6284 = vmatprep.subr.bf16.mxu0 0
        %6285 = vmatpush1.bf16.msra.mxu0 %v6269
        %6286 = vmatprep.subr.bf16.mxu0 0
        %6287 = vmatpush1.bf16.msra.mxu0 %v6268
        %6288 = vmatprep.subr.bf16.mxu0 0
        %6289 = vmatpush1.bf16.msra.mxu0 %v6267
        %6290 = vmatprep.subr.bf16.mxu0 0
        %6291 = vmatpush1.bf16.msra.mxu0 %v6266
        %6292 = vmatprep.subr.bf16.mxu0 0
        %6293 = vmatpush1.bf16.msra.mxu0 %v6265
        %6294 = vmatprep.subr.bf16.mxu0 0
        %6295 = vmatpush1.bf16.msra.mxu0 %v6264
        %6296 = vmatprep.subr.bf16.mxu0 0
        %6297 = vmatpush2.bf16.msra.mxu0 0
        %6298 = vmatprep.subr.bf16.mxu0 0
        %6299 = vmatpush2.bf16.msra.mxu0 0
        %6300 = vmatprep.subr.bf16.mxu0 0
        %6301 = vmatpush2.bf16.msra.mxu0 0
        %6302 = vmatprep.subr.bf16.mxu0 0
        %6303 = vmatpush2.bf16.msra.mxu0 0
        %6304 = vmatprep.subr.bf16.mxu0 0
        %6305 = vmatpush2.bf16.msra.mxu0 0
        %6306 = vmatprep.subr.bf16.mxu0 0
        %6307 = vmatpush2.bf16.msra.mxu0 0
        %6308 = vmatprep.subr.bf16.mxu0 0
        %6309 = vmatpush2.bf16.msra.mxu0 0
        %6310 = vmatprep.subr.bf16.mxu0 0
        %6311 = vmatpush2.bf16.msra.mxu0 0
        %6312 = vmatprep.mubr.bf16.mxu0 0
        %6313 = vmatmul.mubr.bf16.gmra.mxu0 %v6208
        %v6314 = vpop.f32.mrf.mxu0
        %v6315 = vadd.f32 0.0, %v6314
        %v6316 = vpop.f32.mrf.mxu0
        %v6317 = vpop.f32.mrf.mxu0
        %v6318 = vadd.f32 0.0, %v6317
        %v6319 = vpop.f32.mrf.mxu0
        %6320 = vmatprep.mubr.bf16.mxu0 0
        %6321 = vmatmul.mubr.bf16.gmra.mxu0 %v6209
        %v6322 = vpop.f32.mrf.mxu0
        %v6323 = vadd.f32 0.0, %v6322
        %v6324 = vpop.f32.mrf.mxu0
        %v6325 = vpop.f32.mrf.mxu0
        %v6326 = vadd.f32 0.0, %v6325
        %v6327 = vpop.f32.mrf.mxu0
        %6328 = vmatprep.mubr.bf16.mxu0 0
        %6329 = vmatmul.mubr.bf16.gmra.mxu0 %v6210
        %v6330 = vpop.f32.mrf.mxu0
        %v6331 = vadd.f32 0.0, %v6330
        %v6332 = vpop.f32.mrf.mxu0
        %v6333 = vpop.f32.mrf.mxu0
        %v6334 = vadd.f32 0.0, %v6333
        %v6335 = vpop.f32.mrf.mxu0
        %6336 = vmatprep.mubr.bf16.mxu0 0
        %6337 = vmatmul.mubr.bf16.gmra.mxu0 %v6211
        %v6338 = vpop.f32.mrf.mxu0
        %v6339 = vadd.f32 0.0, %v6338
        %v6340 = vpop.f32.mrf.mxu0
        %v6341 = vpop.f32.mrf.mxu0
        %v6342 = vadd.f32 0.0, %v6341
        %v6343 = vpop.f32.mrf.mxu0
        %6344 = vmatprep.mubr.bf16.mxu0 0
        %6345 = vmatmul.mubr.bf16.gmra.mxu0 %v6212
        %v6346 = vpop.f32.mrf.mxu0
        %v6347 = vadd.f32 0.0, %v6346
        %v6348 = vpop.f32.mrf.mxu0
        %v6349 = vpop.f32.mrf.mxu0
        %v6350 = vadd.f32 0.0, %v6349
        %v6351 = vpop.f32.mrf.mxu0
        %6352 = vmatprep.mubr.bf16.mxu0 0
        %6353 = vmatmul.mubr.bf16.gmra.mxu0 %v6213
        %v6354 = vpop.f32.mrf.mxu0
        %v6355 = vadd.f32 0.0, %v6354
        %v6356 = vpop.f32.mrf.mxu0
        %v6357 = vpop.f32.mrf.mxu0
        %v6358 = vadd.f32 0.0, %v6357
        %v6359 = vpop.f32.mrf.mxu0
        %6360 = vmatprep.mubr.bf16.mxu0 0
        %6361 = vmatmul.mubr.bf16.gmra.mxu0 %v6214
        %v6362 = vpop.f32.mrf.mxu0
        %v6363 = vadd.f32 0.0, %v6362
        %v6364 = vpop.f32.mrf.mxu0
        %v6365 = vpop.f32.mrf.mxu0
        %v6366 = vadd.f32 0.0, %v6365
        %v6367 = vpop.f32.mrf.mxu0
        %6368 = vmatprep.mubr.bf16.mxu0 0
        %6369 = vmatmul.mubr.bf16.gmra.mxu0 %v6215
        %v6370 = vpop.f32.mrf.mxu0
        %v6371 = vadd.f32 0.0, %v6370
        %v6372 = vpop.f32.mrf.mxu0
        %v6373 = vpop.f32.mrf.mxu0
        %v6374 = vadd.f32 0.0, %v6373
        %v6375 = vpop.f32.mrf.mxu0
        %6376 = vdwg.mxu0
        %6377 = vst [vmem:[#allocation5 + $0x10] sm:$0xff] %v6315
        %6378 = vst [vmem:[#allocation5 + $0x30] sm:$0xff] %v6318
        %6379 = vst [vmem:[#allocation5 + $0x50] sm:$0xff] %v6323
        %6380 = vst [vmem:[#allocation5 + $0x70] sm:$0xff] %v6326
        %6381 = vst [vmem:[#allocation5 + $0x90] sm:$0xff] %v6331
        %6382 = vst [vmem:[#allocation5 + $0xb0] sm:$0xff] %v6334
        %6383 = vst [vmem:[#allocation5 + $0xd0] sm:$0xff] %v6339
        %6384 = vst [vmem:[#allocation5 + $0xf0] sm:$0xff] %v6342
        %6385 = vst [vmem:[#allocation5 + $0x110] sm:$0xff] %v6347
        %6386 = vst [vmem:[#allocation5 + $0x130] sm:$0xff] %v6350
        %6387 = vst [vmem:[#allocation5 + $0x150] sm:$0xff] %v6355
        %6388 = vst [vmem:[#allocation5 + $0x170] sm:$0xff] %v6358
        %6389 = vst [vmem:[#allocation5 + $0x190] sm:$0xff] %v6363
        %6390 = vst [vmem:[#allocation5 + $0x1b0] sm:$0xff] %v6366
        %6391 = vst [vmem:[#allocation5 + $0x1d0] sm:$0xff] %v6371
        %6392 = vst [vmem:[#allocation5 + $0x1f0] sm:$0xff] %v6374
        %v6393 = vld [vmem:[#allocation2 + $0xc] sm:$0xf]
        %v6394 = vld [vmem:[#allocation2 + $0x1c] sm:$0xf]
        %v6395 = vld [vmem:[#allocation2 + $0x2c] sm:$0xf]
        %v6396 = vld [vmem:[#allocation2 + $0x3c] sm:$0xf]
        %v6397 = vld [vmem:[#allocation2 + $0x4c] sm:$0xf]
        %v6398 = vld [vmem:[#allocation2 + $0x5c] sm:$0xf]
        %v6399 = vld [vmem:[#allocation2 + $0x6c] sm:$0xf]
        %v6400 = vld [vmem:[#allocation2 + $0x7c] sm:$0xf]
        %v6401 = vld [vmem:[#allocation2 + $0x8c] sm:$0xf]
        %v6402 = vld [vmem:[#allocation2 + $0x9c] sm:$0xf]
        %v6403 = vld [vmem:[#allocation2 + $0xac] sm:$0xf]
        %v6404 = vld [vmem:[#allocation2 + $0xbc] sm:$0xf]
        %v6405 = vld [vmem:[#allocation2 + $0xcc] sm:$0xf]
        %v6406 = vld [vmem:[#allocation2 + $0xdc] sm:$0xf]
        %v6407 = vld [vmem:[#allocation2 + $0xec] sm:$0xf]
        %v6408 = vld [vmem:[#allocation2 + $0xfc] sm:$0xf]
        %v6409 = vld [vmem:[#allocation3 + $0xc] sm:$0xf]
        %v6410 = vld [vmem:[#allocation3 + $0x1c] sm:$0xf]
        %v6411 = vld [vmem:[#allocation3 + $0x2c] sm:$0xf]
        %v6412 = vld [vmem:[#allocation3 + $0x3c] sm:$0xf]
        %v6413 = vld [vmem:[#allocation3 + $0x4c] sm:$0xf]
        %v6414 = vld [vmem:[#allocation3 + $0x5c] sm:$0xf]
        %v6415 = vld [vmem:[#allocation3 + $0x6c] sm:$0xf]
        %v6416 = vld [vmem:[#allocation3 + $0x7c] sm:$0xf]
        %v6417 = vld [vmem:[#allocation3 + $0x8c] sm:$0xf]
        %v6418 = vld [vmem:[#allocation3 + $0x9c] sm:$0xf]
        %v6419 = vld [vmem:[#allocation3 + $0xac] sm:$0xf]
        %v6420 = vld [vmem:[#allocation3 + $0xbc] sm:$0xf]
        %v6421 = vld [vmem:[#allocation3 + $0xcc] sm:$0xf]
        %v6422 = vld [vmem:[#allocation3 + $0xdc] sm:$0xf]
        %v6423 = vld [vmem:[#allocation3 + $0xec] sm:$0xf]
        %v6424 = vld [vmem:[#allocation3 + $0xfc] sm:$0xf]
        %v6441 = vunpack.c.l.b16 %v6393
        %v6442 = vunpack.c.l.b16 %v6394
        %v6443 = vunpack.c.l.b16 %v6395
        %v6444 = vunpack.c.l.b16 %v6396
        %v6445 = vunpack.c.l.b16 %v6397
        %v6446 = vunpack.c.l.b16 %v6398
        %v6447 = vunpack.c.l.b16 %v6399
        %v6448 = vunpack.c.l.b16 %v6400
        %v6449 = vunpack.c.l.b16 %v6401
        %v6450 = vunpack.c.l.b16 %v6402
        %v6451 = vunpack.c.l.b16 %v6403
        %v6452 = vunpack.c.l.b16 %v6404
        %v6453 = vunpack.c.l.b16 %v6405
        %v6454 = vunpack.c.l.b16 %v6406
        %v6455 = vunpack.c.l.b16 %v6407
        %v6456 = vunpack.c.l.b16 %v6408
        %v6457 = vpack.c.b16 %v6442, %v6441
        %v6458 = vpack.c.b16 %v6444, %v6443
        %v6459 = vpack.c.b16 %v6446, %v6445
        %v6460 = vpack.c.b16 %v6448, %v6447
        %v6461 = vpack.c.b16 %v6450, %v6449
        %v6462 = vpack.c.b16 %v6452, %v6451
        %v6463 = vpack.c.b16 %v6454, %v6453
        %v6464 = vpack.c.b16 %v6456, %v6455
        %v6489 = vunpack.c.l.b16 %v6409
        %v6490 = vunpack.c.l.b16 %v6410
        %v6491 = vunpack.c.l.b16 %v6411
        %v6492 = vunpack.c.l.b16 %v6412
        %v6493 = vunpack.c.l.b16 %v6413
        %v6494 = vunpack.c.l.b16 %v6414
        %v6495 = vunpack.c.l.b16 %v6415
        %v6496 = vunpack.c.l.b16 %v6416
        %v6497 = vunpack.c.l.b16 %v6417
        %v6498 = vunpack.c.l.b16 %v6418
        %v6499 = vunpack.c.l.b16 %v6419
        %v6500 = vunpack.c.l.b16 %v6420
        %v6501 = vunpack.c.l.b16 %v6421
        %v6502 = vunpack.c.l.b16 %v6422
        %v6503 = vunpack.c.l.b16 %v6423
        %v6504 = vunpack.c.l.b16 %v6424
        %v6505 = vpack.c.b16 %v6490, %v6489
        %v6506 = vpack.c.b16 %v6492, %v6491
        %v6507 = vpack.c.b16 %v6494, %v6493
        %v6508 = vpack.c.b16 %v6496, %v6495
        %v6509 = vpack.c.b16 %v6498, %v6497
        %v6510 = vpack.c.b16 %v6500, %v6499
        %v6511 = vpack.c.b16 %v6502, %v6501
        %v6512 = vpack.c.b16 %v6504, %v6503
        %6521 = vmatprep.subr.bf16.mxu0 0
        %6522 = vmatpush1.bf16.xpose.msra.mxu0 %v6512
        %6523 = vmatprep.subr.bf16.mxu0 0
        %6524 = vmatpush1.bf16.xpose.msra.mxu0 %v6511
        %6525 = vmatprep.subr.bf16.mxu0 0
        %6526 = vmatpush1.bf16.xpose.msra.mxu0 %v6510
        %6527 = vmatprep.subr.bf16.mxu0 0
        %6528 = vmatpush1.bf16.xpose.msra.mxu0 %v6509
        %6529 = vmatprep.subr.bf16.mxu0 0
        %6530 = vmatpush1.bf16.xpose.msra.mxu0 %v6508
        %6531 = vmatprep.subr.bf16.mxu0 0
        %6532 = vmatpush1.bf16.xpose.msra.mxu0 %v6507
        %6533 = vmatprep.subr.bf16.mxu0 0
        %6534 = vmatpush1.bf16.xpose.msra.mxu0 %v6506
        %6535 = vmatprep.subr.bf16.mxu0 0
        %6536 = vmatpush1.bf16.xpose.msra.mxu0 %v6505
        %6537 = vmatprep.subr.bf16.mxu0 0
        %6538 = vmatpush2.bf16.xpose.msra.mxu0 0
        %6539 = vmatprep.subr.bf16.mxu0 0
        %6540 = vmatpush2.bf16.xpose.msra.mxu0 0
        %6541 = vmatprep.subr.bf16.mxu0 0
        %6542 = vmatpush2.bf16.xpose.msra.mxu0 0
        %6543 = vmatprep.subr.bf16.mxu0 0
        %6544 = vmatpush2.bf16.xpose.msra.mxu0 0
        %6545 = vmatprep.subr.bf16.mxu0 0
        %6546 = vmatpush2.bf16.xpose.msra.mxu0 0
        %6547 = vmatprep.subr.bf16.mxu0 0
        %6548 = vmatpush2.bf16.xpose.msra.mxu0 0
        %6549 = vmatprep.subr.bf16.mxu0 0
        %6550 = vmatpush2.bf16.xpose.msra.mxu0 0
        %6551 = vmatprep.subr.bf16.mxu0 0
        %6552 = vmatpush2.bf16.xpose.msra.mxu0 0
        %6553 = vmatprep.mubr.bf16.mxu0 0
        %6554 = vmatmul.mubr.bf16.gmra.mxu0 %v6457
        %v6555 = vpop.f32.mrf.mxu0
        %v6556 = vadd.f32 0.0, %v6555
        %v6557 = vpop.f32.mrf.mxu0
        %v6558 = vpop.f32.mrf.mxu0
        %v6559 = vadd.f32 0.0, %v6558
        %v6560 = vpop.f32.mrf.mxu0
        %6561 = vmatprep.mubr.bf16.mxu0 0
        %6562 = vmatmul.mubr.bf16.gmra.mxu0 %v6458
        %v6563 = vpop.f32.mrf.mxu0
        %v6564 = vadd.f32 0.0, %v6563
        %v6565 = vpop.f32.mrf.mxu0
        %v6566 = vpop.f32.mrf.mxu0
        %v6567 = vadd.f32 0.0, %v6566
        %v6568 = vpop.f32.mrf.mxu0
        %6569 = vmatprep.mubr.bf16.mxu0 0
        %6570 = vmatmul.mubr.bf16.gmra.mxu0 %v6459
        %v6571 = vpop.f32.mrf.mxu0
        %v6572 = vadd.f32 0.0, %v6571
        %v6573 = vpop.f32.mrf.mxu0
        %v6574 = vpop.f32.mrf.mxu0
        %v6575 = vadd.f32 0.0, %v6574
        %v6576 = vpop.f32.mrf.mxu0
        %6577 = vmatprep.mubr.bf16.mxu0 0
        %6578 = vmatmul.mubr.bf16.gmra.mxu0 %v6460
        %v6579 = vpop.f32.mrf.mxu0
        %v6580 = vadd.f32 0.0, %v6579
        %v6581 = vpop.f32.mrf.mxu0
        %v6582 = vpop.f32.mrf.mxu0
        %v6583 = vadd.f32 0.0, %v6582
        %v6584 = vpop.f32.mrf.mxu0
        %6585 = vmatprep.mubr.bf16.mxu0 0
        %6586 = vmatmul.mubr.bf16.gmra.mxu0 %v6461
        %v6587 = vpop.f32.mrf.mxu0
        %v6588 = vadd.f32 0.0, %v6587
        %v6589 = vpop.f32.mrf.mxu0
        %v6590 = vpop.f32.mrf.mxu0
        %v6591 = vadd.f32 0.0, %v6590
        %v6592 = vpop.f32.mrf.mxu0
        %6593 = vmatprep.mubr.bf16.mxu0 0
        %6594 = vmatmul.mubr.bf16.gmra.mxu0 %v6462
        %v6595 = vpop.f32.mrf.mxu0
        %v6596 = vadd.f32 0.0, %v6595
        %v6597 = vpop.f32.mrf.mxu0
        %v6598 = vpop.f32.mrf.mxu0
        %v6599 = vadd.f32 0.0, %v6598
        %v6600 = vpop.f32.mrf.mxu0
        %6601 = vmatprep.mubr.bf16.mxu0 0
        %6602 = vmatmul.mubr.bf16.gmra.mxu0 %v6463
        %v6603 = vpop.f32.mrf.mxu0
        %v6604 = vadd.f32 0.0, %v6603
        %v6605 = vpop.f32.mrf.mxu0
        %v6606 = vpop.f32.mrf.mxu0
        %v6607 = vadd.f32 0.0, %v6606
        %v6608 = vpop.f32.mrf.mxu0
        %6609 = vmatprep.mubr.bf16.mxu0 0
        %6610 = vmatmul.mubr.bf16.gmra.mxu0 %v6464
        %v6611 = vpop.f32.mrf.mxu0
        %v6612 = vadd.f32 0.0, %v6611
        %v6613 = vpop.f32.mrf.mxu0
        %v6614 = vpop.f32.mrf.mxu0
        %v6615 = vadd.f32 0.0, %v6614
        %v6616 = vpop.f32.mrf.mxu0
        %6617 = vdwg.mxu0
        %v6618 = vmul.f32 %v6556, 1.442695
        %v6619 = vpow.pop %v6618
        %v6620 = vmul.f32 %v6559, 1.442695
        %v6621 = vpow.pop %v6620
        %v6622 = vmul.f32 %v6564, 1.442695
        %v6623 = vpow.pop %v6622
        %v6624 = vmul.f32 %v6567, 1.442695
        %v6625 = vpow.pop %v6624
        %v6626 = vmul.f32 %v6572, 1.442695
        %v6627 = vpow.pop %v6626
        %v6628 = vmul.f32 %v6575, 1.442695
        %v6629 = vpow.pop %v6628
        %v6630 = vmul.f32 %v6580, 1.442695
        %v6631 = vpow.pop %v6630
        %v6632 = vmul.f32 %v6583, 1.442695
        %v6633 = vpow.pop %v6632
        %v6634 = vmul.f32 %v6588, 1.442695
        %v6635 = vpow.pop %v6634
        %v6636 = vmul.f32 %v6591, 1.442695
        %v6637 = vpow.pop %v6636
        %v6638 = vmul.f32 %v6596, 1.442695
        %v6639 = vpow.pop %v6638
        %v6640 = vmul.f32 %v6599, 1.442695
        %v6641 = vpow.pop %v6640
        %v6642 = vmul.f32 %v6604, 1.442695
        %v6643 = vpow.pop %v6642
        %v6644 = vmul.f32 %v6607, 1.442695
        %v6645 = vpow.pop %v6644
        %v6646 = vmul.f32 %v6612, 1.442695
        %v6647 = vpow.pop %v6646
        %v6648 = vmul.f32 %v6615, 1.442695
        %v6649 = vpow.pop %v6648
        %v6650 = vmul.f32 %v6619, %v4763
        %v6651 = vmul.f32 %v6621, %v4764
        %v6652 = vmul.f32 %v6623, %v4765
        %v6653 = vmul.f32 %v6625, %v4766
        %v6654 = vmul.f32 %v6627, %v4767
        %v6655 = vmul.f32 %v6629, %v4768
        %v6656 = vmul.f32 %v6631, %v4769
        %v6657 = vmul.f32 %v6633, %v4770
        %v6658 = vmul.f32 %v6635, %v4771
        %v6659 = vmul.f32 %v6637, %v4772
        %v6660 = vmul.f32 %v6639, %v4773
        %v6661 = vmul.f32 %v6641, %v4774
        %v6662 = vmul.f32 %v6643, %v4775
        %v6663 = vmul.f32 %v6645, %v4776
        %v6664 = vmul.f32 %v6647, %v4777
        %v6665 = vmul.f32 %v6649, %v4778
        %6666 = vadd.xlane.f32.xlu0 %v6650
        %v6667 = vpop.xlane.xlu0 %6666
        %6668 = vadd.xlane.f32.xlu0 %v6651
        %v6669 = vpop.xlane.xlu0 %6668
        %6670 = vadd.xlane.f32.xlu0 %v6652
        %v6671 = vpop.xlane.xlu0 %6670
        %6672 = vadd.xlane.f32.xlu0 %v6653
        %v6673 = vpop.xlane.xlu0 %6672
        %6674 = vadd.xlane.f32.xlu0 %v6654
        %v6675 = vpop.xlane.xlu0 %6674
        %6676 = vadd.xlane.f32.xlu0 %v6655
        %v6677 = vpop.xlane.xlu0 %6676
        %6678 = vadd.xlane.f32.xlu0 %v6656
        %v6679 = vpop.xlane.xlu0 %6678
        %6680 = vadd.xlane.f32.xlu0 %v6657
        %v6681 = vpop.xlane.xlu0 %6680
        %6682 = vadd.xlane.f32.xlu0 %v6658
        %v6683 = vpop.xlane.xlu0 %6682
        %6684 = vadd.xlane.f32.xlu0 %v6659
        %v6685 = vpop.xlane.xlu0 %6684
        %6686 = vadd.xlane.f32.xlu0 %v6660
        %v6687 = vpop.xlane.xlu0 %6686
        %6688 = vadd.xlane.f32.xlu0 %v6661
        %v6689 = vpop.xlane.xlu0 %6688
        %6690 = vadd.xlane.f32.xlu0 %v6662
        %v6691 = vpop.xlane.xlu0 %6690
        %6692 = vadd.xlane.f32.xlu0 %v6663
        %v6693 = vpop.xlane.xlu0 %6692
        %6694 = vadd.xlane.f32.xlu0 %v6664
        %v6695 = vpop.xlane.xlu0 %6694
        %6696 = vadd.xlane.f32.xlu0 %v6665
        %v6697 = vpop.xlane.xlu0 %6696
        %v6698 = vadd.f32 %v6667, 1e-08
        %v6699 = vadd.f32 %v6669, 1e-08
        %v6700 = vadd.f32 %v6671, 1e-08
        %v6701 = vadd.f32 %v6673, 1e-08
        %v6702 = vadd.f32 %v6675, 1e-08
        %v6703 = vadd.f32 %v6677, 1e-08
        %v6704 = vadd.f32 %v6679, 1e-08
        %v6705 = vadd.f32 %v6681, 1e-08
        %v6706 = vadd.f32 %v6683, 1e-08
        %v6707 = vadd.f32 %v6685, 1e-08
        %v6708 = vadd.f32 %v6687, 1e-08
        %v6709 = vadd.f32 %v6689, 1e-08
        %v6710 = vadd.f32 %v6691, 1e-08
        %v6711 = vadd.f32 %v6693, 1e-08
        %v6712 = vadd.f32 %v6695, 1e-08
        %v6713 = vadd.f32 %v6697, 1e-08
        %v6714 = vrcp.pop %v6698
        %v6715 = vrcp.pop %v6699
        %v6716 = vrcp.pop %v6700
        %v6717 = vrcp.pop %v6701
        %v6718 = vrcp.pop %v6702
        %v6719 = vrcp.pop %v6703
        %v6720 = vrcp.pop %v6704
        %v6721 = vrcp.pop %v6705
        %v6722 = vrcp.pop %v6706
        %v6723 = vrcp.pop %v6707
        %v6724 = vrcp.pop %v6708
        %v6725 = vrcp.pop %v6709
        %v6726 = vrcp.pop %v6710
        %v6727 = vrcp.pop %v6711
        %v6728 = vrcp.pop %v6712
        %v6729 = vrcp.pop %v6713
        %v6730 = vmul.f32 %v6650, %v6714
        %v6731 = vmul.f32 %v6651, %v6715
        %v6732 = vmul.f32 %v6652, %v6716
        %v6733 = vmul.f32 %v6653, %v6717
        %v6734 = vmul.f32 %v6654, %v6718
        %v6735 = vmul.f32 %v6655, %v6719
        %v6736 = vmul.f32 %v6656, %v6720
        %v6737 = vmul.f32 %v6657, %v6721
        %v6738 = vmul.f32 %v6658, %v6722
        %v6739 = vmul.f32 %v6659, %v6723
        %v6740 = vmul.f32 %v6660, %v6724
        %v6741 = vmul.f32 %v6661, %v6725
        %v6742 = vmul.f32 %v6662, %v6726
        %v6743 = vmul.f32 %v6663, %v6727
        %v6744 = vmul.f32 %v6664, %v6728
        %v6745 = vmul.f32 %v6665, %v6729
        %v6746 = vpack.c.bf16 %v6731, %v6730
        %v6747 = vpack.c.bf16 %v6733, %v6732
        %v6748 = vpack.c.bf16 %v6735, %v6734
        %v6749 = vpack.c.bf16 %v6737, %v6736
        %v6750 = vpack.c.bf16 %v6739, %v6738
        %v6751 = vpack.c.bf16 %v6741, %v6740
        %v6752 = vpack.c.bf16 %v6743, %v6742
        %v6753 = vpack.c.bf16 %v6745, %v6744
        %v6754 = vld [vmem:[#allocation4 + $0xc] sm:$0xf]
        %v6755 = vld [vmem:[#allocation4 + $0x1c] sm:$0xf]
        %v6756 = vld [vmem:[#allocation4 + $0x2c] sm:$0xf]
        %v6757 = vld [vmem:[#allocation4 + $0x3c] sm:$0xf]
        %v6758 = vld [vmem:[#allocation4 + $0x4c] sm:$0xf]
        %v6759 = vld [vmem:[#allocation4 + $0x5c] sm:$0xf]
        %v6760 = vld [vmem:[#allocation4 + $0x6c] sm:$0xf]
        %v6761 = vld [vmem:[#allocation4 + $0x7c] sm:$0xf]
        %v6762 = vld [vmem:[#allocation4 + $0x8c] sm:$0xf]
        %v6763 = vld [vmem:[#allocation4 + $0x9c] sm:$0xf]
        %v6764 = vld [vmem:[#allocation4 + $0xac] sm:$0xf]
        %v6765 = vld [vmem:[#allocation4 + $0xbc] sm:$0xf]
        %v6766 = vld [vmem:[#allocation4 + $0xcc] sm:$0xf]
        %v6767 = vld [vmem:[#allocation4 + $0xdc] sm:$0xf]
        %v6768 = vld [vmem:[#allocation4 + $0xec] sm:$0xf]
        %v6769 = vld [vmem:[#allocation4 + $0xfc] sm:$0xf]
        %v6786 = vunpack.c.l.b16 %v6754
        %v6787 = vunpack.c.l.b16 %v6755
        %v6788 = vunpack.c.l.b16 %v6756
        %v6789 = vunpack.c.l.b16 %v6757
        %v6790 = vunpack.c.l.b16 %v6758
        %v6791 = vunpack.c.l.b16 %v6759
        %v6792 = vunpack.c.l.b16 %v6760
        %v6793 = vunpack.c.l.b16 %v6761
        %v6794 = vunpack.c.l.b16 %v6762
        %v6795 = vunpack.c.l.b16 %v6763
        %v6796 = vunpack.c.l.b16 %v6764
        %v6797 = vunpack.c.l.b16 %v6765
        %v6798 = vunpack.c.l.b16 %v6766
        %v6799 = vunpack.c.l.b16 %v6767
        %v6800 = vunpack.c.l.b16 %v6768
        %v6801 = vunpack.c.l.b16 %v6769
        %v6802 = vpack.c.b16 %v6787, %v6786
        %v6803 = vpack.c.b16 %v6789, %v6788
        %v6804 = vpack.c.b16 %v6791, %v6790
        %v6805 = vpack.c.b16 %v6793, %v6792
        %v6806 = vpack.c.b16 %v6795, %v6794
        %v6807 = vpack.c.b16 %v6797, %v6796
        %v6808 = vpack.c.b16 %v6799, %v6798
        %v6809 = vpack.c.b16 %v6801, %v6800
        %6818 = vmatprep.subr.bf16.mxu0 0
        %6819 = vmatpush1.bf16.msra.mxu0 %v6809
        %6820 = vmatprep.subr.bf16.mxu0 0
        %6821 = vmatpush1.bf16.msra.mxu0 %v6808
        %6822 = vmatprep.subr.bf16.mxu0 0
        %6823 = vmatpush1.bf16.msra.mxu0 %v6807
        %6824 = vmatprep.subr.bf16.mxu0 0
        %6825 = vmatpush1.bf16.msra.mxu0 %v6806
        %6826 = vmatprep.subr.bf16.mxu0 0
        %6827 = vmatpush1.bf16.msra.mxu0 %v6805
        %6828 = vmatprep.subr.bf16.mxu0 0
        %6829 = vmatpush1.bf16.msra.mxu0 %v6804
        %6830 = vmatprep.subr.bf16.mxu0 0
        %6831 = vmatpush1.bf16.msra.mxu0 %v6803
        %6832 = vmatprep.subr.bf16.mxu0 0
        %6833 = vmatpush1.bf16.msra.mxu0 %v6802
        %6834 = vmatprep.subr.bf16.mxu0 0
        %6835 = vmatpush2.bf16.msra.mxu0 0
        %6836 = vmatprep.subr.bf16.mxu0 0
        %6837 = vmatpush2.bf16.msra.mxu0 0
        %6838 = vmatprep.subr.bf16.mxu0 0
        %6839 = vmatpush2.bf16.msra.mxu0 0
        %6840 = vmatprep.subr.bf16.mxu0 0
        %6841 = vmatpush2.bf16.msra.mxu0 0
        %6842 = vmatprep.subr.bf16.mxu0 0
        %6843 = vmatpush2.bf16.msra.mxu0 0
        %6844 = vmatprep.subr.bf16.mxu0 0
        %6845 = vmatpush2.bf16.msra.mxu0 0
        %6846 = vmatprep.subr.bf16.mxu0 0
        %6847 = vmatpush2.bf16.msra.mxu0 0
        %6848 = vmatprep.subr.bf16.mxu0 0
        %6849 = vmatpush2.bf16.msra.mxu0 0
        %6850 = vmatprep.mubr.bf16.mxu0 0
        %6851 = vmatmul.mubr.bf16.gmra.mxu0 %v6746
        %v6852 = vpop.f32.mrf.mxu0
        %v6853 = vadd.f32 0.0, %v6852
        %v6854 = vpop.f32.mrf.mxu0
        %v6855 = vpop.f32.mrf.mxu0
        %v6856 = vadd.f32 0.0, %v6855
        %v6857 = vpop.f32.mrf.mxu0
        %6858 = vmatprep.mubr.bf16.mxu0 0
        %6859 = vmatmul.mubr.bf16.gmra.mxu0 %v6747
        %v6860 = vpop.f32.mrf.mxu0
        %v6861 = vadd.f32 0.0, %v6860
        %v6862 = vpop.f32.mrf.mxu0
        %v6863 = vpop.f32.mrf.mxu0
        %v6864 = vadd.f32 0.0, %v6863
        %v6865 = vpop.f32.mrf.mxu0
        %6866 = vmatprep.mubr.bf16.mxu0 0
        %6867 = vmatmul.mubr.bf16.gmra.mxu0 %v6748
        %v6868 = vpop.f32.mrf.mxu0
        %v6869 = vadd.f32 0.0, %v6868
        %v6870 = vpop.f32.mrf.mxu0
        %v6871 = vpop.f32.mrf.mxu0
        %v6872 = vadd.f32 0.0, %v6871
        %v6873 = vpop.f32.mrf.mxu0
        %6874 = vmatprep.mubr.bf16.mxu0 0
        %6875 = vmatmul.mubr.bf16.gmra.mxu0 %v6749
        %v6876 = vpop.f32.mrf.mxu0
        %v6877 = vadd.f32 0.0, %v6876
        %v6878 = vpop.f32.mrf.mxu0
        %v6879 = vpop.f32.mrf.mxu0
        %v6880 = vadd.f32 0.0, %v6879
        %v6881 = vpop.f32.mrf.mxu0
        %6882 = vmatprep.mubr.bf16.mxu0 0
        %6883 = vmatmul.mubr.bf16.gmra.mxu0 %v6750
        %v6884 = vpop.f32.mrf.mxu0
        %v6885 = vadd.f32 0.0, %v6884
        %v6886 = vpop.f32.mrf.mxu0
        %v6887 = vpop.f32.mrf.mxu0
        %v6888 = vadd.f32 0.0, %v6887
        %v6889 = vpop.f32.mrf.mxu0
        %6890 = vmatprep.mubr.bf16.mxu0 0
        %6891 = vmatmul.mubr.bf16.gmra.mxu0 %v6751
        %v6892 = vpop.f32.mrf.mxu0
        %v6893 = vadd.f32 0.0, %v6892
        %v6894 = vpop.f32.mrf.mxu0
        %v6895 = vpop.f32.mrf.mxu0
        %v6896 = vadd.f32 0.0, %v6895
        %v6897 = vpop.f32.mrf.mxu0
        %6898 = vmatprep.mubr.bf16.mxu0 0
        %6899 = vmatmul.mubr.bf16.gmra.mxu0 %v6752
        %v6900 = vpop.f32.mrf.mxu0
        %v6901 = vadd.f32 0.0, %v6900
        %v6902 = vpop.f32.mrf.mxu0
        %v6903 = vpop.f32.mrf.mxu0
        %v6904 = vadd.f32 0.0, %v6903
        %v6905 = vpop.f32.mrf.mxu0
        %6906 = vmatprep.mubr.bf16.mxu0 0
        %6907 = vmatmul.mubr.bf16.gmra.mxu0 %v6753
        %v6908 = vpop.f32.mrf.mxu0
        %v6909 = vadd.f32 0.0, %v6908
        %v6910 = vpop.f32.mrf.mxu0
        %v6911 = vpop.f32.mrf.mxu0
        %v6912 = vadd.f32 0.0, %v6911
        %v6913 = vpop.f32.mrf.mxu0
        %6914 = vdwg.mxu0
        %6915 = vst [vmem:[#allocation5 + $0x18] sm:$0xff] %v6853
        %6916 = vst [vmem:[#allocation5 + $0x38] sm:$0xff] %v6856
        %6917 = vst [vmem:[#allocation5 + $0x58] sm:$0xff] %v6861
        %6918 = vst [vmem:[#allocation5 + $0x78] sm:$0xff] %v6864
        %6919 = vst [vmem:[#allocation5 + $0x98] sm:$0xff] %v6869
        %6920 = vst [vmem:[#allocation5 + $0xb8] sm:$0xff] %v6872
        %6921 = vst [vmem:[#allocation5 + $0xd8] sm:$0xff] %v6877
        %6922 = vst [vmem:[#allocation5 + $0xf8] sm:$0xff] %v6880
        %6923 = vst [vmem:[#allocation5 + $0x118] sm:$0xff] %v6885
        %6924 = vst [vmem:[#allocation5 + $0x138] sm:$0xff] %v6888
        %6925 = vst [vmem:[#allocation5 + $0x158] sm:$0xff] %v6893
        %6926 = vst [vmem:[#allocation5 + $0x178] sm:$0xff] %v6896
        %6927 = vst [vmem:[#allocation5 + $0x198] sm:$0xff] %v6901
        %6928 = vst [vmem:[#allocation5 + $0x1b8] sm:$0xff] %v6904
        %6929 = vst [vmem:[#allocation5 + $0x1d8] sm:$0xff] %v6909
        %6930 = vst [vmem:[#allocation5 + $0x1f8] sm:$0xff] %v6912
        %v6931 = vld [vmem:[#allocation5] sm:$0xff]
        %v6932 = vld [vmem:[#allocation5 + $0x8] sm:$0xff]
        %v6933 = vld [vmem:[#allocation5 + $0x10] sm:$0xff]
        %v6934 = vld [vmem:[#allocation5 + $0x18] sm:$0xff]
        %v6935 = vld [vmem:[#allocation5 + $0x20] sm:$0xff]
        %v6936 = vld [vmem:[#allocation5 + $0x28] sm:$0xff]
        %v6937 = vld [vmem:[#allocation5 + $0x30] sm:$0xff]
        %v6938 = vld [vmem:[#allocation5 + $0x38] sm:$0xff]
        %v6939 = vld [vmem:[#allocation5 + $0x40] sm:$0xff]
        %v6940 = vld [vmem:[#allocation5 + $0x48] sm:$0xff]
        %v6941 = vld [vmem:[#allocation5 + $0x50] sm:$0xff]
        %v6942 = vld [vmem:[#allocation5 + $0x58] sm:$0xff]
        %v6943 = vld [vmem:[#allocation5 + $0x60] sm:$0xff]
        %v6944 = vld [vmem:[#allocation5 + $0x68] sm:$0xff]
        %v6945 = vld [vmem:[#allocation5 + $0x70] sm:$0xff]
        %v6946 = vld [vmem:[#allocation5 + $0x78] sm:$0xff]
        %v6947 = vld [vmem:[#allocation5 + $0x80] sm:$0xff]
        %v6948 = vld [vmem:[#allocation5 + $0x88] sm:$0xff]
        %v6949 = vld [vmem:[#allocation5 + $0x90] sm:$0xff]
        %v6950 = vld [vmem:[#allocation5 + $0x98] sm:$0xff]
        %v6951 = vld [vmem:[#allocation5 + $0xa0] sm:$0xff]
        %v6952 = vld [vmem:[#allocation5 + $0xa8] sm:$0xff]
        %v6953 = vld [vmem:[#allocation5 + $0xb0] sm:$0xff]
        %v6954 = vld [vmem:[#allocation5 + $0xb8] sm:$0xff]
        %v6955 = vld [vmem:[#allocation5 + $0xc0] sm:$0xff]
        %v6956 = vld [vmem:[#allocation5 + $0xc8] sm:$0xff]
        %v6957 = vld [vmem:[#allocation5 + $0xd0] sm:$0xff]
        %v6958 = vld [vmem:[#allocation5 + $0xd8] sm:$0xff]
        %v6959 = vld [vmem:[#allocation5 + $0xe0] sm:$0xff]
        %v6960 = vld [vmem:[#allocation5 + $0xe8] sm:$0xff]
        %v6961 = vld [vmem:[#allocation5 + $0xf0] sm:$0xff]
        %v6962 = vld [vmem:[#allocation5 + $0xf8] sm:$0xff]
        %v6963 = vld [vmem:[#allocation5 + $0x100] sm:$0xff]
        %v6964 = vld [vmem:[#allocation5 + $0x108] sm:$0xff]
        %v6965 = vld [vmem:[#allocation5 + $0x110] sm:$0xff]
        %v6966 = vld [vmem:[#allocation5 + $0x118] sm:$0xff]
        %v6967 = vld [vmem:[#allocation5 + $0x120] sm:$0xff]
        %v6968 = vld [vmem:[#allocation5 + $0x128] sm:$0xff]
        %v6969 = vld [vmem:[#allocation5 + $0x130] sm:$0xff]
        %v6970 = vld [vmem:[#allocation5 + $0x138] sm:$0xff]
        %v6971 = vld [vmem:[#allocation5 + $0x140] sm:$0xff]
        %v6972 = vld [vmem:[#allocation5 + $0x148] sm:$0xff]
        %v6973 = vld [vmem:[#allocation5 + $0x150] sm:$0xff]
        %v6974 = vld [vmem:[#allocation5 + $0x158] sm:$0xff]
        %v6975 = vld [vmem:[#allocation5 + $0x160] sm:$0xff]
        %v6976 = vld [vmem:[#allocation5 + $0x168] sm:$0xff]
        %v6977 = vld [vmem:[#allocation5 + $0x170] sm:$0xff]
        %v6978 = vld [vmem:[#allocation5 + $0x178] sm:$0xff]
        %v6979 = vld [vmem:[#allocation5 + $0x180] sm:$0xff]
        %v6980 = vld [vmem:[#allocation5 + $0x188] sm:$0xff]
        %v6981 = vld [vmem:[#allocation5 + $0x190] sm:$0xff]
        %v6982 = vld [vmem:[#allocation5 + $0x198] sm:$0xff]
        %v6983 = vld [vmem:[#allocation5 + $0x1a0] sm:$0xff]
        %v6984 = vld [vmem:[#allocation5 + $0x1a8] sm:$0xff]
        %v6985 = vld [vmem:[#allocation5 + $0x1b0] sm:$0xff]
        %v6986 = vld [vmem:[#allocation5 + $0x1b8] sm:$0xff]
        %v6987 = vld [vmem:[#allocation5 + $0x1c0] sm:$0xff]
        %v6988 = vld [vmem:[#allocation5 + $0x1c8] sm:$0xff]
        %v6989 = vld [vmem:[#allocation5 + $0x1d0] sm:$0xff]
        %v6990 = vld [vmem:[#allocation5 + $0x1d8] sm:$0xff]
        %v6991 = vld [vmem:[#allocation5 + $0x1e0] sm:$0xff]
        %v6992 = vld [vmem:[#allocation5 + $0x1e8] sm:$0xff]
        %v6993 = vld [vmem:[#allocation5 + $0x1f0] sm:$0xff]
        %v6994 = vld [vmem:[#allocation5 + $0x1f8] sm:$0xff]
        %v6995 = vadd.f32 %v6931, %v6932
        %v6996 = vadd.f32 %v6995, %v6933
        %v6997 = vadd.f32 %v6996, %v6934
        %6998 = vadd.xlane.f32.xlu0 %v6997
        %v6999 = vpop.xlane.xlu0 %6998
        %v7000 = vadd.f32 %v6935, %v6936
        %v7001 = vadd.f32 %v7000, %v6937
        %v7002 = vadd.f32 %v7001, %v6938
        %7003 = vadd.xlane.f32.xlu0 %v7002
        %v7004 = vpop.xlane.xlu0 %7003
        %v7005 = vadd.f32 %v6939, %v6940
        %v7006 = vadd.f32 %v7005, %v6941
        %v7007 = vadd.f32 %v7006, %v6942
        %7008 = vadd.xlane.f32.xlu0 %v7007
        %v7009 = vpop.xlane.xlu0 %7008
        %v7010 = vadd.f32 %v6943, %v6944
        %v7011 = vadd.f32 %v7010, %v6945
        %v7012 = vadd.f32 %v7011, %v6946
        %7013 = vadd.xlane.f32.xlu0 %v7012
        %v7014 = vpop.xlane.xlu0 %7013
        %v7015 = vadd.f32 %v6947, %v6948
        %v7016 = vadd.f32 %v7015, %v6949
        %v7017 = vadd.f32 %v7016, %v6950
        %7018 = vadd.xlane.f32.xlu0 %v7017
        %v7019 = vpop.xlane.xlu0 %7018
        %v7020 = vadd.f32 %v6951, %v6952
        %v7021 = vadd.f32 %v7020, %v6953
        %v7022 = vadd.f32 %v7021, %v6954
        %7023 = vadd.xlane.f32.xlu0 %v7022
        %v7024 = vpop.xlane.xlu0 %7023
        %v7025 = vadd.f32 %v6955, %v6956
        %v7026 = vadd.f32 %v7025, %v6957
        %v7027 = vadd.f32 %v7026, %v6958
        %7028 = vadd.xlane.f32.xlu0 %v7027
        %v7029 = vpop.xlane.xlu0 %7028
        %v7030 = vadd.f32 %v6959, %v6960
        %v7031 = vadd.f32 %v7030, %v6961
        %v7032 = vadd.f32 %v7031, %v6962
        %7033 = vadd.xlane.f32.xlu0 %v7032
        %v7034 = vpop.xlane.xlu0 %7033
        %v7035 = vadd.f32 %v6963, %v6964
        %v7036 = vadd.f32 %v7035, %v6965
        %v7037 = vadd.f32 %v7036, %v6966
        %7038 = vadd.xlane.f32.xlu0 %v7037
        %v7039 = vpop.xlane.xlu0 %7038
        %v7040 = vadd.f32 %v6967, %v6968
        %v7041 = vadd.f32 %v7040, %v6969
        %v7042 = vadd.f32 %v7041, %v6970
        %7043 = vadd.xlane.f32.xlu0 %v7042
        %v7044 = vpop.xlane.xlu0 %7043
        %v7045 = vadd.f32 %v6971, %v6972
        %v7046 = vadd.f32 %v7045, %v6973
        %v7047 = vadd.f32 %v7046, %v6974
        %7048 = vadd.xlane.f32.xlu0 %v7047
        %v7049 = vpop.xlane.xlu0 %7048
        %v7050 = vadd.f32 %v6975, %v6976
        %v7051 = vadd.f32 %v7050, %v6977
        %v7052 = vadd.f32 %v7051, %v6978
        %7053 = vadd.xlane.f32.xlu0 %v7052
        %v7054 = vpop.xlane.xlu0 %7053
        %v7055 = vadd.f32 %v6979, %v6980
        %v7056 = vadd.f32 %v7055, %v6981
        %v7057 = vadd.f32 %v7056, %v6982
        %7058 = vadd.xlane.f32.xlu0 %v7057
        %v7059 = vpop.xlane.xlu0 %7058
        %v7060 = vadd.f32 %v6983, %v6984
        %v7061 = vadd.f32 %v7060, %v6985
        %v7062 = vadd.f32 %v7061, %v6986
        %7063 = vadd.xlane.f32.xlu0 %v7062
        %v7064 = vpop.xlane.xlu0 %7063
        %v7065 = vadd.f32 %v6987, %v6988
        %v7066 = vadd.f32 %v7065, %v6989
        %v7067 = vadd.f32 %v7066, %v6990
        %7068 = vadd.xlane.f32.xlu0 %v7067
        %v7069 = vpop.xlane.xlu0 %7068
        %v7070 = vadd.f32 %v6991, %v6992
        %v7071 = vadd.f32 %v7070, %v6993
        %v7072 = vadd.f32 %v7071, %v6994
        %7073 = vadd.xlane.f32.xlu0 %v7072
        %v7074 = vpop.xlane.xlu0 %7073
        %v7075 = vmul.f32 %v6931, %v6931
        %v7076 = vmul.f32 %v6932, %v6932
        %v7077 = vmul.f32 %v6933, %v6933
        %v7078 = vmul.f32 %v6934, %v6934
        %v7079 = vmul.f32 %v6935, %v6935
        %v7080 = vmul.f32 %v6936, %v6936
        %v7081 = vmul.f32 %v6937, %v6937
        %v7082 = vmul.f32 %v6938, %v6938
        %v7083 = vmul.f32 %v6939, %v6939
        %v7084 = vmul.f32 %v6940, %v6940
        %v7085 = vmul.f32 %v6941, %v6941
        %v7086 = vmul.f32 %v6942, %v6942
        %v7087 = vmul.f32 %v6943, %v6943
        %v7088 = vmul.f32 %v6944, %v6944
        %v7089 = vmul.f32 %v6945, %v6945
        %v7090 = vmul.f32 %v6946, %v6946
        %v7091 = vmul.f32 %v6947, %v6947
        %v7092 = vmul.f32 %v6948, %v6948
        %v7093 = vmul.f32 %v6949, %v6949
        %v7094 = vmul.f32 %v6950, %v6950
        %v7095 = vmul.f32 %v6951, %v6951
        %v7096 = vmul.f32 %v6952, %v6952
        %v7097 = vmul.f32 %v6953, %v6953
        %v7098 = vmul.f32 %v6954, %v6954
        %v7099 = vmul.f32 %v6955, %v6955
        %v7100 = vmul.f32 %v6956, %v6956
        %v7101 = vmul.f32 %v6957, %v6957
        %v7102 = vmul.f32 %v6958, %v6958
        %v7103 = vmul.f32 %v6959, %v6959
        %v7104 = vmul.f32 %v6960, %v6960
        %v7105 = vmul.f32 %v6961, %v6961
        %v7106 = vmul.f32 %v6962, %v6962
        %v7107 = vmul.f32 %v6963, %v6963
        %v7108 = vmul.f32 %v6964, %v6964
        %v7109 = vmul.f32 %v6965, %v6965
        %v7110 = vmul.f32 %v6966, %v6966
        %v7111 = vmul.f32 %v6967, %v6967
        %v7112 = vmul.f32 %v6968, %v6968
        %v7113 = vmul.f32 %v6969, %v6969
        %v7114 = vmul.f32 %v6970, %v6970
        %v7115 = vmul.f32 %v6971, %v6971
        %v7116 = vmul.f32 %v6972, %v6972
        %v7117 = vmul.f32 %v6973, %v6973
        %v7118 = vmul.f32 %v6974, %v6974
        %v7119 = vmul.f32 %v6975, %v6975
        %v7120 = vmul.f32 %v6976, %v6976
        %v7121 = vmul.f32 %v6977, %v6977
        %v7122 = vmul.f32 %v6978, %v6978
        %v7123 = vmul.f32 %v6979, %v6979
        %v7124 = vmul.f32 %v6980, %v6980
        %v7125 = vmul.f32 %v6981, %v6981
        %v7126 = vmul.f32 %v6982, %v6982
        %v7127 = vmul.f32 %v6983, %v6983
        %v7128 = vmul.f32 %v6984, %v6984
        %v7129 = vmul.f32 %v6985, %v6985
        %v7130 = vmul.f32 %v6986, %v6986
        %v7131 = vmul.f32 %v6987, %v6987
        %v7132 = vmul.f32 %v6988, %v6988
        %v7133 = vmul.f32 %v6989, %v6989
        %v7134 = vmul.f32 %v6990, %v6990
        %v7135 = vmul.f32 %v6991, %v6991
        %v7136 = vmul.f32 %v6992, %v6992
        %v7137 = vmul.f32 %v6993, %v6993
        %v7138 = vmul.f32 %v6994, %v6994
        %v7139 = vadd.f32 %v7075, %v7076
        %v7140 = vadd.f32 %v7139, %v7077
        %v7141 = vadd.f32 %v7140, %v7078
        %7142 = vadd.xlane.f32.xlu0 %v7141
        %v7143 = vpop.xlane.xlu0 %7142
        %v7144 = vadd.f32 %v7079, %v7080
        %v7145 = vadd.f32 %v7144, %v7081
        %v7146 = vadd.f32 %v7145, %v7082
        %7147 = vadd.xlane.f32.xlu0 %v7146
        %v7148 = vpop.xlane.xlu0 %7147
        %v7149 = vadd.f32 %v7083, %v7084
        %v7150 = vadd.f32 %v7149, %v7085
        %v7151 = vadd.f32 %v7150, %v7086
        %7152 = vadd.xlane.f32.xlu0 %v7151
        %v7153 = vpop.xlane.xlu0 %7152
        %v7154 = vadd.f32 %v7087, %v7088
        %v7155 = vadd.f32 %v7154, %v7089
        %v7156 = vadd.f32 %v7155, %v7090
        %7157 = vadd.xlane.f32.xlu0 %v7156
        %v7158 = vpop.xlane.xlu0 %7157
        %v7159 = vadd.f32 %v7091, %v7092
        %v7160 = vadd.f32 %v7159, %v7093
        %v7161 = vadd.f32 %v7160, %v7094
        %7162 = vadd.xlane.f32.xlu0 %v7161
        %v7163 = vpop.xlane.xlu0 %7162
        %v7164 = vadd.f32 %v7095, %v7096
        %v7165 = vadd.f32 %v7164, %v7097
        %v7166 = vadd.f32 %v7165, %v7098
        %7167 = vadd.xlane.f32.xlu0 %v7166
        %v7168 = vpop.xlane.xlu0 %7167
        %v7169 = vadd.f32 %v7099, %v7100
        %v7170 = vadd.f32 %v7169, %v7101
        %v7171 = vadd.f32 %v7170, %v7102
        %7172 = vadd.xlane.f32.xlu0 %v7171
        %v7173 = vpop.xlane.xlu0 %7172
        %v7174 = vadd.f32 %v7103, %v7104
        %v7175 = vadd.f32 %v7174, %v7105
        %v7176 = vadd.f32 %v7175, %v7106
        %7177 = vadd.xlane.f32.xlu0 %v7176
        %v7178 = vpop.xlane.xlu0 %7177
        %v7179 = vadd.f32 %v7107, %v7108
        %v7180 = vadd.f32 %v7179, %v7109
        %v7181 = vadd.f32 %v7180, %v7110
        %7182 = vadd.xlane.f32.xlu0 %v7181
        %v7183 = vpop.xlane.xlu0 %7182
        %v7184 = vadd.f32 %v7111, %v7112
        %v7185 = vadd.f32 %v7184, %v7113
        %v7186 = vadd.f32 %v7185, %v7114
        %7187 = vadd.xlane.f32.xlu0 %v7186
        %v7188 = vpop.xlane.xlu0 %7187
        %v7189 = vadd.f32 %v7115, %v7116
        %v7190 = vadd.f32 %v7189, %v7117
        %v7191 = vadd.f32 %v7190, %v7118
        %7192 = vadd.xlane.f32.xlu0 %v7191
        %v7193 = vpop.xlane.xlu0 %7192
        %v7194 = vadd.f32 %v7119, %v7120
        %v7195 = vadd.f32 %v7194, %v7121
        %v7196 = vadd.f32 %v7195, %v7122
        %7197 = vadd.xlane.f32.xlu0 %v7196
        %v7198 = vpop.xlane.xlu0 %7197
        %v7199 = vadd.f32 %v7123, %v7124
        %v7200 = vadd.f32 %v7199, %v7125
        %v7201 = vadd.f32 %v7200, %v7126
        %7202 = vadd.xlane.f32.xlu0 %v7201
        %v7203 = vpop.xlane.xlu0 %7202
        %v7204 = vadd.f32 %v7127, %v7128
        %v7205 = vadd.f32 %v7204, %v7129
        %v7206 = vadd.f32 %v7205, %v7130
        %7207 = vadd.xlane.f32.xlu0 %v7206
        %v7208 = vpop.xlane.xlu0 %7207
        %v7209 = vadd.f32 %v7131, %v7132
        %v7210 = vadd.f32 %v7209, %v7133
        %v7211 = vadd.f32 %v7210, %v7134
        %7212 = vadd.xlane.f32.xlu0 %v7211
        %v7213 = vpop.xlane.xlu0 %7212
        %v7214 = vadd.f32 %v7135, %v7136
        %v7215 = vadd.f32 %v7214, %v7137
        %v7216 = vadd.f32 %v7215, %v7138
        %7217 = vadd.xlane.f32.xlu0 %v7216
        %v7218 = vpop.xlane.xlu0 %7217
        %v7219 = vmul.f32 %v6999, 0.0025
        %v7220 = vmul.f32 %v7004, 0.0025
        %v7221 = vmul.f32 %v7009, 0.0025
        %v7222 = vmul.f32 %v7014, 0.0025
        %v7223 = vmul.f32 %v7019, 0.0025
        %v7224 = vmul.f32 %v7024, 0.0025
        %v7225 = vmul.f32 %v7029, 0.0025
        %v7226 = vmul.f32 %v7034, 0.0025
        %v7227 = vmul.f32 %v7039, 0.0025
        %v7228 = vmul.f32 %v7044, 0.0025
        %v7229 = vmul.f32 %v7049, 0.0025
        %v7230 = vmul.f32 %v7054, 0.0025
        %v7231 = vmul.f32 %v7059, 0.0025
        %v7232 = vmul.f32 %v7064, 0.0025
        %v7233 = vmul.f32 %v7069, 0.0025
        %v7234 = vmul.f32 %v7074, 0.0025
        %v7235 = vmul.f32 %v7143, 0.0025
        %v7236 = vmul.f32 %v7148, 0.0025
        %v7237 = vmul.f32 %v7153, 0.0025
        %v7238 = vmul.f32 %v7158, 0.0025
        %v7239 = vmul.f32 %v7163, 0.0025
        %v7240 = vmul.f32 %v7168, 0.0025
        %v7241 = vmul.f32 %v7173, 0.0025
        %v7242 = vmul.f32 %v7178, 0.0025
        %v7243 = vmul.f32 %v7183, 0.0025
        %v7244 = vmul.f32 %v7188, 0.0025
        %v7245 = vmul.f32 %v7193, 0.0025
        %v7246 = vmul.f32 %v7198, 0.0025
        %v7247 = vmul.f32 %v7203, 0.0025
        %v7248 = vmul.f32 %v7208, 0.0025
        %v7249 = vmul.f32 %v7213, 0.0025
        %v7250 = vmul.f32 %v7218, 0.0025
        %v7251 = vmul.f32 %v7219, %v7219
        %v7252 = vmul.f32 %v7220, %v7220
        %v7253 = vmul.f32 %v7221, %v7221
        %v7254 = vmul.f32 %v7222, %v7222
        %v7255 = vmul.f32 %v7223, %v7223
        %v7256 = vmul.f32 %v7224, %v7224
        %v7257 = vmul.f32 %v7225, %v7225
        %v7258 = vmul.f32 %v7226, %v7226
        %v7259 = vmul.f32 %v7227, %v7227
        %v7260 = vmul.f32 %v7228, %v7228
        %v7261 = vmul.f32 %v7229, %v7229
        %v7262 = vmul.f32 %v7230, %v7230
        %v7263 = vmul.f32 %v7231, %v7231
        %v7264 = vmul.f32 %v7232, %v7232
        %v7265 = vmul.f32 %v7233, %v7233
        %v7266 = vmul.f32 %v7234, %v7234
        %v7267 = vsub.f32 %v7235, %v7251
        %v7268 = vsub.f32 %v7236, %v7252
        %v7269 = vsub.f32 %v7237, %v7253
        %v7270 = vsub.f32 %v7238, %v7254
        %v7271 = vsub.f32 %v7239, %v7255
        %v7272 = vsub.f32 %v7240, %v7256
        %v7273 = vsub.f32 %v7241, %v7257
        %v7274 = vsub.f32 %v7242, %v7258
        %v7275 = vsub.f32 %v7243, %v7259
        %v7276 = vsub.f32 %v7244, %v7260
        %v7277 = vsub.f32 %v7245, %v7261
        %v7278 = vsub.f32 %v7246, %v7262
        %v7279 = vsub.f32 %v7247, %v7263
        %v7280 = vsub.f32 %v7248, %v7264
        %v7281 = vsub.f32 %v7249, %v7265
        %v7282 = vsub.f32 %v7250, %v7266
        %v7283 = vmax.f32 %v7267, 0.0
        %v7284 = vmax.f32 %v7268, 0.0
        %v7285 = vmax.f32 %v7269, 0.0
        %v7286 = vmax.f32 %v7270, 0.0
        %v7287 = vmax.f32 %v7271, 0.0
        %v7288 = vmax.f32 %v7272, 0.0
        %v7289 = vmax.f32 %v7273, 0.0
        %v7290 = vmax.f32 %v7274, 0.0
        %v7291 = vmax.f32 %v7275, 0.0
        %v7292 = vmax.f32 %v7276, 0.0
        %v7293 = vmax.f32 %v7277, 0.0
        %v7294 = vmax.f32 %v7278, 0.0
        %v7295 = vmax.f32 %v7279, 0.0
        %v7296 = vmax.f32 %v7280, 0.0
        %v7297 = vmax.f32 %v7281, 0.0
        %v7298 = vmax.f32 %v7282, 0.0
        %v7299 = vsub.f32 %v6931, %v7219
        %v7300 = vsub.f32 %v6932, %v7219
        %v7301 = vsub.f32 %v6933, %v7219
        %v7302 = vsub.f32 %v6934, %v7219
        %v7303 = vsub.f32 %v6935, %v7220
        %v7304 = vsub.f32 %v6936, %v7220
        %v7305 = vsub.f32 %v6937, %v7220
        %v7306 = vsub.f32 %v6938, %v7220
        %v7307 = vsub.f32 %v6939, %v7221
        %v7308 = vsub.f32 %v6940, %v7221
        %v7309 = vsub.f32 %v6941, %v7221
        %v7310 = vsub.f32 %v6942, %v7221
        %v7311 = vsub.f32 %v6943, %v7222
        %v7312 = vsub.f32 %v6944, %v7222
        %v7313 = vsub.f32 %v6945, %v7222
        %v7314 = vsub.f32 %v6946, %v7222
        %v7315 = vsub.f32 %v6947, %v7223
        %v7316 = vsub.f32 %v6948, %v7223
        %v7317 = vsub.f32 %v6949, %v7223
        %v7318 = vsub.f32 %v6950, %v7223
        %v7319 = vsub.f32 %v6951, %v7224
        %v7320 = vsub.f32 %v6952, %v7224
        %v7321 = vsub.f32 %v6953, %v7224
        %v7322 = vsub.f32 %v6954, %v7224
        %v7323 = vsub.f32 %v6955, %v7225
        %v7324 = vsub.f32 %v6956, %v7225
        %v7325 = vsub.f32 %v6957, %v7225
        %v7326 = vsub.f32 %v6958, %v7225
        %v7327 = vsub.f32 %v6959, %v7226
        %v7328 = vsub.f32 %v6960, %v7226
        %v7329 = vsub.f32 %v6961, %v7226
        %v7330 = vsub.f32 %v6962, %v7226
        %v7331 = vsub.f32 %v6963, %v7227
        %v7332 = vsub.f32 %v6964, %v7227
        %v7333 = vsub.f32 %v6965, %v7227
        %v7334 = vsub.f32 %v6966, %v7227
        %v7335 = vsub.f32 %v6967, %v7228
        %v7336 = vsub.f32 %v6968, %v7228
        %v7337 = vsub.f32 %v6969, %v7228
        %v7338 = vsub.f32 %v6970, %v7228
        %v7339 = vsub.f32 %v6971, %v7229
        %v7340 = vsub.f32 %v6972, %v7229
        %v7341 = vsub.f32 %v6973, %v7229
        %v7342 = vsub.f32 %v6974, %v7229
        %v7343 = vsub.f32 %v6975, %v7230
        %v7344 = vsub.f32 %v6976, %v7230
        %v7345 = vsub.f32 %v6977, %v7230
        %v7346 = vsub.f32 %v6978, %v7230
        %v7347 = vsub.f32 %v6979, %v7231
        %v7348 = vsub.f32 %v6980, %v7231
        %v7349 = vsub.f32 %v6981, %v7231
        %v7350 = vsub.f32 %v6982, %v7231
        %v7351 = vsub.f32 %v6983, %v7232
        %v7352 = vsub.f32 %v6984, %v7232
        %v7353 = vsub.f32 %v6985, %v7232
        %v7354 = vsub.f32 %v6986, %v7232
        %v7355 = vsub.f32 %v6987, %v7233
        %v7356 = vsub.f32 %v6988, %v7233
        %v7357 = vsub.f32 %v6989, %v7233
        %v7358 = vsub.f32 %v6990, %v7233
        %v7359 = vsub.f32 %v6991, %v7234
        %v7360 = vsub.f32 %v6992, %v7234
        %v7361 = vsub.f32 %v6993, %v7234
        %v7362 = vsub.f32 %v6994, %v7234
        %v7363 = vadd.f32 %v7283, 1e-05
        %v7364 = vadd.f32 %v7284, 1e-05
        %v7365 = vadd.f32 %v7285, 1e-05
        %v7366 = vadd.f32 %v7286, 1e-05
        %v7367 = vadd.f32 %v7287, 1e-05
        %v7368 = vadd.f32 %v7288, 1e-05
        %v7369 = vadd.f32 %v7289, 1e-05
        %v7370 = vadd.f32 %v7290, 1e-05
        %v7371 = vadd.f32 %v7291, 1e-05
        %v7372 = vadd.f32 %v7292, 1e-05
        %v7373 = vadd.f32 %v7293, 1e-05
        %v7374 = vadd.f32 %v7294, 1e-05
        %v7375 = vadd.f32 %v7295, 1e-05
        %v7376 = vadd.f32 %v7296, 1e-05
        %v7377 = vadd.f32 %v7297, 1e-05
        %v7378 = vadd.f32 %v7298, 1e-05
        %v7379 = vrsqrt.pop %v7363
        %v7380 = vrsqrt.pop %v7364
        %v7381 = vrsqrt.pop %v7365
        %v7382 = vrsqrt.pop %v7366
        %v7383 = vrsqrt.pop %v7367
        %v7384 = vrsqrt.pop %v7368
        %v7385 = vrsqrt.pop %v7369
        %v7386 = vrsqrt.pop %v7370
        %v7387 = vrsqrt.pop %v7371
        %v7388 = vrsqrt.pop %v7372
        %v7389 = vrsqrt.pop %v7373
        %v7390 = vrsqrt.pop %v7374
        %v7391 = vrsqrt.pop %v7375
        %v7392 = vrsqrt.pop %v7376
        %v7393 = vrsqrt.pop %v7377
        %v7394 = vrsqrt.pop %v7378
        %v7395 = vmul.f32 %v7299, %v7379
        %v7396 = vmul.f32 %v7300, %v7379
        %v7397 = vmul.f32 %v7301, %v7379
        %v7398 = vmul.f32 %v7302, %v7379
        %v7399 = vmul.f32 %v7303, %v7380
        %v7400 = vmul.f32 %v7304, %v7380
        %v7401 = vmul.f32 %v7305, %v7380
        %v7402 = vmul.f32 %v7306, %v7380
        %v7403 = vmul.f32 %v7307, %v7381
        %v7404 = vmul.f32 %v7308, %v7381
        %v7405 = vmul.f32 %v7309, %v7381
        %v7406 = vmul.f32 %v7310, %v7381
        %v7407 = vmul.f32 %v7311, %v7382
        %v7408 = vmul.f32 %v7312, %v7382
        %v7409 = vmul.f32 %v7313, %v7382
        %v7410 = vmul.f32 %v7314, %v7382
        %v7411 = vmul.f32 %v7315, %v7383
        %v7412 = vmul.f32 %v7316, %v7383
        %v7413 = vmul.f32 %v7317, %v7383
        %v7414 = vmul.f32 %v7318, %v7383
        %v7415 = vmul.f32 %v7319, %v7384
        %v7416 = vmul.f32 %v7320, %v7384
        %v7417 = vmul.f32 %v7321, %v7384
        %v7418 = vmul.f32 %v7322, %v7384
        %v7419 = vmul.f32 %v7323, %v7385
        %v7420 = vmul.f32 %v7324, %v7385
        %v7421 = vmul.f32 %v7325, %v7385
        %v7422 = vmul.f32 %v7326, %v7385
        %v7423 = vmul.f32 %v7327, %v7386
        %v7424 = vmul.f32 %v7328, %v7386
        %v7425 = vmul.f32 %v7329, %v7386
        %v7426 = vmul.f32 %v7330, %v7386
        %v7427 = vmul.f32 %v7331, %v7387
        %v7428 = vmul.f32 %v7332, %v7387
        %v7429 = vmul.f32 %v7333, %v7387
        %v7430 = vmul.f32 %v7334, %v7387
        %v7431 = vmul.f32 %v7335, %v7388
        %v7432 = vmul.f32 %v7336, %v7388
        %v7433 = vmul.f32 %v7337, %v7388
        %v7434 = vmul.f32 %v7338, %v7388
        %v7435 = vmul.f32 %v7339, %v7389
        %v7436 = vmul.f32 %v7340, %v7389
        %v7437 = vmul.f32 %v7341, %v7389
        %v7438 = vmul.f32 %v7342, %v7389
        %v7439 = vmul.f32 %v7343, %v7390
        %v7440 = vmul.f32 %v7344, %v7390
        %v7441 = vmul.f32 %v7345, %v7390
        %v7442 = vmul.f32 %v7346, %v7390
        %v7443 = vmul.f32 %v7347, %v7391
        %v7444 = vmul.f32 %v7348, %v7391
        %v7445 = vmul.f32 %v7349, %v7391
        %v7446 = vmul.f32 %v7350, %v7391
        %v7447 = vmul.f32 %v7351, %v7392
        %v7448 = vmul.f32 %v7352, %v7392
        %v7449 = vmul.f32 %v7353, %v7392
        %v7450 = vmul.f32 %v7354, %v7392
        %v7451 = vmul.f32 %v7355, %v7393
        %v7452 = vmul.f32 %v7356, %v7393
        %v7453 = vmul.f32 %v7357, %v7393
        %v7454 = vmul.f32 %v7358, %v7393
        %v7455 = vmul.f32 %v7359, %v7394
        %v7456 = vmul.f32 %v7360, %v7394
        %v7457 = vmul.f32 %v7361, %v7394
        %v7458 = vmul.f32 %v7362, %v7394
        %v7459 = vld [vmem:[%s11] sm:$0xf]
        %v7461 = vlaneseq
        %v7462 = vshrl.u32 %v7461, 7
        %v7463 = vsub.s32 0, %v7462
        %v7464 = vrot.slane %v7459, %v7463
        %v7465 = vlaneseq
        %v7466 = vshrl.u32 %v7465, 7
        %v7467 = vsub.s32 1, %v7466
        %v7468 = vrot.slane %v7459, %v7467
        %v7469 = vlaneseq
        %v7470 = vshrl.u32 %v7469, 7
        %v7471 = vsub.s32 2, %v7470
        %v7472 = vrot.slane %v7459, %v7471
        %v7473 = vlaneseq
        %v7474 = vshrl.u32 %v7473, 7
        %v7475 = vsub.s32 3, %v7474
        %v7476 = vrot.slane %v7459, %v7475
        %v7481 = vmul.f32 %v7395, %v7464
        %v7482 = vmul.f32 %v7396, %v7468
        %v7483 = vmul.f32 %v7397, %v7472
        %v7484 = vmul.f32 %v7398, %v7476
        %v7485 = vmul.f32 %v7399, %v7464
        %v7486 = vmul.f32 %v7400, %v7468
        %v7487 = vmul.f32 %v7401, %v7472
        %v7488 = vmul.f32 %v7402, %v7476
        %v7489 = vmul.f32 %v7403, %v7464
        %v7490 = vmul.f32 %v7404, %v7468
        %v7491 = vmul.f32 %v7405, %v7472
        %v7492 = vmul.f32 %v7406, %v7476
        %v7493 = vmul.f32 %v7407, %v7464
        %v7494 = vmul.f32 %v7408, %v7468
        %v7495 = vmul.f32 %v7409, %v7472
        %v7496 = vmul.f32 %v7410, %v7476
        %v7497 = vmul.f32 %v7411, %v7464
        %v7498 = vmul.f32 %v7412, %v7468
        %v7499 = vmul.f32 %v7413, %v7472
        %v7500 = vmul.f32 %v7414, %v7476
        %v7501 = vmul.f32 %v7415, %v7464
        %v7502 = vmul.f32 %v7416, %v7468
        %v7503 = vmul.f32 %v7417, %v7472
        %v7504 = vmul.f32 %v7418, %v7476
        %v7505 = vmul.f32 %v7419, %v7464
        %v7506 = vmul.f32 %v7420, %v7468
        %v7507 = vmul.f32 %v7421, %v7472
        %v7508 = vmul.f32 %v7422, %v7476
        %v7509 = vmul.f32 %v7423, %v7464
        %v7510 = vmul.f32 %v7424, %v7468
        %v7511 = vmul.f32 %v7425, %v7472
        %v7512 = vmul.f32 %v7426, %v7476
        %v7513 = vmul.f32 %v7427, %v7464
        %v7514 = vmul.f32 %v7428, %v7468
        %v7515 = vmul.f32 %v7429, %v7472
        %v7516 = vmul.f32 %v7430, %v7476
        %v7517 = vmul.f32 %v7431, %v7464
        %v7518 = vmul.f32 %v7432, %v7468
        %v7519 = vmul.f32 %v7433, %v7472
        %v7520 = vmul.f32 %v7434, %v7476
        %v7521 = vmul.f32 %v7435, %v7464
        %v7522 = vmul.f32 %v7436, %v7468
        %v7523 = vmul.f32 %v7437, %v7472
        %v7524 = vmul.f32 %v7438, %v7476
        %v7525 = vmul.f32 %v7439, %v7464
        %v7526 = vmul.f32 %v7440, %v7468
        %v7527 = vmul.f32 %v7441, %v7472
        %v7528 = vmul.f32 %v7442, %v7476
        %v7529 = vmul.f32 %v7443, %v7464
        %v7530 = vmul.f32 %v7444, %v7468
        %v7531 = vmul.f32 %v7445, %v7472
        %v7532 = vmul.f32 %v7446, %v7476
        %v7533 = vmul.f32 %v7447, %v7464
        %v7534 = vmul.f32 %v7448, %v7468
        %v7535 = vmul.f32 %v7449, %v7472
        %v7536 = vmul.f32 %v7450, %v7476
        %v7537 = vmul.f32 %v7451, %v7464
        %v7538 = vmul.f32 %v7452, %v7468
        %v7539 = vmul.f32 %v7453, %v7472
        %v7540 = vmul.f32 %v7454, %v7476
        %v7541 = vmul.f32 %v7455, %v7464
        %v7542 = vmul.f32 %v7456, %v7468
        %v7543 = vmul.f32 %v7457, %v7472
        %v7544 = vmul.f32 %v7458, %v7476
        %v7545 = vld [vmem:[%s12] sm:$0xf]
        %v7547 = vlaneseq
        %v7548 = vshrl.u32 %v7547, 7
        %v7549 = vsub.s32 0, %v7548
        %v7550 = vrot.slane %v7545, %v7549
        %v7551 = vlaneseq
        %v7552 = vshrl.u32 %v7551, 7
        %v7553 = vsub.s32 1, %v7552
        %v7554 = vrot.slane %v7545, %v7553
        %v7555 = vlaneseq
        %v7556 = vshrl.u32 %v7555, 7
        %v7557 = vsub.s32 2, %v7556
        %v7558 = vrot.slane %v7545, %v7557
        %v7559 = vlaneseq
        %v7560 = vshrl.u32 %v7559, 7
        %v7561 = vsub.s32 3, %v7560
        %v7562 = vrot.slane %v7545, %v7561
        %v7567 = vadd.f32 %v7481, %v7550
        %v7568 = vadd.f32 %v7482, %v7554
        %v7569 = vadd.f32 %v7483, %v7558
        %v7570 = vadd.f32 %v7484, %v7562
        %v7571 = vadd.f32 %v7485, %v7550
        %v7572 = vadd.f32 %v7486, %v7554
        %v7573 = vadd.f32 %v7487, %v7558
        %v7574 = vadd.f32 %v7488, %v7562
        %v7575 = vadd.f32 %v7489, %v7550
        %v7576 = vadd.f32 %v7490, %v7554
        %v7577 = vadd.f32 %v7491, %v7558
        %v7578 = vadd.f32 %v7492, %v7562
        %v7579 = vadd.f32 %v7493, %v7550
        %v7580 = vadd.f32 %v7494, %v7554
        %v7581 = vadd.f32 %v7495, %v7558
        %v7582 = vadd.f32 %v7496, %v7562
        %v7583 = vadd.f32 %v7497, %v7550
        %v7584 = vadd.f32 %v7498, %v7554
        %v7585 = vadd.f32 %v7499, %v7558
        %v7586 = vadd.f32 %v7500, %v7562
        %v7587 = vadd.f32 %v7501, %v7550
        %v7588 = vadd.f32 %v7502, %v7554
        %v7589 = vadd.f32 %v7503, %v7558
        %v7590 = vadd.f32 %v7504, %v7562
        %v7591 = vadd.f32 %v7505, %v7550
        %v7592 = vadd.f32 %v7506, %v7554
        %v7593 = vadd.f32 %v7507, %v7558
        %v7594 = vadd.f32 %v7508, %v7562
        %v7595 = vadd.f32 %v7509, %v7550
        %v7596 = vadd.f32 %v7510, %v7554
        %v7597 = vadd.f32 %v7511, %v7558
        %v7598 = vadd.f32 %v7512, %v7562
        %v7599 = vadd.f32 %v7513, %v7550
        %v7600 = vadd.f32 %v7514, %v7554
        %v7601 = vadd.f32 %v7515, %v7558
        %v7602 = vadd.f32 %v7516, %v7562
        %v7603 = vadd.f32 %v7517, %v7550
        %v7604 = vadd.f32 %v7518, %v7554
        %v7605 = vadd.f32 %v7519, %v7558
        %v7606 = vadd.f32 %v7520, %v7562
        %v7607 = vadd.f32 %v7521, %v7550
        %v7608 = vadd.f32 %v7522, %v7554
        %v7609 = vadd.f32 %v7523, %v7558
        %v7610 = vadd.f32 %v7524, %v7562
        %v7611 = vadd.f32 %v7525, %v7550
        %v7612 = vadd.f32 %v7526, %v7554
        %v7613 = vadd.f32 %v7527, %v7558
        %v7614 = vadd.f32 %v7528, %v7562
        %v7615 = vadd.f32 %v7529, %v7550
        %v7616 = vadd.f32 %v7530, %v7554
        %v7617 = vadd.f32 %v7531, %v7558
        %v7618 = vadd.f32 %v7532, %v7562
        %v7619 = vadd.f32 %v7533, %v7550
        %v7620 = vadd.f32 %v7534, %v7554
        %v7621 = vadd.f32 %v7535, %v7558
        %v7622 = vadd.f32 %v7536, %v7562
        %v7623 = vadd.f32 %v7537, %v7550
        %v7624 = vadd.f32 %v7538, %v7554
        %v7625 = vadd.f32 %v7539, %v7558
        %v7626 = vadd.f32 %v7540, %v7562
        %v7627 = vadd.f32 %v7541, %v7550
        %v7628 = vadd.f32 %v7542, %v7554
        %v7629 = vadd.f32 %v7543, %v7558
        %v7630 = vadd.f32 %v7544, %v7562
        %7631 = vst [vmem:[#allocation5] sm:$0xff] %v7567
        %7632 = vst [vmem:[#allocation5 + $0x8] sm:$0xff] %v7568
        %7633 = vst [vmem:[#allocation5 + $0x10] sm:$0xff] %v7569
        %7634 = vst [vmem:[#allocation5 + $0x18] sm:$0xff] %v7570
        %7635 = vst [vmem:[#allocation5 + $0x20] sm:$0xff] %v7571
        %7636 = vst [vmem:[#allocation5 + $0x28] sm:$0xff] %v7572
        %7637 = vst [vmem:[#allocation5 + $0x30] sm:$0xff] %v7573
        %7638 = vst [vmem:[#allocation5 + $0x38] sm:$0xff] %v7574
        %7639 = vst [vmem:[#allocation5 + $0x40] sm:$0xff] %v7575
        %7640 = vst [vmem:[#allocation5 + $0x48] sm:$0xff] %v7576
        %7641 = vst [vmem:[#allocation5 + $0x50] sm:$0xff] %v7577
        %7642 = vst [vmem:[#allocation5 + $0x58] sm:$0xff] %v7578
        %7643 = vst [vmem:[#allocation5 + $0x60] sm:$0xff] %v7579
        %7644 = vst [vmem:[#allocation5 + $0x68] sm:$0xff] %v7580
        %7645 = vst [vmem:[#allocation5 + $0x70] sm:$0xff] %v7581
        %7646 = vst [vmem:[#allocation5 + $0x78] sm:$0xff] %v7582
        %7647 = vst [vmem:[#allocation5 + $0x80] sm:$0xff] %v7583
        %7648 = vst [vmem:[#allocation5 + $0x88] sm:$0xff] %v7584
        %7649 = vst [vmem:[#allocation5 + $0x90] sm:$0xff] %v7585
        %7650 = vst [vmem:[#allocation5 + $0x98] sm:$0xff] %v7586
        %7651 = vst [vmem:[#allocation5 + $0xa0] sm:$0xff] %v7587
        %7652 = vst [vmem:[#allocation5 + $0xa8] sm:$0xff] %v7588
        %7653 = vst [vmem:[#allocation5 + $0xb0] sm:$0xff] %v7589
        %7654 = vst [vmem:[#allocation5 + $0xb8] sm:$0xff] %v7590
        %7655 = vst [vmem:[#allocation5 + $0xc0] sm:$0xff] %v7591
        %7656 = vst [vmem:[#allocation5 + $0xc8] sm:$0xff] %v7592
        %7657 = vst [vmem:[#allocation5 + $0xd0] sm:$0xff] %v7593
        %7658 = vst [vmem:[#allocation5 + $0xd8] sm:$0xff] %v7594
        %7659 = vst [vmem:[#allocation5 + $0xe0] sm:$0xff] %v7595
        %7660 = vst [vmem:[#allocation5 + $0xe8] sm:$0xff] %v7596
        %7661 = vst [vmem:[#allocation5 + $0xf0] sm:$0xff] %v7597
        %7662 = vst [vmem:[#allocation5 + $0xf8] sm:$0xff] %v7598
        %7663 = vst [vmem:[#allocation5 + $0x100] sm:$0xff] %v7599
        %7664 = vst [vmem:[#allocation5 + $0x108] sm:$0xff] %v7600
        %7665 = vst [vmem:[#allocation5 + $0x110] sm:$0xff] %v7601
        %7666 = vst [vmem:[#allocation5 + $0x118] sm:$0xff] %v7602
        %7667 = vst [vmem:[#allocation5 + $0x120] sm:$0xff] %v7603
        %7668 = vst [vmem:[#allocation5 + $0x128] sm:$0xff] %v7604
        %7669 = vst [vmem:[#allocation5 + $0x130] sm:$0xff] %v7605
        %7670 = vst [vmem:[#allocation5 + $0x138] sm:$0xff] %v7606
        %7671 = vst [vmem:[#allocation5 + $0x140] sm:$0xff] %v7607
        %7672 = vst [vmem:[#allocation5 + $0x148] sm:$0xff] %v7608
        %7673 = vst [vmem:[#allocation5 + $0x150] sm:$0xff] %v7609
        %7674 = vst [vmem:[#allocation5 + $0x158] sm:$0xff] %v7610
        %7675 = vst [vmem:[#allocation5 + $0x160] sm:$0xff] %v7611
        %7676 = vst [vmem:[#allocation5 + $0x168] sm:$0xff] %v7612
        %7677 = vst [vmem:[#allocation5 + $0x170] sm:$0xff] %v7613
        %7678 = vst [vmem:[#allocation5 + $0x178] sm:$0xff] %v7614
        %7679 = vst [vmem:[#allocation5 + $0x180] sm:$0xff] %v7615
        %7680 = vst [vmem:[#allocation5 + $0x188] sm:$0xff] %v7616
        %7681 = vst [vmem:[#allocation5 + $0x190] sm:$0xff] %v7617
        %7682 = vst [vmem:[#allocation5 + $0x198] sm:$0xff] %v7618
        %7683 = vst [vmem:[#allocation5 + $0x1a0] sm:$0xff] %v7619
        %7684 = vst [vmem:[#allocation5 + $0x1a8] sm:$0xff] %v7620
        %7685 = vst [vmem:[#allocation5 + $0x1b0] sm:$0xff] %v7621
        %7686 = vst [vmem:[#allocation5 + $0x1b8] sm:$0xff] %v7622
        %7687 = vst [vmem:[#allocation5 + $0x1c0] sm:$0xff] %v7623
        %7688 = vst [vmem:[#allocation5 + $0x1c8] sm:$0xff] %v7624
        %7689 = vst [vmem:[#allocation5 + $0x1d0] sm:$0xff] %v7625
        %7690 = vst [vmem:[#allocation5 + $0x1d8] sm:$0xff] %v7626
        %7691 = vst [vmem:[#allocation5 + $0x1e0] sm:$0xff] %v7627
        %7692 = vst [vmem:[#allocation5 + $0x1e8] sm:$0xff] %v7628
        %7693 = vst [vmem:[#allocation5 + $0x1f0] sm:$0xff] %v7629
        %7694 = vst [vmem:[#allocation5 + $0x1f8] sm:$0xff] %v7630
        %v7695 = vld [vmem:[#allocation5] sm:$0xff]
        %v7696 = vld [vmem:[#allocation5 + $0x8] sm:$0xff]
        %v7697 = vld [vmem:[#allocation5 + $0x10] sm:$0xff]
        %v7698 = vld [vmem:[#allocation5 + $0x18] sm:$0xff]
        %v7699 = vld [vmem:[#allocation5 + $0x20] sm:$0xff]
        %v7700 = vld [vmem:[#allocation5 + $0x28] sm:$0xff]
        %v7701 = vld [vmem:[#allocation5 + $0x30] sm:$0xff]
        %v7702 = vld [vmem:[#allocation5 + $0x38] sm:$0xff]
        %v7703 = vld [vmem:[#allocation5 + $0x40] sm:$0xff]
        %v7704 = vld [vmem:[#allocation5 + $0x48] sm:$0xff]
        %v7705 = vld [vmem:[#allocation5 + $0x50] sm:$0xff]
        %v7706 = vld [vmem:[#allocation5 + $0x58] sm:$0xff]
        %v7707 = vld [vmem:[#allocation5 + $0x60] sm:$0xff]
        %v7708 = vld [vmem:[#allocation5 + $0x68] sm:$0xff]
        %v7709 = vld [vmem:[#allocation5 + $0x70] sm:$0xff]
        %v7710 = vld [vmem:[#allocation5 + $0x78] sm:$0xff]
        %v7711 = vld [vmem:[#allocation5 + $0x80] sm:$0xff]
        %v7712 = vld [vmem:[#allocation5 + $0x88] sm:$0xff]
        %v7713 = vld [vmem:[#allocation5 + $0x90] sm:$0xff]
        %v7714 = vld [vmem:[#allocation5 + $0x98] sm:$0xff]
        %v7715 = vld [vmem:[#allocation5 + $0xa0] sm:$0xff]
        %v7716 = vld [vmem:[#allocation5 + $0xa8] sm:$0xff]
        %v7717 = vld [vmem:[#allocation5 + $0xb0] sm:$0xff]
        %v7718 = vld [vmem:[#allocation5 + $0xb8] sm:$0xff]
        %v7719 = vld [vmem:[#allocation5 + $0xc0] sm:$0xff]
        %v7720 = vld [vmem:[#allocation5 + $0xc8] sm:$0xff]
        %v7721 = vld [vmem:[#allocation5 + $0xd0] sm:$0xff]
        %v7722 = vld [vmem:[#allocation5 + $0xd8] sm:$0xff]
        %v7723 = vld [vmem:[#allocation5 + $0xe0] sm:$0xff]
        %v7724 = vld [vmem:[#allocation5 + $0xe8] sm:$0xff]
        %v7725 = vld [vmem:[#allocation5 + $0xf0] sm:$0xff]
        %v7726 = vld [vmem:[#allocation5 + $0xf8] sm:$0xff]
        %v7727 = vld [vmem:[#allocation5 + $0x100] sm:$0xff]
        %v7728 = vld [vmem:[#allocation5 + $0x108] sm:$0xff]
        %v7729 = vld [vmem:[#allocation5 + $0x110] sm:$0xff]
        %v7730 = vld [vmem:[#allocation5 + $0x118] sm:$0xff]
        %v7731 = vld [vmem:[#allocation5 + $0x120] sm:$0xff]
        %v7732 = vld [vmem:[#allocation5 + $0x128] sm:$0xff]
        %v7733 = vld [vmem:[#allocation5 + $0x130] sm:$0xff]
        %v7734 = vld [vmem:[#allocation5 + $0x138] sm:$0xff]
        %v7735 = vld [vmem:[#allocation5 + $0x140] sm:$0xff]
        %v7736 = vld [vmem:[#allocation5 + $0x148] sm:$0xff]
        %v7737 = vld [vmem:[#allocation5 + $0x150] sm:$0xff]
        %v7738 = vld [vmem:[#allocation5 + $0x158] sm:$0xff]
        %v7739 = vld [vmem:[#allocation5 + $0x160] sm:$0xff]
        %v7740 = vld [vmem:[#allocation5 + $0x168] sm:$0xff]
        %v7741 = vld [vmem:[#allocation5 + $0x170] sm:$0xff]
        %v7742 = vld [vmem:[#allocation5 + $0x178] sm:$0xff]
        %v7743 = vld [vmem:[#allocation5 + $0x180] sm:$0xff]
        %v7744 = vld [vmem:[#allocation5 + $0x188] sm:$0xff]
        %v7745 = vld [vmem:[#allocation5 + $0x190] sm:$0xff]
        %v7746 = vld [vmem:[#allocation5 + $0x198] sm:$0xff]
        %v7747 = vld [vmem:[#allocation5 + $0x1a0] sm:$0xff]
        %v7748 = vld [vmem:[#allocation5 + $0x1a8] sm:$0xff]
        %v7749 = vld [vmem:[#allocation5 + $0x1b0] sm:$0xff]
        %v7750 = vld [vmem:[#allocation5 + $0x1b8] sm:$0xff]
        %v7751 = vld [vmem:[#allocation5 + $0x1c0] sm:$0xff]
        %v7752 = vld [vmem:[#allocation5 + $0x1c8] sm:$0xff]
        %v7753 = vld [vmem:[#allocation5 + $0x1d0] sm:$0xff]
        %v7754 = vld [vmem:[#allocation5 + $0x1d8] sm:$0xff]
        %v7755 = vld [vmem:[#allocation5 + $0x1e0] sm:$0xff]
        %v7756 = vld [vmem:[#allocation5 + $0x1e8] sm:$0xff]
        %v7757 = vld [vmem:[#allocation5 + $0x1f0] sm:$0xff]
        %v7758 = vld [vmem:[#allocation5 + $0x1f8] sm:$0xff]
        %v7759 = vpack.c.bf16 %v7699, %v7695
        %v7760 = vpack.c.bf16 %v7700, %v7696
        %v7761 = vpack.c.bf16 %v7701, %v7697
        %v7762 = vpack.c.bf16 %v7702, %v7698
        %v7763 = vpack.c.bf16 %v7707, %v7703
        %v7764 = vpack.c.bf16 %v7708, %v7704
        %v7765 = vpack.c.bf16 %v7709, %v7705
        %v7766 = vpack.c.bf16 %v7710, %v7706
        %v7767 = vpack.c.bf16 %v7715, %v7711
        %v7768 = vpack.c.bf16 %v7716, %v7712
        %v7769 = vpack.c.bf16 %v7717, %v7713
        %v7770 = vpack.c.bf16 %v7718, %v7714
        %v7771 = vpack.c.bf16 %v7723, %v7719
        %v7772 = vpack.c.bf16 %v7724, %v7720
        %v7773 = vpack.c.bf16 %v7725, %v7721
        %v7774 = vpack.c.bf16 %v7726, %v7722
        %v7775 = vpack.c.bf16 %v7731, %v7727
        %v7776 = vpack.c.bf16 %v7732, %v7728
        %v7777 = vpack.c.bf16 %v7733, %v7729
        %v7778 = vpack.c.bf16 %v7734, %v7730
        %v7779 = vpack.c.bf16 %v7739, %v7735
        %v7780 = vpack.c.bf16 %v7740, %v7736
        %v7781 = vpack.c.bf16 %v7741, %v7737
        %v7782 = vpack.c.bf16 %v7742, %v7738
        %v7783 = vpack.c.bf16 %v7747, %v7743
        %v7784 = vpack.c.bf16 %v7748, %v7744
        %v7785 = vpack.c.bf16 %v7749, %v7745
        %v7786 = vpack.c.bf16 %v7750, %v7746
        %v7787 = vpack.c.bf16 %v7755, %v7751
        %v7788 = vpack.c.bf16 %v7756, %v7752
        %v7789 = vpack.c.bf16 %v7757, %v7753
        %v7790 = vpack.c.bf16 %v7758, %v7754
        %v7791 = vld [vmem:[%s13] sm:$0xf]
        %v7792 = vld [vmem:[%s13 + $0x4] sm:$0xf]
        %v7793 = vld [vmem:[%s13 + $0x8] sm:$0xf]
        %v7794 = vld [vmem:[%s13 + $0xc] sm:$0xf]
        %v7795 = vld [vmem:[%s13 + $0x10] sm:$0xf]
        %v7796 = vld [vmem:[%s13 + $0x14] sm:$0xf]
        %v7797 = vld [vmem:[%s13 + $0x18] sm:$0xf]
        %v7798 = vld [vmem:[%s13 + $0x1c] sm:$0xf]
        %v7799 = vld [vmem:[%s13 + $0x20] sm:$0xf]
        %v7800 = vld [vmem:[%s13 + $0x24] sm:$0xf]
        %v7801 = vld [vmem:[%s13 + $0x28] sm:$0xf]
        %v7802 = vld [vmem:[%s13 + $0x2c] sm:$0xf]
        %v7803 = vld [vmem:[%s13 + $0x30] sm:$0xf]
        %v7804 = vld [vmem:[%s13 + $0x34] sm:$0xf]
        %v7805 = vld [vmem:[%s13 + $0x38] sm:$0xf]
        %v7806 = vld [vmem:[%s13 + $0x3c] sm:$0xf]
        %v7807 = vld [vmem:[%s13 + $0x40] sm:$0xf]
        %v7808 = vld [vmem:[%s13 + $0x44] sm:$0xf]
        %v7809 = vld [vmem:[%s13 + $0x48] sm:$0xf]
        %v7810 = vld [vmem:[%s13 + $0x4c] sm:$0xf]
        %v7811 = vld [vmem:[%s13 + $0x50] sm:$0xf]
        %v7812 = vld [vmem:[%s13 + $0x54] sm:$0xf]
        %v7813 = vld [vmem:[%s13 + $0x58] sm:$0xf]
        %v7814 = vld [vmem:[%s13 + $0x5c] sm:$0xf]
        %v7815 = vld [vmem:[%s13 + $0x60] sm:$0xf]
        %v7816 = vld [vmem:[%s13 + $0x64] sm:$0xf]
        %v7817 = vld [vmem:[%s13 + $0x68] sm:$0xf]
        %v7818 = vld [vmem:[%s13 + $0x6c] sm:$0xf]
        %v7819 = vld [vmem:[%s13 + $0x70] sm:$0xf]
        %v7820 = vld [vmem:[%s13 + $0x74] sm:$0xf]
        %v7821 = vld [vmem:[%s13 + $0x78] sm:$0xf]
        %v7822 = vld [vmem:[%s13 + $0x7c] sm:$0xf]
        %v7823 = vld [vmem:[%s13 + $0x80] sm:$0xf]
        %v7824 = vld [vmem:[%s13 + $0x84] sm:$0xf]
        %v7825 = vld [vmem:[%s13 + $0x88] sm:$0xf]
        %v7826 = vld [vmem:[%s13 + $0x8c] sm:$0xf]
        %v7827 = vld [vmem:[%s13 + $0x90] sm:$0xf]
        %v7828 = vld [vmem:[%s13 + $0x94] sm:$0xf]
        %v7829 = vld [vmem:[%s13 + $0x98] sm:$0xf]
        %v7830 = vld [vmem:[%s13 + $0x9c] sm:$0xf]
        %v7831 = vld [vmem:[%s13 + $0xa0] sm:$0xf]
        %v7832 = vld [vmem:[%s13 + $0xa4] sm:$0xf]
        %v7833 = vld [vmem:[%s13 + $0xa8] sm:$0xf]
        %v7834 = vld [vmem:[%s13 + $0xac] sm:$0xf]
        %v7835 = vld [vmem:[%s13 + $0xb0] sm:$0xf]
        %v7836 = vld [vmem:[%s13 + $0xb4] sm:$0xf]
        %v7837 = vld [vmem:[%s13 + $0xb8] sm:$0xf]
        %v7838 = vld [vmem:[%s13 + $0xbc] sm:$0xf]
        %v7839 = vld [vmem:[%s13 + $0xc0] sm:$0xf]
        %v7840 = vld [vmem:[%s13 + $0xc4] sm:$0xf]
        %v7841 = vld [vmem:[%s13 + $0xc8] sm:$0xf]
        %v7842 = vld [vmem:[%s13 + $0xcc] sm:$0xf]
        %v7843 = vld [vmem:[%s13 + $0xd0] sm:$0xf]
        %v7844 = vld [vmem:[%s13 + $0xd4] sm:$0xf]
        %v7845 = vld [vmem:[%s13 + $0xd8] sm:$0xf]
        %v7846 = vld [vmem:[%s13 + $0xdc] sm:$0xf]
        %v7847 = vld [vmem:[%s13 + $0xe0] sm:$0xf]
        %v7848 = vld [vmem:[%s13 + $0xe4] sm:$0xf]
        %v7849 = vld [vmem:[%s13 + $0xe8] sm:$0xf]
        %v7850 = vld [vmem:[%s13 + $0xec] sm:$0xf]
        %v7851 = vld [vmem:[%s13 + $0xf0] sm:$0xf]
        %v7852 = vld [vmem:[%s13 + $0xf4] sm:$0xf]
        %v7853 = vld [vmem:[%s13 + $0xf8] sm:$0xf]
        %v7854 = vld [vmem:[%s13 + $0xfc] sm:$0xf]
        %v7855 = vld [vmem:[%s14] sm:$0x1]
        %v7857 = vlaneseq
        %v7858 = vshrl.u32 %v7857, 7
        %v7859 = vsub.s32 0, %v7858
        %v7860 = vrot.slane %v7855, %v7859
        %v7926 = vunpack.c.l.b16 %v7791
        %v7927 = vunpack.c.l.b16 %v7792
        %v7928 = vunpack.c.l.b16 %v7793
        %v7929 = vunpack.c.l.b16 %v7794
        %v7930 = vunpack.c.l.b16 %v7795
        %v7931 = vunpack.c.l.b16 %v7796
        %v7932 = vunpack.c.l.b16 %v7797
        %v7933 = vunpack.c.l.b16 %v7798
        %v7934 = vunpack.c.l.b16 %v7799
        %v7935 = vunpack.c.l.b16 %v7800
        %v7936 = vunpack.c.l.b16 %v7801
        %v7937 = vunpack.c.l.b16 %v7802
        %v7938 = vunpack.c.l.b16 %v7803
        %v7939 = vunpack.c.l.b16 %v7804
        %v7940 = vunpack.c.l.b16 %v7805
        %v7941 = vunpack.c.l.b16 %v7806
        %v7942 = vunpack.c.l.b16 %v7807
        %v7943 = vunpack.c.l.b16 %v7808
        %v7944 = vunpack.c.l.b16 %v7809
        %v7945 = vunpack.c.l.b16 %v7810
        %v7946 = vunpack.c.l.b16 %v7811
        %v7947 = vunpack.c.l.b16 %v7812
        %v7948 = vunpack.c.l.b16 %v7813
        %v7949 = vunpack.c.l.b16 %v7814
        %v7950 = vunpack.c.l.b16 %v7815
        %v7951 = vunpack.c.l.b16 %v7816
        %v7952 = vunpack.c.l.b16 %v7817
        %v7953 = vunpack.c.l.b16 %v7818
        %v7954 = vunpack.c.l.b16 %v7819
        %v7955 = vunpack.c.l.b16 %v7820
        %v7956 = vunpack.c.l.b16 %v7821
        %v7957 = vunpack.c.l.b16 %v7822
        %v7958 = vunpack.c.l.b16 %v7823
        %v7959 = vunpack.c.l.b16 %v7824
        %v7960 = vunpack.c.l.b16 %v7825
        %v7961 = vunpack.c.l.b16 %v7826
        %v7962 = vunpack.c.l.b16 %v7827
        %v7963 = vunpack.c.l.b16 %v7828
        %v7964 = vunpack.c.l.b16 %v7829
        %v7965 = vunpack.c.l.b16 %v7830
        %v7966 = vunpack.c.l.b16 %v7831
        %v7967 = vunpack.c.l.b16 %v7832
        %v7968 = vunpack.c.l.b16 %v7833
        %v7969 = vunpack.c.l.b16 %v7834
        %v7970 = vunpack.c.l.b16 %v7835
        %v7971 = vunpack.c.l.b16 %v7836
        %v7972 = vunpack.c.l.b16 %v7837
        %v7973 = vunpack.c.l.b16 %v7838
        %v7974 = vunpack.c.l.b16 %v7839
        %v7975 = vunpack.c.l.b16 %v7840
        %v7976 = vunpack.c.l.b16 %v7841
        %v7977 = vunpack.c.l.b16 %v7842
        %v7978 = vunpack.c.l.b16 %v7843
        %v7979 = vunpack.c.l.b16 %v7844
        %v7980 = vunpack.c.l.b16 %v7845
        %v7981 = vunpack.c.l.b16 %v7846
        %v7982 = vunpack.c.l.b16 %v7847
        %v7983 = vunpack.c.l.b16 %v7848
        %v7984 = vunpack.c.l.b16 %v7849
        %v7985 = vunpack.c.l.b16 %v7850
        %v7986 = vunpack.c.l.b16 %v7851
        %v7987 = vunpack.c.l.b16 %v7852
        %v7988 = vunpack.c.l.b16 %v7853
        %v7989 = vunpack.c.l.b16 %v7854
        %v7990 = vpack.c.b16 %v7927, %v7926
        %v7991 = vpack.c.b16 %v7929, %v7928
        %v7992 = vpack.c.b16 %v7931, %v7930
        %v7993 = vpack.c.b16 %v7933, %v7932
        %v7994 = vpack.c.b16 %v7935, %v7934
        %v7995 = vpack.c.b16 %v7937, %v7936
        %v7996 = vpack.c.b16 %v7939, %v7938
        %v7997 = vpack.c.b16 %v7941, %v7940
        %v7998 = vpack.c.b16 %v7943, %v7942
        %v7999 = vpack.c.b16 %v7945, %v7944
        %v8000 = vpack.c.b16 %v7947, %v7946
        %v8001 = vpack.c.b16 %v7949, %v7948
        %v8002 = vpack.c.b16 %v7951, %v7950
        %v8003 = vpack.c.b16 %v7953, %v7952
        %v8004 = vpack.c.b16 %v7955, %v7954
        %v8005 = vpack.c.b16 %v7957, %v7956
        %v8006 = vpack.c.b16 %v7959, %v7958
        %v8007 = vpack.c.b16 %v7961, %v7960
        %v8008 = vpack.c.b16 %v7963, %v7962
        %v8009 = vpack.c.b16 %v7965, %v7964
        %v8010 = vpack.c.b16 %v7967, %v7966
        %v8011 = vpack.c.b16 %v7969, %v7968
        %v8012 = vpack.c.b16 %v7971, %v7970
        %v8013 = vpack.c.b16 %v7973, %v7972
        %v8014 = vpack.c.b16 %v7975, %v7974
        %v8015 = vpack.c.b16 %v7977, %v7976
        %v8016 = vpack.c.b16 %v7979, %v7978
        %v8017 = vpack.c.b16 %v7981, %v7980
        %v8018 = vpack.c.b16 %v7983, %v7982
        %v8019 = vpack.c.b16 %v7985, %v7984
        %v8020 = vpack.c.b16 %v7987, %v7986
        %v8021 = vpack.c.b16 %v7989, %v7988
        %8054 = vmatprep.subr.bf16.mxu0 0
        %8055 = vmatpush1.bf16.msra.mxu0 %v7997
        %8056 = vmatprep.subr.bf16.mxu0 0
        %8057 = vmatpush1.bf16.msra.mxu0 %v7996
        %8058 = vmatprep.subr.bf16.mxu0 0
        %8059 = vmatpush1.bf16.msra.mxu0 %v7995
        %8060 = vmatprep.subr.bf16.mxu0 0
        %8061 = vmatpush1.bf16.msra.mxu0 %v7994
        %8062 = vmatprep.subr.bf16.mxu0 0
        %8063 = vmatpush1.bf16.msra.mxu0 %v7993
        %8064 = vmatprep.subr.bf16.mxu0 0
        %8065 = vmatpush1.bf16.msra.mxu0 %v7992
        %8066 = vmatprep.subr.bf16.mxu0 0
        %8067 = vmatpush1.bf16.msra.mxu0 %v7991
        %8068 = vmatprep.subr.bf16.mxu0 0
        %8069 = vmatpush1.bf16.msra.mxu0 %v7990
        %8070 = vmatprep.subr.bf16.mxu0 0
        %8071 = vmatpush2.bf16.msra.mxu0 %v8005
        %8072 = vmatprep.subr.bf16.mxu0 0
        %8073 = vmatpush2.bf16.msra.mxu0 %v8004
        %8074 = vmatprep.subr.bf16.mxu0 0
        %8075 = vmatpush2.bf16.msra.mxu0 %v8003
        %8076 = vmatprep.subr.bf16.mxu0 0
        %8077 = vmatpush2.bf16.msra.mxu0 %v8002
        %8078 = vmatprep.subr.bf16.mxu0 0
        %8079 = vmatpush2.bf16.msra.mxu0 %v8001
        %8080 = vmatprep.subr.bf16.mxu0 0
        %8081 = vmatpush2.bf16.msra.mxu0 %v8000
        %8082 = vmatprep.subr.bf16.mxu0 0
        %8083 = vmatpush2.bf16.msra.mxu0 %v7999
        %8084 = vmatprep.subr.bf16.mxu0 0
        %8085 = vmatpush2.bf16.msra.mxu0 %v7998
        %8086 = vmatprep.mubr.bf16.mxu0 %v7760
        %8087 = vmatmul.mubr.bf16.gmra.mxu0 %v7759
        %v8088 = vpop.f32.mrf.mxu0
        %v8089 = vadd.f32 %v7860, %v8088
        %v8090 = vpop.f32.mrf.mxu0
        %v8091 = vpop.f32.mrf.mxu0
        %v8092 = vadd.f32 %v7860, %v8091
        %v8093 = vpop.f32.mrf.mxu0
        %8094 = vmatprep.mubr.bf16.mxu0 %v7764
        %8095 = vmatmul.mubr.bf16.gmra.mxu0 %v7763
        %v8096 = vpop.f32.mrf.mxu0
        %v8097 = vadd.f32 %v7860, %v8096
        %v8098 = vpop.f32.mrf.mxu0
        %v8099 = vpop.f32.mrf.mxu0
        %v8100 = vadd.f32 %v7860, %v8099
        %v8101 = vpop.f32.mrf.mxu0
        %8102 = vmatprep.mubr.bf16.mxu0 %v7768
        %8103 = vmatmul.mubr.bf16.gmra.mxu0 %v7767
        %v8104 = vpop.f32.mrf.mxu0
        %v8105 = vadd.f32 %v7860, %v8104
        %v8106 = vpop.f32.mrf.mxu0
        %v8107 = vpop.f32.mrf.mxu0
        %v8108 = vadd.f32 %v7860, %v8107
        %v8109 = vpop.f32.mrf.mxu0
        %8110 = vmatprep.mubr.bf16.mxu0 %v7772
        %8111 = vmatmul.mubr.bf16.gmra.mxu0 %v7771
        %v8112 = vpop.f32.mrf.mxu0
        %v8113 = vadd.f32 %v7860, %v8112
        %v8114 = vpop.f32.mrf.mxu0
        %v8115 = vpop.f32.mrf.mxu0
        %v8116 = vadd.f32 %v7860, %v8115
        %v8117 = vpop.f32.mrf.mxu0
        %8118 = vmatprep.mubr.bf16.mxu0 %v7776
        %8119 = vmatmul.mubr.bf16.gmra.mxu0 %v7775
        %v8120 = vpop.f32.mrf.mxu0
        %v8121 = vadd.f32 %v7860, %v8120
        %v8122 = vpop.f32.mrf.mxu0
        %v8123 = vpop.f32.mrf.mxu0
        %v8124 = vadd.f32 %v7860, %v8123
        %v8125 = vpop.f32.mrf.mxu0
        %8126 = vmatprep.mubr.bf16.mxu0 %v7780
        %8127 = vmatmul.mubr.bf16.gmra.mxu0 %v7779
        %v8128 = vpop.f32.mrf.mxu0
        %v8129 = vadd.f32 %v7860, %v8128
        %v8130 = vpop.f32.mrf.mxu0
        %v8131 = vpop.f32.mrf.mxu0
        %v8132 = vadd.f32 %v7860, %v8131
        %v8133 = vpop.f32.mrf.mxu0
        %8134 = vmatprep.mubr.bf16.mxu0 %v7784
        %8135 = vmatmul.mubr.bf16.gmra.mxu0 %v7783
        %v8136 = vpop.f32.mrf.mxu0
        %v8137 = vadd.f32 %v7860, %v8136
        %v8138 = vpop.f32.mrf.mxu0
        %v8139 = vpop.f32.mrf.mxu0
        %v8140 = vadd.f32 %v7860, %v8139
        %v8141 = vpop.f32.mrf.mxu0
        %8142 = vmatprep.mubr.bf16.mxu0 %v7788
        %8143 = vmatmul.mubr.bf16.gmra.mxu0 %v7787
        %v8144 = vpop.f32.mrf.mxu0
        %v8145 = vadd.f32 %v7860, %v8144
        %v8146 = vpop.f32.mrf.mxu0
        %v8147 = vpop.f32.mrf.mxu0
        %v8148 = vadd.f32 %v7860, %v8147
        %v8149 = vpop.f32.mrf.mxu0
        %8150 = vdwg.mxu0
        %8151 = vmatprep.subr.bf16.mxu0 0
        %8152 = vmatpush1.bf16.msra.mxu0 %v8013
        %8153 = vmatprep.subr.bf16.mxu0 0
        %8154 = vmatpush1.bf16.msra.mxu0 %v8012
        %8155 = vmatprep.subr.bf16.mxu0 0
        %8156 = vmatpush1.bf16.msra.mxu0 %v8011
        %8157 = vmatprep.subr.bf16.mxu0 0
        %8158 = vmatpush1.bf16.msra.mxu0 %v8010
        %8159 = vmatprep.subr.bf16.mxu0 0
        %8160 = vmatpush1.bf16.msra.mxu0 %v8009
        %8161 = vmatprep.subr.bf16.mxu0 0
        %8162 = vmatpush1.bf16.msra.mxu0 %v8008
        %8163 = vmatprep.subr.bf16.mxu0 0
        %8164 = vmatpush1.bf16.msra.mxu0 %v8007
        %8165 = vmatprep.subr.bf16.mxu0 0
        %8166 = vmatpush1.bf16.msra.mxu0 %v8006
        %8167 = vmatprep.subr.bf16.mxu0 0
        %8168 = vmatpush2.bf16.msra.mxu0 %v8021
        %8169 = vmatprep.subr.bf16.mxu0 0
        %8170 = vmatpush2.bf16.msra.mxu0 %v8020
        %8171 = vmatprep.subr.bf16.mxu0 0
        %8172 = vmatpush2.bf16.msra.mxu0 %v8019
        %8173 = vmatprep.subr.bf16.mxu0 0
        %8174 = vmatpush2.bf16.msra.mxu0 %v8018
        %8175 = vmatprep.subr.bf16.mxu0 0
        %8176 = vmatpush2.bf16.msra.mxu0 %v8017
        %8177 = vmatprep.subr.bf16.mxu0 0
        %8178 = vmatpush2.bf16.msra.mxu0 %v8016
        %8179 = vmatprep.subr.bf16.mxu0 0
        %8180 = vmatpush2.bf16.msra.mxu0 %v8015
        %8181 = vmatprep.subr.bf16.mxu0 0
        %8182 = vmatpush2.bf16.msra.mxu0 %v8014
        %8183 = vmatprep.mubr.bf16.mxu0 %v7762
        %8184 = vmatmul.mubr.bf16.gmra.mxu0 %v7761
        %v8185 = vpop.f32.mrf.mxu0
        %v8186 = vadd.f32 %v8089, %v8185
        %v8187 = vpop.f32.mrf.mxu0
        %v8188 = vpop.f32.mrf.mxu0
        %v8189 = vadd.f32 %v8092, %v8188
        %v8190 = vpop.f32.mrf.mxu0
        %8191 = vmatprep.mubr.bf16.mxu0 %v7766
        %8192 = vmatmul.mubr.bf16.gmra.mxu0 %v7765
        %v8193 = vpop.f32.mrf.mxu0
        %v8194 = vadd.f32 %v8097, %v8193
        %v8195 = vpop.f32.mrf.mxu0
        %v8196 = vpop.f32.mrf.mxu0
        %v8197 = vadd.f32 %v8100, %v8196
        %v8198 = vpop.f32.mrf.mxu0
        %8199 = vmatprep.mubr.bf16.mxu0 %v7770
        %8200 = vmatmul.mubr.bf16.gmra.mxu0 %v7769
        %v8201 = vpop.f32.mrf.mxu0
        %v8202 = vadd.f32 %v8105, %v8201
        %v8203 = vpop.f32.mrf.mxu0
        %v8204 = vpop.f32.mrf.mxu0
        %v8205 = vadd.f32 %v8108, %v8204
        %v8206 = vpop.f32.mrf.mxu0
        %8207 = vmatprep.mubr.bf16.mxu0 %v7774
        %8208 = vmatmul.mubr.bf16.gmra.mxu0 %v7773
        %v8209 = vpop.f32.mrf.mxu0
        %v8210 = vadd.f32 %v8113, %v8209
        %v8211 = vpop.f32.mrf.mxu0
        %v8212 = vpop.f32.mrf.mxu0
        %v8213 = vadd.f32 %v8116, %v8212
        %v8214 = vpop.f32.mrf.mxu0
        %8215 = vmatprep.mubr.bf16.mxu0 %v7778
        %8216 = vmatmul.mubr.bf16.gmra.mxu0 %v7777
        %v8217 = vpop.f32.mrf.mxu0
        %v8218 = vadd.f32 %v8121, %v8217
        %v8219 = vpop.f32.mrf.mxu0
        %v8220 = vpop.f32.mrf.mxu0
        %v8221 = vadd.f32 %v8124, %v8220
        %v8222 = vpop.f32.mrf.mxu0
        %8223 = vmatprep.mubr.bf16.mxu0 %v7782
        %8224 = vmatmul.mubr.bf16.gmra.mxu0 %v7781
        %v8225 = vpop.f32.mrf.mxu0
        %v8226 = vadd.f32 %v8129, %v8225
        %v8227 = vpop.f32.mrf.mxu0
        %v8228 = vpop.f32.mrf.mxu0
        %v8229 = vadd.f32 %v8132, %v8228
        %v8230 = vpop.f32.mrf.mxu0
        %8231 = vmatprep.mubr.bf16.mxu0 %v7786
        %8232 = vmatmul.mubr.bf16.gmra.mxu0 %v7785
        %v8233 = vpop.f32.mrf.mxu0
        %v8234 = vadd.f32 %v8137, %v8233
        %v8235 = vpop.f32.mrf.mxu0
        %v8236 = vpop.f32.mrf.mxu0
        %v8237 = vadd.f32 %v8140, %v8236
        %v8238 = vpop.f32.mrf.mxu0
        %8239 = vmatprep.mubr.bf16.mxu0 %v7790
        %8240 = vmatmul.mubr.bf16.gmra.mxu0 %v7789
        %v8241 = vpop.f32.mrf.mxu0
        %v8242 = vadd.f32 %v8145, %v8241
        %v8243 = vpop.f32.mrf.mxu0
        %v8244 = vpop.f32.mrf.mxu0
        %v8245 = vadd.f32 %v8148, %v8244
        %v8246 = vpop.f32.mrf.mxu0
        %8247 = vdwg.mxu0
        %v8248 = vtanh.pop %v8186
        %v8249 = vtanh.pop %v8189
        %v8250 = vtanh.pop %v8194
        %v8251 = vtanh.pop %v8197
        %v8252 = vtanh.pop %v8202
        %v8253 = vtanh.pop %v8205
        %v8254 = vtanh.pop %v8210
        %v8255 = vtanh.pop %v8213
        %v8256 = vtanh.pop %v8218
        %v8257 = vtanh.pop %v8221
        %v8258 = vtanh.pop %v8226
        %v8259 = vtanh.pop %v8229
        %v8260 = vtanh.pop %v8234
        %v8261 = vtanh.pop %v8237
        %v8262 = vtanh.pop %v8242
        %v8263 = vtanh.pop %v8245
        %v8264 = vld [vmem:[%s15] sm:$0x1]
        %v8266 = vlaneseq
        %v8267 = vshrl.u32 %v8266, 7
        %v8268 = vsub.s32 0, %v8267
        %v8269 = vrot.slane %v8264, %v8268
        %v8271 = vmul.f32 %v8248, %v8269
        %v8272 = vmul.f32 %v8249, %v8269
        %v8273 = vmul.f32 %v8250, %v8269
        %v8274 = vmul.f32 %v8251, %v8269
        %v8275 = vmul.f32 %v8252, %v8269
        %v8276 = vmul.f32 %v8253, %v8269
        %v8277 = vmul.f32 %v8254, %v8269
        %v8278 = vmul.f32 %v8255, %v8269
        %v8279 = vmul.f32 %v8256, %v8269
        %v8280 = vmul.f32 %v8257, %v8269
        %v8281 = vmul.f32 %v8258, %v8269
        %v8282 = vmul.f32 %v8259, %v8269
        %v8283 = vmul.f32 %v8260, %v8269
        %v8284 = vmul.f32 %v8261, %v8269
        %v8285 = vmul.f32 %v8262, %v8269
        %v8286 = vmul.f32 %v8263, %v8269
        %8287 = vadd.xlane.f32.xlu0 %v8271
        %v8288 = vpop.xlane.xlu0 %8287
        %8289 = vadd.xlane.f32.xlu0 %v8272
        %v8290 = vpop.xlane.xlu0 %8289
        %8291 = vadd.xlane.f32.xlu0 %v8273
        %v8292 = vpop.xlane.xlu0 %8291
        %8293 = vadd.xlane.f32.xlu0 %v8274
        %v8294 = vpop.xlane.xlu0 %8293
        %8295 = vadd.xlane.f32.xlu0 %v8275
        %v8296 = vpop.xlane.xlu0 %8295
        %8297 = vadd.xlane.f32.xlu0 %v8276
        %v8298 = vpop.xlane.xlu0 %8297
        %8299 = vadd.xlane.f32.xlu0 %v8277
        %v8300 = vpop.xlane.xlu0 %8299
        %8301 = vadd.xlane.f32.xlu0 %v8278
        %v8302 = vpop.xlane.xlu0 %8301
        %8303 = vadd.xlane.f32.xlu0 %v8279
        %v8304 = vpop.xlane.xlu0 %8303
        %8305 = vadd.xlane.f32.xlu0 %v8280
        %v8306 = vpop.xlane.xlu0 %8305
        %8307 = vadd.xlane.f32.xlu0 %v8281
        %v8308 = vpop.xlane.xlu0 %8307
        %8309 = vadd.xlane.f32.xlu0 %v8282
        %v8310 = vpop.xlane.xlu0 %8309
        %8311 = vadd.xlane.f32.xlu0 %v8283
        %v8312 = vpop.xlane.xlu0 %8311
        %8313 = vadd.xlane.f32.xlu0 %v8284
        %v8314 = vpop.xlane.xlu0 %8313
        %8315 = vadd.xlane.f32.xlu0 %v8285
        %v8316 = vpop.xlane.xlu0 %8315
        %8317 = vadd.xlane.f32.xlu0 %v8286
        %v8318 = vpop.xlane.xlu0 %8317
        %v8319 = vld [vmem:[#allocation6] sm:$0x1]
        %v8321 = vlaneseq
        %v8322 = vshrl.u32 %v8321, 7
        %v8323 = vsub.s32 0, %v8322
        %v8324 = vrot.slane %v8319, %v8323
        %v8326 = vadd.f32 %v8288, %v8324
        %v8327 = vadd.f32 %v8290, %v8324
        %v8328 = vadd.f32 %v8292, %v8324
        %v8329 = vadd.f32 %v8294, %v8324
        %v8330 = vadd.f32 %v8296, %v8324
        %v8331 = vadd.f32 %v8298, %v8324
        %v8332 = vadd.f32 %v8300, %v8324
        %v8333 = vadd.f32 %v8302, %v8324
        %v8334 = vadd.f32 %v8304, %v8324
        %v8335 = vadd.f32 %v8306, %v8324
        %v8336 = vadd.f32 %v8308, %v8324
        %v8337 = vadd.f32 %v8310, %v8324
        %v8338 = vadd.f32 %v8312, %v8324
        %v8339 = vadd.f32 %v8314, %v8324
        %v8340 = vadd.f32 %v8316, %v8324
        %v8341 = vadd.f32 %v8318, %v8324
        %v8342 = vmul.f32 %v8326, 1.442695
        %v8343 = vpow.pop %v8342
        %v8344 = vmul.f32 %v8327, 1.442695
        %v8345 = vpow.pop %v8344
        %v8346 = vmul.f32 %v8328, 1.442695
        %v8347 = vpow.pop %v8346
        %v8348 = vmul.f32 %v8329, 1.442695
        %v8349 = vpow.pop %v8348
        %v8350 = vmul.f32 %v8330, 1.442695
        %v8351 = vpow.pop %v8350
        %v8352 = vmul.f32 %v8331, 1.442695
        %v8353 = vpow.pop %v8352
        %v8354 = vmul.f32 %v8332, 1.442695
        %v8355 = vpow.pop %v8354
        %v8356 = vmul.f32 %v8333, 1.442695
        %v8357 = vpow.pop %v8356
        %v8358 = vmul.f32 %v8334, 1.442695
        %v8359 = vpow.pop %v8358
        %v8360 = vmul.f32 %v8335, 1.442695
        %v8361 = vpow.pop %v8360
        %v8362 = vmul.f32 %v8336, 1.442695
        %v8363 = vpow.pop %v8362
        %v8364 = vmul.f32 %v8337, 1.442695
        %v8365 = vpow.pop %v8364
        %v8366 = vmul.f32 %v8338, 1.442695
        %v8367 = vpow.pop %v8366
        %v8368 = vmul.f32 %v8339, 1.442695
        %v8369 = vpow.pop %v8368
        %v8370 = vmul.f32 %v8340, 1.442695
        %v8371 = vpow.pop %v8370
        %v8372 = vmul.f32 %v8341, 1.442695
        %v8373 = vpow.pop %v8372
        %v8374 = vld [vmem:[%s657] sm:$0xff]
        %v8375 = vld [vmem:[%s657 + $0x8] sm:$0xff]
        %v8376 = vld [vmem:[%s657 + $0x10] sm:$0xff]
        %v8377 = vld [vmem:[%s657 + $0x18] sm:$0xff]
        %v8378 = vld [vmem:[%s657 + $0x20] sm:$0xff]
        %v8379 = vld [vmem:[%s657 + $0x28] sm:$0xff]
        %v8380 = vld [vmem:[%s657 + $0x30] sm:$0xff]
        %v8381 = vld [vmem:[%s657 + $0x38] sm:$0xff]
        %v8382 = vld [vmem:[%s657 + $0x40] sm:$0xff]
        %v8383 = vld [vmem:[%s657 + $0x48] sm:$0xff]
        %v8384 = vld [vmem:[%s657 + $0x50] sm:$0xff]
        %v8385 = vld [vmem:[%s657 + $0x58] sm:$0xff]
        %v8386 = vld [vmem:[%s657 + $0x60] sm:$0xff]
        %v8387 = vld [vmem:[%s657 + $0x68] sm:$0xff]
        %v8388 = vld [vmem:[%s657 + $0x70] sm:$0xff]
        %v8389 = vld [vmem:[%s657 + $0x78] sm:$0xff]
        %v8390 = vmul.f32 %v8343, %v8374
        %v8391 = vmul.f32 %v8345, %v8375
        %v8392 = vmul.f32 %v8347, %v8376
        %v8393 = vmul.f32 %v8349, %v8377
        %v8394 = vmul.f32 %v8351, %v8378
        %v8395 = vmul.f32 %v8353, %v8379
        %v8396 = vmul.f32 %v8355, %v8380
        %v8397 = vmul.f32 %v8357, %v8381
        %v8398 = vmul.f32 %v8359, %v8382
        %v8399 = vmul.f32 %v8361, %v8383
        %v8400 = vmul.f32 %v8363, %v8384
        %v8401 = vmul.f32 %v8365, %v8385
        %v8402 = vmul.f32 %v8367, %v8386
        %v8403 = vmul.f32 %v8369, %v8387
        %v8404 = vmul.f32 %v8371, %v8388
        %v8405 = vmul.f32 %v8373, %v8389
        %v8406 = vld [vmem:[%s4] sm:$0xff]
        %v8407 = vld [vmem:[%s4 + $0x8] sm:$0xff]
        %8409 = vset.pattern.permute.xlu0 0
        %8410 = vperm.xlu0 %8409, %v8390
        %v8411 = vpop.permute.xlu0 %8410
        %8414 = vset.pattern.permute.xlu0 0
        %8415 = vperm.xlu0 %8414, %v8391
        %v8416 = vpop.permute.xlu0 %8415
        %8419 = vset.pattern.permute.xlu0 0
        %8420 = vperm.xlu0 %8419, %v8392
        %v8421 = vpop.permute.xlu0 %8420
        %8424 = vset.pattern.permute.xlu0 0
        %8425 = vperm.xlu0 %8424, %v8393
        %v8426 = vpop.permute.xlu0 %8425
        %8429 = vset.pattern.permute.xlu0 0
        %8430 = vperm.xlu0 %8429, %v8394
        %v8431 = vpop.permute.xlu0 %8430
        %8434 = vset.pattern.permute.xlu0 0
        %8435 = vperm.xlu0 %8434, %v8395
        %v8436 = vpop.permute.xlu0 %8435
        %8439 = vset.pattern.permute.xlu0 0
        %8440 = vperm.xlu0 %8439, %v8396
        %v8441 = vpop.permute.xlu0 %8440
        %8444 = vset.pattern.permute.xlu0 0
        %8445 = vperm.xlu0 %8444, %v8397
        %v8446 = vpop.permute.xlu0 %8445
        %8449 = vset.pattern.permute.xlu0 0
        %8450 = vperm.xlu0 %8449, %v8398
        %v8451 = vpop.permute.xlu0 %8450
        %8454 = vset.pattern.permute.xlu0 0
        %8455 = vperm.xlu0 %8454, %v8399
        %v8456 = vpop.permute.xlu0 %8455
        %8459 = vset.pattern.permute.xlu0 0
        %8460 = vperm.xlu0 %8459, %v8400
        %v8461 = vpop.permute.xlu0 %8460
        %8464 = vset.pattern.permute.xlu0 0
        %8465 = vperm.xlu0 %8464, %v8401
        %v8466 = vpop.permute.xlu0 %8465
        %8469 = vset.pattern.permute.xlu0 0
        %8470 = vperm.xlu0 %8469, %v8402
        %v8471 = vpop.permute.xlu0 %8470
        %8474 = vset.pattern.permute.xlu0 0
        %8475 = vperm.xlu0 %8474, %v8403
        %v8476 = vpop.permute.xlu0 %8475
        %8479 = vset.pattern.permute.xlu0 0
        %8480 = vperm.xlu0 %8479, %v8404
        %v8481 = vpop.permute.xlu0 %8480
        %8484 = vset.pattern.permute.xlu0 0
        %8485 = vperm.xlu0 %8484, %v8405
        %v8486 = vpop.permute.xlu0 %8485
        %v8488 = vmul.f32 %v8411, %v7695
        %v8489 = vmul.f32 %v8411, %v7696
        %v8490 = vmul.f32 %v8411, %v7697
        %v8491 = vmul.f32 %v8411, %v7698
        %v8492 = vmul.f32 %v8416, %v7699
        %v8493 = vmul.f32 %v8416, %v7700
        %v8494 = vmul.f32 %v8416, %v7701
        %v8495 = vmul.f32 %v8416, %v7702
        %v8496 = vmul.f32 %v8421, %v7703
        %v8497 = vmul.f32 %v8421, %v7704
        %v8498 = vmul.f32 %v8421, %v7705
        %v8499 = vmul.f32 %v8421, %v7706
        %v8500 = vmul.f32 %v8426, %v7707
        %v8501 = vmul.f32 %v8426, %v7708
        %v8502 = vmul.f32 %v8426, %v7709
        %v8503 = vmul.f32 %v8426, %v7710
        %v8504 = vmul.f32 %v8431, %v7711
        %v8505 = vmul.f32 %v8431, %v7712
        %v8506 = vmul.f32 %v8431, %v7713
        %v8507 = vmul.f32 %v8431, %v7714
        %v8508 = vmul.f32 %v8436, %v7715
        %v8509 = vmul.f32 %v8436, %v7716
        %v8510 = vmul.f32 %v8436, %v7717
        %v8511 = vmul.f32 %v8436, %v7718
        %v8512 = vmul.f32 %v8441, %v7719
        %v8513 = vmul.f32 %v8441, %v7720
        %v8514 = vmul.f32 %v8441, %v7721
        %v8515 = vmul.f32 %v8441, %v7722
        %v8516 = vmul.f32 %v8446, %v7723
        %v8517 = vmul.f32 %v8446, %v7724
        %v8518 = vmul.f32 %v8446, %v7725
        %v8519 = vmul.f32 %v8446, %v7726
        %v8520 = vmul.f32 %v8451, %v7727
        %v8521 = vmul.f32 %v8451, %v7728
        %v8522 = vmul.f32 %v8451, %v7729
        %v8523 = vmul.f32 %v8451, %v7730
        %v8524 = vmul.f32 %v8456, %v7731
        %v8525 = vmul.f32 %v8456, %v7732
        %v8526 = vmul.f32 %v8456, %v7733
        %v8527 = vmul.f32 %v8456, %v7734
        %v8528 = vmul.f32 %v8461, %v7735
        %v8529 = vmul.f32 %v8461, %v7736
        %v8530 = vmul.f32 %v8461, %v7737
        %v8531 = vmul.f32 %v8461, %v7738
        %v8532 = vmul.f32 %v8466, %v7739
        %v8533 = vmul.f32 %v8466, %v7740
        %v8534 = vmul.f32 %v8466, %v7741
        %v8535 = vmul.f32 %v8466, %v7742
        %v8536 = vmul.f32 %v8471, %v7743
        %v8537 = vmul.f32 %v8471, %v7744
        %v8538 = vmul.f32 %v8471, %v7745
        %v8539 = vmul.f32 %v8471, %v7746
        %v8540 = vmul.f32 %v8476, %v7747
        %v8541 = vmul.f32 %v8476, %v7748
        %v8542 = vmul.f32 %v8476, %v7749
        %v8543 = vmul.f32 %v8476, %v7750
        %v8544 = vmul.f32 %v8481, %v7751
        %v8545 = vmul.f32 %v8481, %v7752
        %v8546 = vmul.f32 %v8481, %v7753
        %v8547 = vmul.f32 %v8481, %v7754
        %v8548 = vmul.f32 %v8486, %v7755
        %v8549 = vmul.f32 %v8486, %v7756
        %v8550 = vmul.f32 %v8486, %v7757
        %v8551 = vmul.f32 %v8486, %v7758
        %8552 = vmatprep.subr.mxu0 %v8549
        %8553 = vmatpush1.msra.mxu0 %v8548
        %8554 = vmatprep.subr.mxu0 %v8545
        %8555 = vmatpush1.msra.mxu0 %v8544
        %8556 = vmatprep.subr.mxu0 %v8541
        %8557 = vmatpush1.msra.mxu0 %v8540
        %8558 = vmatprep.subr.mxu0 %v8537
        %8559 = vmatpush1.msra.mxu0 %v8536
        %8560 = vmatprep.subr.mxu0 %v8533
        %8561 = vmatpush1.msra.mxu0 %v8532
        %8562 = vmatprep.subr.mxu0 %v8529
        %8563 = vmatpush1.msra.mxu0 %v8528
        %8564 = vmatprep.subr.mxu0 %v8525
        %8565 = vmatpush1.msra.mxu0 %v8524
        %8566 = vmatprep.subr.mxu0 %v8521
        %8567 = vmatpush1.msra.mxu0 %v8520
        %8568 = vmatprep.subr.mxu0 %v8517
        %8569 = vmatpush1.msra.mxu0 %v8516
        %8570 = vmatprep.subr.mxu0 %v8513
        %8571 = vmatpush1.msra.mxu0 %v8512
        %8572 = vmatprep.subr.mxu0 %v8509
        %8573 = vmatpush1.msra.mxu0 %v8508
        %8574 = vmatprep.subr.mxu0 %v8505
        %8575 = vmatpush1.msra.mxu0 %v8504
        %8576 = vmatprep.subr.mxu0 %v8501
        %8577 = vmatpush1.msra.mxu0 %v8500
        %8578 = vmatprep.subr.mxu0 %v8497
        %8579 = vmatpush1.msra.mxu0 %v8496
        %8580 = vmatprep.subr.mxu0 %v8493
        %8581 = vmatpush1.msra.mxu0 %v8492
        %8582 = vmatprep.subr.mxu0 %v8489
        %8583 = vmatpush1.msra.mxu0 %v8488
        %8584 = vmatprep.subr.mxu0 0.0
        %8585 = vmatpush2.msra.mxu0 0.0
        %8586 = vmatprep.subr.mxu0 0.0
        %8587 = vmatpush2.msra.mxu0 0.0
        %8588 = vmatprep.subr.mxu0 0.0
        %8589 = vmatpush2.msra.mxu0 0.0
        %8590 = vmatprep.subr.mxu0 0.0
        %8591 = vmatpush2.msra.mxu0 0.0
        %8592 = vmatprep.subr.mxu0 0.0
        %8593 = vmatpush2.msra.mxu0 0.0
        %8594 = vmatprep.subr.mxu0 0.0
        %8595 = vmatpush2.msra.mxu0 0.0
        %8596 = vmatprep.subr.mxu0 0.0
        %8597 = vmatpush2.msra.mxu0 0.0
        %8598 = vmatprep.subr.mxu0 0.0
        %8599 = vmatpush2.msra.mxu0 0.0
        %8600 = vmatprep.subr.mxu0 0.0
        %8601 = vmatpush2.msra.mxu0 0.0
        %8602 = vmatprep.subr.mxu0 0.0
        %8603 = vmatpush2.msra.mxu0 0.0
        %8604 = vmatprep.subr.mxu0 0.0
        %8605 = vmatpush2.msra.mxu0 0.0
        %8606 = vmatprep.subr.mxu0 0.0
        %8607 = vmatpush2.msra.mxu0 0.0
        %8608 = vmatprep.subr.mxu0 0.0
        %8609 = vmatpush2.msra.mxu0 0.0
        %8610 = vmatprep.subr.mxu0 0.0
        %8611 = vmatpush2.msra.mxu0 0.0
        %8612 = vmatprep.subr.mxu0 0.0
        %8613 = vmatpush2.msra.mxu0 0.0
        %8614 = vmatprep.subr.mxu0 0.0
        %8615 = vmatpush2.msra.mxu0 0.0
        %8616 = vmatprep.mubr.f32.mxu0 0.0
        %8617 = vmatmul.mubr.f32.gmra.mxu0 %v8406
        %v8618 = vpop.f32.mrf.mxu0
        %v8619 = vadd.f32 0.0, %v8618
        %v8620 = vpop.f32.mrf.mxu0
        %v8621 = vadd.f32 0.0, %v8620
        %8622 = vmatprep.mubr.f32.mxu0 0.0
        %8623 = vmatmul.mubr.f32.gmra.mxu0 %v8407
        %v8624 = vpop.f32.mrf.mxu0
        %v8625 = vadd.f32 0.0, %v8624
        %v8626 = vpop.f32.mrf.mxu0
        %v8627 = vadd.f32 0.0, %v8626
        %8628 = vdwg.mxu0
        %8629 = vmatprep.subr.mxu0 %v8551
        %8630 = vmatpush1.msra.mxu0 %v8550
        %8631 = vmatprep.subr.mxu0 %v8547
        %8632 = vmatpush1.msra.mxu0 %v8546
        %8633 = vmatprep.subr.mxu0 %v8543
        %8634 = vmatpush1.msra.mxu0 %v8542
        %8635 = vmatprep.subr.mxu0 %v8539
        %8636 = vmatpush1.msra.mxu0 %v8538
        %8637 = vmatprep.subr.mxu0 %v8535
        %8638 = vmatpush1.msra.mxu0 %v8534
        %8639 = vmatprep.subr.mxu0 %v8531
        %8640 = vmatpush1.msra.mxu0 %v8530
        %8641 = vmatprep.subr.mxu0 %v8527
        %8642 = vmatpush1.msra.mxu0 %v8526
        %8643 = vmatprep.subr.mxu0 %v8523
        %8644 = vmatpush1.msra.mxu0 %v8522
        %8645 = vmatprep.subr.mxu0 %v8519
        %8646 = vmatpush1.msra.mxu0 %v8518
        %8647 = vmatprep.subr.mxu0 %v8515
        %8648 = vmatpush1.msra.mxu0 %v8514
        %8649 = vmatprep.subr.mxu0 %v8511
        %8650 = vmatpush1.msra.mxu0 %v8510
        %8651 = vmatprep.subr.mxu0 %v8507
        %8652 = vmatpush1.msra.mxu0 %v8506
        %8653 = vmatprep.subr.mxu0 %v8503
        %8654 = vmatpush1.msra.mxu0 %v8502
        %8655 = vmatprep.subr.mxu0 %v8499
        %8656 = vmatpush1.msra.mxu0 %v8498
        %8657 = vmatprep.subr.mxu0 %v8495
        %8658 = vmatpush1.msra.mxu0 %v8494
        %8659 = vmatprep.subr.mxu0 %v8491
        %8660 = vmatpush1.msra.mxu0 %v8490
        %8661 = vmatprep.subr.mxu0 0.0
        %8662 = vmatpush2.msra.mxu0 0.0
        %8663 = vmatprep.subr.mxu0 0.0
        %8664 = vmatpush2.msra.mxu0 0.0
        %8665 = vmatprep.subr.mxu0 0.0
        %8666 = vmatpush2.msra.mxu0 0.0
        %8667 = vmatprep.subr.mxu0 0.0
        %8668 = vmatpush2.msra.mxu0 0.0
        %8669 = vmatprep.subr.mxu0 0.0
        %8670 = vmatpush2.msra.mxu0 0.0
        %8671 = vmatprep.subr.mxu0 0.0
        %8672 = vmatpush2.msra.mxu0 0.0
        %8673 = vmatprep.subr.mxu0 0.0
        %8674 = vmatpush2.msra.mxu0 0.0
        %8675 = vmatprep.subr.mxu0 0.0
        %8676 = vmatpush2.msra.mxu0 0.0
        %8677 = vmatprep.subr.mxu0 0.0
        %8678 = vmatpush2.msra.mxu0 0.0
        %8679 = vmatprep.subr.mxu0 0.0
        %8680 = vmatpush2.msra.mxu0 0.0
        %8681 = vmatprep.subr.mxu0 0.0
        %8682 = vmatpush2.msra.mxu0 0.0
        %8683 = vmatprep.subr.mxu0 0.0
        %8684 = vmatpush2.msra.mxu0 0.0
        %8685 = vmatprep.subr.mxu0 0.0
        %8686 = vmatpush2.msra.mxu0 0.0
        %8687 = vmatprep.subr.mxu0 0.0
        %8688 = vmatpush2.msra.mxu0 0.0
        %8689 = vmatprep.subr.mxu0 0.0
        %8690 = vmatpush2.msra.mxu0 0.0
        %8691 = vmatprep.subr.mxu0 0.0
        %8692 = vmatpush2.msra.mxu0 0.0
        %8693 = vmatprep.mubr.f32.mxu0 0.0
        %8694 = vmatmul.mubr.f32.gmra.mxu0 %v8406
        %v8695 = vpop.f32.mrf.mxu0
        %v8696 = vadd.f32 0.0, %v8695
        %v8697 = vpop.f32.mrf.mxu0
        %v8698 = vadd.f32 0.0, %v8697
        %8699 = vmatprep.mubr.f32.mxu0 0.0
        %8700 = vmatmul.mubr.f32.gmra.mxu0 %v8407
        %v8701 = vpop.f32.mrf.mxu0
        %v8702 = vadd.f32 0.0, %v8701
        %v8703 = vpop.f32.mrf.mxu0
        %v8704 = vadd.f32 0.0, %v8703
        %8705 = vdwg.mxu0
        %8706 = vmatprep.subr.mxu0 0.0
        %8707 = vmatpush1.msra.mxu0 %v8405
        %8708 = vmatprep.subr.mxu0 0.0
        %8709 = vmatpush1.msra.mxu0 %v8404
        %8710 = vmatprep.subr.mxu0 0.0
        %8711 = vmatpush1.msra.mxu0 %v8403
        %8712 = vmatprep.subr.mxu0 0.0
        %8713 = vmatpush1.msra.mxu0 %v8402
        %8714 = vmatprep.subr.mxu0 0.0
        %8715 = vmatpush1.msra.mxu0 %v8401
        %8716 = vmatprep.subr.mxu0 0.0
        %8717 = vmatpush1.msra.mxu0 %v8400
        %8718 = vmatprep.subr.mxu0 0.0
        %8719 = vmatpush1.msra.mxu0 %v8399
        %8720 = vmatprep.subr.mxu0 0.0
        %8721 = vmatpush1.msra.mxu0 %v8398
        %8722 = vmatprep.subr.mxu0 0.0
        %8723 = vmatpush1.msra.mxu0 %v8397
        %8724 = vmatprep.subr.mxu0 0.0
        %8725 = vmatpush1.msra.mxu0 %v8396
        %8726 = vmatprep.subr.mxu0 0.0
        %8727 = vmatpush1.msra.mxu0 %v8395
        %8728 = vmatprep.subr.mxu0 0.0
        %8729 = vmatpush1.msra.mxu0 %v8394
        %8730 = vmatprep.subr.mxu0 0.0
        %8731 = vmatpush1.msra.mxu0 %v8393
        %8732 = vmatprep.subr.mxu0 0.0
        %8733 = vmatpush1.msra.mxu0 %v8392
        %8734 = vmatprep.subr.mxu0 0.0
        %8735 = vmatpush1.msra.mxu0 %v8391
        %8736 = vmatprep.subr.mxu0 0.0
        %8737 = vmatpush1.msra.mxu0 %v8390
        %8738 = vmatprep.subr.mxu0 0.0
        %8739 = vmatpush2.msra.mxu0 0.0
        %8740 = vmatprep.subr.mxu0 0.0
        %8741 = vmatpush2.msra.mxu0 0.0
        %8742 = vmatprep.subr.mxu0 0.0
        %8743 = vmatpush2.msra.mxu0 0.0
        %8744 = vmatprep.subr.mxu0 0.0
        %8745 = vmatpush2.msra.mxu0 0.0
        %8746 = vmatprep.subr.mxu0 0.0
        %8747 = vmatpush2.msra.mxu0 0.0
        %8748 = vmatprep.subr.mxu0 0.0
        %8749 = vmatpush2.msra.mxu0 0.0
        %8750 = vmatprep.subr.mxu0 0.0
        %8751 = vmatpush2.msra.mxu0 0.0
        %8752 = vmatprep.subr.mxu0 0.0
        %8753 = vmatpush2.msra.mxu0 0.0
        %8754 = vmatprep.subr.mxu0 0.0
        %8755 = vmatpush2.msra.mxu0 0.0
        %8756 = vmatprep.subr.mxu0 0.0
        %8757 = vmatpush2.msra.mxu0 0.0
        %8758 = vmatprep.subr.mxu0 0.0
        %8759 = vmatpush2.msra.mxu0 0.0
        %8760 = vmatprep.subr.mxu0 0.0
        %8761 = vmatpush2.msra.mxu0 0.0
        %8762 = vmatprep.subr.mxu0 0.0
        %8763 = vmatpush2.msra.mxu0 0.0
        %8764 = vmatprep.subr.mxu0 0.0
        %8765 = vmatpush2.msra.mxu0 0.0
        %8766 = vmatprep.subr.mxu0 0.0
        %8767 = vmatpush2.msra.mxu0 0.0
        %8768 = vmatprep.subr.mxu0 0.0
        %8769 = vmatpush2.msra.mxu0 0.0
        %8770 = vmatprep.mubr.f32.mxu0 0.0
        %8771 = vmatmul.mubr.f32.gmra.mxu0 %v8406
        %v8772 = vpop.f32.mrf.mxu0
        %v8773 = vadd.f32 1e-08, %v8772
        %v8774 = vpop.f32.mrf.mxu0
        %8775 = vmatprep.mubr.f32.mxu0 0.0
        %8776 = vmatmul.mubr.f32.gmra.mxu0 %v8407
        %v8777 = vpop.f32.mrf.mxu0
        %v8778 = vadd.f32 1e-08, %v8777
        %v8779 = vpop.f32.mrf.mxu0
        %8780 = vdwg.mxu0
        %v8781 = vrcp.pop %v8773
        %v8782 = vrcp.pop %v8778
        %8784 = vset.pattern.permute.xlu0 0
        %8785 = vperm.xlu0 %8784, %v8781
        %v8786 = vpop.permute.xlu0 %8785
        %8789 = vset.pattern.permute.xlu0 0
        %8790 = vperm.xlu0 %8789, %v8782
        %v8791 = vpop.permute.xlu0 %8790
        %v8793 = vmul.f32 %v8619, %v8786
        %v8794 = vmul.f32 %v8621, %v8786
        %v8795 = vmul.f32 %v8696, %v8786
        %v8796 = vmul.f32 %v8698, %v8786
        %v8797 = vmul.f32 %v8625, %v8791
        %v8798 = vmul.f32 %v8627, %v8791
        %v8799 = vmul.f32 %v8702, %v8791
        %v8800 = vmul.f32 %v8704, %v8791
        %v8801 = vadd.f32 %v8793, %v8794
        %v8802 = vadd.f32 %v8801, %v8795
        %v8803 = vadd.f32 %v8802, %v8796
        %8804 = vadd.xlane.f32.xlu0 %v8803
        %v8805 = vpop.xlane.xlu0 %8804
        %v8806 = vadd.f32 %v8797, %v8798
        %v8807 = vadd.f32 %v8806, %v8799
        %v8808 = vadd.f32 %v8807, %v8800
        %8809 = vadd.xlane.f32.xlu0 %v8808
        %v8810 = vpop.xlane.xlu0 %8809
        %v8811 = vmul.f32 %v8793, %v8793
        %v8812 = vmul.f32 %v8794, %v8794
        %v8813 = vmul.f32 %v8795, %v8795
        %v8814 = vmul.f32 %v8796, %v8796
        %v8815 = vmul.f32 %v8797, %v8797
        %v8816 = vmul.f32 %v8798, %v8798
        %v8817 = vmul.f32 %v8799, %v8799
        %v8818 = vmul.f32 %v8800, %v8800
        %v8819 = vadd.f32 %v8811, %v8812
        %v8820 = vadd.f32 %v8819, %v8813
        %v8821 = vadd.f32 %v8820, %v8814
        %8822 = vadd.xlane.f32.xlu0 %v8821
        %v8823 = vpop.xlane.xlu0 %8822
        %v8824 = vadd.f32 %v8815, %v8816
        %v8825 = vadd.f32 %v8824, %v8817
        %v8826 = vadd.f32 %v8825, %v8818
        %8827 = vadd.xlane.f32.xlu0 %v8826
        %v8828 = vpop.xlane.xlu0 %8827
        %v8829 = vmul.f32 %v8805, 0.0025
        %v8830 = vmul.f32 %v8810, 0.0025
        %v8831 = vmul.f32 %v8823, 0.0025
        %v8832 = vmul.f32 %v8828, 0.0025
        %v8833 = vmul.f32 %v8829, %v8829
        %v8834 = vmul.f32 %v8830, %v8830
        %v8835 = vsub.f32 %v8831, %v8833
        %v8836 = vsub.f32 %v8832, %v8834
        %v8837 = vmax.f32 %v8835, 0.0
        %v8838 = vmax.f32 %v8836, 0.0
        %v8839 = vsub.f32 %v8793, %v8829
        %v8840 = vsub.f32 %v8794, %v8829
        %v8841 = vsub.f32 %v8795, %v8829
        %v8842 = vsub.f32 %v8796, %v8829
        %v8843 = vsub.f32 %v8797, %v8830
        %v8844 = vsub.f32 %v8798, %v8830
        %v8845 = vsub.f32 %v8799, %v8830
        %v8846 = vsub.f32 %v8800, %v8830
        %v8847 = vadd.f32 %v8837, 1e-05
        %v8848 = vadd.f32 %v8838, 1e-05
        %v8849 = vrsqrt.pop %v8847
        %v8850 = vrsqrt.pop %v8848
        %v8851 = vmul.f32 %v8839, %v8849
        %v8852 = vmul.f32 %v8840, %v8849
        %v8853 = vmul.f32 %v8841, %v8849
        %v8854 = vmul.f32 %v8842, %v8849
        %v8855 = vmul.f32 %v8843, %v8850
        %v8856 = vmul.f32 %v8844, %v8850
        %v8857 = vmul.f32 %v8845, %v8850
        %v8858 = vmul.f32 %v8846, %v8850
        %v8859 = vld [vmem:[%s17] sm:$0xf]
        %v8861 = vlaneseq
        %v8862 = vshrl.u32 %v8861, 7
        %v8863 = vsub.s32 0, %v8862
        %v8864 = vrot.slane %v8859, %v8863
        %v8865 = vlaneseq
        %v8866 = vshrl.u32 %v8865, 7
        %v8867 = vsub.s32 1, %v8866
        %v8868 = vrot.slane %v8859, %v8867
        %v8869 = vlaneseq
        %v8870 = vshrl.u32 %v8869, 7
        %v8871 = vsub.s32 2, %v8870
        %v8872 = vrot.slane %v8859, %v8871
        %v8873 = vlaneseq
        %v8874 = vshrl.u32 %v8873, 7
        %v8875 = vsub.s32 3, %v8874
        %v8876 = vrot.slane %v8859, %v8875
        %v8881 = vmul.f32 %v8851, %v8864
        %v8882 = vmul.f32 %v8852, %v8868
        %v8883 = vmul.f32 %v8853, %v8872
        %v8884 = vmul.f32 %v8854, %v8876
        %v8885 = vmul.f32 %v8855, %v8864
        %v8886 = vmul.f32 %v8856, %v8868
        %v8887 = vmul.f32 %v8857, %v8872
        %v8888 = vmul.f32 %v8858, %v8876
        %v8889 = vld [vmem:[%s18] sm:$0xf]
        %v8891 = vlaneseq
        %v8892 = vshrl.u32 %v8891, 7
        %v8893 = vsub.s32 0, %v8892
        %v8894 = vrot.slane %v8889, %v8893
        %v8895 = vlaneseq
        %v8896 = vshrl.u32 %v8895, 7
        %v8897 = vsub.s32 1, %v8896
        %v8898 = vrot.slane %v8889, %v8897
        %v8899 = vlaneseq
        %v8900 = vshrl.u32 %v8899, 7
        %v8901 = vsub.s32 2, %v8900
        %v8902 = vrot.slane %v8889, %v8901
        %v8903 = vlaneseq
        %v8904 = vshrl.u32 %v8903, 7
        %v8905 = vsub.s32 3, %v8904
        %v8906 = vrot.slane %v8889, %v8905
        %v8911 = vadd.f32 %v8881, %v8894
        %v8912 = vadd.f32 %v8882, %v8898
        %v8913 = vadd.f32 %v8883, %v8902
        %v8914 = vadd.f32 %v8884, %v8906
        %v8915 = vadd.f32 %v8885, %v8894
        %v8916 = vadd.f32 %v8886, %v8898
        %v8917 = vadd.f32 %v8887, %v8902
        %v8918 = vadd.f32 %v8888, %v8906
        %8919 = vst [vmem:[%s642] sm:$0xff] %v8911
        %8920 = vst [vmem:[%s642 + $0x8] sm:$0xff] %v8912
        %8921 = vst [vmem:[%s642 + $0x10] sm:$0xff] %v8913
        %8922 = vst [vmem:[%s642 + $0x18] sm:$0xff] %v8914
        %8923 = vst [vmem:[%s642 + $0x20] sm:$0xff] %v8915
        %8924 = vst [vmem:[%s642 + $0x28] sm:$0xff] %v8916
        %8925 = vst [vmem:[%s642 + $0x30] sm:$0xff] %v8917
        %8926 = vst [vmem:[%s642 + $0x38] sm:$0xff] %v8918
        %s8927 = sand.u32 %s458, 1
        %s8928 = scalar_lea.sflag [#allocation9], %s8927
        %s8929 = sand.u32 %s458, 1
        %s8930 = smul.addr %s8929, 64
        %s8931 = scalar_lea.vmem [#allocation10], %s8930
        // Predicated region
        $region101: #{tpu_custom_call.1} parent=95 // pred_check
          %p8932 = pneg %p468
        $region102: #{tpu_custom_call.1} parent=95 // pred_check_branch
          %8934 = sbr.rel (%p8932) target = $region104
        $region103: #{tpu_custom_call.1} parent=95 // pred_region
          %s8935 = smul.u32 2, %s36
          %s8937 = ssub.s32 1024, 1024
          %8938 = vsyncadd %s8928, %s8937
          %s8939 = smul.addr %s8935, 4
          %s8940 = smul.addr %s8939, 128
          %s8941 = scalar_lea.hbm %s19, %s8940
          %s8942 = sshll.u32 %s8931, 4
          %s8943 = int_to_ptr.vmem [resolvable:$true] %s8942
          %8948 = dma.vmem_to_hbm [thread:$0]  %s8943, 1024, %s8941, %s8928, 512, 512, 32
        $region104: #{tpu_custom_call.1} parent=95 // pred_fallthru
          _
      $region96: #{tpu_custom_call.1} parent=5 // pred_fallthru
        _
      %p8949 = scmp.le.s32.totalorder 2, %s31
      // Predicated region
      $region105: #{tpu_custom_call.1} parent=5 // pred_check
        %p8950 = pneg %p8949
      $region106: #{tpu_custom_call.1} parent=5 // pred_check_branch
        %8952 = sbr.rel (%p8950) target = $region108
      $region107: #{tpu_custom_call.1} parent=5 // pred_region
        %s8953 = ssub.s32 %s31, 2
        // Predicated region
        $region109: #{tpu_custom_call.1} parent=107 // pred_check
          %p8954 = pneg %p474
        $region110: #{tpu_custom_call.1} parent=107 // pred_check_branch
          %8956 = sbr.rel (%p8954) target = $region112
        $region111: #{tpu_custom_call.1} parent=107 // pred_region
          %s8957 = sand.u32 %s459, 1
          %s8958 = scalar_lea.sflag [#allocation9], %s8957
          %s8959 = sand.u32 %s459, 1
          %s8960 = smul.addr %s8959, 64
          %s8961 = scalar_lea.vmem [#allocation10], %s8960
          %8962 = dma.done %s8958, 1024
        $region112: #{tpu_custom_call.1} parent=107 // pred_fallthru
          _
      $region108: #{tpu_custom_call.1} parent=5 // pred_fallthru
        _
    $region6: #{tpu_custom_call.1} parent=1 // loop_footer
      %s35 = sadd.s32 1, %s31
    $region7: #{tpu_custom_call.1} parent=1 // loop_footer_branch
      %30 = sbr.rel target = $region3
    $region8: #{tpu_custom_call.1} parent=1 // loop_exit
      _
    %8963 = vsyncpa [#allocation8], 1
    %s8964 = scalar_lea.sflag [#allocation8], 1
    %8965 = vsyncpa %s8964, 1
    %8966 = vsyncpa [#allocation9], 1
    %s8967 = scalar_lea.sflag [#allocation9], 1
    %8968 = vsyncpa %s8967, 1

</llo_original>
